<compile_context>
chip_gen: v6e
topology: v6e:2x2x1
jax: 0.10.0
libtpu: 0.0.40
codegen_flags: <defaults>
</compile_context>

<pallas_src>
import numpy as np
import jax
import jax.numpy as jnp
from jax import lax
from jax.experimental import pallas as pl
from jax.experimental.pallas import tpu as pltpu

# ---------------- configuration (small, consistent with the module) ----------------
B       = 8          # batch (>= 8 fills all MXU sublanes per the perf review)
T_ENC   = 8          # encoder timesteps
E       = 32         # in_features (encoder embedding dim)
MEL     = 4          # mel channels (inputs_dim)
R       = 2          # reduction factor r
MELR    = MEL * R
T_MEL   = 8          # teacher-forced mel frames (divisible by R)
T_STEPS = T_MEL // R
H       = 128        # attention / decoder LSTM dim (module: 1024)
P       = 64         # prenet dim                   (module: 256)
A       = 128        # attention dim                (module: 128)
NF      = 32         # location attention filters   (module: 32)
K       = 31         # location conv kernel size    (module: 31)
PAD     = (K - 1) // 2

EP = 128             # context / encoder dim padded to one full lane tile
PP = 128             # prenet output padded to one full lane tile

NB = 1               # batch grid blocks ("parallel").  On v7x use NB=2 with a
                     # larger batch (BB multiple of 8) to shard across both TCs.
BB = B // NB

OUT_W     = 128      # packed lane-dense output width
GATE_OFF  = MELR     # gate logit lane
ALIGN_OFF = 16       # alignment lanes [16, 16 + T_ENC)


# ---------------- parameters (deterministic, in (in, out) layout) ----------------
def init_params(key):
    ks = jax.random.split(key, 21)

    def w(k, shape, fan_in):
        return (1.0 / np.sqrt(fan_in)) * jax.random.normal(k, shape, jnp.float32)

    return {
        'go_frame':     w(ks[0],  (1, MELR), MELR),
        'att_rnn_init': w(ks[1],  (1, H), H),
        'dec_rnn_init': w(ks[2],  (1, H), H),
        'wp1':          w(ks[3],  (MELR, P), MELR),
        'wp2':          w(ks[4],  (P, P), P),
        'wiha':         w(ks[5],  (P + E, 4 * H), P + E),
        'whha':         w(ks[6],  (H, 4 * H), H),
        'ba':           w(ks[7],  (1, 4 * H), H),
        'wq':           w(ks[8],  (H, A), H),
        'win':          w(ks[9],  (E, A), E),
        'wconv':        w(ks[10], (NF, 2, K), 2 * K),
        'wld':          w(ks[11], (NF, A), NF),
        'wv':           w(ks[12], (1, A), A),
        'bv':           w(ks[13], (1, 1), 1),
        'wihd':         w(ks[14], (H + E, 4 * H), H + E),
        'whhd':         w(ks[15], (H, 4 * H), H),
        'bd':           w(ks[16], (1, 4 * H), H),
        'wproj':        w(ks[17], (H + E, MELR), H + E),
        'bproj':        w(ks[18], (1, MELR), 1),
        'wstop':        w(ks[19], (1, H + MELR), H + MELR),
        'bstop':        w(ks[20], (1, 1), 1),
    }


# ---------------- weight folding (pure parameter setup, no data) ----------------
def build_location_matrix(wconv, wld):
    """Fold Conv1d(2->NF, k=31, same, no bias) + Linear(NF->A, no bias) into a
    (2*T_enc, T_enc*A) matrix acting on [attn_w | attn_w_cum]."""
    wconv = np.asarray(wconv)           # (NF, 2, K)
    wld = np.asarray(wld)               # (NF, A)
    L = np.zeros((2 * T_ENC, T_ENC * A), np.float32)
    for t in range(T_ENC):
        for tau in range(T_ENC):
            k = tau - t + PAD
            if 0 <= k < K:
                for c in range(2):
                    L[c * T_ENC + tau, t * A:(t + 1) * A] += wconv[:, c, k] @ wld
    return jnp.asarray(L)


# ---------------- the Pallas kernel: one program == full recurrence for a batch block ----------------
def decoder_kernel(
    # batch-blocked inputs
    mems_ref, encf_ref, pin_ref, mbias_ref,
    # packed constants
    init_ref, wpre_ref, watt_ref, wdec_ref, blstm_ref, wq_ref,
    lloc_ref, vtile_ref, wprojg_ref, bprojg_ref, bdmask_ref,
    # packed lane-dense output
    out_ref,
    # scratch
    x_scr,
):
    f32 = jnp.float32

    # ---- preamble: Prenet hoisted out of the recurrence (module applies it pre-loop too) ----
    # TODO(synk): F.dropout in Prenet / decode / stopnet omitted (eval-mode, deterministic).
    mems_all = mems_ref[...].reshape(T_STEPS * BB, MELR)
    x_all = jnp.maximum(jnp.dot(mems_all, wpre_ref[0:MELR, :],
                                preferred_element_type=f32), 0.0)
    x_all = jnp.maximum(jnp.dot(x_all, wpre_ref[MELR:MELR + PP, :],
                                preferred_element_type=f32), 0.0)        # (T_STEPS*BB, PP)
    x_scr[...] = x_all

    # ---- hoisted loop-invariant loads / broadcasts (JAX does not CSE broadcast_in_dim) ----
    pin     = pin_ref[...]                                               # (BB, T_enc*A)
    mbias   = mbias_ref[...]                                             # (BB, T_enc)
    enc_f   = encf_ref[...]                                              # (BB*T_enc, EP)
    bdmsk   = bdmask_ref[...]                                            # (BB, BB*T_enc)
    vtile_b = jnp.broadcast_to(vtile_ref[...], (BB, T_ENC * A))
    b_att   = jnp.broadcast_to(blstm_ref[:, 0:4 * H], (BB, 4 * H))
    b_dec   = jnp.broadcast_to(blstm_ref[:, 4 * H:8 * H], (BB, 4 * H))
    b_projg = jnp.broadcast_to(bprojg_ref[...], (BB, MELR + 1))
    zpad1   = jnp.zeros((BB, ALIGN_OFF - (MELR + 1)), f32)
    zpad2   = jnp.zeros((BB, OUT_W - ALIGN_OFF - T_ENC), f32)

    # Decoder._init_states + Attention.init_states (state carried in vregs).
    att_h0 = jnp.broadcast_to(init_ref[:, 0:H], (BB, H))
    dec_h0 = jnp.broadcast_to(init_ref[:, H:2 * H], (BB, H))
    carry0 = (att_h0, jnp.zeros((BB, H), f32),
              dec_h0, jnp.zeros((BB, H), f32),
              jnp.zeros((BB, EP), f32),
              jnp.zeros((BB, T_ENC), f32), jnp.zeros((BB, T_ENC), f32))

    def step(t, carry):
        att_h, att_c, dec_h, dec_c, ctx, attn_w, attn_cum = carry

        # prenet output precomputed in the preamble
        x = x_scr[pl.ds(pl.multiple_of(t * BB, BB), BB), :]              # (BB, PP)

        # ---- attention_rnn LSTMCell: single fused gate matmul over [x | ctx | h] ----
        cell_in = jnp.concatenate([x, ctx, att_h], axis=-1)              # (BB, 3*128)
        g = jnp.dot(cell_in, watt_ref[...], preferred_element_type=f32) + b_att
        i1 = jax.nn.sigmoid(g[:, 0 * H:1 * H])
        f1 = jax.nn.sigmoid(g[:, 1 * H:2 * H])
        g1 = jnp.tanh(g[:, 2 * H:3 * H])
        o1 = jax.nn.sigmoid(g[:, 3 * H:4 * H])
        att_c = f1 * att_c + i1 * g1
        att_h = o1 * jnp.tanh(att_c)

        # ---- location-sensitive attention (flattened (BB, T_enc*A) layout) ----
        pq = jnp.dot(att_h, wq_ref[...], preferred_element_type=f32)     # (BB, A)
        pq_rep = jnp.concatenate([pq] * T_ENC, axis=-1)                  # (BB, T_enc*A)
        loc_in = jnp.concatenate([attn_w, attn_cum], axis=-1)            # (BB, 2*T_enc)
        ploc = jnp.dot(loc_in, lloc_ref[...], preferred_element_type=f32)  # conv31+dense fused
        s = jnp.tanh(pq_rep + ploc + pin)
        # energies via VPU multiply + per-128-lane group reduction (off the MXU chain).
        # v's scalar bias is dropped: softmax is shift-invariant, outputs unchanged.
        ener = jnp.sum((s * vtile_b).reshape(BB, T_ENC, A), axis=-1) + mbias
        # energies are tanh-bounded so no max-subtraction is needed; masked lanes
        # carry a -1e30 additive bias and exp() underflows to exactly 0.
        eexp = jnp.exp(ener)
        align = eexp * pl.reciprocal(jnp.sum(eexp, axis=-1, keepdims=True), approx=True)
        attn_cum = attn_cum + align                                      # update_location_attention
        attn_w = align

        # context = bmm(alignment, inputs): single block-diagonal matmul for the batch block
        align_bd = jnp.concatenate([align] * BB, axis=-1) * bdmsk        # (BB, BB*T_enc)
        ctx = jnp.dot(align_bd, enc_f, preferred_element_type=f32)       # (BB, EP)

        # ---- decoder_rnn LSTMCell: single fused gate matmul over [att_h | ctx | h] ----
        dcell_in = jnp.concatenate([att_h, ctx, dec_h], axis=-1)         # (BB, 3*128)
        g2 = jnp.dot(dcell_in, wdec_ref[...], preferred_element_type=f32) + b_dec
        i2 = jax.nn.sigmoid(g2[:, 0 * H:1 * H])
        f2 = jax.nn.sigmoid(g2[:, 1 * H:2 * H])
        gg = jnp.tanh(g2[:, 2 * H:3 * H])
        o2 = jax.nn.sigmoid(g2[:, 3 * H:4 * H])
        dec_c = f2 * dec_c + i2 * gg
        dec_h = o2 * jnp.tanh(dec_c)

        # ---- linear_projection + folded stopnet: one matmul -> [mel | gate] ----
        proj_in = jnp.concatenate([dec_h, ctx], axis=-1)                 # (BB, 2*128)
        mg = jnp.dot(proj_in, wprojg_ref[...], preferred_element_type=f32) + b_projg

        # ---- packed lane-dense store: [mel 0:8 | gate 8 | pad | align 16:24 | pad] ----
        out_ref[t] = jnp.concatenate([mg, zpad1, align, zpad2], axis=-1)
        return (att_h, att_c, dec_h, dec_c, ctx, attn_w, attn_cum)

    # TODO(synk): at production T_STEPS use a partial unroll (2-4) instead of a full unroll.
    lax.fori_loop(0, T_STEPS, step, carry0, unroll=True)


# ---------------- wrapper ----------------
def run_decoder(enc, memories, mask, params):
    f32 = jnp.float32
    # glue: get_go_frame + _reshape_memory + concat (teacher forcing frames fed per step)
    mems = memories.reshape(B, T_STEPS, MELR)
    mems = jnp.transpose(mems, (1, 0, 2))                # (T_steps, B, MELR)
    go = jnp.broadcast_to(params['go_frame'], (1, B, MELR))
    mems = jnp.concatenate([go, mems], axis=0)[:T_STEPS]

    # glue: one-time precomputes + host-side weight folding / packing
    proc_in = jnp.einsum('bte,ea->bta', enc, params['win'])
    pin_flat = proc_in.reshape(B, T_ENC * A)
    lloc = build_location_matrix(params['wconv'], params['wld'])      # (2*T_enc, T_enc*A)
    vtile = jnp.tile(params['wv'], (1, T_ENC))                        # (1, T_enc*A)
    mbias = jnp.where(mask > 0.5, 0.0, -1e30).astype(f32)             # additive mask bias
    enc_flat = jnp.pad(enc, ((0, 0), (0, 0), (0, EP - E))).reshape(B * T_ENC, EP)
    bdmask = jnp.asarray(np.kron(np.eye(BB, dtype=np.float32),
                                 np.ones((1, T_ENC), np.float32)))    # (BB, BB*T_enc)

    wp1_p = jnp.pad(params['wp1'], ((0, 0), (0, PP - P)))             # (MELR, PP)
    wp2_p = jnp.pad(params['wp2'], ((0, PP - P), (0, PP - P)))        # (PP, PP)
    w_pre = jnp.concatenate([wp1_p, wp2_p], axis=0)                   # (MELR+PP, PP)

    zp = jnp.zeros((PP - P, 4 * H), f32)
    ze = jnp.zeros((EP - E, 4 * H), f32)
    # fused attention-LSTM weight, rows ordered as the in-kernel concat [x | ctx | h]
    w_att = jnp.concatenate([params['wiha'][:P], zp,
                             params['wiha'][P:], ze,
                             params['whha']], axis=0)                 # (384, 4H)
    # fused decoder-LSTM weight, rows ordered as [att_h | ctx | h]
    w_dec = jnp.concatenate([params['wihd'][:H],
                             params['wihd'][H:], ze,
                             params['whhd']], axis=0)                 # (384, 4H)
    # fused projection weight, rows ordered as [dec_h | ctx]
    w_proj = jnp.concatenate([params['wproj'][:H],
                              params['wproj'][H:],
                              jnp.zeros((EP - E, MELR), f32)], axis=0)  # (256, MELR)

    # fold the stopnet into the projection: one extra output column = gate logit
    wstop_h = params['wstop'][:, :H]                                  # (1, H)
    wstop_m = params['wstop'][:, H:]                                  # (1, MELR)
    gate_col = w_proj @ wstop_m.T                                     # (256, 1)
    gate_col = gate_col.at[:H, :].add(wstop_h.T)
    w_projg = jnp.concatenate([w_proj, gate_col], axis=1)             # (256, MELR+1)
    b_gate = params['bproj'] @ wstop_m.T + params['bstop']            # (1, 1)
    b_projg = jnp.concatenate([params['bproj'], b_gate], axis=1)      # (1, MELR+1)

    b_lstm = jnp.concatenate([params['ba'], params['bd']], axis=1)    # (1, 8H)
    init_h = jnp.concatenate([params['att_rnn_init'],
                              params['dec_rnn_init']], axis=1)        # (1, 2H)

    kernel_inputs = [
        mems, enc_flat, pin_flat, mbias,
        init_h, w_pre, w_att, w_dec, b_lstm, params['wq'],
        lloc, vtile, w_projg, b_projg, bdmask,
    ]

    def const_spec(arr):
        nd = arr.ndim
        return pl.BlockSpec(arr.shape, lambda b, _nd=nd: (0,) * _nd)

    in_specs = [
        pl.BlockSpec((T_STEPS, BB, MELR), lambda b: (0, b, 0)),
        pl.BlockSpec((BB * T_ENC, EP),    lambda b: (b, 0)),
        pl.BlockSpec((BB, T_ENC * A),     lambda b: (b, 0)),
        pl.BlockSpec((BB, T_ENC),         lambda b: (b, 0)),
    ] + [const_spec(x) for x in kernel_inputs[4:]]

    out_shape = jax.ShapeDtypeStruct((T_STEPS, B, OUT_W), f32)
    out_specs = pl.BlockSpec((T_STEPS, BB, OUT_W), lambda b: (0, b, 0))

    out_seq = pl.pallas_call(
        decoder_kernel,
        out_shape=out_shape,
        grid_spec=pltpu.PrefetchScalarGridSpec(
            num_scalar_prefetch=0,
            grid=(NB,),                       # batch blocks only; time loop is in-kernel
            in_specs=in_specs,
            out_specs=out_specs,
            scratch_shapes=[pltpu.VMEM((T_STEPS * BB, PP), f32)],
        ),
        compiler_params=pltpu.CompilerParams(
            dimension_semantics=("parallel",),
            # raise when scaling T_enc (dense folded lloc grows O(T_enc^2 * A))
            vmem_limit_bytes=32 * 1024 * 1024),
    )(*kernel_inputs)

    # split the packed lane-dense output slab
    mel_seq   = out_seq[:, :, 0:MELR]
    gate_seq  = out_seq[:, :, GATE_OFF:GATE_OFF + 1]
    align_seq = out_seq[:, :, ALIGN_OFF:ALIGN_OFF + T_ENC]

    # glue: _parse_outputs
    outputs = jnp.transpose(mel_seq, (1, 0, 2)).reshape(B, T_STEPS * R, MEL)
    outputs = jnp.transpose(outputs, (0, 2, 1))          # (B, MEL, T_mel)
    stop_tokens = jnp.transpose(gate_seq[:, :, 0], (1, 0))
    alignments = jnp.transpose(align_seq, (1, 0, 2))
    return (outputs, stop_tokens, alignments), (mel_seq, gate_seq, align_seq)


# ---------------- pure-JAX reference (mirrors the PyTorch forward) ----------------
def decoder_ref(enc, memories, mask, params):
    mems = memories.reshape(B, T_STEPS, MELR).transpose(1, 0, 2)
    go = jnp.broadcast_to(params['go_frame'], (1, B, MELR))
    mems = jnp.concatenate([go, mems], axis=0)[:T_STEPS]

    att_h = jnp.broadcast_to(params['att_rnn_init'], (B, H))
    dec_h = jnp.broadcast_to(params['dec_rnn_init'], (B, H))
    att_c = jnp.zeros((B, H)); dec_c = jnp.zeros((B, H))
    ctx = jnp.zeros((B, E))
    aw = jnp.zeros((B, T_ENC)); awc = jnp.zeros((B, T_ENC))
    proc_in = jnp.einsum('bte,ea->bta', enc, params['win'])
    maskf = mask.astype(jnp.float32)

    def lstm(x, h, c, wih, whh, b):
        g = x @ wih + h @ whh + b
        i = jax.nn.sigmoid(g[:, :H]); f = jax.nn.sigmoid(g[:, H:2 * H])
        gg = jnp.tanh(g[:, 2 * H:3 * H]); o = jax.nn.sigmoid(g[:, 3 * H:])
        c = f * c + i * gg
        return o * jnp.tanh(c), c

    mels, gates, aligns = [], [], []
    for t in range(T_STEPS):
        x = jax.nn.relu(mems[t] @ params['wp1'])
        x = jax.nn.relu(x @ params['wp2'])
        att_h, att_c = lstm(jnp.concatenate([x, ctx], -1), att_h, att_c,
                            params['wiha'], params['whha'], params['ba'])
        pq = att_h @ params['wq']
        cat = jnp.stack([aw, awc], axis=1)                               # (B, 2, T_enc)
        y = jax.lax.conv_general_dilated(cat, params['wconv'], (1,), [(PAD, PAD)],
                                         dimension_numbers=('NCH', 'OIH', 'NCH'))
        ploc = jnp.einsum('bft,fa->bta', y, params['wld'])
        s = jnp.tanh(pq[:, None, :] + ploc + proc_in)
        en = jnp.sum(s * params['wv'][None, :, :], axis=-1) + params['bv'][0, 0]
        en = jnp.where(maskf > 0.5, en, -jnp.inf)
        align = jax.nn.softmax(en, axis=-1)
        awc = awc + align
        aw = align
        ctx = jnp.einsum('bt,bte->be', align, enc)
        dec_h, dec_c = lstm(jnp.concatenate([att_h, ctx], -1), dec_h, dec_c,
                            params['wihd'], params['whhd'], params['bd'])
        mel = jnp.concatenate([dec_h, ctx], -1) @ params['wproj'] + params['bproj']
        gate = (jnp.sum(jnp.concatenate([dec_h, mel], -1) * params['wstop'],
                        axis=-1, keepdims=True) + params['bstop'])
        mels.append(mel); gates.append(gate); aligns.append(align)
    return jnp.stack(mels), jnp.stack(gates), jnp.stack(aligns)


if __name__ == "__main__":
    key = jax.random.PRNGKey(0)
    k_enc, k_mem, k_par = jax.random.split(key, 3)
    params = init_params(k_par)

    enc = jax.random.normal(k_enc, (B, T_ENC, E), jnp.float32)         # encoder outputs
    memories = jax.random.normal(k_mem, (B, T_MEL, MEL), jnp.float32)  # teacher mel frames
    mask = jnp.ones((B, T_ENC), jnp.float32)
    mask = mask.at[1, 6:].set(0.0).at[3, 5:].set(0.0).at[6, 7:].set(0.0)

    (outputs, stop_tokens, alignments), raw = run_decoder(enc, memories, mask, params)
    jax.block_until_ready((outputs, stop_tokens, alignments))

    # sanity check against a pure-JAX reference of the same forward pass
    mel_ref, gate_ref, align_ref = decoder_ref(enc, memories, mask, params)
    mel_seq, gate_seq, align_seq = raw
    assert outputs.shape == (B, MEL, T_MEL)
    assert stop_tokens.shape == (B, T_STEPS)
    assert alignments.shape == (B, T_STEPS, T_ENC)
    np.testing.assert_allclose(np.asarray(mel_seq), np.asarray(mel_ref), rtol=2e-2, atol=2e-2)
    np.testing.assert_allclose(np.asarray(gate_seq), np.asarray(gate_ref), rtol=2e-2, atol=2e-2)
    np.testing.assert_allclose(np.asarray(align_seq), np.asarray(align_ref), rtol=2e-2, atol=2e-2)

    print("KERNEL_OK")
</pallas_src>

<mosaic_0001>
module attributes {stable_mosaic.version = 11 : i64} {
  func.func @decoder_kernel(%arg0: i32, %arg1: memref<4x8x8xf32, #tpu.memory_space<vmem>>, %arg2: memref<64x128xf32, #tpu.memory_space<vmem>>, %arg3: memref<8x1024xf32, #tpu.memory_space<vmem>>, %arg4: memref<8x8xf32, #tpu.memory_space<vmem>>, %arg5: memref<1x256xf32, #tpu.memory_space<vmem>>, %arg6: memref<136x128xf32, #tpu.memory_space<vmem>>, %arg7: memref<384x512xf32, #tpu.memory_space<vmem>>, %arg8: memref<384x512xf32, #tpu.memory_space<vmem>>, %arg9: memref<1x1024xf32, #tpu.memory_space<vmem>>, %arg10: memref<128x128xf32, #tpu.memory_space<vmem>>, %arg11: memref<16x1024xf32, #tpu.memory_space<vmem>>, %arg12: memref<1x1024xf32, #tpu.memory_space<vmem>>, %arg13: memref<256x9xf32, #tpu.memory_space<vmem>>, %arg14: memref<1x9xf32, #tpu.memory_space<vmem>>, %arg15: memref<8x64xf32, #tpu.memory_space<vmem>>, %arg16: memref<4x8x128xf32, #tpu.memory_space<vmem>>, %arg17: memref<32x128xf32, #tpu.memory_space<vmem>>) attributes {dimension_semantics = [#tpu.dimension_semantics<parallel>], iteration_bounds = array<i64: 1>, scalar_prefetch = 0 : i64, scratch_operands = 1 : i64, tpu.core_type = #tpu.core_type<tc>, window_params = [{transform_indices = @transform_0, window_bounds = array<i64: 4, 8, 8>}, {transform_indices = @transform_1, window_bounds = array<i64: 64, 128>}, {transform_indices = @transform_2, window_bounds = array<i64: 8, 1024>}, {transform_indices = @transform_3, window_bounds = array<i64: 8, 8>}, {pipeline_mode = #tpu.pipeline_mode<synchronous>, transform_indices = @transform_4, window_bounds = array<i64: 1, 256>}, {pipeline_mode = #tpu.pipeline_mode<synchronous>, transform_indices = @transform_5, window_bounds = array<i64: 136, 128>}, {pipeline_mode = #tpu.pipeline_mode<synchronous>, transform_indices = @transform_6, window_bounds = array<i64: 384, 512>}, {pipeline_mode = #tpu.pipeline_mode<synchronous>, transform_indices = @transform_7, window_bounds = array<i64: 384, 512>}, {pipeline_mode = #tpu.pipeline_mode<synchronous>, transform_indices = @transform_8, window_bounds = array<i64: 1, 1024>}, {pipeline_mode = #tpu.pipeline_mode<synchronous>, transform_indices = @transform_9, window_bounds = array<i64: 128, 128>}, {pipeline_mode = #tpu.pipeline_mode<synchronous>, transform_indices = @transform_10, window_bounds = array<i64: 16, 1024>}, {pipeline_mode = #tpu.pipeline_mode<synchronous>, transform_indices = @transform_11, window_bounds = array<i64: 1, 1024>}, {pipeline_mode = #tpu.pipeline_mode<synchronous>, transform_indices = @transform_12, window_bounds = array<i64: 256, 9>}, {pipeline_mode = #tpu.pipeline_mode<synchronous>, transform_indices = @transform_13, window_bounds = array<i64: 1, 9>}, {pipeline_mode = #tpu.pipeline_mode<synchronous>, transform_indices = @transform_14, window_bounds = array<i64: 8, 64>}, {transform_indices = @transform_15, window_bounds = array<i64: 4, 8, 128>}]} {
    %c0 = arith.constant 0 : index
    %c0_0 = arith.constant 0 : index
    %c0_1 = arith.constant 0 : index
    %0 = vector.load %arg1[%c0, %c0_0, %c0_1] : memref<4x8x8xf32, #tpu.memory_space<vmem>>, vector<4x8x8xf32>
    %1 = vector.shape_cast %0 : vector<4x8x8xf32> to vector<32x8xf32>
    %c0_2 = arith.constant 0 : index
    %c0_3 = arith.constant 0 : index
    %2 = vector.load %arg6[%c0_2, %c0_3] : memref<136x128xf32, #tpu.memory_space<vmem>>, vector<8x128xf32>
    %cst = arith.constant dense<0.000000e+00> : vector<32x128xf32>
    %3 = tpu.matmul %1, %2, %cst {dimension_numbers = #tpu.dot_dimension_numbers<[1], [0], [0], [1], [0, 0, 1, 1], [], []>} : vector<32x8xf32>, vector<8x128xf32>, vector<32x128xf32> -> vector<32x128xf32>
    %cst_4 = arith.constant 0.000000e+00 : f32
    %4 = vector.broadcast %cst_4 : f32 to vector<32x128xf32>
    %5 = arith.maximumf %3, %4 : vector<32x128xf32>
    %c8 = arith.constant 8 : index
    %c0_5 = arith.constant 0 : index
    %6 = vector.load %arg6[%c8, %c0_5] : memref<136x128xf32, #tpu.memory_space<vmem>>, vector<128x128xf32>
    %cst_6 = arith.constant dense<0.000000e+00> : vector<32x128xf32>
    %7 = tpu.matmul %5, %6, %cst_6 {dimension_numbers = #tpu.dot_dimension_numbers<[1], [0], [0], [1], [0, 0, 1, 1], [], []>} : vector<32x128xf32>, vector<128x128xf32>, vector<32x128xf32> -> vector<32x128xf32>
    %cst_7 = arith.constant 0.000000e+00 : f32
    %8 = vector.broadcast %cst_7 : f32 to vector<32x128xf32>
    %9 = arith.maximumf %7, %8 : vector<32x128xf32>
    %c0_8 = arith.constant 0 : index
    %c0_9 = arith.constant 0 : index
    %10 = vector.load %arg17[%c0_8, %c0_9] : memref<32x128xf32, #tpu.memory_space<vmem>>, vector<32x128xf32>
    tpu.vector_store %arg17[%c0_8, %c0_9], %9 {strides = array<i32>} : memref<32x128xf32, #tpu.memory_space<vmem>>, vector<32x128xf32>,
    %c0_10 = arith.constant 0 : index
    %c0_11 = arith.constant 0 : index
    %11 = vector.load %arg3[%c0_10, %c0_11] : memref<8x1024xf32, #tpu.memory_space<vmem>>, vector<8x1024xf32>
    %c0_12 = arith.constant 0 : index
    %c0_13 = arith.constant 0 : index
    %12 = vector.load %arg4[%c0_12, %c0_13] : memref<8x8xf32, #tpu.memory_space<vmem>>, vector<8x8xf32>
    %c0_14 = arith.constant 0 : index
    %c0_15 = arith.constant 0 : index
    %13 = vector.load %arg2[%c0_14, %c0_15] : memref<64x128xf32, #tpu.memory_space<vmem>>, vector<64x128xf32>
    %c0_16 = arith.constant 0 : index
    %c0_17 = arith.constant 0 : index
    %14 = vector.load %arg15[%c0_16, %c0_17] : memref<8x64xf32, #tpu.memory_space<vmem>>, vector<8x64xf32>
    %c0_18 = arith.constant 0 : index
    %c0_19 = arith.constant 0 : index
    %15 = vector.load %arg12[%c0_18, %c0_19] : memref<1x1024xf32, #tpu.memory_space<vmem>>, vector<1x1024xf32>
    %16 = vector.shape_cast %15 : vector<1x1024xf32> to vector<1x1024xf32>
    %17 = vector.broadcast %16 : vector<1x1024xf32> to vector<8x1024xf32>
    %c0_20 = arith.constant 0 : index
    %c0_21 = arith.constant 0 : index
    %18 = vector.load %arg9[%c0_20, %c0_21] : memref<1x1024xf32, #tpu.memory_space<vmem>>, vector<1x512xf32>
    %19 = vector.shape_cast %18 : vector<1x512xf32> to vector<1x512xf32>
    %20 = vector.broadcast %19 : vector<1x512xf32> to vector<8x512xf32>
    %c0_22 = arith.constant 0 : index
    %c512 = arith.constant 512 : index
    %21 = vector.load %arg9[%c0_22, %c512] : memref<1x1024xf32, #tpu.memory_space<vmem>>, vector<1x512xf32>
    %22 = vector.shape_cast %21 : vector<1x512xf32> to vector<1x512xf32>
    %23 = vector.broadcast %22 : vector<1x512xf32> to vector<8x512xf32>
    %c0_23 = arith.constant 0 : index
    %c0_24 = arith.constant 0 : index
    %24 = vector.load %arg14[%c0_23, %c0_24] : memref<1x9xf32, #tpu.memory_space<vmem>>, vector<1x9xf32>
    %25 = vector.shape_cast %24 : vector<1x9xf32> to vector<1x9xf32>
    %26 = vector.broadcast %25 : vector<1x9xf32> to vector<8x9xf32>
    %cst_25 = arith.constant 0.000000e+00 : f32
    %27 = vector.broadcast %cst_25 : f32 to vector<8x7xf32>
    %cst_26 = arith.constant 0.000000e+00 : f32
    %28 = vector.broadcast %cst_26 : f32 to vector<8x104xf32>
    %c0_27 = arith.constant 0 : index
    %c0_28 = arith.constant 0 : index
    %29 = vector.load %arg5[%c0_27, %c0_28] : memref<1x256xf32, #tpu.memory_space<vmem>>, vector<1x128xf32>
    %30 = vector.shape_cast %29 : vector<1x128xf32> to vector<1x128xf32>
    %31 = vector.broadcast %30 : vector<1x128xf32> to vector<8x128xf32>
    %c0_29 = arith.constant 0 : index
    %c128 = arith.constant 128 : index
    %32 = vector.load %arg5[%c0_29, %c128] : memref<1x256xf32, #tpu.memory_space<vmem>>, vector<1x128xf32>
    %33 = vector.shape_cast %32 : vector<1x128xf32> to vector<1x128xf32>
    %34 = vector.broadcast %33 : vector<1x128xf32> to vector<8x128xf32>
    %cst_30 = arith.constant 0.000000e+00 : f32
    %35 = vector.broadcast %cst_30 : f32 to vector<8x128xf32>
    %cst_31 = arith.constant 0.000000e+00 : f32
    %36 = vector.broadcast %cst_31 : f32 to vector<8x128xf32>
    %cst_32 = arith.constant 0.000000e+00 : f32
    %37 = vector.broadcast %cst_32 : f32 to vector<8x128xf32>
    %cst_33 = arith.constant 0.000000e+00 : f32
    %38 = vector.broadcast %cst_33 : f32 to vector<8x8xf32>
    %cst_34 = arith.constant 0.000000e+00 : f32
    %39 = vector.broadcast %cst_34 : f32 to vector<8x8xf32>
    %c0_i32 = arith.constant 0 : i32
    %c8_i32 = arith.constant 8 : i32
    %40 = arith.muli %c0_i32, %c8_i32 : i32
    %41 = tpu.assume_multiple %40, 8 : i32
    %42 = arith.index_cast %41 : i32 to index
    %c0_35 = arith.constant 0 : index
    %43 = vector.load %arg17[%42, %c0_35] : memref<32x128xf32, #tpu.memory_space<vmem>>, vector<8x128xf32>
    %44 = tpu.concatenate %43, %37, %31 in 1 : vector<8x128xf32>, vector<8x128xf32>, vector<8x128xf32> -> vector<8x384xf32>
    %c0_36 = arith.constant 0 : index
    %c0_37 = arith.constant 0 : index
    %45 = vector.load %arg7[%c0_36, %c0_37] : memref<384x512xf32, #tpu.memory_space<vmem>>, vector<384x512xf32>
    %cst_38 = arith.constant dense<0.000000e+00> : vector<8x512xf32>
    %46 = tpu.matmul %44, %45, %cst_38 {dimension_numbers = #tpu.dot_dimension_numbers<[1], [0], [0], [1], [0, 0, 1, 1], [], []>} : vector<8x384xf32>, vector<384x512xf32>, vector<8x512xf32> -> vector<8x512xf32>
    %47 = arith.addf %46, %20 : vector<8x512xf32>
    %48 = vector.extract_strided_slice %47 {offsets = [0, 0], sizes = [8, 128], strides = [1, 1]} : vector<8x512xf32> to vector<8x128xf32>
    %49 = arith.negf %48 : vector<8x128xf32>
    %50 = math.exp %49 : vector<8x128xf32>
    %cst_39 = arith.constant 1.000000e+00 : f32
    %51 = vector.broadcast %cst_39 : f32 to vector<8x128xf32>
    %52 = arith.addf %51, %50 : vector<8x128xf32>
    %53 = arith.divf %51, %52 : vector<8x128xf32>
    %54 = vector.extract_strided_slice %47 {offsets = [0, 128], sizes = [8, 128], strides = [1, 1]} : vector<8x512xf32> to vector<8x128xf32>
    %55 = arith.negf %54 : vector<8x128xf32>
    %56 = math.exp %55 : vector<8x128xf32>
    %cst_40 = arith.constant 1.000000e+00 : f32
    %57 = vector.broadcast %cst_40 : f32 to vector<8x128xf32>
    %58 = arith.addf %57, %56 : vector<8x128xf32>
    %59 = arith.divf %57, %58 : vector<8x128xf32>
    %60 = vector.extract_strided_slice %47 {offsets = [0, 256], sizes = [8, 128], strides = [1, 1]} : vector<8x512xf32> to vector<8x128xf32>
    %61 = math.tanh %60 : vector<8x128xf32>
    %62 = vector.extract_strided_slice %47 {offsets = [0, 384], sizes = [8, 128], strides = [1, 1]} : vector<8x512xf32> to vector<8x128xf32>
    %63 = arith.negf %62 : vector<8x128xf32>
    %64 = math.exp %63 : vector<8x128xf32>
    %cst_41 = arith.constant 1.000000e+00 : f32
    %65 = vector.broadcast %cst_41 : f32 to vector<8x128xf32>
    %66 = arith.addf %65, %64 : vector<8x128xf32>
    %67 = arith.divf %65, %66 : vector<8x128xf32>
    %68 = arith.mulf %59, %35 : vector<8x128xf32>
    %69 = arith.mulf %53, %61 : vector<8x128xf32>
    %70 = arith.addf %68, %69 : vector<8x128xf32>
    %71 = math.tanh %70 : vector<8x128xf32>
    %72 = arith.mulf %67, %71 : vector<8x128xf32>
    %c0_42 = arith.constant 0 : index
    %c0_43 = arith.constant 0 : index
    %73 = vector.load %arg10[%c0_42, %c0_43] : memref<128x128xf32, #tpu.memory_space<vmem>>, vector<128x128xf32>
    %cst_44 = arith.constant dense<0.000000e+00> : vector<8x128xf32>
    %74 = tpu.matmul %72, %73, %cst_44 {dimension_numbers = #tpu.dot_dimension_numbers<[1], [0], [0], [1], [0, 0, 1, 1], [], []>} : vector<8x128xf32>, vector<128x128xf32>, vector<8x128xf32> -> vector<8x128xf32>
    %75 = tpu.concatenate %74, %74, %74, %74, %74, %74, %74, %74 in 1 : vector<8x128xf32>, vector<8x128xf32>, vector<8x128xf32>, vector<8x128xf32>, vector<8x128xf32>, vector<8x128xf32>, vector<8x128xf32>, vector<8x128xf32> -> vector<8x1024xf32>
    %76 = tpu.concatenate %38, %39 in 1 : vector<8x8xf32>, vector<8x8xf32> -> vector<8x16xf32>
    %c0_45 = arith.constant 0 : index
    %c0_46 = arith.constant 0 : index
    %77 = vector.load %arg11[%c0_45, %c0_46] : memref<16x1024xf32, #tpu.memory_space<vmem>>, vector<16x1024xf32>
    %cst_47 = arith.constant dense<0.000000e+00> : vector<8x1024xf32>
    %78 = tpu.matmul %76, %77, %cst_47 {dimension_numbers = #tpu.dot_dimension_numbers<[1], [0], [0], [1], [0, 0, 1, 1], [], []>} : vector<8x16xf32>, vector<16x1024xf32>, vector<8x1024xf32> -> vector<8x1024xf32>
    %79 = arith.addf %75, %78 : vector<8x1024xf32>
    %80 = arith.addf %79, %11 : vector<8x1024xf32>
    %81 = math.tanh %80 : vector<8x1024xf32>
    %82 = arith.mulf %81, %17 : vector<8x1024xf32>
    %83 = vector.shape_cast %82 : vector<8x1024xf32> to vector<8x8x128xf32>
    %cst_48 = arith.constant dense<0.000000e+00> : vector<8x8xf32>
    %84 = vector.multi_reduction <add>, %83, %cst_48 [2] : vector<8x8x128xf32> to vector<8x8xf32>
    %85 = arith.addf %84, %12 : vector<8x8xf32>
    %86 = math.exp %85 : vector<8x8xf32>
    %cst_49 = arith.constant dense<0.000000e+00> : vector<8xf32>
    %87 = vector.multi_reduction <add>, %86, %cst_49 [1] : vector<8x8xf32> to vector<8xf32>
    %88 = vector.shape_cast %87 : vector<8xf32> to vector<8x1xf32>
    %89 = tpu.reciprocal %88 {approx = true} : vector<8x1xf32> -> vector<8x1xf32>
    %90 = vector.broadcast %89 : vector<8x1xf32> to vector<8x8xf32>
    %91 = arith.mulf %86, %90 : vector<8x8xf32>
    %92 = arith.addf %39, %91 : vector<8x8xf32>
    %93 = tpu.concatenate %91, %91, %91, %91, %91, %91, %91, %91 in 1 : vector<8x8xf32>, vector<8x8xf32>, vector<8x8xf32>, vector<8x8xf32>, vector<8x8xf32>, vector<8x8xf32>, vector<8x8xf32>, vector<8x8xf32> -> vector<8x64xf32>
    %94 = arith.mulf %93, %14 : vector<8x64xf32>
    %cst_50 = arith.constant dense<0.000000e+00> : vector<8x128xf32>
    %95 = tpu.matmul %94, %13, %cst_50 {dimension_numbers = #tpu.dot_dimension_numbers<[1], [0], [0], [1], [0, 0, 1, 1], [], []>} : vector<8x64xf32>, vector<64x128xf32>, vector<8x128xf32> -> vector<8x128xf32>
    %96 = tpu.concatenate %72, %95, %34 in 1 : vector<8x128xf32>, vector<8x128xf32>, vector<8x128xf32> -> vector<8x384xf32>
    %c0_51 = arith.constant 0 : index
    %c0_52 = arith.constant 0 : index
    %97 = vector.load %arg8[%c0_51, %c0_52] : memref<384x512xf32, #tpu.memory_space<vmem>>, vector<384x512xf32>
    %cst_53 = arith.constant dense<0.000000e+00> : vector<8x512xf32>
    %98 = tpu.matmul %96, %97, %cst_53 {dimension_numbers = #tpu.dot_dimension_numbers<[1], [0], [0], [1], [0, 0, 1, 1], [], []>} : vector<8x384xf32>, vector<384x512xf32>, vector<8x512xf32> -> vector<8x512xf32>
    %99 = arith.addf %98, %23 : vector<8x512xf32>
    %100 = vector.extract_strided_slice %99 {offsets = [0, 0], sizes = [8, 128], strides = [1, 1]} : vector<8x512xf32> to vector<8x128xf32>
    %101 = arith.negf %100 : vector<8x128xf32>
    %102 = math.exp %101 : vector<8x128xf32>
    %cst_54 = arith.constant 1.000000e+00 : f32
    %103 = vector.broadcast %cst_54 : f32 to vector<8x128xf32>
    %104 = arith.addf %103, %102 : vector<8x128xf32>
    %105 = arith.divf %103, %104 : vector<8x128xf32>
    %106 = vector.extract_strided_slice %99 {offsets = [0, 128], sizes = [8, 128], strides = [1, 1]} : vector<8x512xf32> to vector<8x128xf32>
    %107 = arith.negf %106 : vector<8x128xf32>
    %108 = math.exp %107 : vector<8x128xf32>
    %cst_55 = arith.constant 1.000000e+00 : f32
    %109 = vector.broadcast %cst_55 : f32 to vector<8x128xf32>
    %110 = arith.addf %109, %108 : vector<8x128xf32>
    %111 = arith.divf %109, %110 : vector<8x128xf32>
    %112 = vector.extract_strided_slice %99 {offsets = [0, 256], sizes = [8, 128], strides = [1, 1]} : vector<8x512xf32> to vector<8x128xf32>
    %113 = math.tanh %112 : vector<8x128xf32>
    %114 = vector.extract_strided_slice %99 {offsets = [0, 384], sizes = [8, 128], strides = [1, 1]} : vector<8x512xf32> to vector<8x128xf32>
    %115 = arith.negf %114 : vector<8x128xf32>
    %116 = math.exp %115 : vector<8x128xf32>
    %cst_56 = arith.constant 1.000000e+00 : f32
    %117 = vector.broadcast %cst_56 : f32 to vector<8x128xf32>
    %118 = arith.addf %117, %116 : vector<8x128xf32>
    %119 = arith.divf %117, %118 : vector<8x128xf32>
    %120 = arith.mulf %111, %36 : vector<8x128xf32>
    %121 = arith.mulf %105, %113 : vector<8x128xf32>
    %122 = arith.addf %120, %121 : vector<8x128xf32>
    %123 = math.tanh %122 : vector<8x128xf32>
    %124 = arith.mulf %119, %123 : vector<8x128xf32>
    %125 = tpu.concatenate %124, %95 in 1 : vector<8x128xf32>, vector<8x128xf32> -> vector<8x256xf32>
    %c0_57 = arith.constant 0 : index
    %c0_58 = arith.constant 0 : index
    %126 = vector.load %arg13[%c0_57, %c0_58] : memref<256x9xf32, #tpu.memory_space<vmem>>, vector<256x9xf32>
    %cst_59 = arith.constant dense<0.000000e+00> : vector<8x9xf32>
    %127 = tpu.matmul %125, %126, %cst_59 {dimension_numbers = #tpu.dot_dimension_numbers<[1], [0], [0], [1], [0, 0, 1, 1], [], []>} : vector<8x256xf32>, vector<256x9xf32>, vector<8x9xf32> -> vector<8x9xf32>
    %128 = arith.addf %127, %26 : vector<8x9xf32>
    %129 = tpu.concatenate %128, %27, %91, %28 in 1 : vector<8x9xf32>, vector<8x7xf32>, vector<8x8xf32>, vector<8x104xf32> -> vector<8x128xf32>
    %130 = arith.index_cast %c0_i32 : i32 to index
    %c0_60 = arith.constant 0 : index
    %c0_61 = arith.constant 0 : index
    %131 = vector.load %arg16[%130, %c0_60, %c0_61] : memref<4x8x128xf32, #tpu.memory_space<vmem>>, vector<1x8x128xf32>
    %132 = vector.shape_cast %131 : vector<1x8x128xf32> to vector<8x128xf32>
    %133 = vector.shape_cast %129 : vector<8x128xf32> to vector<1x8x128xf32>
    tpu.vector_store %arg16[%130, %c0_60, %c0_61], %133 {strides = array<i32>} : memref<4x8x128xf32, #tpu.memory_space<vmem>>, vector<1x8x128xf32>,
    %c1_i32 = arith.constant 1 : i32
    %c8_i32_62 = arith.constant 8 : i32
    %134 = arith.muli %c1_i32, %c8_i32_62 : i32
    %135 = tpu.assume_multiple %134, 8 : i32
    %136 = arith.index_cast %135 : i32 to index
    %c0_63 = arith.constant 0 : index
    %137 = vector.load %arg17[%136, %c0_63] : memref<32x128xf32, #tpu.memory_space<vmem>>, vector<8x128xf32>
    %138 = tpu.concatenate %137, %95, %72 in 1 : vector<8x128xf32>, vector<8x128xf32>, vector<8x128xf32> -> vector<8x384xf32>
    %c0_64 = arith.constant 0 : index
    %c0_65 = arith.constant 0 : index
    %139 = vector.load %arg7[%c0_64, %c0_65] : memref<384x512xf32, #tpu.memory_space<vmem>>, vector<384x512xf32>
    %cst_66 = arith.constant dense<0.000000e+00> : vector<8x512xf32>
    %140 = tpu.matmul %138, %139, %cst_66 {dimension_numbers = #tpu.dot_dimension_numbers<[1], [0], [0], [1], [0, 0, 1, 1], [], []>} : vector<8x384xf32>, vector<384x512xf32>, vector<8x512xf32> -> vector<8x512xf32>
    %141 = arith.addf %140, %20 : vector<8x512xf32>
    %142 = vector.extract_strided_slice %141 {offsets = [0, 0], sizes = [8, 128], strides = [1, 1]} : vector<8x512xf32> to vector<8x128xf32>
    %143 = arith.negf %142 : vector<8x128xf32>
    %144 = math.exp %143 : vector<8x128xf32>
    %cst_67 = arith.constant 1.000000e+00 : f32
    %145 = vector.broadcast %cst_67 : f32 to vector<8x128xf32>
    %146 = arith.addf %145, %144 : vector<8x128xf32>
    %147 = arith.divf %145, %146 : vector<8x128xf32>
    %148 = vector.extract_strided_slice %141 {offsets = [0, 128], sizes = [8, 128], strides = [1, 1]} : vector<8x512xf32> to vector<8x128xf32>
    %149 = arith.negf %148 : vector<8x128xf32>
    %150 = math.exp %149 : vector<8x128xf32>
    %cst_68 = arith.constant 1.000000e+00 : f32
    %151 = vector.broadcast %cst_68 : f32 to vector<8x128xf32>
    %152 = arith.addf %151, %150 : vector<8x128xf32>
    %153 = arith.divf %151, %152 : vector<8x128xf32>
    %154 = vector.extract_strided_slice %141 {offsets = [0, 256], sizes = [8, 128], strides = [1, 1]} : vector<8x512xf32> to vector<8x128xf32>
    %155 = math.tanh %154 : vector<8x128xf32>
    %156 = vector.extract_strided_slice %141 {offsets = [0, 384], sizes = [8, 128], strides = [1, 1]} : vector<8x512xf32> to vector<8x128xf32>
    %157 = arith.negf %156 : vector<8x128xf32>
    %158 = math.exp %157 : vector<8x128xf32>
    %cst_69 = arith.constant 1.000000e+00 : f32
    %159 = vector.broadcast %cst_69 : f32 to vector<8x128xf32>
    %160 = arith.addf %159, %158 : vector<8x128xf32>
    %161 = arith.divf %159, %160 : vector<8x128xf32>
    %162 = arith.mulf %153, %70 : vector<8x128xf32>
    %163 = arith.mulf %147, %155 : vector<8x128xf32>
    %164 = arith.addf %162, %163 : vector<8x128xf32>
    %165 = math.tanh %164 : vector<8x128xf32>
    %166 = arith.mulf %161, %165 : vector<8x128xf32>
    %c0_70 = arith.constant 0 : index
    %c0_71 = arith.constant 0 : index
    %167 = vector.load %arg10[%c0_70, %c0_71] : memref<128x128xf32, #tpu.memory_space<vmem>>, vector<128x128xf32>
    %cst_72 = arith.constant dense<0.000000e+00> : vector<8x128xf32>
    %168 = tpu.matmul %166, %167, %cst_72 {dimension_numbers = #tpu.dot_dimension_numbers<[1], [0], [0], [1], [0, 0, 1, 1], [], []>} : vector<8x128xf32>, vector<128x128xf32>, vector<8x128xf32> -> vector<8x128xf32>
    %169 = tpu.concatenate %168, %168, %168, %168, %168, %168, %168, %168 in 1 : vector<8x128xf32>, vector<8x128xf32>, vector<8x128xf32>, vector<8x128xf32>, vector<8x128xf32>, vector<8x128xf32>, vector<8x128xf32>, vector<8x128xf32> -> vector<8x1024xf32>
    %170 = tpu.concatenate %91, %92 in 1 : vector<8x8xf32>, vector<8x8xf32> -> vector<8x16xf32>
    %c0_73 = arith.constant 0 : index
    %c0_74 = arith.constant 0 : index
    %171 = vector.load %arg11[%c0_73, %c0_74] : memref<16x1024xf32, #tpu.memory_space<vmem>>, vector<16x1024xf32>
    %cst_75 = arith.constant dense<0.000000e+00> : vector<8x1024xf32>
    %172 = tpu.matmul %170, %171, %cst_75 {dimension_numbers = #tpu.dot_dimension_numbers<[1], [0], [0], [1], [0, 0, 1, 1], [], []>} : vector<8x16xf32>, vector<16x1024xf32>, vector<8x1024xf32> -> vector<8x1024xf32>
    %173 = arith.addf %169, %172 : vector<8x1024xf32>
    %174 = arith.addf %173, %11 : vector<8x1024xf32>
    %175 = math.tanh %174 : vector<8x1024xf32>
    %176 = arith.mulf %175, %17 : vector<8x1024xf32>
    %177 = vector.shape_cast %176 : vector<8x1024xf32> to vector<8x8x128xf32>
    %cst_76 = arith.constant dense<0.000000e+00> : vector<8x8xf32>
    %178 = vector.multi_reduction <add>, %177, %cst_76 [2] : vector<8x8x128xf32> to vector<8x8xf32>
    %179 = arith.addf %178, %12 : vector<8x8xf32>
    %180 = math.exp %179 : vector<8x8xf32>
    %cst_77 = arith.constant dense<0.000000e+00> : vector<8xf32>
    %181 = vector.multi_reduction <add>, %180, %cst_77 [1] : vector<8x8xf32> to vector<8xf32>
    %182 = vector.shape_cast %181 : vector<8xf32> to vector<8x1xf32>
    %183 = tpu.reciprocal %182 {approx = true} : vector<8x1xf32> -> vector<8x1xf32>
    %184 = vector.broadcast %183 : vector<8x1xf32> to vector<8x8xf32>
    %185 = arith.mulf %180, %184 : vector<8x8xf32>
    %186 = arith.addf %92, %185 : vector<8x8xf32>
    %187 = tpu.concatenate %185, %185, %185, %185, %185, %185, %185, %185 in 1 : vector<8x8xf32>, vector<8x8xf32>, vector<8x8xf32>, vector<8x8xf32>, vector<8x8xf32>, vector<8x8xf32>, vector<8x8xf32>, vector<8x8xf32> -> vector<8x64xf32>
    %188 = arith.mulf %187, %14 : vector<8x64xf32>
    %cst_78 = arith.constant dense<0.000000e+00> : vector<8x128xf32>
    %189 = tpu.matmul %188, %13, %cst_78 {dimension_numbers = #tpu.dot_dimension_numbers<[1], [0], [0], [1], [0, 0, 1, 1], [], []>} : vector<8x64xf32>, vector<64x128xf32>, vector<8x128xf32> -> vector<8x128xf32>
    %190 = tpu.concatenate %166, %189, %124 in 1 : vector<8x128xf32>, vector<8x128xf32>, vector<8x128xf32> -> vector<8x384xf32>
    %c0_79 = arith.constant 0 : index
    %c0_80 = arith.constant 0 : index
    %191 = vector.load %arg8[%c0_79, %c0_80] : memref<384x512xf32, #tpu.memory_space<vmem>>, vector<384x512xf32>
    %cst_81 = arith.constant dense<0.000000e+00> : vector<8x512xf32>
    %192 = tpu.matmul %190, %191, %cst_81 {dimension_numbers = #tpu.dot_dimension_numbers<[1], [0], [0], [1], [0, 0, 1, 1], [], []>} : vector<8x384xf32>, vector<384x512xf32>, vector<8x512xf32> -> vector<8x512xf32>
    %193 = arith.addf %192, %23 : vector<8x512xf32>
    %194 = vector.extract_strided_slice %193 {offsets = [0, 0], sizes = [8, 128], strides = [1, 1]} : vector<8x512xf32> to vector<8x128xf32>
    %195 = arith.negf %194 : vector<8x128xf32>
    %196 = math.exp %195 : vector<8x128xf32>
    %cst_82 = arith.constant 1.000000e+00 : f32
    %197 = vector.broadcast %cst_82 : f32 to vector<8x128xf32>
    %198 = arith.addf %197, %196 : vector<8x128xf32>
    %199 = arith.divf %197, %198 : vector<8x128xf32>
    %200 = vector.extract_strided_slice %193 {offsets = [0, 128], sizes = [8, 128], strides = [1, 1]} : vector<8x512xf32> to vector<8x128xf32>
    %201 = arith.negf %200 : vector<8x128xf32>
    %202 = math.exp %201 : vector<8x128xf32>
    %cst_83 = arith.constant 1.000000e+00 : f32
    %203 = vector.broadcast %cst_83 : f32 to vector<8x128xf32>
    %204 = arith.addf %203, %202 : vector<8x128xf32>
    %205 = arith.divf %203, %204 : vector<8x128xf32>
    %206 = vector.extract_strided_slice %193 {offsets = [0, 256], sizes = [8, 128], strides = [1, 1]} : vector<8x512xf32> to vector<8x128xf32>
    %207 = math.tanh %206 : vector<8x128xf32>
    %208 = vector.extract_strided_slice %193 {offsets = [0, 384], sizes = [8, 128], strides = [1, 1]} : vector<8x512xf32> to vector<8x128xf32>
    %209 = arith.negf %208 : vector<8x128xf32>
    %210 = math.exp %209 : vector<8x128xf32>
    %cst_84 = arith.constant 1.000000e+00 : f32
    %211 = vector.broadcast %cst_84 : f32 to vector<8x128xf32>
    %212 = arith.addf %211, %210 : vector<8x128xf32>
    %213 = arith.divf %211, %212 : vector<8x128xf32>
    %214 = arith.mulf %205, %122 : vector<8x128xf32>
    %215 = arith.mulf %199, %207 : vector<8x128xf32>
    %216 = arith.addf %214, %215 : vector<8x128xf32>
    %217 = math.tanh %216 : vector<8x128xf32>
    %218 = arith.mulf %213, %217 : vector<8x128xf32>
    %219 = tpu.concatenate %218, %189 in 1 : vector<8x128xf32>, vector<8x128xf32> -> vector<8x256xf32>
    %c0_85 = arith.constant 0 : index
    %c0_86 = arith.constant 0 : index
    %220 = vector.load %arg13[%c0_85, %c0_86] : memref<256x9xf32, #tpu.memory_space<vmem>>, vector<256x9xf32>
    %cst_87 = arith.constant dense<0.000000e+00> : vector<8x9xf32>
    %221 = tpu.matmul %219, %220, %cst_87 {dimension_numbers = #tpu.dot_dimension_numbers<[1], [0], [0], [1], [0, 0, 1, 1], [], []>} : vector<8x256xf32>, vector<256x9xf32>, vector<8x9xf32> -> vector<8x9xf32>
    %222 = arith.addf %221, %26 : vector<8x9xf32>
    %223 = tpu.concatenate %222, %27, %185, %28 in 1 : vector<8x9xf32>, vector<8x7xf32>, vector<8x8xf32>, vector<8x104xf32> -> vector<8x128xf32>
    %224 = arith.index_cast %c1_i32 : i32 to index
    %c0_88 = arith.constant 0 : index
    %c0_89 = arith.constant 0 : index
    %225 = vector.load %arg16[%224, %c0_88, %c0_89] : memref<4x8x128xf32, #tpu.memory_space<vmem>>, vector<1x8x128xf32>
    %226 = vector.shape_cast %225 : vector<1x8x128xf32> to vector<8x128xf32>
    %227 = vector.shape_cast %223 : vector<8x128xf32> to vector<1x8x128xf32>
    tpu.vector_store %arg16[%224, %c0_88, %c0_89], %227 {strides = array<i32>} : memref<4x8x128xf32, #tpu.memory_space<vmem>>, vector<1x8x128xf32>,
    %c2_i32 = arith.constant 2 : i32
    %c8_i32_90 = arith.constant 8 : i32
    %228 = arith.muli %c2_i32, %c8_i32_90 : i32
    %229 = tpu.assume_multiple %228, 8 : i32
    %230 = arith.index_cast %229 : i32 to index
    %c0_91 = arith.constant 0 : index
    %231 = vector.load %arg17[%230, %c0_91] : memref<32x128xf32, #tpu.memory_space<vmem>>, vector<8x128xf32>
    %232 = tpu.concatenate %231, %189, %166 in 1 : vector<8x128xf32>, vector<8x128xf32>, vector<8x128xf32> -> vector<8x384xf32>
    %c0_92 = arith.constant 0 : index
    %c0_93 = arith.constant 0 : index
    %233 = vector.load %arg7[%c0_92, %c0_93] : memref<384x512xf32, #tpu.memory_space<vmem>>, vector<384x512xf32>
    %cst_94 = arith.constant dense<0.000000e+00> : vector<8x512xf32>
    %234 = tpu.matmul %232, %233, %cst_94 {dimension_numbers = #tpu.dot_dimension_numbers<[1], [0], [0], [1], [0, 0, 1, 1], [], []>} : vector<8x384xf32>, vector<384x512xf32>, vector<8x512xf32> -> vector<8x512xf32>
    %235 = arith.addf %234, %20 : vector<8x512xf32>
    %236 = vector.extract_strided_slice %235 {offsets = [0, 0], sizes = [8, 128], strides = [1, 1]} : vector<8x512xf32> to vector<8x128xf32>
    %237 = arith.negf %236 : vector<8x128xf32>
    %238 = math.exp %237 : vector<8x128xf32>
    %cst_95 = arith.constant 1.000000e+00 : f32
    %239 = vector.broadcast %cst_95 : f32 to vector<8x128xf32>
    %240 = arith.addf %239, %238 : vector<8x128xf32>
    %241 = arith.divf %239, %240 : vector<8x128xf32>
    %242 = vector.extract_strided_slice %235 {offsets = [0, 128], sizes = [8, 128], strides = [1, 1]} : vector<8x512xf32> to vector<8x128xf32>
    %243 = arith.negf %242 : vector<8x128xf32>
    %244 = math.exp %243 : vector<8x128xf32>
    %cst_96 = arith.constant 1.000000e+00 : f32
    %245 = vector.broadcast %cst_96 : f32 to vector<8x128xf32>
    %246 = arith.addf %245, %244 : vector<8x128xf32>
    %247 = arith.divf %245, %246 : vector<8x128xf32>
    %248 = vector.extract_strided_slice %235 {offsets = [0, 256], sizes = [8, 128], strides = [1, 1]} : vector<8x512xf32> to vector<8x128xf32>
    %249 = math.tanh %248 : vector<8x128xf32>
    %250 = vector.extract_strided_slice %235 {offsets = [0, 384], sizes = [8, 128], strides = [1, 1]} : vector<8x512xf32> to vector<8x128xf32>
    %251 = arith.negf %250 : vector<8x128xf32>
    %252 = math.exp %251 : vector<8x128xf32>
    %cst_97 = arith.constant 1.000000e+00 : f32
    %253 = vector.broadcast %cst_97 : f32 to vector<8x128xf32>
    %254 = arith.addf %253, %252 : vector<8x128xf32>
    %255 = arith.divf %253, %254 : vector<8x128xf32>
    %256 = arith.mulf %247, %164 : vector<8x128xf32>
    %257 = arith.mulf %241, %249 : vector<8x128xf32>
    %258 = arith.addf %256, %257 : vector<8x128xf32>
    %259 = math.tanh %258 : vector<8x128xf32>
    %260 = arith.mulf %255, %259 : vector<8x128xf32>
    %c0_98 = arith.constant 0 : index
    %c0_99 = arith.constant 0 : index
    %261 = vector.load %arg10[%c0_98, %c0_99] : memref<128x128xf32, #tpu.memory_space<vmem>>, vector<128x128xf32>
    %cst_100 = arith.constant dense<0.000000e+00> : vector<8x128xf32>
    %262 = tpu.matmul %260, %261, %cst_100 {dimension_numbers = #tpu.dot_dimension_numbers<[1], [0], [0], [1], [0, 0, 1, 1], [], []>} : vector<8x128xf32>, vector<128x128xf32>, vector<8x128xf32> -> vector<8x128xf32>
    %263 = tpu.concatenate %262, %262, %262, %262, %262, %262, %262, %262 in 1 : vector<8x128xf32>, vector<8x128xf32>, vector<8x128xf32>, vector<8x128xf32>, vector<8x128xf32>, vector<8x128xf32>, vector<8x128xf32>, vector<8x128xf32> -> vector<8x1024xf32>
    %264 = tpu.concatenate %185, %186 in 1 : vector<8x8xf32>, vector<8x8xf32> -> vector<8x16xf32>
    %c0_101 = arith.constant 0 : index
    %c0_102 = arith.constant 0 : index
    %265 = vector.load %arg11[%c0_101, %c0_102] : memref<16x1024xf32, #tpu.memory_space<vmem>>, vector<16x1024xf32>
    %cst_103 = arith.constant dense<0.000000e+00> : vector<8x1024xf32>
    %266 = tpu.matmul %264, %265, %cst_103 {dimension_numbers = #tpu.dot_dimension_numbers<[1], [0], [0], [1], [0, 0, 1, 1], [], []>} : vector<8x16xf32>, vector<16x1024xf32>, vector<8x1024xf32> -> vector<8x1024xf32>
    %267 = arith.addf %263, %266 : vector<8x1024xf32>
    %268 = arith.addf %267, %11 : vector<8x1024xf32>
    %269 = math.tanh %268 : vector<8x1024xf32>
    %270 = arith.mulf %269, %17 : vector<8x1024xf32>
    %271 = vector.shape_cast %270 : vector<8x1024xf32> to vector<8x8x128xf32>
    %cst_104 = arith.constant dense<0.000000e+00> : vector<8x8xf32>
    %272 = vector.multi_reduction <add>, %271, %cst_104 [2] : vector<8x8x128xf32> to vector<8x8xf32>
    %273 = arith.addf %272, %12 : vector<8x8xf32>
    %274 = math.exp %273 : vector<8x8xf32>
    %cst_105 = arith.constant dense<0.000000e+00> : vector<8xf32>
    %275 = vector.multi_reduction <add>, %274, %cst_105 [1] : vector<8x8xf32> to vector<8xf32>
    %276 = vector.shape_cast %275 : vector<8xf32> to vector<8x1xf32>
    %277 = tpu.reciprocal %276 {approx = true} : vector<8x1xf32> -> vector<8x1xf32>
    %278 = vector.broadcast %277 : vector<8x1xf32> to vector<8x8xf32>
    %279 = arith.mulf %274, %278 : vector<8x8xf32>
    %280 = arith.addf %186, %279 : vector<8x8xf32>
    %281 = tpu.concatenate %279, %279, %279, %279, %279, %279, %279, %279 in 1 : vector<8x8xf32>, vector<8x8xf32>, vector<8x8xf32>, vector<8x8xf32>, vector<8x8xf32>, vector<8x8xf32>, vector<8x8xf32>, vector<8x8xf32> -> vector<8x64xf32>
    %282 = arith.mulf %281, %14 : vector<8x64xf32>
    %cst_106 = arith.constant dense<0.000000e+00> : vector<8x128xf32>
    %283 = tpu.matmul %282, %13, %cst_106 {dimension_numbers = #tpu.dot_dimension_numbers<[1], [0], [0], [1], [0, 0, 1, 1], [], []>} : vector<8x64xf32>, vector<64x128xf32>, vector<8x128xf32> -> vector<8x128xf32>
    %284 = tpu.concatenate %260, %283, %218 in 1 : vector<8x128xf32>, vector<8x128xf32>, vector<8x128xf32> -> vector<8x384xf32>
    %c0_107 = arith.constant 0 : index
    %c0_108 = arith.constant 0 : index
    %285 = vector.load %arg8[%c0_107, %c0_108] : memref<384x512xf32, #tpu.memory_space<vmem>>, vector<384x512xf32>
    %cst_109 = arith.constant dense<0.000000e+00> : vector<8x512xf32>
    %286 = tpu.matmul %284, %285, %cst_109 {dimension_numbers = #tpu.dot_dimension_numbers<[1], [0], [0], [1], [0, 0, 1, 1], [], []>} : vector<8x384xf32>, vector<384x512xf32>, vector<8x512xf32> -> vector<8x512xf32>
    %287 = arith.addf %286, %23 : vector<8x512xf32>
    %288 = vector.extract_strided_slice %287 {offsets = [0, 0], sizes = [8, 128], strides = [1, 1]} : vector<8x512xf32> to vector<8x128xf32>
    %289 = arith.negf %288 : vector<8x128xf32>
    %290 = math.exp %289 : vector<8x128xf32>
    %cst_110 = arith.constant 1.000000e+00 : f32
    %291 = vector.broadcast %cst_110 : f32 to vector<8x128xf32>
    %292 = arith.addf %291, %290 : vector<8x128xf32>
    %293 = arith.divf %291, %292 : vector<8x128xf32>
    %294 = vector.extract_strided_slice %287 {offsets = [0, 128], sizes = [8, 128], strides = [1, 1]} : vector<8x512xf32> to vector<8x128xf32>
    %295 = arith.negf %294 : vector<8x128xf32>
    %296 = math.exp %295 : vector<8x128xf32>
    %cst_111 = arith.constant 1.000000e+00 : f32
    %297 = vector.broadcast %cst_111 : f32 to vector<8x128xf32>
    %298 = arith.addf %297, %296 : vector<8x128xf32>
    %299 = arith.divf %297, %298 : vector<8x128xf32>
    %300 = vector.extract_strided_slice %287 {offsets = [0, 256], sizes = [8, 128], strides = [1, 1]} : vector<8x512xf32> to vector<8x128xf32>
    %301 = math.tanh %300 : vector<8x128xf32>
    %302 = vector.extract_strided_slice %287 {offsets = [0, 384], sizes = [8, 128], strides = [1, 1]} : vector<8x512xf32> to vector<8x128xf32>
    %303 = arith.negf %302 : vector<8x128xf32>
    %304 = math.exp %303 : vector<8x128xf32>
    %cst_112 = arith.constant 1.000000e+00 : f32
    %305 = vector.broadcast %cst_112 : f32 to vector<8x128xf32>
    %306 = arith.addf %305, %304 : vector<8x128xf32>
    %307 = arith.divf %305, %306 : vector<8x128xf32>
    %308 = arith.mulf %299, %216 : vector<8x128xf32>
    %309 = arith.mulf %293, %301 : vector<8x128xf32>
    %310 = arith.addf %308, %309 : vector<8x128xf32>
    %311 = math.tanh %310 : vector<8x128xf32>
    %312 = arith.mulf %307, %311 : vector<8x128xf32>
    %313 = tpu.concatenate %312, %283 in 1 : vector<8x128xf32>, vector<8x128xf32> -> vector<8x256xf32>
    %c0_113 = arith.constant 0 : index
    %c0_114 = arith.constant 0 : index
    %314 = vector.load %arg13[%c0_113, %c0_114] : memref<256x9xf32, #tpu.memory_space<vmem>>, vector<256x9xf32>
    %cst_115 = arith.constant dense<0.000000e+00> : vector<8x9xf32>
    %315 = tpu.matmul %313, %314, %cst_115 {dimension_numbers = #tpu.dot_dimension_numbers<[1], [0], [0], [1], [0, 0, 1, 1], [], []>} : vector<8x256xf32>, vector<256x9xf32>, vector<8x9xf32> -> vector<8x9xf32>
    %316 = arith.addf %315, %26 : vector<8x9xf32>
    %317 = tpu.concatenate %316, %27, %279, %28 in 1 : vector<8x9xf32>, vector<8x7xf32>, vector<8x8xf32>, vector<8x104xf32> -> vector<8x128xf32>
    %318 = arith.index_cast %c2_i32 : i32 to index
    %c0_116 = arith.constant 0 : index
    %c0_117 = arith.constant 0 : index
    %319 = vector.load %arg16[%318, %c0_116, %c0_117] : memref<4x8x128xf32, #tpu.memory_space<vmem>>, vector<1x8x128xf32>
    %320 = vector.shape_cast %319 : vector<1x8x128xf32> to vector<8x128xf32>
    %321 = vector.shape_cast %317 : vector<8x128xf32> to vector<1x8x128xf32>
    tpu.vector_store %arg16[%318, %c0_116, %c0_117], %321 {strides = array<i32>} : memref<4x8x128xf32, #tpu.memory_space<vmem>>, vector<1x8x128xf32>,
    %c3_i32 = arith.constant 3 : i32
    %c8_i32_118 = arith.constant 8 : i32
    %322 = arith.muli %c3_i32, %c8_i32_118 : i32
    %323 = tpu.assume_multiple %322, 8 : i32
    %324 = arith.index_cast %323 : i32 to index
    %c0_119 = arith.constant 0 : index
    %325 = vector.load %arg17[%324, %c0_119] : memref<32x128xf32, #tpu.memory_space<vmem>>, vector<8x128xf32>
    %326 = tpu.concatenate %325, %283, %260 in 1 : vector<8x128xf32>, vector<8x128xf32>, vector<8x128xf32> -> vector<8x384xf32>
    %c0_120 = arith.constant 0 : index
    %c0_121 = arith.constant 0 : index
    %327 = vector.load %arg7[%c0_120, %c0_121] : memref<384x512xf32, #tpu.memory_space<vmem>>, vector<384x512xf32>
    %cst_122 = arith.constant dense<0.000000e+00> : vector<8x512xf32>
    %328 = tpu.matmul %326, %327, %cst_122 {dimension_numbers = #tpu.dot_dimension_numbers<[1], [0], [0], [1], [0, 0, 1, 1], [], []>} : vector<8x384xf32>, vector<384x512xf32>, vector<8x512xf32> -> vector<8x512xf32>
    %329 = arith.addf %328, %20 : vector<8x512xf32>
    %330 = vector.extract_strided_slice %329 {offsets = [0, 0], sizes = [8, 128], strides = [1, 1]} : vector<8x512xf32> to vector<8x128xf32>
    %331 = arith.negf %330 : vector<8x128xf32>
    %332 = math.exp %331 : vector<8x128xf32>
    %cst_123 = arith.constant 1.000000e+00 : f32
    %333 = vector.broadcast %cst_123 : f32 to vector<8x128xf32>
    %334 = arith.addf %333, %332 : vector<8x128xf32>
    %335 = arith.divf %333, %334 : vector<8x128xf32>
    %336 = vector.extract_strided_slice %329 {offsets = [0, 128], sizes = [8, 128], strides = [1, 1]} : vector<8x512xf32> to vector<8x128xf32>
    %337 = arith.negf %336 : vector<8x128xf32>
    %338 = math.exp %337 : vector<8x128xf32>
    %cst_124 = arith.constant 1.000000e+00 : f32
    %339 = vector.broadcast %cst_124 : f32 to vector<8x128xf32>
    %340 = arith.addf %339, %338 : vector<8x128xf32>
    %341 = arith.divf %339, %340 : vector<8x128xf32>
    %342 = vector.extract_strided_slice %329 {offsets = [0, 256], sizes = [8, 128], strides = [1, 1]} : vector<8x512xf32> to vector<8x128xf32>
    %343 = math.tanh %342 : vector<8x128xf32>
    %344 = vector.extract_strided_slice %329 {offsets = [0, 384], sizes = [8, 128], strides = [1, 1]} : vector<8x512xf32> to vector<8x128xf32>
    %345 = arith.negf %344 : vector<8x128xf32>
    %346 = math.exp %345 : vector<8x128xf32>
    %cst_125 = arith.constant 1.000000e+00 : f32
    %347 = vector.broadcast %cst_125 : f32 to vector<8x128xf32>
    %348 = arith.addf %347, %346 : vector<8x128xf32>
    %349 = arith.divf %347, %348 : vector<8x128xf32>
    %350 = arith.mulf %341, %258 : vector<8x128xf32>
    %351 = arith.mulf %335, %343 : vector<8x128xf32>
    %352 = arith.addf %350, %351 : vector<8x128xf32>
    %353 = math.tanh %352 : vector<8x128xf32>
    %354 = arith.mulf %349, %353 : vector<8x128xf32>
    %c0_126 = arith.constant 0 : index
    %c0_127 = arith.constant 0 : index
    %355 = vector.load %arg10[%c0_126, %c0_127] : memref<128x128xf32, #tpu.memory_space<vmem>>, vector<128x128xf32>
    %cst_128 = arith.constant dense<0.000000e+00> : vector<8x128xf32>
    %356 = tpu.matmul %354, %355, %cst_128 {dimension_numbers = #tpu.dot_dimension_numbers<[1], [0], [0], [1], [0, 0, 1, 1], [], []>} : vector<8x128xf32>, vector<128x128xf32>, vector<8x128xf32> -> vector<8x128xf32>
    %357 = tpu.concatenate %356, %356, %356, %356, %356, %356, %356, %356 in 1 : vector<8x128xf32>, vector<8x128xf32>, vector<8x128xf32>, vector<8x128xf32>, vector<8x128xf32>, vector<8x128xf32>, vector<8x128xf32>, vector<8x128xf32> -> vector<8x1024xf32>
    %358 = tpu.concatenate %279, %280 in 1 : vector<8x8xf32>, vector<8x8xf32> -> vector<8x16xf32>
    %c0_129 = arith.constant 0 : index
    %c0_130 = arith.constant 0 : index
    %359 = vector.load %arg11[%c0_129, %c0_130] : memref<16x1024xf32, #tpu.memory_space<vmem>>, vector<16x1024xf32>
    %cst_131 = arith.constant dense<0.000000e+00> : vector<8x1024xf32>
    %360 = tpu.matmul %358, %359, %cst_131 {dimension_numbers = #tpu.dot_dimension_numbers<[1], [0], [0], [1], [0, 0, 1, 1], [], []>} : vector<8x16xf32>, vector<16x1024xf32>, vector<8x1024xf32> -> vector<8x1024xf32>
    %361 = arith.addf %357, %360 : vector<8x1024xf32>
    %362 = arith.addf %361, %11 : vector<8x1024xf32>
    %363 = math.tanh %362 : vector<8x1024xf32>
    %364 = arith.mulf %363, %17 : vector<8x1024xf32>
    %365 = vector.shape_cast %364 : vector<8x1024xf32> to vector<8x8x128xf32>
    %cst_132 = arith.constant dense<0.000000e+00> : vector<8x8xf32>
    %366 = vector.multi_reduction <add>, %365, %cst_132 [2] : vector<8x8x128xf32> to vector<8x8xf32>
    %367 = arith.addf %366, %12 : vector<8x8xf32>
    %368 = math.exp %367 : vector<8x8xf32>
    %cst_133 = arith.constant dense<0.000000e+00> : vector<8xf32>
    %369 = vector.multi_reduction <add>, %368, %cst_133 [1] : vector<8x8xf32> to vector<8xf32>
    %370 = vector.shape_cast %369 : vector<8xf32> to vector<8x1xf32>
    %371 = tpu.reciprocal %370 {approx = true} : vector<8x1xf32> -> vector<8x1xf32>
    %372 = vector.broadcast %371 : vector<8x1xf32> to vector<8x8xf32>
    %373 = arith.mulf %368, %372 : vector<8x8xf32>
    %374 = arith.addf %280, %373 : vector<8x8xf32>
    %375 = tpu.concatenate %373, %373, %373, %373, %373, %373, %373, %373 in 1 : vector<8x8xf32>, vector<8x8xf32>, vector<8x8xf32>, vector<8x8xf32>, vector<8x8xf32>, vector<8x8xf32>, vector<8x8xf32>, vector<8x8xf32> -> vector<8x64xf32>
    %376 = arith.mulf %375, %14 : vector<8x64xf32>
    %cst_134 = arith.constant dense<0.000000e+00> : vector<8x128xf32>
    %377 = tpu.matmul %376, %13, %cst_134 {dimension_numbers = #tpu.dot_dimension_numbers<[1], [0], [0], [1], [0, 0, 1, 1], [], []>} : vector<8x64xf32>, vector<64x128xf32>, vector<8x128xf32> -> vector<8x128xf32>
    %378 = tpu.concatenate %354, %377, %312 in 1 : vector<8x128xf32>, vector<8x128xf32>, vector<8x128xf32> -> vector<8x384xf32>
    %c0_135 = arith.constant 0 : index
    %c0_136 = arith.constant 0 : index
    %379 = vector.load %arg8[%c0_135, %c0_136] : memref<384x512xf32, #tpu.memory_space<vmem>>, vector<384x512xf32>
    %cst_137 = arith.constant dense<0.000000e+00> : vector<8x512xf32>
    %380 = tpu.matmul %378, %379, %cst_137 {dimension_numbers = #tpu.dot_dimension_numbers<[1], [0], [0], [1], [0, 0, 1, 1], [], []>} : vector<8x384xf32>, vector<384x512xf32>, vector<8x512xf32> -> vector<8x512xf32>
    %381 = arith.addf %380, %23 : vector<8x512xf32>
    %382 = vector.extract_strided_slice %381 {offsets = [0, 0], sizes = [8, 128], strides = [1, 1]} : vector<8x512xf32> to vector<8x128xf32>
    %383 = arith.negf %382 : vector<8x128xf32>
    %384 = math.exp %383 : vector<8x128xf32>
    %cst_138 = arith.constant 1.000000e+00 : f32
    %385 = vector.broadcast %cst_138 : f32 to vector<8x128xf32>
    %386 = arith.addf %385, %384 : vector<8x128xf32>
    %387 = arith.divf %385, %386 : vector<8x128xf32>
    %388 = vector.extract_strided_slice %381 {offsets = [0, 128], sizes = [8, 128], strides = [1, 1]} : vector<8x512xf32> to vector<8x128xf32>
    %389 = arith.negf %388 : vector<8x128xf32>
    %390 = math.exp %389 : vector<8x128xf32>
    %cst_139 = arith.constant 1.000000e+00 : f32
    %391 = vector.broadcast %cst_139 : f32 to vector<8x128xf32>
    %392 = arith.addf %391, %390 : vector<8x128xf32>
    %393 = arith.divf %391, %392 : vector<8x128xf32>
    %394 = vector.extract_strided_slice %381 {offsets = [0, 256], sizes = [8, 128], strides = [1, 1]} : vector<8x512xf32> to vector<8x128xf32>
    %395 = math.tanh %394 : vector<8x128xf32>
    %396 = vector.extract_strided_slice %381 {offsets = [0, 384], sizes = [8, 128], strides = [1, 1]} : vector<8x512xf32> to vector<8x128xf32>
    %397 = arith.negf %396 : vector<8x128xf32>
    %398 = math.exp %397 : vector<8x128xf32>
    %cst_140 = arith.constant 1.000000e+00 : f32
    %399 = vector.broadcast %cst_140 : f32 to vector<8x128xf32>
    %400 = arith.addf %399, %398 : vector<8x128xf32>
    %401 = arith.divf %399, %400 : vector<8x128xf32>
    %402 = arith.mulf %393, %310 : vector<8x128xf32>
    %403 = arith.mulf %387, %395 : vector<8x128xf32>
    %404 = arith.addf %402, %403 : vector<8x128xf32>
    %405 = math.tanh %404 : vector<8x128xf32>
    %406 = arith.mulf %401, %405 : vector<8x128xf32>
    %407 = tpu.concatenate %406, %377 in 1 : vector<8x128xf32>, vector<8x128xf32> -> vector<8x256xf32>
    %c0_141 = arith.constant 0 : index
    %c0_142 = arith.constant 0 : index
    %408 = vector.load %arg13[%c0_141, %c0_142] : memref<256x9xf32, #tpu.memory_space<vmem>>, vector<256x9xf32>
    %cst_143 = arith.constant dense<0.000000e+00> : vector<8x9xf32>
    %409 = tpu.matmul %407, %408, %cst_143 {dimension_numbers = #tpu.dot_dimension_numbers<[1], [0], [0], [1], [0, 0, 1, 1], [], []>} : vector<8x256xf32>, vector<256x9xf32>, vector<8x9xf32> -> vector<8x9xf32>
    %410 = arith.addf %409, %26 : vector<8x9xf32>
    %411 = tpu.concatenate %410, %27, %373, %28 in 1 : vector<8x9xf32>, vector<8x7xf32>, vector<8x8xf32>, vector<8x104xf32> -> vector<8x128xf32>
    %412 = arith.index_cast %c3_i32 : i32 to index
    %c0_144 = arith.constant 0 : index
    %c0_145 = arith.constant 0 : index
    %413 = vector.load %arg16[%412, %c0_144, %c0_145] : memref<4x8x128xf32, #tpu.memory_space<vmem>>, vector<1x8x128xf32>
    %414 = vector.shape_cast %413 : vector<1x8x128xf32> to vector<8x128xf32>
    %415 = vector.shape_cast %411 : vector<8x128xf32> to vector<1x8x128xf32>
    tpu.vector_store %arg16[%412, %c0_144, %c0_145], %415 {strides = array<i32>} : memref<4x8x128xf32, #tpu.memory_space<vmem>>, vector<1x8x128xf32>,
    %c4_i32 = arith.constant 4 : i32
    return
  }
  func.func @transform_0(%arg0: i32) -> (i32, i32, i32) {
    %c0_i32 = arith.constant 0 : i32
    %c0_i32_0 = arith.constant 0 : i32
    %c0_i32_1 = arith.constant 0 : i32
    return %c0_i32, %arg0, %c0_i32_0 : i32, i32, i32
  }
  func.func @transform_1(%arg0: i32) -> (i32, i32) {
    %c0_i32 = arith.constant 0 : i32
    %c0_i32_0 = arith.constant 0 : i32
    return %arg0, %c0_i32 : i32, i32
  }
  func.func @transform_2(%arg0: i32) -> (i32, i32) {
    %c0_i32 = arith.constant 0 : i32
    %c0_i32_0 = arith.constant 0 : i32
    return %arg0, %c0_i32 : i32, i32
  }
  func.func @transform_3(%arg0: i32) -> (i32, i32) {
    %c0_i32 = arith.constant 0 : i32
    %c0_i32_0 = arith.constant 0 : i32
    return %arg0, %c0_i32 : i32, i32
  }
  func.func @transform_4(%arg0: i32) -> (i32, i32) {
    %c0_i32 = arith.constant 0 : i32
    %c0_i32_0 = arith.constant 0 : i32
    %c0_i32_1 = arith.constant 0 : i32
    return %c0_i32, %c0_i32_0 : i32, i32
  }
  func.func @transform_5(%arg0: i32) -> (i32, i32) {
    %c0_i32 = arith.constant 0 : i32
    %c0_i32_0 = arith.constant 0 : i32
    %c0_i32_1 = arith.constant 0 : i32
    return %c0_i32, %c0_i32_0 : i32, i32
  }
  func.func @transform_6(%arg0: i32) -> (i32, i32) {
    %c0_i32 = arith.constant 0 : i32
    %c0_i32_0 = arith.constant 0 : i32
    %c0_i32_1 = arith.constant 0 : i32
    return %c0_i32, %c0_i32_0 : i32, i32
  }
  func.func @transform_7(%arg0: i32) -> (i32, i32) {
    %c0_i32 = arith.constant 0 : i32
    %c0_i32_0 = arith.constant 0 : i32
    %c0_i32_1 = arith.constant 0 : i32
    return %c0_i32, %c0_i32_0 : i32, i32
  }
  func.func @transform_8(%arg0: i32) -> (i32, i32) {
    %c0_i32 = arith.constant 0 : i32
    %c0_i32_0 = arith.constant 0 : i32
    %c0_i32_1 = arith.constant 0 : i32
    return %c0_i32, %c0_i32_0 : i32, i32
  }
  func.func @transform_9(%arg0: i32) -> (i32, i32) {
    %c0_i32 = arith.constant 0 : i32
    %c0_i32_0 = arith.constant 0 : i32
    %c0_i32_1 = arith.constant 0 : i32
    return %c0_i32, %c0_i32_0 : i32, i32
  }
  func.func @transform_10(%arg0: i32) -> (i32, i32) {
    %c0_i32 = arith.constant 0 : i32
    %c0_i32_0 = arith.constant 0 : i32
    %c0_i32_1 = arith.constant 0 : i32
    return %c0_i32, %c0_i32_0 : i32, i32
  }
  func.func @transform_11(%arg0: i32) -> (i32, i32) {
    %c0_i32 = arith.constant 0 : i32
    %c0_i32_0 = arith.constant 0 : i32
    %c0_i32_1 = arith.constant 0 : i32
    return %c0_i32, %c0_i32_0 : i32, i32
  }
  func.func @transform_12(%arg0: i32) -> (i32, i32) {
    %c0_i32 = arith.constant 0 : i32
    %c0_i32_0 = arith.constant 0 : i32
    %c0_i32_1 = arith.constant 0 : i32
    return %c0_i32, %c0_i32_0 : i32, i32
  }
  func.func @transform_13(%arg0: i32) -> (i32, i32) {
    %c0_i32 = arith.constant 0 : i32
    %c0_i32_0 = arith.constant 0 : i32
    %c0_i32_1 = arith.constant 0 : i32
    return %c0_i32, %c0_i32_0 : i32, i32
  }
  func.func @transform_14(%arg0: i32) -> (i32, i32) {
    %c0_i32 = arith.constant 0 : i32
    %c0_i32_0 = arith.constant 0 : i32
    %c0_i32_1 = arith.constant 0 : i32
    return %c0_i32, %c0_i32_0 : i32, i32
  }
  func.func @transform_15(%arg0: i32) -> (i32, i32, i32) {
    %c0_i32 = arith.constant 0 : i32
    %c0_i32_0 = arith.constant 0 : i32
    %c0_i32_1 = arith.constant 0 : i32
    return %c0_i32, %arg0, %c0_i32_0 : i32, i32, i32
  }
}

</mosaic_0001>

<llo_original>
// kernel: tpu_custom_call.1
$region0: #{tpu_custom_call.1}
  #allocation0 [shape = 'u32[]', space=smem, size = 0x4, offset = 0x4, fixed_abs, tag = 'smem constant byte address 0x4 - core index']
  #allocation1 [shape = 'u32[144,128]{1,0:T(1,128)}', space=vmem, size = 0x12000, scoped, tag = 'internal scratch']
  #allocation2 [shape = 'f32[32,128]{1,0:T(8,128)}', space=vmem, size = 0x4000, scoped, tag = 'scratch operand']
  %s0 = inlined_call_operand.hbm [shape: f32[4,8,8], index: 0, kind: input, shape index: {}]
  %s1 = inlined_call_operand.hbm [shape: f32[64,128], index: 1, kind: input, shape index: {}]
  %s2 = inlined_call_operand.hbm [shape: f32[8,1024], index: 2, kind: input, shape index: {}]
  %s3 = inlined_call_operand.vmem [shape: f32[8,8], index: 3, kind: input, shape index: {}]
  %s4 = inlined_call_operand.vmem [shape: f32[1,256], index: 4, kind: input, shape index: {}]
  %s5 = inlined_call_operand.vmem [shape: f32[136,128], index: 5, kind: input, shape index: {}]
  %s6 = inlined_call_operand.hbm [shape: f32[384,512], index: 6, kind: input, shape index: {}]
  %s7 = inlined_call_operand.hbm [shape: f32[384,512], index: 7, kind: input, shape index: {}]
  %s8 = inlined_call_operand.vmem [shape: f32[1,1024], index: 8, kind: input, shape index: {}]
  %s9 = inlined_call_operand.vmem [shape: f32[128,128], index: 9, kind: input, shape index: {}]
  %s10 = inlined_call_operand.hbm [shape: f32[16,1024], index: 10, kind: input, shape index: {}]
  %s11 = inlined_call_operand.vmem [shape: f32[1,1024], index: 11, kind: input, shape index: {}]
  %s12 = inlined_call_operand.vmem [shape: f32[256,9], index: 12, kind: input, shape index: {}]
  %s13 = inlined_call_operand.vmem [shape: f32[1,9], index: 13, kind: input, shape index: {}]
  %s14 = inlined_call_operand.vmem [shape: f32[8,64], index: 14, kind: input, shape index: {}]
  %s15 = inlined_call_operand.hbm [shape: f32[4,8,128], index: 15, kind: output, shape index: {}]
  %s16 = sld [smem:[#allocation0]]
  $region94: #{tpu_custom_call.1} parent=0
    _
  %s18 = ssub.s32 1, %s16
  %s19 = scalar_select 0, %s18, %s16
  $region1: #{tpu_custom_call.1} parent=0
    #allocation3 [shape = 'u8[16384]{0}', space=vmem, size = 0x4000, scoped, tag = 'input window, operand 0, single buffered']
    #allocation4 [shape = 's32[1]{0}', space=sflag, size = 0x4, scoped, tag = 'scoped memory for tpu_custom_call.1']
    #allocation5 [shape = 's32[1]{0}', space=sflag, size = 0x4, scoped, tag = 'scoped memory for tpu_custom_call.1']
    #allocation6 [shape = 'u8[32768]{0}', space=vmem, size = 0x8000, scoped, tag = 'input window, operand 1, single buffered']
    #allocation7 [shape = 's32[1]{0}', space=sflag, size = 0x4, scoped, tag = 'scoped memory for tpu_custom_call.1']
    #allocation8 [shape = 'u8[32768]{0}', space=vmem, size = 0x8000, scoped, tag = 'input window, operand 2, single buffered']
    #allocation9 [shape = 'u8[786432]{0}', space=vmem, size = 0xc0000, scoped, tag = 'input window, operand 6, single buffered']
    #allocation10 [shape = 's32[1]{0}', space=sflag, size = 0x4, scoped, tag = 'scoped memory for tpu_custom_call.1']
    #allocation11 [shape = 'u8[786432]{0}', space=vmem, size = 0xc0000, scoped, tag = 'input window, operand 7, single buffered']
    #allocation12 [shape = 'u8[65536]{0}', space=vmem, size = 0x10000, scoped, tag = 'input window, operand 10, single buffered']
    #allocation13 [shape = 's32[1]{0}', space=sflag, size = 0x4, scoped, tag = 'scoped memory for tpu_custom_call.1']
    #allocation14 [shape = 'u8[16384]{0}', space=vmem, size = 0x4000, scoped, tag = 'output window, operand 0, single buffered']
    %20 = vsyncpa [#allocation4], 0
    %21 = vsyncpa [#allocation7], 0
    %22 = vsyncpa [#allocation10], 0
    %23 = vsyncpa [#allocation13], 0
    %24 = vsyncpa [#allocation5], 0
    // Predicated region
    $region2: #{tpu_custom_call.1} parent=1 // pred_check
      _
    $region3: #{tpu_custom_call.1} parent=1 // pred_check_branch
      %26 = sbr.rel (0) target = $region5
    $region4: #{tpu_custom_call.1} parent=1 // pred_region
      %s28 = ssub.s32 512, 512
      %29 = vsyncadd [#allocation4], %s28
      %s30 = sshll.u32 [#allocation3], 4
      %s31 = int_to_ptr.vmem [resolvable:$true] %s30
      %36 = dma.hbm_to_vmem [thread:$0]  %s0, 512, %s31, [#allocation4], 128, 128, 8
    $region5: #{tpu_custom_call.1} parent=1 // pred_fallthru
      _
    // Predicated region
    $region6: #{tpu_custom_call.1} parent=1 // pred_check
      _
    $region7: #{tpu_custom_call.1} parent=1 // pred_check_branch
      %38 = sbr.rel (0) target = $region9
    $region8: #{tpu_custom_call.1} parent=1 // pred_region
      %s40 = ssub.s32 1024, 1024
      %41 = vsyncadd [#allocation7], %s40
      %s42 = sshll.u32 [#allocation6], 4
      %s43 = int_to_ptr.vmem [resolvable:$true] %s42
      %48 = dma.hbm_to_vmem [thread:$0]  %s1, 1024, %s43, [#allocation7], 128, 128, 8
    $region9: #{tpu_custom_call.1} parent=1 // pred_fallthru
      _
    // Predicated region
    $region10: #{tpu_custom_call.1} parent=1 // pred_check
      _
    $region11: #{tpu_custom_call.1} parent=1 // pred_check_branch
      %50 = sbr.rel (0) target = $region13
    $region12: #{tpu_custom_call.1} parent=1 // pred_region
      %s52 = ssub.s32 1024, 1024
      %53 = vsyncadd [#allocation7], %s52
      %s55 = sshll.u32 [#allocation8], 4
      %s56 = int_to_ptr.vmem [resolvable:$true] %s55
      %58 = dma.hbm_to_vmem [thread:$0]  %s2, 1024, %s56, [#allocation7]
    $region13: #{tpu_custom_call.1} parent=1 // pred_fallthru
      _
    // Predicated region
    $region14: #{tpu_custom_call.1} parent=1 // pred_check
      _
    $region15: #{tpu_custom_call.1} parent=1 // pred_check_branch
      %60 = sbr.rel (0) target = $region17
    $region16: #{tpu_custom_call.1} parent=1 // pred_region
      _
    $region17: #{tpu_custom_call.1} parent=1 // pred_fallthru
      _
    // Predicated region
    $region18: #{tpu_custom_call.1} parent=1 // pred_check
      _
    $region19: #{tpu_custom_call.1} parent=1 // pred_check_branch
      %62 = sbr.rel (0) target = $region21
    $region20: #{tpu_custom_call.1} parent=1 // pred_region
      _
    $region21: #{tpu_custom_call.1} parent=1 // pred_fallthru
      _
    // Predicated region
    $region22: #{tpu_custom_call.1} parent=1 // pred_check
      _
    $region23: #{tpu_custom_call.1} parent=1 // pred_check_branch
      %64 = sbr.rel (0) target = $region25
    $region24: #{tpu_custom_call.1} parent=1 // pred_region
      _
    $region25: #{tpu_custom_call.1} parent=1 // pred_fallthru
      _
    // Predicated region
    $region26: #{tpu_custom_call.1} parent=1 // pred_check
      _
    $region27: #{tpu_custom_call.1} parent=1 // pred_check_branch
      %66 = sbr.rel (0) target = $region29
    $region28: #{tpu_custom_call.1} parent=1 // pred_region
      %s68 = ssub.s32 24576, 24576
      %69 = vsyncadd [#allocation10], %s68
      %s70 = sshll.u32 [#allocation9], 4
      %s71 = int_to_ptr.vmem [resolvable:$true] %s70
      %76 = dma.hbm_to_vmem [thread:$0]  %s6, 24576, %s71, [#allocation10], 512, 512, 32
    $region29: #{tpu_custom_call.1} parent=1 // pred_fallthru
      _
    // Predicated region
    $region30: #{tpu_custom_call.1} parent=1 // pred_check
      _
    $region31: #{tpu_custom_call.1} parent=1 // pred_check_branch
      %78 = sbr.rel (0) target = $region33
    $region32: #{tpu_custom_call.1} parent=1 // pred_region
      %s80 = ssub.s32 24576, 24576
      %81 = vsyncadd [#allocation10], %s80
      %s82 = sshll.u32 [#allocation11], 4
      %s83 = int_to_ptr.vmem [resolvable:$true] %s82
      %88 = dma.hbm_to_vmem [thread:$0]  %s7, 24576, %s83, [#allocation10], 512, 512, 32
    $region33: #{tpu_custom_call.1} parent=1 // pred_fallthru
      _
    // Predicated region
    $region34: #{tpu_custom_call.1} parent=1 // pred_check
      _
    $region35: #{tpu_custom_call.1} parent=1 // pred_check_branch
      %90 = sbr.rel (0) target = $region37
    $region36: #{tpu_custom_call.1} parent=1 // pred_region
      _
    $region37: #{tpu_custom_call.1} parent=1 // pred_fallthru
      _
    // Predicated region
    $region38: #{tpu_custom_call.1} parent=1 // pred_check
      _
    $region39: #{tpu_custom_call.1} parent=1 // pred_check_branch
      %92 = sbr.rel (0) target = $region41
    $region40: #{tpu_custom_call.1} parent=1 // pred_region
      _
    $region41: #{tpu_custom_call.1} parent=1 // pred_fallthru
      _
    // Predicated region
    $region42: #{tpu_custom_call.1} parent=1 // pred_check
      _
    $region43: #{tpu_custom_call.1} parent=1 // pred_check_branch
      %94 = sbr.rel (0) target = $region45
    $region44: #{tpu_custom_call.1} parent=1 // pred_region
      %s96 = ssub.s32 2048, 2048
      %97 = vsyncadd [#allocation13], %s96
      %s98 = sshll.u32 [#allocation12], 4
      %s99 = int_to_ptr.vmem [resolvable:$true] %s98
      %104 = dma.hbm_to_vmem [thread:$0]  %s10, 2048, %s99, [#allocation13], 1024, 1024, 64
    $region45: #{tpu_custom_call.1} parent=1 // pred_fallthru
      _
    // Predicated region
    $region46: #{tpu_custom_call.1} parent=1 // pred_check
      _
    $region47: #{tpu_custom_call.1} parent=1 // pred_check_branch
      %106 = sbr.rel (0) target = $region49
    $region48: #{tpu_custom_call.1} parent=1 // pred_region
      _
    $region49: #{tpu_custom_call.1} parent=1 // pred_fallthru
      _
    // Predicated region
    $region50: #{tpu_custom_call.1} parent=1 // pred_check
      _
    $region51: #{tpu_custom_call.1} parent=1 // pred_check_branch
      %108 = sbr.rel (0) target = $region53
    $region52: #{tpu_custom_call.1} parent=1 // pred_region
      _
    $region53: #{tpu_custom_call.1} parent=1 // pred_fallthru
      _
    // Predicated region
    $region54: #{tpu_custom_call.1} parent=1 // pred_check
      _
    $region55: #{tpu_custom_call.1} parent=1 // pred_check_branch
      %110 = sbr.rel (0) target = $region57
    $region56: #{tpu_custom_call.1} parent=1 // pred_region
      _
    $region57: #{tpu_custom_call.1} parent=1 // pred_fallthru
      _
    // Predicated region
    $region58: #{tpu_custom_call.1} parent=1 // pred_check
      _
    $region59: #{tpu_custom_call.1} parent=1 // pred_check_branch
      %112 = sbr.rel (0) target = $region61
    $region60: #{tpu_custom_call.1} parent=1 // pred_region
      _
    $region61: #{tpu_custom_call.1} parent=1 // pred_fallthru
      _
    // Predicated region
    $region62: #{tpu_custom_call.1} parent=1 // pred_check
      _
    $region63: #{tpu_custom_call.1} parent=1 // pred_check_branch
      %114 = sbr.rel (0) target = $region65
    $region64: #{tpu_custom_call.1} parent=1 // pred_region
      %115 = dma.done [#allocation4], 512
    $region65: #{tpu_custom_call.1} parent=1 // pred_fallthru
      _
    // Predicated region
    $region66: #{tpu_custom_call.1} parent=1 // pred_check
      _
    $region67: #{tpu_custom_call.1} parent=1 // pred_check_branch
      %117 = sbr.rel (0) target = $region69
    $region68: #{tpu_custom_call.1} parent=1 // pred_region
      %118 = dma.done [#allocation7], 1024
    $region69: #{tpu_custom_call.1} parent=1 // pred_fallthru
      _
    // Predicated region
    $region70: #{tpu_custom_call.1} parent=1 // pred_check
      _
    $region71: #{tpu_custom_call.1} parent=1 // pred_check_branch
      %120 = sbr.rel (0) target = $region73
    $region72: #{tpu_custom_call.1} parent=1 // pred_region
      %121 = dma.done [#allocation7], 1024
    $region73: #{tpu_custom_call.1} parent=1 // pred_fallthru
      _
    // Predicated region
    $region74: #{tpu_custom_call.1} parent=1 // pred_check
      _
    $region75: #{tpu_custom_call.1} parent=1 // pred_check_branch
      %123 = sbr.rel (0) target = $region77
    $region76: #{tpu_custom_call.1} parent=1 // pred_region
      %124 = dma.done [#allocation10], 24576
    $region77: #{tpu_custom_call.1} parent=1 // pred_fallthru
      _
    // Predicated region
    $region78: #{tpu_custom_call.1} parent=1 // pred_check
      _
    $region79: #{tpu_custom_call.1} parent=1 // pred_check_branch
      %126 = sbr.rel (0) target = $region81
    $region80: #{tpu_custom_call.1} parent=1 // pred_region
      %127 = dma.done [#allocation10], 24576
    $region81: #{tpu_custom_call.1} parent=1 // pred_fallthru
      _
    // Predicated region
    $region82: #{tpu_custom_call.1} parent=1 // pred_check
      _
    $region83: #{tpu_custom_call.1} parent=1 // pred_check_branch
      %129 = sbr.rel (0) target = $region85
    $region84: #{tpu_custom_call.1} parent=1 // pred_region
      %130 = dma.done [#allocation13], 2048
    $region85: #{tpu_custom_call.1} parent=1 // pred_fallthru
      _
    %v131 = vld [vmem:[#allocation3] sm:$0xff]
    %v132 = vld [vmem:[#allocation3 + $0x8] sm:$0xff]
    %v133 = vld [vmem:[#allocation3 + $0x10] sm:$0xff]
    %v134 = vld [vmem:[#allocation3 + $0x18] sm:$0xff]
    %v135 = vld [vmem:[%s5] sm:$0xff]
    %vm136 = vcmask 64512
    %v138 = vsel %vm136, %v131, 0
    %v141 = vsel %vm136, %v132, 0
    %v144 = vsel %vm136, %v133, 0
    %v147 = vsel %vm136, %v134, 0
    %149 = vmatprep.subr.mxu0 0.0
    %150 = vmatpush1.msra.mxu0 0.0
    %151 = vmatprep.subr.mxu0 0.0
    %152 = vmatpush1.msra.mxu0 0.0
    %153 = vmatprep.subr.mxu0 0.0
    %154 = vmatpush1.msra.mxu0 0.0
    %155 = vmatprep.subr.mxu0 0.0
    %156 = vmatpush1.msra.mxu0 0.0
    %157 = vmatprep.subr.mxu0 0.0
    %158 = vmatpush1.msra.mxu0 0.0
    %159 = vmatprep.subr.mxu0 0.0
    %160 = vmatpush1.msra.mxu0 0.0
    %161 = vmatprep.subr.mxu0 0.0
    %162 = vmatpush1.msra.mxu0 0.0
    %163 = vmatprep.subr.mxu0 0.0
    %164 = vmatpush1.msra.mxu0 0.0
    %165 = vmatprep.subr.mxu0 0.0
    %166 = vmatpush1.msra.mxu0 0.0
    %167 = vmatprep.subr.mxu0 0.0
    %168 = vmatpush1.msra.mxu0 0.0
    %169 = vmatprep.subr.mxu0 0.0
    %170 = vmatpush1.msra.mxu0 0.0
    %171 = vmatprep.subr.mxu0 0.0
    %172 = vmatpush1.msra.mxu0 0.0
    %173 = vmatprep.subr.mxu0 0.0
    %174 = vmatpush1.msra.mxu0 0.0
    %175 = vmatprep.subr.mxu0 0.0
    %176 = vmatpush1.msra.mxu0 0.0
    %177 = vmatprep.subr.mxu0 0.0
    %178 = vmatpush1.msra.mxu0 0.0
    %179 = vmatprep.subr.mxu0 0.0
    %180 = vmatpush1.msra.mxu0 %v135
    %181 = vmatprep.subr.mxu0 0.0
    %182 = vmatpush2.msra.mxu0 0.0
    %183 = vmatprep.subr.mxu0 0.0
    %184 = vmatpush2.msra.mxu0 0.0
    %185 = vmatprep.subr.mxu0 0.0
    %186 = vmatpush2.msra.mxu0 0.0
    %187 = vmatprep.subr.mxu0 0.0
    %188 = vmatpush2.msra.mxu0 0.0
    %189 = vmatprep.subr.mxu0 0.0
    %190 = vmatpush2.msra.mxu0 0.0
    %191 = vmatprep.subr.mxu0 0.0
    %192 = vmatpush2.msra.mxu0 0.0
    %193 = vmatprep.subr.mxu0 0.0
    %194 = vmatpush2.msra.mxu0 0.0
    %195 = vmatprep.subr.mxu0 0.0
    %196 = vmatpush2.msra.mxu0 0.0
    %197 = vmatprep.subr.mxu0 0.0
    %198 = vmatpush2.msra.mxu0 0.0
    %199 = vmatprep.subr.mxu0 0.0
    %200 = vmatpush2.msra.mxu0 0.0
    %201 = vmatprep.subr.mxu0 0.0
    %202 = vmatpush2.msra.mxu0 0.0
    %203 = vmatprep.subr.mxu0 0.0
    %204 = vmatpush2.msra.mxu0 0.0
    %205 = vmatprep.subr.mxu0 0.0
    %206 = vmatpush2.msra.mxu0 0.0
    %207 = vmatprep.subr.mxu0 0.0
    %208 = vmatpush2.msra.mxu0 0.0
    %209 = vmatprep.subr.mxu0 0.0
    %210 = vmatpush2.msra.mxu0 0.0
    %211 = vmatprep.subr.mxu0 0.0
    %212 = vmatpush2.msra.mxu0 0.0
    %213 = vmatprep.mubr.f32.mxu0 0.0
    %214 = vmatmul.mubr.f32.gmra.mxu0 %v138
    %v215 = vpop.f32.mrf.mxu0
    %v216 = vadd.f32 0.0, %v215
    %v217 = vpop.f32.mrf.mxu0
    %218 = vmatprep.mubr.f32.mxu0 0.0
    %219 = vmatmul.mubr.f32.gmra.mxu0 %v141
    %v220 = vpop.f32.mrf.mxu0
    %v221 = vadd.f32 0.0, %v220
    %v222 = vpop.f32.mrf.mxu0
    %223 = vmatprep.mubr.f32.mxu0 0.0
    %224 = vmatmul.mubr.f32.gmra.mxu0 %v144
    %v225 = vpop.f32.mrf.mxu0
    %v226 = vadd.f32 0.0, %v225
    %v227 = vpop.f32.mrf.mxu0
    %228 = vmatprep.mubr.f32.mxu0 0.0
    %229 = vmatmul.mubr.f32.gmra.mxu0 %v147
    %v230 = vpop.f32.mrf.mxu0
    %v231 = vadd.f32 0.0, %v230
    %v232 = vpop.f32.mrf.mxu0
    %233 = vdwg.mxu0
    %v234 = vmax.f32 %v216, 0.0
    %v235 = vmax.f32 %v221, 0.0
    %v236 = vmax.f32 %v226, 0.0
    %v237 = vmax.f32 %v231, 0.0
    %v238 = vld [vmem:[%s5 + $0x8] sm:$0xff]
    %v239 = vld [vmem:[%s5 + $0x10] sm:$0xff]
    %v240 = vld [vmem:[%s5 + $0x18] sm:$0xff]
    %v241 = vld [vmem:[%s5 + $0x20] sm:$0xff]
    %v242 = vld [vmem:[%s5 + $0x28] sm:$0xff]
    %v243 = vld [vmem:[%s5 + $0x30] sm:$0xff]
    %v244 = vld [vmem:[%s5 + $0x38] sm:$0xff]
    %v245 = vld [vmem:[%s5 + $0x40] sm:$0xff]
    %v246 = vld [vmem:[%s5 + $0x48] sm:$0xff]
    %v247 = vld [vmem:[%s5 + $0x50] sm:$0xff]
    %v248 = vld [vmem:[%s5 + $0x58] sm:$0xff]
    %v249 = vld [vmem:[%s5 + $0x60] sm:$0xff]
    %v250 = vld [vmem:[%s5 + $0x68] sm:$0xff]
    %v251 = vld [vmem:[%s5 + $0x70] sm:$0xff]
    %v252 = vld [vmem:[%s5 + $0x78] sm:$0xff]
    %v253 = vld [vmem:[%s5 + $0x80] sm:$0xff]
    %254 = vmatprep.subr.mxu0 0.0
    %255 = vmatpush1.msra.mxu0 %v253
    %256 = vmatprep.subr.mxu0 0.0
    %257 = vmatpush1.msra.mxu0 %v252
    %258 = vmatprep.subr.mxu0 0.0
    %259 = vmatpush1.msra.mxu0 %v251
    %260 = vmatprep.subr.mxu0 0.0
    %261 = vmatpush1.msra.mxu0 %v250
    %262 = vmatprep.subr.mxu0 0.0
    %263 = vmatpush1.msra.mxu0 %v249
    %264 = vmatprep.subr.mxu0 0.0
    %265 = vmatpush1.msra.mxu0 %v248
    %266 = vmatprep.subr.mxu0 0.0
    %267 = vmatpush1.msra.mxu0 %v247
    %268 = vmatprep.subr.mxu0 0.0
    %269 = vmatpush1.msra.mxu0 %v246
    %270 = vmatprep.subr.mxu0 0.0
    %271 = vmatpush1.msra.mxu0 %v245
    %272 = vmatprep.subr.mxu0 0.0
    %273 = vmatpush1.msra.mxu0 %v244
    %274 = vmatprep.subr.mxu0 0.0
    %275 = vmatpush1.msra.mxu0 %v243
    %276 = vmatprep.subr.mxu0 0.0
    %277 = vmatpush1.msra.mxu0 %v242
    %278 = vmatprep.subr.mxu0 0.0
    %279 = vmatpush1.msra.mxu0 %v241
    %280 = vmatprep.subr.mxu0 0.0
    %281 = vmatpush1.msra.mxu0 %v240
    %282 = vmatprep.subr.mxu0 0.0
    %283 = vmatpush1.msra.mxu0 %v239
    %284 = vmatprep.subr.mxu0 0.0
    %285 = vmatpush1.msra.mxu0 %v238
    %286 = vmatprep.subr.mxu0 0.0
    %287 = vmatpush2.msra.mxu0 0.0
    %288 = vmatprep.subr.mxu0 0.0
    %289 = vmatpush2.msra.mxu0 0.0
    %290 = vmatprep.subr.mxu0 0.0
    %291 = vmatpush2.msra.mxu0 0.0
    %292 = vmatprep.subr.mxu0 0.0
    %293 = vmatpush2.msra.mxu0 0.0
    %294 = vmatprep.subr.mxu0 0.0
    %295 = vmatpush2.msra.mxu0 0.0
    %296 = vmatprep.subr.mxu0 0.0
    %297 = vmatpush2.msra.mxu0 0.0
    %298 = vmatprep.subr.mxu0 0.0
    %299 = vmatpush2.msra.mxu0 0.0
    %300 = vmatprep.subr.mxu0 0.0
    %301 = vmatpush2.msra.mxu0 0.0
    %302 = vmatprep.subr.mxu0 0.0
    %303 = vmatpush2.msra.mxu0 0.0
    %304 = vmatprep.subr.mxu0 0.0
    %305 = vmatpush2.msra.mxu0 0.0
    %306 = vmatprep.subr.mxu0 0.0
    %307 = vmatpush2.msra.mxu0 0.0
    %308 = vmatprep.subr.mxu0 0.0
    %309 = vmatpush2.msra.mxu0 0.0
    %310 = vmatprep.subr.mxu0 0.0
    %311 = vmatpush2.msra.mxu0 0.0
    %312 = vmatprep.subr.mxu0 0.0
    %313 = vmatpush2.msra.mxu0 0.0
    %314 = vmatprep.subr.mxu0 0.0
    %315 = vmatpush2.msra.mxu0 0.0
    %316 = vmatprep.subr.mxu0 0.0
    %317 = vmatpush2.msra.mxu0 0.0
    %318 = vmatprep.mubr.f32.mxu0 0.0
    %319 = vmatmul.mubr.f32.gmra.mxu0 %v234
    %v320 = vpop.f32.mrf.mxu0
    %v321 = vadd.f32 0.0, %v320
    %v322 = vpop.f32.mrf.mxu0
    %323 = vmatprep.mubr.f32.mxu0 0.0
    %324 = vmatmul.mubr.f32.gmra.mxu0 %v235
    %v325 = vpop.f32.mrf.mxu0
    %v326 = vadd.f32 0.0, %v325
    %v327 = vpop.f32.mrf.mxu0
    %328 = vmatprep.mubr.f32.mxu0 0.0
    %329 = vmatmul.mubr.f32.gmra.mxu0 %v236
    %v330 = vpop.f32.mrf.mxu0
    %v331 = vadd.f32 0.0, %v330
    %v332 = vpop.f32.mrf.mxu0
    %333 = vmatprep.mubr.f32.mxu0 0.0
    %334 = vmatmul.mubr.f32.gmra.mxu0 %v237
    %v335 = vpop.f32.mrf.mxu0
    %v336 = vadd.f32 0.0, %v335
    %v337 = vpop.f32.mrf.mxu0
    %338 = vdwg.mxu0
    %v339 = vmax.f32 %v321, 0.0
    %v340 = vmax.f32 %v326, 0.0
    %v341 = vmax.f32 %v331, 0.0
    %v342 = vmax.f32 %v336, 0.0
    %343 = vst [vmem:[#allocation2] sm:$0xff] %v339
    %344 = vst [vmem:[#allocation2 + $0x8] sm:$0xff] %v340
    %345 = vst [vmem:[#allocation2 + $0x10] sm:$0xff] %v341
    %346 = vst [vmem:[#allocation2 + $0x18] sm:$0xff] %v342
    %v347 = vld [vmem:[#allocation8] sm:$0xff]
    %v348 = vld [vmem:[#allocation8 + $0x8] sm:$0xff]
    %v349 = vld [vmem:[#allocation8 + $0x10] sm:$0xff]
    %v350 = vld [vmem:[#allocation8 + $0x18] sm:$0xff]
    %v351 = vld [vmem:[#allocation8 + $0x20] sm:$0xff]
    %v352 = vld [vmem:[#allocation8 + $0x28] sm:$0xff]
    %v353 = vld [vmem:[#allocation8 + $0x30] sm:$0xff]
    %v354 = vld [vmem:[#allocation8 + $0x38] sm:$0xff]
    %v355 = vld [vmem:[%s3] sm:$0xff]
    %v356 = vld [vmem:[#allocation6] sm:$0xff]
    %v357 = vld [vmem:[#allocation6 + $0x8] sm:$0xff]
    %v358 = vld [vmem:[#allocation6 + $0x10] sm:$0xff]
    %v359 = vld [vmem:[#allocation6 + $0x18] sm:$0xff]
    %v360 = vld [vmem:[#allocation6 + $0x20] sm:$0xff]
    %v361 = vld [vmem:[#allocation6 + $0x28] sm:$0xff]
    %v362 = vld [vmem:[#allocation6 + $0x30] sm:$0xff]
    %v363 = vld [vmem:[#allocation6 + $0x38] sm:$0xff]
    %v364 = vld [vmem:[%s14] sm:$0xff]
    %v365 = vld [vmem:[%s11] sm:$0xff]
    %v367 = vlaneseq
    %v368 = vshrl.u32 %v367, 7
    %v369 = vsub.s32 0, %v368
    %v370 = vrot.slane %v365, %v369
    %v371 = vlaneseq
    %v372 = vshrl.u32 %v371, 7
    %v373 = vsub.s32 1, %v372
    %v374 = vrot.slane %v365, %v373
    %v375 = vlaneseq
    %v376 = vshrl.u32 %v375, 7
    %v377 = vsub.s32 2, %v376
    %v378 = vrot.slane %v365, %v377
    %v379 = vlaneseq
    %v380 = vshrl.u32 %v379, 7
    %v381 = vsub.s32 3, %v380
    %v382 = vrot.slane %v365, %v381
    %v383 = vlaneseq
    %v384 = vshrl.u32 %v383, 7
    %v385 = vsub.s32 4, %v384
    %v386 = vrot.slane %v365, %v385
    %v387 = vlaneseq
    %v388 = vshrl.u32 %v387, 7
    %v389 = vsub.s32 5, %v388
    %v390 = vrot.slane %v365, %v389
    %v391 = vlaneseq
    %v392 = vshrl.u32 %v391, 7
    %v393 = vsub.s32 6, %v392
    %v394 = vrot.slane %v365, %v393
    %v395 = vlaneseq
    %v396 = vshrl.u32 %v395, 7
    %v397 = vsub.s32 7, %v396
    %v398 = vrot.slane %v365, %v397
    %v407 = vld [vmem:[%s8] sm:$0xf]
    %v409 = vlaneseq
    %v410 = vshrl.u32 %v409, 7
    %v411 = vsub.s32 0, %v410
    %v412 = vrot.slane %v407, %v411
    %v413 = vlaneseq
    %v414 = vshrl.u32 %v413, 7
    %v415 = vsub.s32 1, %v414
    %v416 = vrot.slane %v407, %v415
    %v417 = vlaneseq
    %v418 = vshrl.u32 %v417, 7
    %v419 = vsub.s32 2, %v418
    %v420 = vrot.slane %v407, %v419
    %v421 = vlaneseq
    %v422 = vshrl.u32 %v421, 7
    %v423 = vsub.s32 3, %v422
    %v424 = vrot.slane %v407, %v423
    %v429 = vld [vmem:[%s8 + $0x4] sm:$0xf]
    %v431 = vlaneseq
    %v432 = vshrl.u32 %v431, 7
    %v433 = vsub.s32 0, %v432
    %v434 = vrot.slane %v429, %v433
    %v435 = vlaneseq
    %v436 = vshrl.u32 %v435, 7
    %v437 = vsub.s32 1, %v436
    %v438 = vrot.slane %v429, %v437
    %v439 = vlaneseq
    %v440 = vshrl.u32 %v439, 7
    %v441 = vsub.s32 2, %v440
    %v442 = vrot.slane %v429, %v441
    %v443 = vlaneseq
    %v444 = vshrl.u32 %v443, 7
    %v445 = vsub.s32 3, %v444
    %v446 = vrot.slane %v429, %v445
    %v451 = vld [vmem:[%s13] sm:$0x1]
    %v453 = vlaneseq
    %v454 = vshrl.u32 %v453, 7
    %v455 = vsub.s32 0, %v454
    %v456 = vrot.slane %v451, %v455
    %v458 = vld [vmem:[%s4] sm:$0x1]
    %v460 = vlaneseq
    %v461 = vshrl.u32 %v460, 7
    %v462 = vsub.s32 0, %v461
    %v463 = vrot.slane %v458, %v462
    %v465 = vld [vmem:[%s4 + $0x1] sm:$0x1]
    %v467 = vlaneseq
    %v468 = vshrl.u32 %v467, 7
    %v469 = vsub.s32 0, %v468
    %v470 = vrot.slane %v465, %v469
    %v472 = vld [vmem:[#allocation2] sm:$0xff]
    %v473 = vld [vmem:[#allocation9] sm:$0xff]
    %v474 = vld [vmem:[#allocation9 + $0x8] sm:$0xff]
    %v475 = vld [vmem:[#allocation9 + $0x10] sm:$0xff]
    %v476 = vld [vmem:[#allocation9 + $0x18] sm:$0xff]
    %v477 = vld [vmem:[#allocation9 + $0x20] sm:$0xff]
    %v478 = vld [vmem:[#allocation9 + $0x28] sm:$0xff]
    %v479 = vld [vmem:[#allocation9 + $0x30] sm:$0xff]
    %v480 = vld [vmem:[#allocation9 + $0x38] sm:$0xff]
    %v481 = vld [vmem:[#allocation9 + $0x40] sm:$0xff]
    %v482 = vld [vmem:[#allocation9 + $0x48] sm:$0xff]
    %v483 = vld [vmem:[#allocation9 + $0x50] sm:$0xff]
    %v484 = vld [vmem:[#allocation9 + $0x58] sm:$0xff]
    %v485 = vld [vmem:[#allocation9 + $0x60] sm:$0xff]
    %v486 = vld [vmem:[#allocation9 + $0x68] sm:$0xff]
    %v487 = vld [vmem:[#allocation9 + $0x70] sm:$0xff]
    %v488 = vld [vmem:[#allocation9 + $0x78] sm:$0xff]
    %v489 = vld [vmem:[#allocation9 + $0x80] sm:$0xff]
    %v490 = vld [vmem:[#allocation9 + $0x88] sm:$0xff]
    %v491 = vld [vmem:[#allocation9 + $0x90] sm:$0xff]
    %v492 = vld [vmem:[#allocation9 + $0x98] sm:$0xff]
    %v493 = vld [vmem:[#allocation9 + $0xa0] sm:$0xff]
    %v494 = vld [vmem:[#allocation9 + $0xa8] sm:$0xff]
    %v495 = vld [vmem:[#allocation9 + $0xb0] sm:$0xff]
    %v496 = vld [vmem:[#allocation9 + $0xb8] sm:$0xff]
    %v497 = vld [vmem:[#allocation9 + $0xc0] sm:$0xff]
    %v498 = vld [vmem:[#allocation9 + $0xc8] sm:$0xff]
    %v499 = vld [vmem:[#allocation9 + $0xd0] sm:$0xff]
    %v500 = vld [vmem:[#allocation9 + $0xd8] sm:$0xff]
    %v501 = vld [vmem:[#allocation9 + $0xe0] sm:$0xff]
    %v502 = vld [vmem:[#allocation9 + $0xe8] sm:$0xff]
    %v503 = vld [vmem:[#allocation9 + $0xf0] sm:$0xff]
    %v504 = vld [vmem:[#allocation9 + $0xf8] sm:$0xff]
    %v505 = vld [vmem:[#allocation9 + $0x100] sm:$0xff]
    %v506 = vld [vmem:[#allocation9 + $0x108] sm:$0xff]
    %v507 = vld [vmem:[#allocation9 + $0x110] sm:$0xff]
    %v508 = vld [vmem:[#allocation9 + $0x118] sm:$0xff]
    %v509 = vld [vmem:[#allocation9 + $0x120] sm:$0xff]
    %v510 = vld [vmem:[#allocation9 + $0x128] sm:$0xff]
    %v511 = vld [vmem:[#allocation9 + $0x130] sm:$0xff]
    %v512 = vld [vmem:[#allocation9 + $0x138] sm:$0xff]
    %v513 = vld [vmem:[#allocation9 + $0x140] sm:$0xff]
    %v514 = vld [vmem:[#allocation9 + $0x148] sm:$0xff]
    %v515 = vld [vmem:[#allocation9 + $0x150] sm:$0xff]
    %v516 = vld [vmem:[#allocation9 + $0x158] sm:$0xff]
    %v517 = vld [vmem:[#allocation9 + $0x160] sm:$0xff]
    %v518 = vld [vmem:[#allocation9 + $0x168] sm:$0xff]
    %v519 = vld [vmem:[#allocation9 + $0x170] sm:$0xff]
    %v520 = vld [vmem:[#allocation9 + $0x178] sm:$0xff]
    %v521 = vld [vmem:[#allocation9 + $0x180] sm:$0xff]
    %v522 = vld [vmem:[#allocation9 + $0x188] sm:$0xff]
    %v523 = vld [vmem:[#allocation9 + $0x190] sm:$0xff]
    %v524 = vld [vmem:[#allocation9 + $0x198] sm:$0xff]
    %v525 = vld [vmem:[#allocation9 + $0x1a0] sm:$0xff]
    %v526 = vld [vmem:[#allocation9 + $0x1a8] sm:$0xff]
    %v527 = vld [vmem:[#allocation9 + $0x1b0] sm:$0xff]
    %v528 = vld [vmem:[#allocation9 + $0x1b8] sm:$0xff]
    %v529 = vld [vmem:[#allocation9 + $0x1c0] sm:$0xff]
    %v530 = vld [vmem:[#allocation9 + $0x1c8] sm:$0xff]
    %v531 = vld [vmem:[#allocation9 + $0x1d0] sm:$0xff]
    %v532 = vld [vmem:[#allocation9 + $0x1d8] sm:$0xff]
    %v533 = vld [vmem:[#allocation9 + $0x1e0] sm:$0xff]
    %v534 = vld [vmem:[#allocation9 + $0x1e8] sm:$0xff]
    %v535 = vld [vmem:[#allocation9 + $0x1f0] sm:$0xff]
    %v536 = vld [vmem:[#allocation9 + $0x1f8] sm:$0xff]
    %v537 = vld [vmem:[#allocation9 + $0x200] sm:$0xff]
    %v538 = vld [vmem:[#allocation9 + $0x208] sm:$0xff]
    %v539 = vld [vmem:[#allocation9 + $0x210] sm:$0xff]
    %v540 = vld [vmem:[#allocation9 + $0x218] sm:$0xff]
    %v541 = vld [vmem:[#allocation9 + $0x220] sm:$0xff]
    %v542 = vld [vmem:[#allocation9 + $0x228] sm:$0xff]
    %v543 = vld [vmem:[#allocation9 + $0x230] sm:$0xff]
    %v544 = vld [vmem:[#allocation9 + $0x238] sm:$0xff]
    %v545 = vld [vmem:[#allocation9 + $0x240] sm:$0xff]
    %v546 = vld [vmem:[#allocation9 + $0x248] sm:$0xff]
    %v547 = vld [vmem:[#allocation9 + $0x250] sm:$0xff]
    %v548 = vld [vmem:[#allocation9 + $0x258] sm:$0xff]
    %v549 = vld [vmem:[#allocation9 + $0x260] sm:$0xff]
    %v550 = vld [vmem:[#allocation9 + $0x268] sm:$0xff]
    %v551 = vld [vmem:[#allocation9 + $0x270] sm:$0xff]
    %v552 = vld [vmem:[#allocation9 + $0x278] sm:$0xff]
    %v553 = vld [vmem:[#allocation9 + $0x280] sm:$0xff]
    %v554 = vld [vmem:[#allocation9 + $0x288] sm:$0xff]
    %v555 = vld [vmem:[#allocation9 + $0x290] sm:$0xff]
    %v556 = vld [vmem:[#allocation9 + $0x298] sm:$0xff]
    %v557 = vld [vmem:[#allocation9 + $0x2a0] sm:$0xff]
    %v558 = vld [vmem:[#allocation9 + $0x2a8] sm:$0xff]
    %v559 = vld [vmem:[#allocation9 + $0x2b0] sm:$0xff]
    %v560 = vld [vmem:[#allocation9 + $0x2b8] sm:$0xff]
    %v561 = vld [vmem:[#allocation9 + $0x2c0] sm:$0xff]
    %v562 = vld [vmem:[#allocation9 + $0x2c8] sm:$0xff]
    %v563 = vld [vmem:[#allocation9 + $0x2d0] sm:$0xff]
    %v564 = vld [vmem:[#allocation9 + $0x2d8] sm:$0xff]
    %v565 = vld [vmem:[#allocation9 + $0x2e0] sm:$0xff]
    %v566 = vld [vmem:[#allocation9 + $0x2e8] sm:$0xff]
    %v567 = vld [vmem:[#allocation9 + $0x2f0] sm:$0xff]
    %v568 = vld [vmem:[#allocation9 + $0x2f8] sm:$0xff]
    %v569 = vld [vmem:[#allocation9 + $0x300] sm:$0xff]
    %v570 = vld [vmem:[#allocation9 + $0x308] sm:$0xff]
    %v571 = vld [vmem:[#allocation9 + $0x310] sm:$0xff]
    %v572 = vld [vmem:[#allocation9 + $0x318] sm:$0xff]
    %v573 = vld [vmem:[#allocation9 + $0x320] sm:$0xff]
    %v574 = vld [vmem:[#allocation9 + $0x328] sm:$0xff]
    %v575 = vld [vmem:[#allocation9 + $0x330] sm:$0xff]
    %v576 = vld [vmem:[#allocation9 + $0x338] sm:$0xff]
    %v577 = vld [vmem:[#allocation9 + $0x340] sm:$0xff]
    %v578 = vld [vmem:[#allocation9 + $0x348] sm:$0xff]
    %v579 = vld [vmem:[#allocation9 + $0x350] sm:$0xff]
    %v580 = vld [vmem:[#allocation9 + $0x358] sm:$0xff]
    %v581 = vld [vmem:[#allocation9 + $0x360] sm:$0xff]
    %v582 = vld [vmem:[#allocation9 + $0x368] sm:$0xff]
    %v583 = vld [vmem:[#allocation9 + $0x370] sm:$0xff]
    %v584 = vld [vmem:[#allocation9 + $0x378] sm:$0xff]
    %v585 = vld [vmem:[#allocation9 + $0x380] sm:$0xff]
    %v586 = vld [vmem:[#allocation9 + $0x388] sm:$0xff]
    %v587 = vld [vmem:[#allocation9 + $0x390] sm:$0xff]
    %v588 = vld [vmem:[#allocation9 + $0x398] sm:$0xff]
    %v589 = vld [vmem:[#allocation9 + $0x3a0] sm:$0xff]
    %v590 = vld [vmem:[#allocation9 + $0x3a8] sm:$0xff]
    %v591 = vld [vmem:[#allocation9 + $0x3b0] sm:$0xff]
    %v592 = vld [vmem:[#allocation9 + $0x3b8] sm:$0xff]
    %v593 = vld [vmem:[#allocation9 + $0x3c0] sm:$0xff]
    %v594 = vld [vmem:[#allocation9 + $0x3c8] sm:$0xff]
    %v595 = vld [vmem:[#allocation9 + $0x3d0] sm:$0xff]
    %v596 = vld [vmem:[#allocation9 + $0x3d8] sm:$0xff]
    %v597 = vld [vmem:[#allocation9 + $0x3e0] sm:$0xff]
    %v598 = vld [vmem:[#allocation9 + $0x3e8] sm:$0xff]
    %v599 = vld [vmem:[#allocation9 + $0x3f0] sm:$0xff]
    %v600 = vld [vmem:[#allocation9 + $0x3f8] sm:$0xff]
    %v601 = vld [vmem:[#allocation9 + $0x400] sm:$0xff]
    %v602 = vld [vmem:[#allocation9 + $0x408] sm:$0xff]
    %v603 = vld [vmem:[#allocation9 + $0x410] sm:$0xff]
    %v604 = vld [vmem:[#allocation9 + $0x418] sm:$0xff]
    %v605 = vld [vmem:[#allocation9 + $0x420] sm:$0xff]
    %v606 = vld [vmem:[#allocation9 + $0x428] sm:$0xff]
    %v607 = vld [vmem:[#allocation9 + $0x430] sm:$0xff]
    %v608 = vld [vmem:[#allocation9 + $0x438] sm:$0xff]
    %v609 = vld [vmem:[#allocation9 + $0x440] sm:$0xff]
    %v610 = vld [vmem:[#allocation9 + $0x448] sm:$0xff]
    %v611 = vld [vmem:[#allocation9 + $0x450] sm:$0xff]
    %v612 = vld [vmem:[#allocation9 + $0x458] sm:$0xff]
    %v613 = vld [vmem:[#allocation9 + $0x460] sm:$0xff]
    %v614 = vld [vmem:[#allocation9 + $0x468] sm:$0xff]
    %v615 = vld [vmem:[#allocation9 + $0x470] sm:$0xff]
    %v616 = vld [vmem:[#allocation9 + $0x478] sm:$0xff]
    %v617 = vld [vmem:[#allocation9 + $0x480] sm:$0xff]
    %v618 = vld [vmem:[#allocation9 + $0x488] sm:$0xff]
    %v619 = vld [vmem:[#allocation9 + $0x490] sm:$0xff]
    %v620 = vld [vmem:[#allocation9 + $0x498] sm:$0xff]
    %v621 = vld [vmem:[#allocation9 + $0x4a0] sm:$0xff]
    %v622 = vld [vmem:[#allocation9 + $0x4a8] sm:$0xff]
    %v623 = vld [vmem:[#allocation9 + $0x4b0] sm:$0xff]
    %v624 = vld [vmem:[#allocation9 + $0x4b8] sm:$0xff]
    %v625 = vld [vmem:[#allocation9 + $0x4c0] sm:$0xff]
    %v626 = vld [vmem:[#allocation9 + $0x4c8] sm:$0xff]
    %v627 = vld [vmem:[#allocation9 + $0x4d0] sm:$0xff]
    %v628 = vld [vmem:[#allocation9 + $0x4d8] sm:$0xff]
    %v629 = vld [vmem:[#allocation9 + $0x4e0] sm:$0xff]
    %v630 = vld [vmem:[#allocation9 + $0x4e8] sm:$0xff]
    %v631 = vld [vmem:[#allocation9 + $0x4f0] sm:$0xff]
    %v632 = vld [vmem:[#allocation9 + $0x4f8] sm:$0xff]
    %v633 = vld [vmem:[#allocation9 + $0x500] sm:$0xff]
    %v634 = vld [vmem:[#allocation9 + $0x508] sm:$0xff]
    %v635 = vld [vmem:[#allocation9 + $0x510] sm:$0xff]
    %v636 = vld [vmem:[#allocation9 + $0x518] sm:$0xff]
    %v637 = vld [vmem:[#allocation9 + $0x520] sm:$0xff]
    %v638 = vld [vmem:[#allocation9 + $0x528] sm:$0xff]
    %v639 = vld [vmem:[#allocation9 + $0x530] sm:$0xff]
    %v640 = vld [vmem:[#allocation9 + $0x538] sm:$0xff]
    %v641 = vld [vmem:[#allocation9 + $0x540] sm:$0xff]
    %v642 = vld [vmem:[#allocation9 + $0x548] sm:$0xff]
    %v643 = vld [vmem:[#allocation9 + $0x550] sm:$0xff]
    %v644 = vld [vmem:[#allocation9 + $0x558] sm:$0xff]
    %v645 = vld [vmem:[#allocation9 + $0x560] sm:$0xff]
    %v646 = vld [vmem:[#allocation9 + $0x568] sm:$0xff]
    %v647 = vld [vmem:[#allocation9 + $0x570] sm:$0xff]
    %v648 = vld [vmem:[#allocation9 + $0x578] sm:$0xff]
    %v649 = vld [vmem:[#allocation9 + $0x580] sm:$0xff]
    %v650 = vld [vmem:[#allocation9 + $0x588] sm:$0xff]
    %v651 = vld [vmem:[#allocation9 + $0x590] sm:$0xff]
    %v652 = vld [vmem:[#allocation9 + $0x598] sm:$0xff]
    %v653 = vld [vmem:[#allocation9 + $0x5a0] sm:$0xff]
    %v654 = vld [vmem:[#allocation9 + $0x5a8] sm:$0xff]
    %v655 = vld [vmem:[#allocation9 + $0x5b0] sm:$0xff]
    %v656 = vld [vmem:[#allocation9 + $0x5b8] sm:$0xff]
    %v657 = vld [vmem:[#allocation9 + $0x5c0] sm:$0xff]
    %v658 = vld [vmem:[#allocation9 + $0x5c8] sm:$0xff]
    %v659 = vld [vmem:[#allocation9 + $0x5d0] sm:$0xff]
    %v660 = vld [vmem:[#allocation9 + $0x5d8] sm:$0xff]
    %v661 = vld [vmem:[#allocation9 + $0x5e0] sm:$0xff]
    %v662 = vld [vmem:[#allocation9 + $0x5e8] sm:$0xff]
    %v663 = vld [vmem:[#allocation9 + $0x5f0] sm:$0xff]
    %v664 = vld [vmem:[#allocation9 + $0x5f8] sm:$0xff]
    %665 = vmatprep.subr.mxu0 %v534
    %666 = vmatpush1.msra.mxu0 %v533
    %667 = vmatprep.subr.mxu0 %v530
    %668 = vmatpush1.msra.mxu0 %v529
    %669 = vmatprep.subr.mxu0 %v526
    %670 = vmatpush1.msra.mxu0 %v525
    %671 = vmatprep.subr.mxu0 %v522
    %672 = vmatpush1.msra.mxu0 %v521
    %673 = vmatprep.subr.mxu0 %v518
    %674 = vmatpush1.msra.mxu0 %v517
    %675 = vmatprep.subr.mxu0 %v514
    %676 = vmatpush1.msra.mxu0 %v513
    %677 = vmatprep.subr.mxu0 %v510
    %678 = vmatpush1.msra.mxu0 %v509
    %679 = vmatprep.subr.mxu0 %v506
    %680 = vmatpush1.msra.mxu0 %v505
    %681 = vmatprep.subr.mxu0 %v502
    %682 = vmatpush1.msra.mxu0 %v501
    %683 = vmatprep.subr.mxu0 %v498
    %684 = vmatpush1.msra.mxu0 %v497
    %685 = vmatprep.subr.mxu0 %v494
    %686 = vmatpush1.msra.mxu0 %v493
    %687 = vmatprep.subr.mxu0 %v490
    %688 = vmatpush1.msra.mxu0 %v489
    %689 = vmatprep.subr.mxu0 %v486
    %690 = vmatpush1.msra.mxu0 %v485
    %691 = vmatprep.subr.mxu0 %v482
    %692 = vmatpush1.msra.mxu0 %v481
    %693 = vmatprep.subr.mxu0 %v478
    %694 = vmatpush1.msra.mxu0 %v477
    %695 = vmatprep.subr.mxu0 %v474
    %696 = vmatpush1.msra.mxu0 %v473
    %697 = vmatprep.subr.mxu0 %v598
    %698 = vmatpush2.msra.mxu0 %v597
    %699 = vmatprep.subr.mxu0 %v594
    %700 = vmatpush2.msra.mxu0 %v593
    %701 = vmatprep.subr.mxu0 %v590
    %702 = vmatpush2.msra.mxu0 %v589
    %703 = vmatprep.subr.mxu0 %v586
    %704 = vmatpush2.msra.mxu0 %v585
    %705 = vmatprep.subr.mxu0 %v582
    %706 = vmatpush2.msra.mxu0 %v581
    %707 = vmatprep.subr.mxu0 %v578
    %708 = vmatpush2.msra.mxu0 %v577
    %709 = vmatprep.subr.mxu0 %v574
    %710 = vmatpush2.msra.mxu0 %v573
    %711 = vmatprep.subr.mxu0 %v570
    %712 = vmatpush2.msra.mxu0 %v569
    %713 = vmatprep.subr.mxu0 %v566
    %714 = vmatpush2.msra.mxu0 %v565
    %715 = vmatprep.subr.mxu0 %v562
    %716 = vmatpush2.msra.mxu0 %v561
    %717 = vmatprep.subr.mxu0 %v558
    %718 = vmatpush2.msra.mxu0 %v557
    %719 = vmatprep.subr.mxu0 %v554
    %720 = vmatpush2.msra.mxu0 %v553
    %721 = vmatprep.subr.mxu0 %v550
    %722 = vmatpush2.msra.mxu0 %v549
    %723 = vmatprep.subr.mxu0 %v546
    %724 = vmatpush2.msra.mxu0 %v545
    %725 = vmatprep.subr.mxu0 %v542
    %726 = vmatpush2.msra.mxu0 %v541
    %727 = vmatprep.subr.mxu0 %v538
    %728 = vmatpush2.msra.mxu0 %v537
    %729 = vmatprep.mubr.f32.mxu0 0.0
    %730 = vmatmul.mubr.f32.gmra.mxu0 %v472
    %v731 = vpop.f32.mrf.mxu0
    %v732 = vadd.f32 %v412, %v731
    %v733 = vpop.f32.mrf.mxu0
    %v734 = vadd.f32 %v416, %v733
    %735 = vdwg.mxu0
    %736 = vmatprep.subr.mxu0 %v662
    %737 = vmatpush1.msra.mxu0 %v661
    %738 = vmatprep.subr.mxu0 %v658
    %739 = vmatpush1.msra.mxu0 %v657
    %740 = vmatprep.subr.mxu0 %v654
    %741 = vmatpush1.msra.mxu0 %v653
    %742 = vmatprep.subr.mxu0 %v650
    %743 = vmatpush1.msra.mxu0 %v649
    %744 = vmatprep.subr.mxu0 %v646
    %745 = vmatpush1.msra.mxu0 %v645
    %746 = vmatprep.subr.mxu0 %v642
    %747 = vmatpush1.msra.mxu0 %v641
    %748 = vmatprep.subr.mxu0 %v638
    %749 = vmatpush1.msra.mxu0 %v637
    %750 = vmatprep.subr.mxu0 %v634
    %751 = vmatpush1.msra.mxu0 %v633
    %752 = vmatprep.subr.mxu0 %v630
    %753 = vmatpush1.msra.mxu0 %v629
    %754 = vmatprep.subr.mxu0 %v626
    %755 = vmatpush1.msra.mxu0 %v625
    %756 = vmatprep.subr.mxu0 %v622
    %757 = vmatpush1.msra.mxu0 %v621
    %758 = vmatprep.subr.mxu0 %v618
    %759 = vmatpush1.msra.mxu0 %v617
    %760 = vmatprep.subr.mxu0 %v614
    %761 = vmatpush1.msra.mxu0 %v613
    %762 = vmatprep.subr.mxu0 %v610
    %763 = vmatpush1.msra.mxu0 %v609
    %764 = vmatprep.subr.mxu0 %v606
    %765 = vmatpush1.msra.mxu0 %v605
    %766 = vmatprep.subr.mxu0 %v602
    %767 = vmatpush1.msra.mxu0 %v601
    %768 = vmatprep.subr.mxu0 0.0
    %769 = vmatpush2.msra.mxu0 0.0
    %770 = vmatprep.subr.mxu0 0.0
    %771 = vmatpush2.msra.mxu0 0.0
    %772 = vmatprep.subr.mxu0 0.0
    %773 = vmatpush2.msra.mxu0 0.0
    %774 = vmatprep.subr.mxu0 0.0
    %775 = vmatpush2.msra.mxu0 0.0
    %776 = vmatprep.subr.mxu0 0.0
    %777 = vmatpush2.msra.mxu0 0.0
    %778 = vmatprep.subr.mxu0 0.0
    %779 = vmatpush2.msra.mxu0 0.0
    %780 = vmatprep.subr.mxu0 0.0
    %781 = vmatpush2.msra.mxu0 0.0
    %782 = vmatprep.subr.mxu0 0.0
    %783 = vmatpush2.msra.mxu0 0.0
    %784 = vmatprep.subr.mxu0 0.0
    %785 = vmatpush2.msra.mxu0 0.0
    %786 = vmatprep.subr.mxu0 0.0
    %787 = vmatpush2.msra.mxu0 0.0
    %788 = vmatprep.subr.mxu0 0.0
    %789 = vmatpush2.msra.mxu0 0.0
    %790 = vmatprep.subr.mxu0 0.0
    %791 = vmatpush2.msra.mxu0 0.0
    %792 = vmatprep.subr.mxu0 0.0
    %793 = vmatpush2.msra.mxu0 0.0
    %794 = vmatprep.subr.mxu0 0.0
    %795 = vmatpush2.msra.mxu0 0.0
    %796 = vmatprep.subr.mxu0 0.0
    %797 = vmatpush2.msra.mxu0 0.0
    %798 = vmatprep.subr.mxu0 0.0
    %799 = vmatpush2.msra.mxu0 0.0
    %800 = vmatprep.mubr.f32.mxu0 0.0
    %801 = vmatmul.mubr.f32.gmra.mxu0 %v463
    %v802 = vpop.f32.mrf.mxu0
    %v803 = vadd.f32 %v732, %v802
    %v804 = vpop.f32.mrf.mxu0
    %v805 = vadd.f32 %v734, %v804
    %806 = vdwg.mxu0
    %807 = vmatprep.subr.mxu0 %v536
    %808 = vmatpush1.msra.mxu0 %v535
    %809 = vmatprep.subr.mxu0 %v532
    %810 = vmatpush1.msra.mxu0 %v531
    %811 = vmatprep.subr.mxu0 %v528
    %812 = vmatpush1.msra.mxu0 %v527
    %813 = vmatprep.subr.mxu0 %v524
    %814 = vmatpush1.msra.mxu0 %v523
    %815 = vmatprep.subr.mxu0 %v520
    %816 = vmatpush1.msra.mxu0 %v519
    %817 = vmatprep.subr.mxu0 %v516
    %818 = vmatpush1.msra.mxu0 %v515
    %819 = vmatprep.subr.mxu0 %v512
    %820 = vmatpush1.msra.mxu0 %v511
    %821 = vmatprep.subr.mxu0 %v508
    %822 = vmatpush1.msra.mxu0 %v507
    %823 = vmatprep.subr.mxu0 %v504
    %824 = vmatpush1.msra.mxu0 %v503
    %825 = vmatprep.subr.mxu0 %v500
    %826 = vmatpush1.msra.mxu0 %v499
    %827 = vmatprep.subr.mxu0 %v496
    %828 = vmatpush1.msra.mxu0 %v495
    %829 = vmatprep.subr.mxu0 %v492
    %830 = vmatpush1.msra.mxu0 %v491
    %831 = vmatprep.subr.mxu0 %v488
    %832 = vmatpush1.msra.mxu0 %v487
    %833 = vmatprep.subr.mxu0 %v484
    %834 = vmatpush1.msra.mxu0 %v483
    %835 = vmatprep.subr.mxu0 %v480
    %836 = vmatpush1.msra.mxu0 %v479
    %837 = vmatprep.subr.mxu0 %v476
    %838 = vmatpush1.msra.mxu0 %v475
    %839 = vmatprep.subr.mxu0 %v600
    %840 = vmatpush2.msra.mxu0 %v599
    %841 = vmatprep.subr.mxu0 %v596
    %842 = vmatpush2.msra.mxu0 %v595
    %843 = vmatprep.subr.mxu0 %v592
    %844 = vmatpush2.msra.mxu0 %v591
    %845 = vmatprep.subr.mxu0 %v588
    %846 = vmatpush2.msra.mxu0 %v587
    %847 = vmatprep.subr.mxu0 %v584
    %848 = vmatpush2.msra.mxu0 %v583
    %849 = vmatprep.subr.mxu0 %v580
    %850 = vmatpush2.msra.mxu0 %v579
    %851 = vmatprep.subr.mxu0 %v576
    %852 = vmatpush2.msra.mxu0 %v575
    %853 = vmatprep.subr.mxu0 %v572
    %854 = vmatpush2.msra.mxu0 %v571
    %855 = vmatprep.subr.mxu0 %v568
    %856 = vmatpush2.msra.mxu0 %v567
    %857 = vmatprep.subr.mxu0 %v564
    %858 = vmatpush2.msra.mxu0 %v563
    %859 = vmatprep.subr.mxu0 %v560
    %860 = vmatpush2.msra.mxu0 %v559
    %861 = vmatprep.subr.mxu0 %v556
    %862 = vmatpush2.msra.mxu0 %v555
    %863 = vmatprep.subr.mxu0 %v552
    %864 = vmatpush2.msra.mxu0 %v551
    %865 = vmatprep.subr.mxu0 %v548
    %866 = vmatpush2.msra.mxu0 %v547
    %867 = vmatprep.subr.mxu0 %v544
    %868 = vmatpush2.msra.mxu0 %v543
    %869 = vmatprep.subr.mxu0 %v540
    %870 = vmatpush2.msra.mxu0 %v539
    %871 = vmatprep.mubr.f32.mxu0 0.0
    %872 = vmatmul.mubr.f32.gmra.mxu0 %v472
    %v873 = vpop.f32.mrf.mxu0
    %v874 = vadd.f32 %v420, %v873
    %v875 = vpop.f32.mrf.mxu0
    %v876 = vadd.f32 %v424, %v875
    %877 = vdwg.mxu0
    %878 = vmatprep.subr.mxu0 %v664
    %879 = vmatpush1.msra.mxu0 %v663
    %880 = vmatprep.subr.mxu0 %v660
    %881 = vmatpush1.msra.mxu0 %v659
    %882 = vmatprep.subr.mxu0 %v656
    %883 = vmatpush1.msra.mxu0 %v655
    %884 = vmatprep.subr.mxu0 %v652
    %885 = vmatpush1.msra.mxu0 %v651
    %886 = vmatprep.subr.mxu0 %v648
    %887 = vmatpush1.msra.mxu0 %v647
    %888 = vmatprep.subr.mxu0 %v644
    %889 = vmatpush1.msra.mxu0 %v643
    %890 = vmatprep.subr.mxu0 %v640
    %891 = vmatpush1.msra.mxu0 %v639
    %892 = vmatprep.subr.mxu0 %v636
    %893 = vmatpush1.msra.mxu0 %v635
    %894 = vmatprep.subr.mxu0 %v632
    %895 = vmatpush1.msra.mxu0 %v631
    %896 = vmatprep.subr.mxu0 %v628
    %897 = vmatpush1.msra.mxu0 %v627
    %898 = vmatprep.subr.mxu0 %v624
    %899 = vmatpush1.msra.mxu0 %v623
    %900 = vmatprep.subr.mxu0 %v620
    %901 = vmatpush1.msra.mxu0 %v619
    %902 = vmatprep.subr.mxu0 %v616
    %903 = vmatpush1.msra.mxu0 %v615
    %904 = vmatprep.subr.mxu0 %v612
    %905 = vmatpush1.msra.mxu0 %v611
    %906 = vmatprep.subr.mxu0 %v608
    %907 = vmatpush1.msra.mxu0 %v607
    %908 = vmatprep.subr.mxu0 %v604
    %909 = vmatpush1.msra.mxu0 %v603
    %910 = vmatprep.subr.mxu0 0.0
    %911 = vmatpush2.msra.mxu0 0.0
    %912 = vmatprep.subr.mxu0 0.0
    %913 = vmatpush2.msra.mxu0 0.0
    %914 = vmatprep.subr.mxu0 0.0
    %915 = vmatpush2.msra.mxu0 0.0
    %916 = vmatprep.subr.mxu0 0.0
    %917 = vmatpush2.msra.mxu0 0.0
    %918 = vmatprep.subr.mxu0 0.0
    %919 = vmatpush2.msra.mxu0 0.0
    %920 = vmatprep.subr.mxu0 0.0
    %921 = vmatpush2.msra.mxu0 0.0
    %922 = vmatprep.subr.mxu0 0.0
    %923 = vmatpush2.msra.mxu0 0.0
    %924 = vmatprep.subr.mxu0 0.0
    %925 = vmatpush2.msra.mxu0 0.0
    %926 = vmatprep.subr.mxu0 0.0
    %927 = vmatpush2.msra.mxu0 0.0
    %928 = vmatprep.subr.mxu0 0.0
    %929 = vmatpush2.msra.mxu0 0.0
    %930 = vmatprep.subr.mxu0 0.0
    %931 = vmatpush2.msra.mxu0 0.0
    %932 = vmatprep.subr.mxu0 0.0
    %933 = vmatpush2.msra.mxu0 0.0
    %934 = vmatprep.subr.mxu0 0.0
    %935 = vmatpush2.msra.mxu0 0.0
    %936 = vmatprep.subr.mxu0 0.0
    %937 = vmatpush2.msra.mxu0 0.0
    %938 = vmatprep.subr.mxu0 0.0
    %939 = vmatpush2.msra.mxu0 0.0
    %940 = vmatprep.subr.mxu0 0.0
    %941 = vmatpush2.msra.mxu0 0.0
    %942 = vmatprep.mubr.f32.mxu0 0.0
    %943 = vmatmul.mubr.f32.gmra.mxu0 %v463
    %v944 = vpop.f32.mrf.mxu0
    %v945 = vadd.f32 %v874, %v944
    %v946 = vpop.f32.mrf.mxu0
    %v947 = vadd.f32 %v876, %v946
    %948 = vdwg.mxu0
    %v949 = vxor.u32 %v803, 2147483648
    %v950 = vmul.f32 %v949, 1.442695
    %v951 = vpow.pop %v950
    %v952 = vadd.f32 %v951, 1.0
    %v953 = vrcp.pop %v952
    %v954 = vmul.f32 1.0, %v953
    %v955 = vxor.u32 %v805, 2147483648
    %v956 = vmul.f32 %v955, 1.442695
    %v957 = vpow.pop %v956
    %v958 = vadd.f32 %v957, 1.0
    %v959 = vrcp.pop %v958
    %v960 = vmul.f32 1.0, %v959
    %v961 = vtanh.pop %v945
    %v962 = vxor.u32 %v947, 2147483648
    %v963 = vmul.f32 %v962, 1.442695
    %v964 = vpow.pop %v963
    %v965 = vadd.f32 %v964, 1.0
    %v966 = vrcp.pop %v965
    %v967 = vmul.f32 1.0, %v966
    %v968 = vmul.f32 %v960, 0.0
    %v969 = vmul.f32 %v954, %v961
    %v970 = vadd.f32 %v968, %v969
    %v971 = vtanh.pop %v970
    %v972 = vmul.f32 %v967, %v971
    %v973 = vld [vmem:[%s9] sm:$0xff]
    %v974 = vld [vmem:[%s9 + $0x8] sm:$0xff]
    %v975 = vld [vmem:[%s9 + $0x10] sm:$0xff]
    %v976 = vld [vmem:[%s9 + $0x18] sm:$0xff]
    %v977 = vld [vmem:[%s9 + $0x20] sm:$0xff]
    %v978 = vld [vmem:[%s9 + $0x28] sm:$0xff]
    %v979 = vld [vmem:[%s9 + $0x30] sm:$0xff]
    %v980 = vld [vmem:[%s9 + $0x38] sm:$0xff]
    %v981 = vld [vmem:[%s9 + $0x40] sm:$0xff]
    %v982 = vld [vmem:[%s9 + $0x48] sm:$0xff]
    %v983 = vld [vmem:[%s9 + $0x50] sm:$0xff]
    %v984 = vld [vmem:[%s9 + $0x58] sm:$0xff]
    %v985 = vld [vmem:[%s9 + $0x60] sm:$0xff]
    %v986 = vld [vmem:[%s9 + $0x68] sm:$0xff]
    %v987 = vld [vmem:[%s9 + $0x70] sm:$0xff]
    %v988 = vld [vmem:[%s9 + $0x78] sm:$0xff]
    %989 = vmatprep.subr.mxu0 0.0
    %990 = vmatpush1.msra.mxu0 %v988
    %991 = vmatprep.subr.mxu0 0.0
    %992 = vmatpush1.msra.mxu0 %v987
    %993 = vmatprep.subr.mxu0 0.0
    %994 = vmatpush1.msra.mxu0 %v986
    %995 = vmatprep.subr.mxu0 0.0
    %996 = vmatpush1.msra.mxu0 %v985
    %997 = vmatprep.subr.mxu0 0.0
    %998 = vmatpush1.msra.mxu0 %v984
    %999 = vmatprep.subr.mxu0 0.0
    %1000 = vmatpush1.msra.mxu0 %v983
    %1001 = vmatprep.subr.mxu0 0.0
    %1002 = vmatpush1.msra.mxu0 %v982
    %1003 = vmatprep.subr.mxu0 0.0
    %1004 = vmatpush1.msra.mxu0 %v981
    %1005 = vmatprep.subr.mxu0 0.0
    %1006 = vmatpush1.msra.mxu0 %v980
    %1007 = vmatprep.subr.mxu0 0.0
    %1008 = vmatpush1.msra.mxu0 %v979
    %1009 = vmatprep.subr.mxu0 0.0
    %1010 = vmatpush1.msra.mxu0 %v978
    %1011 = vmatprep.subr.mxu0 0.0
    %1012 = vmatpush1.msra.mxu0 %v977
    %1013 = vmatprep.subr.mxu0 0.0
    %1014 = vmatpush1.msra.mxu0 %v976
    %1015 = vmatprep.subr.mxu0 0.0
    %1016 = vmatpush1.msra.mxu0 %v975
    %1017 = vmatprep.subr.mxu0 0.0
    %1018 = vmatpush1.msra.mxu0 %v974
    %1019 = vmatprep.subr.mxu0 0.0
    %1020 = vmatpush1.msra.mxu0 %v973
    %1021 = vmatprep.subr.mxu0 0.0
    %1022 = vmatpush2.msra.mxu0 0.0
    %1023 = vmatprep.subr.mxu0 0.0
    %1024 = vmatpush2.msra.mxu0 0.0
    %1025 = vmatprep.subr.mxu0 0.0
    %1026 = vmatpush2.msra.mxu0 0.0
    %1027 = vmatprep.subr.mxu0 0.0
    %1028 = vmatpush2.msra.mxu0 0.0
    %1029 = vmatprep.subr.mxu0 0.0
    %1030 = vmatpush2.msra.mxu0 0.0
    %1031 = vmatprep.subr.mxu0 0.0
    %1032 = vmatpush2.msra.mxu0 0.0
    %1033 = vmatprep.subr.mxu0 0.0
    %1034 = vmatpush2.msra.mxu0 0.0
    %1035 = vmatprep.subr.mxu0 0.0
    %1036 = vmatpush2.msra.mxu0 0.0
    %1037 = vmatprep.subr.mxu0 0.0
    %1038 = vmatpush2.msra.mxu0 0.0
    %1039 = vmatprep.subr.mxu0 0.0
    %1040 = vmatpush2.msra.mxu0 0.0
    %1041 = vmatprep.subr.mxu0 0.0
    %1042 = vmatpush2.msra.mxu0 0.0
    %1043 = vmatprep.subr.mxu0 0.0
    %1044 = vmatpush2.msra.mxu0 0.0
    %1045 = vmatprep.subr.mxu0 0.0
    %1046 = vmatpush2.msra.mxu0 0.0
    %1047 = vmatprep.subr.mxu0 0.0
    %1048 = vmatpush2.msra.mxu0 0.0
    %1049 = vmatprep.subr.mxu0 0.0
    %1050 = vmatpush2.msra.mxu0 0.0
    %1051 = vmatprep.subr.mxu0 0.0
    %1052 = vmatpush2.msra.mxu0 0.0
    %1053 = vmatprep.mubr.f32.mxu0 0.0
    %1054 = vmatmul.mubr.f32.gmra.mxu0 %v972
    %v1055 = vpop.f32.mrf.mxu0
    %v1056 = vadd.f32 0.0, %v1055
    %v1057 = vpop.f32.mrf.mxu0
    %1058 = vdwg.mxu0
    %v1059 = vld [vmem:[#allocation12] sm:$0xff]
    %v1060 = vld [vmem:[#allocation12 + $0x8] sm:$0xff]
    %v1061 = vld [vmem:[#allocation12 + $0x10] sm:$0xff]
    %v1062 = vld [vmem:[#allocation12 + $0x18] sm:$0xff]
    %v1063 = vld [vmem:[#allocation12 + $0x20] sm:$0xff]
    %v1064 = vld [vmem:[#allocation12 + $0x28] sm:$0xff]
    %v1065 = vld [vmem:[#allocation12 + $0x30] sm:$0xff]
    %v1066 = vld [vmem:[#allocation12 + $0x38] sm:$0xff]
    %v1067 = vld [vmem:[#allocation12 + $0x40] sm:$0xff]
    %v1068 = vld [vmem:[#allocation12 + $0x48] sm:$0xff]
    %v1069 = vld [vmem:[#allocation12 + $0x50] sm:$0xff]
    %v1070 = vld [vmem:[#allocation12 + $0x58] sm:$0xff]
    %v1071 = vld [vmem:[#allocation12 + $0x60] sm:$0xff]
    %v1072 = vld [vmem:[#allocation12 + $0x68] sm:$0xff]
    %v1073 = vld [vmem:[#allocation12 + $0x70] sm:$0xff]
    %v1074 = vld [vmem:[#allocation12 + $0x78] sm:$0xff]
    %vm1075 = vcmask 130048
    %v1077 = vsel %vm1075, 0.0, 0
    %1079 = vmatprep.subr.mxu0 0.0
    %1080 = vmatpush1.msra.mxu0 0.0
    %1081 = vmatprep.subr.mxu0 0.0
    %1082 = vmatpush1.msra.mxu0 0.0
    %1083 = vmatprep.subr.mxu0 0.0
    %1084 = vmatpush1.msra.mxu0 0.0
    %1085 = vmatprep.subr.mxu0 0.0
    %1086 = vmatpush1.msra.mxu0 0.0
    %1087 = vmatprep.subr.mxu0 0.0
    %1088 = vmatpush1.msra.mxu0 0.0
    %1089 = vmatprep.subr.mxu0 0.0
    %1090 = vmatpush1.msra.mxu0 0.0
    %1091 = vmatprep.subr.mxu0 0.0
    %1092 = vmatpush1.msra.mxu0 0.0
    %1093 = vmatprep.subr.mxu0 0.0
    %1094 = vmatpush1.msra.mxu0 0.0
    %1095 = vmatprep.subr.mxu0 0.0
    %1096 = vmatpush1.msra.mxu0 0.0
    %1097 = vmatprep.subr.mxu0 0.0
    %1098 = vmatpush1.msra.mxu0 0.0
    %1099 = vmatprep.subr.mxu0 0.0
    %1100 = vmatpush1.msra.mxu0 0.0
    %1101 = vmatprep.subr.mxu0 0.0
    %1102 = vmatpush1.msra.mxu0 0.0
    %1103 = vmatprep.subr.mxu0 0.0
    %1104 = vmatpush1.msra.mxu0 0.0
    %1105 = vmatprep.subr.mxu0 0.0
    %1106 = vmatpush1.msra.mxu0 0.0
    %1107 = vmatprep.subr.mxu0 %v1068
    %1108 = vmatpush1.msra.mxu0 %v1067
    %1109 = vmatprep.subr.mxu0 %v1060
    %1110 = vmatpush1.msra.mxu0 %v1059
    %1111 = vmatprep.subr.mxu0 0.0
    %1112 = vmatpush2.msra.mxu0 0.0
    %1113 = vmatprep.subr.mxu0 0.0
    %1114 = vmatpush2.msra.mxu0 0.0
    %1115 = vmatprep.subr.mxu0 0.0
    %1116 = vmatpush2.msra.mxu0 0.0
    %1117 = vmatprep.subr.mxu0 0.0
    %1118 = vmatpush2.msra.mxu0 0.0
    %1119 = vmatprep.subr.mxu0 0.0
    %1120 = vmatpush2.msra.mxu0 0.0
    %1121 = vmatprep.subr.mxu0 0.0
    %1122 = vmatpush2.msra.mxu0 0.0
    %1123 = vmatprep.subr.mxu0 0.0
    %1124 = vmatpush2.msra.mxu0 0.0
    %1125 = vmatprep.subr.mxu0 0.0
    %1126 = vmatpush2.msra.mxu0 0.0
    %1127 = vmatprep.subr.mxu0 0.0
    %1128 = vmatpush2.msra.mxu0 0.0
    %1129 = vmatprep.subr.mxu0 0.0
    %1130 = vmatpush2.msra.mxu0 0.0
    %1131 = vmatprep.subr.mxu0 0.0
    %1132 = vmatpush2.msra.mxu0 0.0
    %1133 = vmatprep.subr.mxu0 0.0
    %1134 = vmatpush2.msra.mxu0 0.0
    %1135 = vmatprep.subr.mxu0 0.0
    %1136 = vmatpush2.msra.mxu0 0.0
    %1137 = vmatprep.subr.mxu0 0.0
    %1138 = vmatpush2.msra.mxu0 0.0
    %1139 = vmatprep.subr.mxu0 0.0
    %1140 = vmatpush2.msra.mxu0 0.0
    %1141 = vmatprep.subr.mxu0 0.0
    %1142 = vmatpush2.msra.mxu0 0.0
    %1143 = vmatprep.mubr.f32.mxu0 0.0
    %1144 = vmatmul.mubr.f32.gmra.mxu0 %v1077
    %v1145 = vpop.f32.mrf.mxu0
    %v1146 = vadd.f32 0.0, %v1145
    %v1147 = vpop.f32.mrf.mxu0
    %v1148 = vadd.f32 0.0, %v1147
    %1149 = vdwg.mxu0
    %1150 = vmatprep.subr.mxu0 0.0
    %1151 = vmatpush1.msra.mxu0 0.0
    %1152 = vmatprep.subr.mxu0 0.0
    %1153 = vmatpush1.msra.mxu0 0.0
    %1154 = vmatprep.subr.mxu0 0.0
    %1155 = vmatpush1.msra.mxu0 0.0
    %1156 = vmatprep.subr.mxu0 0.0
    %1157 = vmatpush1.msra.mxu0 0.0
    %1158 = vmatprep.subr.mxu0 0.0
    %1159 = vmatpush1.msra.mxu0 0.0
    %1160 = vmatprep.subr.mxu0 0.0
    %1161 = vmatpush1.msra.mxu0 0.0
    %1162 = vmatprep.subr.mxu0 0.0
    %1163 = vmatpush1.msra.mxu0 0.0
    %1164 = vmatprep.subr.mxu0 0.0
    %1165 = vmatpush1.msra.mxu0 0.0
    %1166 = vmatprep.subr.mxu0 0.0
    %1167 = vmatpush1.msra.mxu0 0.0
    %1168 = vmatprep.subr.mxu0 0.0
    %1169 = vmatpush1.msra.mxu0 0.0
    %1170 = vmatprep.subr.mxu0 0.0
    %1171 = vmatpush1.msra.mxu0 0.0
    %1172 = vmatprep.subr.mxu0 0.0
    %1173 = vmatpush1.msra.mxu0 0.0
    %1174 = vmatprep.subr.mxu0 0.0
    %1175 = vmatpush1.msra.mxu0 0.0
    %1176 = vmatprep.subr.mxu0 0.0
    %1177 = vmatpush1.msra.mxu0 0.0
    %1178 = vmatprep.subr.mxu0 %v1070
    %1179 = vmatpush1.msra.mxu0 %v1069
    %1180 = vmatprep.subr.mxu0 %v1062
    %1181 = vmatpush1.msra.mxu0 %v1061
    %1182 = vmatprep.subr.mxu0 0.0
    %1183 = vmatpush2.msra.mxu0 0.0
    %1184 = vmatprep.subr.mxu0 0.0
    %1185 = vmatpush2.msra.mxu0 0.0
    %1186 = vmatprep.subr.mxu0 0.0
    %1187 = vmatpush2.msra.mxu0 0.0
    %1188 = vmatprep.subr.mxu0 0.0
    %1189 = vmatpush2.msra.mxu0 0.0
    %1190 = vmatprep.subr.mxu0 0.0
    %1191 = vmatpush2.msra.mxu0 0.0
    %1192 = vmatprep.subr.mxu0 0.0
    %1193 = vmatpush2.msra.mxu0 0.0
    %1194 = vmatprep.subr.mxu0 0.0
    %1195 = vmatpush2.msra.mxu0 0.0
    %1196 = vmatprep.subr.mxu0 0.0
    %1197 = vmatpush2.msra.mxu0 0.0
    %1198 = vmatprep.subr.mxu0 0.0
    %1199 = vmatpush2.msra.mxu0 0.0
    %1200 = vmatprep.subr.mxu0 0.0
    %1201 = vmatpush2.msra.mxu0 0.0
    %1202 = vmatprep.subr.mxu0 0.0
    %1203 = vmatpush2.msra.mxu0 0.0
    %1204 = vmatprep.subr.mxu0 0.0
    %1205 = vmatpush2.msra.mxu0 0.0
    %1206 = vmatprep.subr.mxu0 0.0
    %1207 = vmatpush2.msra.mxu0 0.0
    %1208 = vmatprep.subr.mxu0 0.0
    %1209 = vmatpush2.msra.mxu0 0.0
    %1210 = vmatprep.subr.mxu0 0.0
    %1211 = vmatpush2.msra.mxu0 0.0
    %1212 = vmatprep.subr.mxu0 0.0
    %1213 = vmatpush2.msra.mxu0 0.0
    %1214 = vmatprep.mubr.f32.mxu0 0.0
    %1215 = vmatmul.mubr.f32.gmra.mxu0 %v1077
    %v1216 = vpop.f32.mrf.mxu0
    %v1217 = vadd.f32 0.0, %v1216
    %v1218 = vpop.f32.mrf.mxu0
    %v1219 = vadd.f32 0.0, %v1218
    %1220 = vdwg.mxu0
    %1221 = vmatprep.subr.mxu0 0.0
    %1222 = vmatpush1.msra.mxu0 0.0
    %1223 = vmatprep.subr.mxu0 0.0
    %1224 = vmatpush1.msra.mxu0 0.0
    %1225 = vmatprep.subr.mxu0 0.0
    %1226 = vmatpush1.msra.mxu0 0.0
    %1227 = vmatprep.subr.mxu0 0.0
    %1228 = vmatpush1.msra.mxu0 0.0
    %1229 = vmatprep.subr.mxu0 0.0
    %1230 = vmatpush1.msra.mxu0 0.0
    %1231 = vmatprep.subr.mxu0 0.0
    %1232 = vmatpush1.msra.mxu0 0.0
    %1233 = vmatprep.subr.mxu0 0.0
    %1234 = vmatpush1.msra.mxu0 0.0
    %1235 = vmatprep.subr.mxu0 0.0
    %1236 = vmatpush1.msra.mxu0 0.0
    %1237 = vmatprep.subr.mxu0 0.0
    %1238 = vmatpush1.msra.mxu0 0.0
    %1239 = vmatprep.subr.mxu0 0.0
    %1240 = vmatpush1.msra.mxu0 0.0
    %1241 = vmatprep.subr.mxu0 0.0
    %1242 = vmatpush1.msra.mxu0 0.0
    %1243 = vmatprep.subr.mxu0 0.0
    %1244 = vmatpush1.msra.mxu0 0.0
    %1245 = vmatprep.subr.mxu0 0.0
    %1246 = vmatpush1.msra.mxu0 0.0
    %1247 = vmatprep.subr.mxu0 0.0
    %1248 = vmatpush1.msra.mxu0 0.0
    %1249 = vmatprep.subr.mxu0 %v1072
    %1250 = vmatpush1.msra.mxu0 %v1071
    %1251 = vmatprep.subr.mxu0 %v1064
    %1252 = vmatpush1.msra.mxu0 %v1063
    %1253 = vmatprep.subr.mxu0 0.0
    %1254 = vmatpush2.msra.mxu0 0.0
    %1255 = vmatprep.subr.mxu0 0.0
    %1256 = vmatpush2.msra.mxu0 0.0
    %1257 = vmatprep.subr.mxu0 0.0
    %1258 = vmatpush2.msra.mxu0 0.0
    %1259 = vmatprep.subr.mxu0 0.0
    %1260 = vmatpush2.msra.mxu0 0.0
    %1261 = vmatprep.subr.mxu0 0.0
    %1262 = vmatpush2.msra.mxu0 0.0
    %1263 = vmatprep.subr.mxu0 0.0
    %1264 = vmatpush2.msra.mxu0 0.0
    %1265 = vmatprep.subr.mxu0 0.0
    %1266 = vmatpush2.msra.mxu0 0.0
    %1267 = vmatprep.subr.mxu0 0.0
    %1268 = vmatpush2.msra.mxu0 0.0
    %1269 = vmatprep.subr.mxu0 0.0
    %1270 = vmatpush2.msra.mxu0 0.0
    %1271 = vmatprep.subr.mxu0 0.0
    %1272 = vmatpush2.msra.mxu0 0.0
    %1273 = vmatprep.subr.mxu0 0.0
    %1274 = vmatpush2.msra.mxu0 0.0
    %1275 = vmatprep.subr.mxu0 0.0
    %1276 = vmatpush2.msra.mxu0 0.0
    %1277 = vmatprep.subr.mxu0 0.0
    %1278 = vmatpush2.msra.mxu0 0.0
    %1279 = vmatprep.subr.mxu0 0.0
    %1280 = vmatpush2.msra.mxu0 0.0
    %1281 = vmatprep.subr.mxu0 0.0
    %1282 = vmatpush2.msra.mxu0 0.0
    %1283 = vmatprep.subr.mxu0 0.0
    %1284 = vmatpush2.msra.mxu0 0.0
    %1285 = vmatprep.mubr.f32.mxu0 0.0
    %1286 = vmatmul.mubr.f32.gmra.mxu0 %v1077
    %v1287 = vpop.f32.mrf.mxu0
    %v1288 = vadd.f32 0.0, %v1287
    %v1289 = vpop.f32.mrf.mxu0
    %v1290 = vadd.f32 0.0, %v1289
    %1291 = vdwg.mxu0
    %1292 = vmatprep.subr.mxu0 0.0
    %1293 = vmatpush1.msra.mxu0 0.0
    %1294 = vmatprep.subr.mxu0 0.0
    %1295 = vmatpush1.msra.mxu0 0.0
    %1296 = vmatprep.subr.mxu0 0.0
    %1297 = vmatpush1.msra.mxu0 0.0
    %1298 = vmatprep.subr.mxu0 0.0
    %1299 = vmatpush1.msra.mxu0 0.0
    %1300 = vmatprep.subr.mxu0 0.0
    %1301 = vmatpush1.msra.mxu0 0.0
    %1302 = vmatprep.subr.mxu0 0.0
    %1303 = vmatpush1.msra.mxu0 0.0
    %1304 = vmatprep.subr.mxu0 0.0
    %1305 = vmatpush1.msra.mxu0 0.0
    %1306 = vmatprep.subr.mxu0 0.0
    %1307 = vmatpush1.msra.mxu0 0.0
    %1308 = vmatprep.subr.mxu0 0.0
    %1309 = vmatpush1.msra.mxu0 0.0
    %1310 = vmatprep.subr.mxu0 0.0
    %1311 = vmatpush1.msra.mxu0 0.0
    %1312 = vmatprep.subr.mxu0 0.0
    %1313 = vmatpush1.msra.mxu0 0.0
    %1314 = vmatprep.subr.mxu0 0.0
    %1315 = vmatpush1.msra.mxu0 0.0
    %1316 = vmatprep.subr.mxu0 0.0
    %1317 = vmatpush1.msra.mxu0 0.0
    %1318 = vmatprep.subr.mxu0 0.0
    %1319 = vmatpush1.msra.mxu0 0.0
    %1320 = vmatprep.subr.mxu0 %v1074
    %1321 = vmatpush1.msra.mxu0 %v1073
    %1322 = vmatprep.subr.mxu0 %v1066
    %1323 = vmatpush1.msra.mxu0 %v1065
    %1324 = vmatprep.subr.mxu0 0.0
    %1325 = vmatpush2.msra.mxu0 0.0
    %1326 = vmatprep.subr.mxu0 0.0
    %1327 = vmatpush2.msra.mxu0 0.0
    %1328 = vmatprep.subr.mxu0 0.0
    %1329 = vmatpush2.msra.mxu0 0.0
    %1330 = vmatprep.subr.mxu0 0.0
    %1331 = vmatpush2.msra.mxu0 0.0
    %1332 = vmatprep.subr.mxu0 0.0
    %1333 = vmatpush2.msra.mxu0 0.0
    %1334 = vmatprep.subr.mxu0 0.0
    %1335 = vmatpush2.msra.mxu0 0.0
    %1336 = vmatprep.subr.mxu0 0.0
    %1337 = vmatpush2.msra.mxu0 0.0
    %1338 = vmatprep.subr.mxu0 0.0
    %1339 = vmatpush2.msra.mxu0 0.0
    %1340 = vmatprep.subr.mxu0 0.0
    %1341 = vmatpush2.msra.mxu0 0.0
    %1342 = vmatprep.subr.mxu0 0.0
    %1343 = vmatpush2.msra.mxu0 0.0
    %1344 = vmatprep.subr.mxu0 0.0
    %1345 = vmatpush2.msra.mxu0 0.0
    %1346 = vmatprep.subr.mxu0 0.0
    %1347 = vmatpush2.msra.mxu0 0.0
    %1348 = vmatprep.subr.mxu0 0.0
    %1349 = vmatpush2.msra.mxu0 0.0
    %1350 = vmatprep.subr.mxu0 0.0
    %1351 = vmatpush2.msra.mxu0 0.0
    %1352 = vmatprep.subr.mxu0 0.0
    %1353 = vmatpush2.msra.mxu0 0.0
    %1354 = vmatprep.subr.mxu0 0.0
    %1355 = vmatpush2.msra.mxu0 0.0
    %1356 = vmatprep.mubr.f32.mxu0 0.0
    %1357 = vmatmul.mubr.f32.gmra.mxu0 %v1077
    %v1358 = vpop.f32.mrf.mxu0
    %v1359 = vadd.f32 0.0, %v1358
    %v1360 = vpop.f32.mrf.mxu0
    %v1361 = vadd.f32 0.0, %v1360
    %1362 = vdwg.mxu0
    %v1363 = vadd.f32 %v1056, %v1146
    %v1364 = vadd.f32 %v1056, %v1148
    %v1365 = vadd.f32 %v1056, %v1217
    %v1366 = vadd.f32 %v1056, %v1219
    %v1367 = vadd.f32 %v1056, %v1288
    %v1368 = vadd.f32 %v1056, %v1290
    %v1369 = vadd.f32 %v1056, %v1359
    %v1370 = vadd.f32 %v1056, %v1361
    %v1371 = vadd.f32 %v1363, %v347
    %v1372 = vadd.f32 %v1364, %v348
    %v1373 = vadd.f32 %v1365, %v349
    %v1374 = vadd.f32 %v1366, %v350
    %v1375 = vadd.f32 %v1367, %v351
    %v1376 = vadd.f32 %v1368, %v352
    %v1377 = vadd.f32 %v1369, %v353
    %v1378 = vadd.f32 %v1370, %v354
    %v1379 = vtanh.pop %v1371
    %v1380 = vtanh.pop %v1372
    %v1381 = vtanh.pop %v1373
    %v1382 = vtanh.pop %v1374
    %v1383 = vtanh.pop %v1375
    %v1384 = vtanh.pop %v1376
    %v1385 = vtanh.pop %v1377
    %v1386 = vtanh.pop %v1378
    %v1387 = vmul.f32 %v1379, %v370
    %v1388 = vmul.f32 %v1380, %v374
    %v1389 = vmul.f32 %v1381, %v378
    %v1390 = vmul.f32 %v1382, %v382
    %v1391 = vmul.f32 %v1383, %v386
    %v1392 = vmul.f32 %v1384, %v390
    %v1393 = vmul.f32 %v1385, %v394
    %v1394 = vmul.f32 %v1386, %v398
    %v1395 = vcombine.low %v1387, %v1389
    %v1396 = vcombine.high %v1387, %v1389
    %v1398 = vunpack.c.l.s4 1983009808
    %v1399 = vunpack.c.0.s8 %v1398
    %v1400 = vlaneseq
    %v1401 = vshrl.u32 %v1400, 7
    %v1402 = vsub.s32 %v1399, %v1401
    %v1403 = vrot.slane %v1395, %v1402
    %v1405 = vunpack.c.l.s4 1983009808
    %v1406 = vunpack.c.0.s8 %v1405
    %v1407 = vlaneseq
    %v1408 = vshrl.u32 %v1407, 7
    %v1409 = vsub.s32 %v1406, %v1408
    %v1410 = vrot.slane %v1396, %v1409
    %v1411 = vcombine.low %v1388, %v1390
    %v1412 = vcombine.high %v1388, %v1390
    %v1414 = vunpack.c.l.s4 1983009808
    %v1415 = vunpack.c.0.s8 %v1414
    %v1416 = vlaneseq
    %v1417 = vshrl.u32 %v1416, 7
    %v1418 = vsub.s32 %v1415, %v1417
    %v1419 = vrot.slane %v1411, %v1418
    %v1421 = vunpack.c.l.s4 1983009808
    %v1422 = vunpack.c.0.s8 %v1421
    %v1423 = vlaneseq
    %v1424 = vshrl.u32 %v1423, 7
    %v1425 = vsub.s32 %v1422, %v1424
    %v1426 = vrot.slane %v1412, %v1425
    %v1427 = vcombine.low %v1391, %v1393
    %v1428 = vcombine.high %v1391, %v1393
    %v1430 = vunpack.c.l.s4 1983009808
    %v1431 = vunpack.c.0.s8 %v1430
    %v1432 = vlaneseq
    %v1433 = vshrl.u32 %v1432, 7
    %v1434 = vsub.s32 %v1431, %v1433
    %v1435 = vrot.slane %v1427, %v1434
    %v1437 = vunpack.c.l.s4 1983009808
    %v1438 = vunpack.c.0.s8 %v1437
    %v1439 = vlaneseq
    %v1440 = vshrl.u32 %v1439, 7
    %v1441 = vsub.s32 %v1438, %v1440
    %v1442 = vrot.slane %v1428, %v1441
    %v1443 = vcombine.low %v1392, %v1394
    %v1444 = vcombine.high %v1392, %v1394
    %v1446 = vunpack.c.l.s4 1983009808
    %v1447 = vunpack.c.0.s8 %v1446
    %v1448 = vlaneseq
    %v1449 = vshrl.u32 %v1448, 7
    %v1450 = vsub.s32 %v1447, %v1449
    %v1451 = vrot.slane %v1443, %v1450
    %v1453 = vunpack.c.l.s4 1983009808
    %v1454 = vunpack.c.0.s8 %v1453
    %v1455 = vlaneseq
    %v1456 = vshrl.u32 %v1455, 7
    %v1457 = vsub.s32 %v1454, %v1456
    %v1458 = vrot.slane %v1444, %v1457
    %v1459 = vcombine.low %v1403, %v1419
    %v1460 = vcombine.high %v1403, %v1419
    %v1462 = vunpack.c.l.s4 1934713408
    %v1463 = vunpack.c.0.s8 %v1462
    %v1464 = vlaneseq
    %v1465 = vshrl.u32 %v1464, 7
    %v1466 = vsub.s32 %v1463, %v1465
    %v1467 = vrot.slane %v1459, %v1466
    %v1469 = vunpack.c.l.s4 1934713408
    %v1470 = vunpack.c.0.s8 %v1469
    %v1471 = vlaneseq
    %v1472 = vshrl.u32 %v1471, 7
    %v1473 = vsub.s32 %v1470, %v1472
    %v1474 = vrot.slane %v1460, %v1473
    %v1475 = vcombine.low %v1410, %v1426
    %v1476 = vcombine.high %v1410, %v1426
    %v1478 = vunpack.c.l.s4 1934713408
    %v1479 = vunpack.c.0.s8 %v1478
    %v1480 = vlaneseq
    %v1481 = vshrl.u32 %v1480, 7
    %v1482 = vsub.s32 %v1479, %v1481
    %v1483 = vrot.slane %v1475, %v1482
    %v1485 = vunpack.c.l.s4 1934713408
    %v1486 = vunpack.c.0.s8 %v1485
    %v1487 = vlaneseq
    %v1488 = vshrl.u32 %v1487, 7
    %v1489 = vsub.s32 %v1486, %v1488
    %v1490 = vrot.slane %v1476, %v1489
    %v1491 = vcombine.low %v1435, %v1451
    %v1492 = vcombine.high %v1435, %v1451
    %v1494 = vunpack.c.l.s4 1934713408
    %v1495 = vunpack.c.0.s8 %v1494
    %v1496 = vlaneseq
    %v1497 = vshrl.u32 %v1496, 7
    %v1498 = vsub.s32 %v1495, %v1497
    %v1499 = vrot.slane %v1491, %v1498
    %v1501 = vunpack.c.l.s4 1934713408
    %v1502 = vunpack.c.0.s8 %v1501
    %v1503 = vlaneseq
    %v1504 = vshrl.u32 %v1503, 7
    %v1505 = vsub.s32 %v1502, %v1504
    %v1506 = vrot.slane %v1492, %v1505
    %v1507 = vcombine.low %v1442, %v1458
    %v1508 = vcombine.high %v1442, %v1458
    %v1510 = vunpack.c.l.s4 1934713408
    %v1511 = vunpack.c.0.s8 %v1510
    %v1512 = vlaneseq
    %v1513 = vshrl.u32 %v1512, 7
    %v1514 = vsub.s32 %v1511, %v1513
    %v1515 = vrot.slane %v1507, %v1514
    %v1517 = vunpack.c.l.s4 1934713408
    %v1518 = vunpack.c.0.s8 %v1517
    %v1519 = vlaneseq
    %v1520 = vshrl.u32 %v1519, 7
    %v1521 = vsub.s32 %v1518, %v1520
    %v1522 = vrot.slane %v1508, %v1521
    %v1523 = vcombine.low %v1467, %v1499
    %v1524 = vcombine.high %v1467, %v1499
    %v1525 = vcombine.low %v1474, %v1506
    %v1526 = vcombine.high %v1474, %v1506
    %v1527 = vcombine.low %v1483, %v1515
    %v1528 = vcombine.high %v1483, %v1515
    %v1529 = vcombine.low %v1490, %v1522
    %v1530 = vcombine.high %v1490, %v1522
    %1531 = vadd.xlane.f32.xlu0 %v1523
    %v1532 = vpop.xlane.xlu0 %1531
    %1533 = vadd.xlane.f32.xlu0 %v1524
    %v1534 = vpop.xlane.xlu0 %1533
    %1535 = vadd.xlane.f32.xlu0 %v1525
    %v1536 = vpop.xlane.xlu0 %1535
    %1537 = vadd.xlane.f32.xlu0 %v1526
    %v1538 = vpop.xlane.xlu0 %1537
    %1539 = vadd.xlane.f32.xlu0 %v1527
    %v1540 = vpop.xlane.xlu0 %1539
    %1541 = vadd.xlane.f32.xlu0 %v1528
    %v1542 = vpop.xlane.xlu0 %1541
    %1543 = vadd.xlane.f32.xlu0 %v1529
    %v1544 = vpop.xlane.xlu0 %1543
    %1545 = vadd.xlane.f32.xlu0 %v1530
    %v1546 = vpop.xlane.xlu0 %1545
    %v1548 = vlaneseq
    %v1549 = vshrl.u32 %v1548, 7
    %v1550 = vsub.s32 0, %v1549
    %v1551 = vrot.slane %v355, %v1550
    %1553 = vbcast.lane.b32.xlu0 %v1551, 256
    %v1554 = vpop.permute.xlu0 %1553
    %v1555 = vlaneseq
    %v1556 = vshrl.u32 %v1555, 7
    %v1557 = vsub.s32 1, %v1556
    %v1558 = vrot.slane %v355, %v1557
    %1560 = vbcast.lane.b32.xlu0 %v1558, 256
    %v1561 = vpop.permute.xlu0 %1560
    %v1562 = vlaneseq
    %v1563 = vshrl.u32 %v1562, 7
    %v1564 = vsub.s32 2, %v1563
    %v1565 = vrot.slane %v355, %v1564
    %1567 = vbcast.lane.b32.xlu0 %v1565, 256
    %v1568 = vpop.permute.xlu0 %1567
    %v1569 = vlaneseq
    %v1570 = vshrl.u32 %v1569, 7
    %v1571 = vsub.s32 3, %v1570
    %v1572 = vrot.slane %v355, %v1571
    %1574 = vbcast.lane.b32.xlu0 %v1572, 256
    %v1575 = vpop.permute.xlu0 %1574
    %v1576 = vlaneseq
    %v1577 = vshrl.u32 %v1576, 7
    %v1578 = vsub.s32 4, %v1577
    %v1579 = vrot.slane %v355, %v1578
    %1581 = vbcast.lane.b32.xlu0 %v1579, 256
    %v1582 = vpop.permute.xlu0 %1581
    %v1583 = vlaneseq
    %v1584 = vshrl.u32 %v1583, 7
    %v1585 = vsub.s32 5, %v1584
    %v1586 = vrot.slane %v355, %v1585
    %1588 = vbcast.lane.b32.xlu0 %v1586, 256
    %v1589 = vpop.permute.xlu0 %1588
    %v1590 = vlaneseq
    %v1591 = vshrl.u32 %v1590, 7
    %v1592 = vsub.s32 6, %v1591
    %v1593 = vrot.slane %v355, %v1592
    %1595 = vbcast.lane.b32.xlu0 %v1593, 256
    %v1596 = vpop.permute.xlu0 %1595
    %v1597 = vlaneseq
    %v1598 = vshrl.u32 %v1597, 7
    %v1599 = vsub.s32 7, %v1598
    %v1600 = vrot.slane %v355, %v1599
    %1602 = vbcast.lane.b32.xlu0 %v1600, 256
    %v1603 = vpop.permute.xlu0 %1602
    %v1612 = vadd.f32 %v1532, %v1554
    %v1613 = vadd.f32 %v1534, %v1561
    %v1614 = vadd.f32 %v1536, %v1568
    %v1615 = vadd.f32 %v1538, %v1575
    %v1616 = vadd.f32 %v1540, %v1582
    %v1617 = vadd.f32 %v1542, %v1589
    %v1618 = vadd.f32 %v1544, %v1596
    %v1619 = vadd.f32 %v1546, %v1603
    %v1620 = vmul.f32 %v1612, 1.442695
    %v1621 = vpow.pop %v1620
    %v1622 = vmul.f32 %v1613, 1.442695
    %v1623 = vpow.pop %v1622
    %v1624 = vmul.f32 %v1614, 1.442695
    %v1625 = vpow.pop %v1624
    %v1626 = vmul.f32 %v1615, 1.442695
    %v1627 = vpow.pop %v1626
    %v1628 = vmul.f32 %v1616, 1.442695
    %v1629 = vpow.pop %v1628
    %v1630 = vmul.f32 %v1617, 1.442695
    %v1631 = vpow.pop %v1630
    %v1632 = vmul.f32 %v1618, 1.442695
    %v1633 = vpow.pop %v1632
    %v1634 = vmul.f32 %v1619, 1.442695
    %v1635 = vpow.pop %v1634
    %1644 = vset.pattern.permute.xlu0 0
    %1645 = vperm.xlu0 %1644, %v1621
    %v1646 = vpop.permute.xlu0 %1645
    %1647 = vset.pattern.permute.xlu0 0
    %1648 = vperm.xlu0 %1647, %v1623
    %v1649 = vpop.permute.xlu0 %1648
    %1650 = vset.pattern.permute.xlu0 0
    %1651 = vperm.xlu0 %1650, %v1625
    %v1652 = vpop.permute.xlu0 %1651
    %1653 = vset.pattern.permute.xlu0 0
    %1654 = vperm.xlu0 %1653, %v1627
    %v1655 = vpop.permute.xlu0 %1654
    %1656 = vset.pattern.permute.xlu0 0
    %1657 = vperm.xlu0 %1656, %v1629
    %v1658 = vpop.permute.xlu0 %1657
    %1659 = vset.pattern.permute.xlu0 0
    %1660 = vperm.xlu0 %1659, %v1631
    %v1661 = vpop.permute.xlu0 %1660
    %1662 = vset.pattern.permute.xlu0 0
    %1663 = vperm.xlu0 %1662, %v1633
    %v1664 = vpop.permute.xlu0 %1663
    %1665 = vset.pattern.permute.xlu0 0
    %1666 = vperm.xlu0 %1665, %v1635
    %v1667 = vpop.permute.xlu0 %1666
    %v1668 = vlaneseq
    %v1669 = vand.u32 %v1668, 127
    %v1670 = vlaneseq
    %v1671 = vshrl.u32 %v1670, 7
    %v1672 = vsub.s32 %v1669, %v1671
    %v1673 = vrot.slane %v1646, %v1672
    %v1674 = vlaneseq
    %v1675 = vshrl.u32 %v1674, 7
    %v1676 = vsub.s32 %v1669, %v1675
    %v1677 = vrot.slane %v1649, %v1676
    %v1678 = vlaneseq
    %v1679 = vshrl.u32 %v1678, 7
    %v1680 = vsub.s32 %v1669, %v1679
    %v1681 = vrot.slane %v1652, %v1680
    %v1682 = vlaneseq
    %v1683 = vshrl.u32 %v1682, 7
    %v1684 = vsub.s32 %v1669, %v1683
    %v1685 = vrot.slane %v1655, %v1684
    %v1686 = vlaneseq
    %v1687 = vshrl.u32 %v1686, 7
    %v1688 = vsub.s32 %v1669, %v1687
    %v1689 = vrot.slane %v1658, %v1688
    %v1690 = vlaneseq
    %v1691 = vshrl.u32 %v1690, 7
    %v1692 = vsub.s32 %v1669, %v1691
    %v1693 = vrot.slane %v1661, %v1692
    %v1694 = vlaneseq
    %v1695 = vshrl.u32 %v1694, 7
    %v1696 = vsub.s32 %v1669, %v1695
    %v1697 = vrot.slane %v1664, %v1696
    %v1698 = vlaneseq
    %v1699 = vshrl.u32 %v1698, 7
    %v1700 = vsub.s32 %v1669, %v1699
    %v1701 = vrot.slane %v1667, %v1700
    %vm1702 = vcmask 1041409
    %v1703 = vsel %vm1702, %v1677, %v1673
    %vm1704 = vcmask 1042434
    %v1705 = vsel %vm1704, %v1681, %v1703
    %vm1706 = vcmask 1043459
    %v1707 = vsel %vm1706, %v1685, %v1705
    %vm1708 = vcmask 1044484
    %v1709 = vsel %vm1708, %v1689, %v1707
    %vm1710 = vcmask 1045509
    %v1711 = vsel %vm1710, %v1693, %v1709
    %vm1712 = vcmask 1046534
    %v1713 = vsel %vm1712, %v1697, %v1711
    %vm1714 = vcmask 1047559
    %v1715 = vsel %vm1714, %v1701, %v1713
    %v1717 = vsel %vm136, %v1715, 0.0
    %1718 = vadd.xlane.f32.xlu0 %v1717
    %v1719 = vpop.xlane.xlu0 %1718
    %v1720 = vrcp.pop %v1719
    %v1722 = vlaneseq
    %v1723 = vshrl.u32 %v1722, 7
    %v1724 = vsub.s32 0, %v1723
    %v1725 = vrot.slane %v1720, %v1724
    %v1726 = vlaneseq
    %v1727 = vshrl.u32 %v1726, 7
    %v1728 = vsub.s32 1, %v1727
    %v1729 = vrot.slane %v1720, %v1728
    %v1730 = vlaneseq
    %v1731 = vshrl.u32 %v1730, 7
    %v1732 = vsub.s32 2, %v1731
    %v1733 = vrot.slane %v1720, %v1732
    %v1734 = vlaneseq
    %v1735 = vshrl.u32 %v1734, 7
    %v1736 = vsub.s32 3, %v1735
    %v1737 = vrot.slane %v1720, %v1736
    %v1738 = vlaneseq
    %v1739 = vshrl.u32 %v1738, 7
    %v1740 = vsub.s32 4, %v1739
    %v1741 = vrot.slane %v1720, %v1740
    %v1742 = vlaneseq
    %v1743 = vshrl.u32 %v1742, 7
    %v1744 = vsub.s32 5, %v1743
    %v1745 = vrot.slane %v1720, %v1744
    %v1746 = vlaneseq
    %v1747 = vshrl.u32 %v1746, 7
    %v1748 = vsub.s32 6, %v1747
    %v1749 = vrot.slane %v1720, %v1748
    %v1750 = vlaneseq
    %v1751 = vshrl.u32 %v1750, 7
    %v1752 = vsub.s32 7, %v1751
    %v1753 = vrot.slane %v1720, %v1752
    %v1762 = vmul.f32 %v1621, %v1725
    %v1763 = vmul.f32 %v1623, %v1729
    %v1764 = vmul.f32 %v1625, %v1733
    %v1765 = vmul.f32 %v1627, %v1737
    %v1766 = vmul.f32 %v1629, %v1741
    %v1767 = vmul.f32 %v1631, %v1745
    %v1768 = vmul.f32 %v1633, %v1749
    %v1769 = vmul.f32 %v1635, %v1753
    %v1770 = vadd.f32 %v1762, 0.0
    %v1771 = vadd.f32 %v1763, 0.0
    %v1772 = vadd.f32 %v1764, 0.0
    %v1773 = vadd.f32 %v1765, 0.0
    %v1774 = vadd.f32 %v1766, 0.0
    %v1775 = vadd.f32 %v1767, 0.0
    %v1776 = vadd.f32 %v1768, 0.0
    %v1777 = vadd.f32 %v1769, 0.0
    %1786 = vset.pattern.permute.xlu0 0
    %1787 = vperm.xlu0 %1786, %v1762
    %v1788 = vpop.permute.xlu0 %1787
    %1789 = vset.pattern.permute.xlu0 0
    %1790 = vperm.xlu0 %1789, %v1763
    %v1791 = vpop.permute.xlu0 %1790
    %1792 = vset.pattern.permute.xlu0 0
    %1793 = vperm.xlu0 %1792, %v1764
    %v1794 = vpop.permute.xlu0 %1793
    %1795 = vset.pattern.permute.xlu0 0
    %1796 = vperm.xlu0 %1795, %v1765
    %v1797 = vpop.permute.xlu0 %1796
    %1798 = vset.pattern.permute.xlu0 0
    %1799 = vperm.xlu0 %1798, %v1766
    %v1800 = vpop.permute.xlu0 %1799
    %1801 = vset.pattern.permute.xlu0 0
    %1802 = vperm.xlu0 %1801, %v1767
    %v1803 = vpop.permute.xlu0 %1802
    %1804 = vset.pattern.permute.xlu0 0
    %1805 = vperm.xlu0 %1804, %v1768
    %v1806 = vpop.permute.xlu0 %1805
    %1807 = vset.pattern.permute.xlu0 0
    %1808 = vperm.xlu0 %1807, %v1769
    %v1809 = vpop.permute.xlu0 %1808
    %v1810 = vlaneseq
    %v1811 = vshrl.u32 %v1810, 7
    %v1812 = vsub.s32 %v1669, %v1811
    %v1813 = vrot.slane %v1788, %v1812
    %v1814 = vlaneseq
    %v1815 = vshrl.u32 %v1814, 7
    %v1816 = vsub.s32 %v1669, %v1815
    %v1817 = vrot.slane %v1791, %v1816
    %v1818 = vlaneseq
    %v1819 = vshrl.u32 %v1818, 7
    %v1820 = vsub.s32 %v1669, %v1819
    %v1821 = vrot.slane %v1794, %v1820
    %v1822 = vlaneseq
    %v1823 = vshrl.u32 %v1822, 7
    %v1824 = vsub.s32 %v1669, %v1823
    %v1825 = vrot.slane %v1797, %v1824
    %v1826 = vlaneseq
    %v1827 = vshrl.u32 %v1826, 7
    %v1828 = vsub.s32 %v1669, %v1827
    %v1829 = vrot.slane %v1800, %v1828
    %v1830 = vlaneseq
    %v1831 = vshrl.u32 %v1830, 7
    %v1832 = vsub.s32 %v1669, %v1831
    %v1833 = vrot.slane %v1803, %v1832
    %v1834 = vlaneseq
    %v1835 = vshrl.u32 %v1834, 7
    %v1836 = vsub.s32 %v1669, %v1835
    %v1837 = vrot.slane %v1806, %v1836
    %v1838 = vlaneseq
    %v1839 = vshrl.u32 %v1838, 7
    %v1840 = vsub.s32 %v1669, %v1839
    %v1841 = vrot.slane %v1809, %v1840
    %v1842 = vsel %vm1702, %v1817, %v1813
    %v1843 = vsel %vm1704, %v1821, %v1842
    %v1844 = vsel %vm1706, %v1825, %v1843
    %v1845 = vsel %vm1708, %v1829, %v1844
    %v1846 = vsel %vm1710, %v1833, %v1845
    %v1847 = vsel %vm1712, %v1837, %v1846
    %v1848 = vsel %vm1714, %v1841, %v1847
    %v1850 = vadd.s32 %v1669, 4294967288
    %v1851 = vlaneseq
    %v1852 = vshrl.u32 %v1851, 7
    %v1853 = vsub.s32 %v1850, %v1852
    %v1854 = vrot.slane %v1788, %v1853
    %v1855 = vlaneseq
    %v1856 = vshrl.u32 %v1855, 7
    %v1857 = vsub.s32 %v1850, %v1856
    %v1858 = vrot.slane %v1791, %v1857
    %v1859 = vlaneseq
    %v1860 = vshrl.u32 %v1859, 7
    %v1861 = vsub.s32 %v1850, %v1860
    %v1862 = vrot.slane %v1794, %v1861
    %v1863 = vlaneseq
    %v1864 = vshrl.u32 %v1863, 7
    %v1865 = vsub.s32 %v1850, %v1864
    %v1866 = vrot.slane %v1797, %v1865
    %v1867 = vlaneseq
    %v1868 = vshrl.u32 %v1867, 7
    %v1869 = vsub.s32 %v1850, %v1868
    %v1870 = vrot.slane %v1800, %v1869
    %v1871 = vlaneseq
    %v1872 = vshrl.u32 %v1871, 7
    %v1873 = vsub.s32 %v1850, %v1872
    %v1874 = vrot.slane %v1803, %v1873
    %v1875 = vlaneseq
    %v1876 = vshrl.u32 %v1875, 7
    %v1877 = vsub.s32 %v1850, %v1876
    %v1878 = vrot.slane %v1806, %v1877
    %v1879 = vlaneseq
    %v1880 = vshrl.u32 %v1879, 7
    %v1881 = vsub.s32 %v1850, %v1880
    %v1882 = vrot.slane %v1809, %v1881
    %v1883 = vsel %vm1702, %v1858, %v1854
    %v1884 = vsel %vm1704, %v1862, %v1883
    %v1885 = vsel %vm1706, %v1866, %v1884
    %v1886 = vsel %vm1708, %v1870, %v1885
    %v1887 = vsel %vm1710, %v1874, %v1886
    %v1888 = vsel %vm1712, %v1878, %v1887
    %v1889 = vsel %vm1714, %v1882, %v1888
    %v1891 = vadd.s32 %v1669, 4294967280
    %v1892 = vlaneseq
    %v1893 = vshrl.u32 %v1892, 7
    %v1894 = vsub.s32 %v1891, %v1893
    %v1895 = vrot.slane %v1788, %v1894
    %v1896 = vlaneseq
    %v1897 = vshrl.u32 %v1896, 7
    %v1898 = vsub.s32 %v1891, %v1897
    %v1899 = vrot.slane %v1791, %v1898
    %v1900 = vlaneseq
    %v1901 = vshrl.u32 %v1900, 7
    %v1902 = vsub.s32 %v1891, %v1901
    %v1903 = vrot.slane %v1794, %v1902
    %v1904 = vlaneseq
    %v1905 = vshrl.u32 %v1904, 7
    %v1906 = vsub.s32 %v1891, %v1905
    %v1907 = vrot.slane %v1797, %v1906
    %v1908 = vlaneseq
    %v1909 = vshrl.u32 %v1908, 7
    %v1910 = vsub.s32 %v1891, %v1909
    %v1911 = vrot.slane %v1800, %v1910
    %v1912 = vlaneseq
    %v1913 = vshrl.u32 %v1912, 7
    %v1914 = vsub.s32 %v1891, %v1913
    %v1915 = vrot.slane %v1803, %v1914
    %v1916 = vlaneseq
    %v1917 = vshrl.u32 %v1916, 7
    %v1918 = vsub.s32 %v1891, %v1917
    %v1919 = vrot.slane %v1806, %v1918
    %v1920 = vlaneseq
    %v1921 = vshrl.u32 %v1920, 7
    %v1922 = vsub.s32 %v1891, %v1921
    %v1923 = vrot.slane %v1809, %v1922
    %v1924 = vsel %vm1702, %v1899, %v1895
    %v1925 = vsel %vm1704, %v1903, %v1924
    %v1926 = vsel %vm1706, %v1907, %v1925
    %v1927 = vsel %vm1708, %v1911, %v1926
    %v1928 = vsel %vm1710, %v1915, %v1927
    %v1929 = vsel %vm1712, %v1919, %v1928
    %v1930 = vsel %vm1714, %v1923, %v1929
    %v1932 = vadd.s32 %v1669, 4294967272
    %v1933 = vlaneseq
    %v1934 = vshrl.u32 %v1933, 7
    %v1935 = vsub.s32 %v1932, %v1934
    %v1936 = vrot.slane %v1788, %v1935
    %v1937 = vlaneseq
    %v1938 = vshrl.u32 %v1937, 7
    %v1939 = vsub.s32 %v1932, %v1938
    %v1940 = vrot.slane %v1791, %v1939
    %v1941 = vlaneseq
    %v1942 = vshrl.u32 %v1941, 7
    %v1943 = vsub.s32 %v1932, %v1942
    %v1944 = vrot.slane %v1794, %v1943
    %v1945 = vlaneseq
    %v1946 = vshrl.u32 %v1945, 7
    %v1947 = vsub.s32 %v1932, %v1946
    %v1948 = vrot.slane %v1797, %v1947
    %v1949 = vlaneseq
    %v1950 = vshrl.u32 %v1949, 7
    %v1951 = vsub.s32 %v1932, %v1950
    %v1952 = vrot.slane %v1800, %v1951
    %v1953 = vlaneseq
    %v1954 = vshrl.u32 %v1953, 7
    %v1955 = vsub.s32 %v1932, %v1954
    %v1956 = vrot.slane %v1803, %v1955
    %v1957 = vlaneseq
    %v1958 = vshrl.u32 %v1957, 7
    %v1959 = vsub.s32 %v1932, %v1958
    %v1960 = vrot.slane %v1806, %v1959
    %v1961 = vlaneseq
    %v1962 = vshrl.u32 %v1961, 7
    %v1963 = vsub.s32 %v1932, %v1962
    %v1964 = vrot.slane %v1809, %v1963
    %v1965 = vsel %vm1702, %v1940, %v1936
    %v1966 = vsel %vm1704, %v1944, %v1965
    %v1967 = vsel %vm1706, %v1948, %v1966
    %v1968 = vsel %vm1708, %v1952, %v1967
    %v1969 = vsel %vm1710, %v1956, %v1968
    %v1970 = vsel %vm1712, %v1960, %v1969
    %v1971 = vsel %vm1714, %v1964, %v1970
    %v1973 = vadd.s32 %v1669, 4294967264
    %v1974 = vlaneseq
    %v1975 = vshrl.u32 %v1974, 7
    %v1976 = vsub.s32 %v1973, %v1975
    %v1977 = vrot.slane %v1788, %v1976
    %v1978 = vlaneseq
    %v1979 = vshrl.u32 %v1978, 7
    %v1980 = vsub.s32 %v1973, %v1979
    %v1981 = vrot.slane %v1791, %v1980
    %v1982 = vlaneseq
    %v1983 = vshrl.u32 %v1982, 7
    %v1984 = vsub.s32 %v1973, %v1983
    %v1985 = vrot.slane %v1794, %v1984
    %v1986 = vlaneseq
    %v1987 = vshrl.u32 %v1986, 7
    %v1988 = vsub.s32 %v1973, %v1987
    %v1989 = vrot.slane %v1797, %v1988
    %v1990 = vlaneseq
    %v1991 = vshrl.u32 %v1990, 7
    %v1992 = vsub.s32 %v1973, %v1991
    %v1993 = vrot.slane %v1800, %v1992
    %v1994 = vlaneseq
    %v1995 = vshrl.u32 %v1994, 7
    %v1996 = vsub.s32 %v1973, %v1995
    %v1997 = vrot.slane %v1803, %v1996
    %v1998 = vlaneseq
    %v1999 = vshrl.u32 %v1998, 7
    %v2000 = vsub.s32 %v1973, %v1999
    %v2001 = vrot.slane %v1806, %v2000
    %v2002 = vlaneseq
    %v2003 = vshrl.u32 %v2002, 7
    %v2004 = vsub.s32 %v1973, %v2003
    %v2005 = vrot.slane %v1809, %v2004
    %v2006 = vsel %vm1702, %v1981, %v1977
    %v2007 = vsel %vm1704, %v1985, %v2006
    %v2008 = vsel %vm1706, %v1989, %v2007
    %v2009 = vsel %vm1708, %v1993, %v2008
    %v2010 = vsel %vm1710, %v1997, %v2009
    %v2011 = vsel %vm1712, %v2001, %v2010
    %v2012 = vsel %vm1714, %v2005, %v2011
    %v2014 = vadd.s32 %v1669, 4294967256
    %v2015 = vlaneseq
    %v2016 = vshrl.u32 %v2015, 7
    %v2017 = vsub.s32 %v2014, %v2016
    %v2018 = vrot.slane %v1788, %v2017
    %v2019 = vlaneseq
    %v2020 = vshrl.u32 %v2019, 7
    %v2021 = vsub.s32 %v2014, %v2020
    %v2022 = vrot.slane %v1791, %v2021
    %v2023 = vlaneseq
    %v2024 = vshrl.u32 %v2023, 7
    %v2025 = vsub.s32 %v2014, %v2024
    %v2026 = vrot.slane %v1794, %v2025
    %v2027 = vlaneseq
    %v2028 = vshrl.u32 %v2027, 7
    %v2029 = vsub.s32 %v2014, %v2028
    %v2030 = vrot.slane %v1797, %v2029
    %v2031 = vlaneseq
    %v2032 = vshrl.u32 %v2031, 7
    %v2033 = vsub.s32 %v2014, %v2032
    %v2034 = vrot.slane %v1800, %v2033
    %v2035 = vlaneseq
    %v2036 = vshrl.u32 %v2035, 7
    %v2037 = vsub.s32 %v2014, %v2036
    %v2038 = vrot.slane %v1803, %v2037
    %v2039 = vlaneseq
    %v2040 = vshrl.u32 %v2039, 7
    %v2041 = vsub.s32 %v2014, %v2040
    %v2042 = vrot.slane %v1806, %v2041
    %v2043 = vlaneseq
    %v2044 = vshrl.u32 %v2043, 7
    %v2045 = vsub.s32 %v2014, %v2044
    %v2046 = vrot.slane %v1809, %v2045
    %v2047 = vsel %vm1702, %v2022, %v2018
    %v2048 = vsel %vm1704, %v2026, %v2047
    %v2049 = vsel %vm1706, %v2030, %v2048
    %v2050 = vsel %vm1708, %v2034, %v2049
    %v2051 = vsel %vm1710, %v2038, %v2050
    %v2052 = vsel %vm1712, %v2042, %v2051
    %v2053 = vsel %vm1714, %v2046, %v2052
    %v2055 = vadd.s32 %v1669, 4294967248
    %v2056 = vlaneseq
    %v2057 = vshrl.u32 %v2056, 7
    %v2058 = vsub.s32 %v2055, %v2057
    %v2059 = vrot.slane %v1788, %v2058
    %v2060 = vlaneseq
    %v2061 = vshrl.u32 %v2060, 7
    %v2062 = vsub.s32 %v2055, %v2061
    %v2063 = vrot.slane %v1791, %v2062
    %v2064 = vlaneseq
    %v2065 = vshrl.u32 %v2064, 7
    %v2066 = vsub.s32 %v2055, %v2065
    %v2067 = vrot.slane %v1794, %v2066
    %v2068 = vlaneseq
    %v2069 = vshrl.u32 %v2068, 7
    %v2070 = vsub.s32 %v2055, %v2069
    %v2071 = vrot.slane %v1797, %v2070
    %v2072 = vlaneseq
    %v2073 = vshrl.u32 %v2072, 7
    %v2074 = vsub.s32 %v2055, %v2073
    %v2075 = vrot.slane %v1800, %v2074
    %v2076 = vlaneseq
    %v2077 = vshrl.u32 %v2076, 7
    %v2078 = vsub.s32 %v2055, %v2077
    %v2079 = vrot.slane %v1803, %v2078
    %v2080 = vlaneseq
    %v2081 = vshrl.u32 %v2080, 7
    %v2082 = vsub.s32 %v2055, %v2081
    %v2083 = vrot.slane %v1806, %v2082
    %v2084 = vlaneseq
    %v2085 = vshrl.u32 %v2084, 7
    %v2086 = vsub.s32 %v2055, %v2085
    %v2087 = vrot.slane %v1809, %v2086
    %v2088 = vsel %vm1702, %v2063, %v2059
    %v2089 = vsel %vm1704, %v2067, %v2088
    %v2090 = vsel %vm1706, %v2071, %v2089
    %v2091 = vsel %vm1708, %v2075, %v2090
    %v2092 = vsel %vm1710, %v2079, %v2091
    %v2093 = vsel %vm1712, %v2083, %v2092
    %v2094 = vsel %vm1714, %v2087, %v2093
    %v2096 = vadd.s32 %v1669, 4294967240
    %v2097 = vlaneseq
    %v2098 = vshrl.u32 %v2097, 7
    %v2099 = vsub.s32 %v2096, %v2098
    %v2100 = vrot.slane %v1788, %v2099
    %v2101 = vlaneseq
    %v2102 = vshrl.u32 %v2101, 7
    %v2103 = vsub.s32 %v2096, %v2102
    %v2104 = vrot.slane %v1791, %v2103
    %v2105 = vlaneseq
    %v2106 = vshrl.u32 %v2105, 7
    %v2107 = vsub.s32 %v2096, %v2106
    %v2108 = vrot.slane %v1794, %v2107
    %v2109 = vlaneseq
    %v2110 = vshrl.u32 %v2109, 7
    %v2111 = vsub.s32 %v2096, %v2110
    %v2112 = vrot.slane %v1797, %v2111
    %v2113 = vlaneseq
    %v2114 = vshrl.u32 %v2113, 7
    %v2115 = vsub.s32 %v2096, %v2114
    %v2116 = vrot.slane %v1800, %v2115
    %v2117 = vlaneseq
    %v2118 = vshrl.u32 %v2117, 7
    %v2119 = vsub.s32 %v2096, %v2118
    %v2120 = vrot.slane %v1803, %v2119
    %v2121 = vlaneseq
    %v2122 = vshrl.u32 %v2121, 7
    %v2123 = vsub.s32 %v2096, %v2122
    %v2124 = vrot.slane %v1806, %v2123
    %v2125 = vlaneseq
    %v2126 = vshrl.u32 %v2125, 7
    %v2127 = vsub.s32 %v2096, %v2126
    %v2128 = vrot.slane %v1809, %v2127
    %v2129 = vsel %vm1702, %v2104, %v2100
    %v2130 = vsel %vm1704, %v2108, %v2129
    %v2131 = vsel %vm1706, %v2112, %v2130
    %v2132 = vsel %vm1708, %v2116, %v2131
    %v2133 = vsel %vm1710, %v2120, %v2132
    %v2134 = vsel %vm1712, %v2124, %v2133
    %v2135 = vsel %vm1714, %v2128, %v2134
    %v2137 = vsel %vm136, %v1848, %v1889
    %v2138 = vsel %vm1075, %v2137, %v1930
    %vm2139 = vcmask 195584
    %v2140 = vsel %vm2139, %v2138, %v1971
    %vm2141 = vcmask 261120
    %v2142 = vsel %vm2141, %v2140, %v2012
    %vm2143 = vcmask 326656
    %v2144 = vsel %vm2143, %v2142, %v2053
    %vm2145 = vcmask 392192
    %v2146 = vsel %vm2145, %v2144, %v2094
    %vm2147 = vcmask 457728
    %v2148 = vsel %vm2147, %v2146, %v2135
    %v2149 = vmul.f32 %v2148, %v364
    %vm2150 = vcmask 523264
    %v2152 = vsel %vm2150, %v2149, 0
    %2154 = vmatprep.subr.mxu0 0.0
    %2155 = vmatpush1.msra.mxu0 0.0
    %2156 = vmatprep.subr.mxu0 0.0
    %2157 = vmatpush1.msra.mxu0 0.0
    %2158 = vmatprep.subr.mxu0 0.0
    %2159 = vmatpush1.msra.mxu0 0.0
    %2160 = vmatprep.subr.mxu0 0.0
    %2161 = vmatpush1.msra.mxu0 0.0
    %2162 = vmatprep.subr.mxu0 0.0
    %2163 = vmatpush1.msra.mxu0 0.0
    %2164 = vmatprep.subr.mxu0 0.0
    %2165 = vmatpush1.msra.mxu0 0.0
    %2166 = vmatprep.subr.mxu0 0.0
    %2167 = vmatpush1.msra.mxu0 0.0
    %2168 = vmatprep.subr.mxu0 0.0
    %2169 = vmatpush1.msra.mxu0 0.0
    %2170 = vmatprep.subr.mxu0 0.0
    %2171 = vmatpush1.msra.mxu0 %v363
    %2172 = vmatprep.subr.mxu0 0.0
    %2173 = vmatpush1.msra.mxu0 %v362
    %2174 = vmatprep.subr.mxu0 0.0
    %2175 = vmatpush1.msra.mxu0 %v361
    %2176 = vmatprep.subr.mxu0 0.0
    %2177 = vmatpush1.msra.mxu0 %v360
    %2178 = vmatprep.subr.mxu0 0.0
    %2179 = vmatpush1.msra.mxu0 %v359
    %2180 = vmatprep.subr.mxu0 0.0
    %2181 = vmatpush1.msra.mxu0 %v358
    %2182 = vmatprep.subr.mxu0 0.0
    %2183 = vmatpush1.msra.mxu0 %v357
    %2184 = vmatprep.subr.mxu0 0.0
    %2185 = vmatpush1.msra.mxu0 %v356
    %2186 = vmatprep.subr.mxu0 0.0
    %2187 = vmatpush2.msra.mxu0 0.0
    %2188 = vmatprep.subr.mxu0 0.0
    %2189 = vmatpush2.msra.mxu0 0.0
    %2190 = vmatprep.subr.mxu0 0.0
    %2191 = vmatpush2.msra.mxu0 0.0
    %2192 = vmatprep.subr.mxu0 0.0
    %2193 = vmatpush2.msra.mxu0 0.0
    %2194 = vmatprep.subr.mxu0 0.0
    %2195 = vmatpush2.msra.mxu0 0.0
    %2196 = vmatprep.subr.mxu0 0.0
    %2197 = vmatpush2.msra.mxu0 0.0
    %2198 = vmatprep.subr.mxu0 0.0
    %2199 = vmatpush2.msra.mxu0 0.0
    %2200 = vmatprep.subr.mxu0 0.0
    %2201 = vmatpush2.msra.mxu0 0.0
    %2202 = vmatprep.subr.mxu0 0.0
    %2203 = vmatpush2.msra.mxu0 0.0
    %2204 = vmatprep.subr.mxu0 0.0
    %2205 = vmatpush2.msra.mxu0 0.0
    %2206 = vmatprep.subr.mxu0 0.0
    %2207 = vmatpush2.msra.mxu0 0.0
    %2208 = vmatprep.subr.mxu0 0.0
    %2209 = vmatpush2.msra.mxu0 0.0
    %2210 = vmatprep.subr.mxu0 0.0
    %2211 = vmatpush2.msra.mxu0 0.0
    %2212 = vmatprep.subr.mxu0 0.0
    %2213 = vmatpush2.msra.mxu0 0.0
    %2214 = vmatprep.subr.mxu0 0.0
    %2215 = vmatpush2.msra.mxu0 0.0
    %2216 = vmatprep.subr.mxu0 0.0
    %2217 = vmatpush2.msra.mxu0 0.0
    %2218 = vmatprep.mubr.f32.mxu0 0.0
    %2219 = vmatmul.mubr.f32.gmra.mxu0 %v2152
    %v2220 = vpop.f32.mrf.mxu0
    %v2221 = vadd.f32 0.0, %v2220
    %v2222 = vpop.f32.mrf.mxu0
    %2223 = vdwg.mxu0
    %v2224 = vld [vmem:[#allocation11] sm:$0xff]
    %v2225 = vld [vmem:[#allocation11 + $0x8] sm:$0xff]
    %v2226 = vld [vmem:[#allocation11 + $0x10] sm:$0xff]
    %v2227 = vld [vmem:[#allocation11 + $0x18] sm:$0xff]
    %v2228 = vld [vmem:[#allocation11 + $0x20] sm:$0xff]
    %v2229 = vld [vmem:[#allocation11 + $0x28] sm:$0xff]
    %v2230 = vld [vmem:[#allocation11 + $0x30] sm:$0xff]
    %v2231 = vld [vmem:[#allocation11 + $0x38] sm:$0xff]
    %v2232 = vld [vmem:[#allocation11 + $0x40] sm:$0xff]
    %v2233 = vld [vmem:[#allocation11 + $0x48] sm:$0xff]
    %v2234 = vld [vmem:[#allocation11 + $0x50] sm:$0xff]
    %v2235 = vld [vmem:[#allocation11 + $0x58] sm:$0xff]
    %v2236 = vld [vmem:[#allocation11 + $0x60] sm:$0xff]
    %v2237 = vld [vmem:[#allocation11 + $0x68] sm:$0xff]
    %v2238 = vld [vmem:[#allocation11 + $0x70] sm:$0xff]
    %v2239 = vld [vmem:[#allocation11 + $0x78] sm:$0xff]
    %v2240 = vld [vmem:[#allocation11 + $0x80] sm:$0xff]
    %v2241 = vld [vmem:[#allocation11 + $0x88] sm:$0xff]
    %v2242 = vld [vmem:[#allocation11 + $0x90] sm:$0xff]
    %v2243 = vld [vmem:[#allocation11 + $0x98] sm:$0xff]
    %v2244 = vld [vmem:[#allocation11 + $0xa0] sm:$0xff]
    %v2245 = vld [vmem:[#allocation11 + $0xa8] sm:$0xff]
    %v2246 = vld [vmem:[#allocation11 + $0xb0] sm:$0xff]
    %v2247 = vld [vmem:[#allocation11 + $0xb8] sm:$0xff]
    %v2248 = vld [vmem:[#allocation11 + $0xc0] sm:$0xff]
    %v2249 = vld [vmem:[#allocation11 + $0xc8] sm:$0xff]
    %v2250 = vld [vmem:[#allocation11 + $0xd0] sm:$0xff]
    %v2251 = vld [vmem:[#allocation11 + $0xd8] sm:$0xff]
    %v2252 = vld [vmem:[#allocation11 + $0xe0] sm:$0xff]
    %v2253 = vld [vmem:[#allocation11 + $0xe8] sm:$0xff]
    %v2254 = vld [vmem:[#allocation11 + $0xf0] sm:$0xff]
    %v2255 = vld [vmem:[#allocation11 + $0xf8] sm:$0xff]
    %v2256 = vld [vmem:[#allocation11 + $0x100] sm:$0xff]
    %v2257 = vld [vmem:[#allocation11 + $0x108] sm:$0xff]
    %v2258 = vld [vmem:[#allocation11 + $0x110] sm:$0xff]
    %v2259 = vld [vmem:[#allocation11 + $0x118] sm:$0xff]
    %v2260 = vld [vmem:[#allocation11 + $0x120] sm:$0xff]
    %v2261 = vld [vmem:[#allocation11 + $0x128] sm:$0xff]
    %v2262 = vld [vmem:[#allocation11 + $0x130] sm:$0xff]
    %v2263 = vld [vmem:[#allocation11 + $0x138] sm:$0xff]
    %v2264 = vld [vmem:[#allocation11 + $0x140] sm:$0xff]
    %v2265 = vld [vmem:[#allocation11 + $0x148] sm:$0xff]
    %v2266 = vld [vmem:[#allocation11 + $0x150] sm:$0xff]
    %v2267 = vld [vmem:[#allocation11 + $0x158] sm:$0xff]
    %v2268 = vld [vmem:[#allocation11 + $0x160] sm:$0xff]
    %v2269 = vld [vmem:[#allocation11 + $0x168] sm:$0xff]
    %v2270 = vld [vmem:[#allocation11 + $0x170] sm:$0xff]
    %v2271 = vld [vmem:[#allocation11 + $0x178] sm:$0xff]
    %v2272 = vld [vmem:[#allocation11 + $0x180] sm:$0xff]
    %v2273 = vld [vmem:[#allocation11 + $0x188] sm:$0xff]
    %v2274 = vld [vmem:[#allocation11 + $0x190] sm:$0xff]
    %v2275 = vld [vmem:[#allocation11 + $0x198] sm:$0xff]
    %v2276 = vld [vmem:[#allocation11 + $0x1a0] sm:$0xff]
    %v2277 = vld [vmem:[#allocation11 + $0x1a8] sm:$0xff]
    %v2278 = vld [vmem:[#allocation11 + $0x1b0] sm:$0xff]
    %v2279 = vld [vmem:[#allocation11 + $0x1b8] sm:$0xff]
    %v2280 = vld [vmem:[#allocation11 + $0x1c0] sm:$0xff]
    %v2281 = vld [vmem:[#allocation11 + $0x1c8] sm:$0xff]
    %v2282 = vld [vmem:[#allocation11 + $0x1d0] sm:$0xff]
    %v2283 = vld [vmem:[#allocation11 + $0x1d8] sm:$0xff]
    %v2284 = vld [vmem:[#allocation11 + $0x1e0] sm:$0xff]
    %v2285 = vld [vmem:[#allocation11 + $0x1e8] sm:$0xff]
    %v2286 = vld [vmem:[#allocation11 + $0x1f0] sm:$0xff]
    %v2287 = vld [vmem:[#allocation11 + $0x1f8] sm:$0xff]
    %v2288 = vld [vmem:[#allocation11 + $0x200] sm:$0xff]
    %v2289 = vld [vmem:[#allocation11 + $0x208] sm:$0xff]
    %v2290 = vld [vmem:[#allocation11 + $0x210] sm:$0xff]
    %v2291 = vld [vmem:[#allocation11 + $0x218] sm:$0xff]
    %v2292 = vld [vmem:[#allocation11 + $0x220] sm:$0xff]
    %v2293 = vld [vmem:[#allocation11 + $0x228] sm:$0xff]
    %v2294 = vld [vmem:[#allocation11 + $0x230] sm:$0xff]
    %v2295 = vld [vmem:[#allocation11 + $0x238] sm:$0xff]
    %v2296 = vld [vmem:[#allocation11 + $0x240] sm:$0xff]
    %v2297 = vld [vmem:[#allocation11 + $0x248] sm:$0xff]
    %v2298 = vld [vmem:[#allocation11 + $0x250] sm:$0xff]
    %v2299 = vld [vmem:[#allocation11 + $0x258] sm:$0xff]
    %v2300 = vld [vmem:[#allocation11 + $0x260] sm:$0xff]
    %v2301 = vld [vmem:[#allocation11 + $0x268] sm:$0xff]
    %v2302 = vld [vmem:[#allocation11 + $0x270] sm:$0xff]
    %v2303 = vld [vmem:[#allocation11 + $0x278] sm:$0xff]
    %v2304 = vld [vmem:[#allocation11 + $0x280] sm:$0xff]
    %v2305 = vld [vmem:[#allocation11 + $0x288] sm:$0xff]
    %v2306 = vld [vmem:[#allocation11 + $0x290] sm:$0xff]
    %v2307 = vld [vmem:[#allocation11 + $0x298] sm:$0xff]
    %v2308 = vld [vmem:[#allocation11 + $0x2a0] sm:$0xff]
    %v2309 = vld [vmem:[#allocation11 + $0x2a8] sm:$0xff]
    %v2310 = vld [vmem:[#allocation11 + $0x2b0] sm:$0xff]
    %v2311 = vld [vmem:[#allocation11 + $0x2b8] sm:$0xff]
    %v2312 = vld [vmem:[#allocation11 + $0x2c0] sm:$0xff]
    %v2313 = vld [vmem:[#allocation11 + $0x2c8] sm:$0xff]
    %v2314 = vld [vmem:[#allocation11 + $0x2d0] sm:$0xff]
    %v2315 = vld [vmem:[#allocation11 + $0x2d8] sm:$0xff]
    %v2316 = vld [vmem:[#allocation11 + $0x2e0] sm:$0xff]
    %v2317 = vld [vmem:[#allocation11 + $0x2e8] sm:$0xff]
    %v2318 = vld [vmem:[#allocation11 + $0x2f0] sm:$0xff]
    %v2319 = vld [vmem:[#allocation11 + $0x2f8] sm:$0xff]
    %v2320 = vld [vmem:[#allocation11 + $0x300] sm:$0xff]
    %v2321 = vld [vmem:[#allocation11 + $0x308] sm:$0xff]
    %v2322 = vld [vmem:[#allocation11 + $0x310] sm:$0xff]
    %v2323 = vld [vmem:[#allocation11 + $0x318] sm:$0xff]
    %v2324 = vld [vmem:[#allocation11 + $0x320] sm:$0xff]
    %v2325 = vld [vmem:[#allocation11 + $0x328] sm:$0xff]
    %v2326 = vld [vmem:[#allocation11 + $0x330] sm:$0xff]
    %v2327 = vld [vmem:[#allocation11 + $0x338] sm:$0xff]
    %v2328 = vld [vmem:[#allocation11 + $0x340] sm:$0xff]
    %v2329 = vld [vmem:[#allocation11 + $0x348] sm:$0xff]
    %v2330 = vld [vmem:[#allocation11 + $0x350] sm:$0xff]
    %v2331 = vld [vmem:[#allocation11 + $0x358] sm:$0xff]
    %v2332 = vld [vmem:[#allocation11 + $0x360] sm:$0xff]
    %v2333 = vld [vmem:[#allocation11 + $0x368] sm:$0xff]
    %v2334 = vld [vmem:[#allocation11 + $0x370] sm:$0xff]
    %v2335 = vld [vmem:[#allocation11 + $0x378] sm:$0xff]
    %v2336 = vld [vmem:[#allocation11 + $0x380] sm:$0xff]
    %v2337 = vld [vmem:[#allocation11 + $0x388] sm:$0xff]
    %v2338 = vld [vmem:[#allocation11 + $0x390] sm:$0xff]
    %v2339 = vld [vmem:[#allocation11 + $0x398] sm:$0xff]
    %v2340 = vld [vmem:[#allocation11 + $0x3a0] sm:$0xff]
    %v2341 = vld [vmem:[#allocation11 + $0x3a8] sm:$0xff]
    %v2342 = vld [vmem:[#allocation11 + $0x3b0] sm:$0xff]
    %v2343 = vld [vmem:[#allocation11 + $0x3b8] sm:$0xff]
    %v2344 = vld [vmem:[#allocation11 + $0x3c0] sm:$0xff]
    %v2345 = vld [vmem:[#allocation11 + $0x3c8] sm:$0xff]
    %v2346 = vld [vmem:[#allocation11 + $0x3d0] sm:$0xff]
    %v2347 = vld [vmem:[#allocation11 + $0x3d8] sm:$0xff]
    %v2348 = vld [vmem:[#allocation11 + $0x3e0] sm:$0xff]
    %v2349 = vld [vmem:[#allocation11 + $0x3e8] sm:$0xff]
    %v2350 = vld [vmem:[#allocation11 + $0x3f0] sm:$0xff]
    %v2351 = vld [vmem:[#allocation11 + $0x3f8] sm:$0xff]
    %v2352 = vld [vmem:[#allocation11 + $0x400] sm:$0xff]
    %v2353 = vld [vmem:[#allocation11 + $0x408] sm:$0xff]
    %v2354 = vld [vmem:[#allocation11 + $0x410] sm:$0xff]
    %v2355 = vld [vmem:[#allocation11 + $0x418] sm:$0xff]
    %v2356 = vld [vmem:[#allocation11 + $0x420] sm:$0xff]
    %v2357 = vld [vmem:[#allocation11 + $0x428] sm:$0xff]
    %v2358 = vld [vmem:[#allocation11 + $0x430] sm:$0xff]
    %v2359 = vld [vmem:[#allocation11 + $0x438] sm:$0xff]
    %v2360 = vld [vmem:[#allocation11 + $0x440] sm:$0xff]
    %v2361 = vld [vmem:[#allocation11 + $0x448] sm:$0xff]
    %v2362 = vld [vmem:[#allocation11 + $0x450] sm:$0xff]
    %v2363 = vld [vmem:[#allocation11 + $0x458] sm:$0xff]
    %v2364 = vld [vmem:[#allocation11 + $0x460] sm:$0xff]
    %v2365 = vld [vmem:[#allocation11 + $0x468] sm:$0xff]
    %v2366 = vld [vmem:[#allocation11 + $0x470] sm:$0xff]
    %v2367 = vld [vmem:[#allocation11 + $0x478] sm:$0xff]
    %v2368 = vld [vmem:[#allocation11 + $0x480] sm:$0xff]
    %v2369 = vld [vmem:[#allocation11 + $0x488] sm:$0xff]
    %v2370 = vld [vmem:[#allocation11 + $0x490] sm:$0xff]
    %v2371 = vld [vmem:[#allocation11 + $0x498] sm:$0xff]
    %v2372 = vld [vmem:[#allocation11 + $0x4a0] sm:$0xff]
    %v2373 = vld [vmem:[#allocation11 + $0x4a8] sm:$0xff]
    %v2374 = vld [vmem:[#allocation11 + $0x4b0] sm:$0xff]
    %v2375 = vld [vmem:[#allocation11 + $0x4b8] sm:$0xff]
    %v2376 = vld [vmem:[#allocation11 + $0x4c0] sm:$0xff]
    %v2377 = vld [vmem:[#allocation11 + $0x4c8] sm:$0xff]
    %v2378 = vld [vmem:[#allocation11 + $0x4d0] sm:$0xff]
    %v2379 = vld [vmem:[#allocation11 + $0x4d8] sm:$0xff]
    %v2380 = vld [vmem:[#allocation11 + $0x4e0] sm:$0xff]
    %v2381 = vld [vmem:[#allocation11 + $0x4e8] sm:$0xff]
    %v2382 = vld [vmem:[#allocation11 + $0x4f0] sm:$0xff]
    %v2383 = vld [vmem:[#allocation11 + $0x4f8] sm:$0xff]
    %v2384 = vld [vmem:[#allocation11 + $0x500] sm:$0xff]
    %v2385 = vld [vmem:[#allocation11 + $0x508] sm:$0xff]
    %v2386 = vld [vmem:[#allocation11 + $0x510] sm:$0xff]
    %v2387 = vld [vmem:[#allocation11 + $0x518] sm:$0xff]
    %v2388 = vld [vmem:[#allocation11 + $0x520] sm:$0xff]
    %v2389 = vld [vmem:[#allocation11 + $0x528] sm:$0xff]
    %v2390 = vld [vmem:[#allocation11 + $0x530] sm:$0xff]
    %v2391 = vld [vmem:[#allocation11 + $0x538] sm:$0xff]
    %v2392 = vld [vmem:[#allocation11 + $0x540] sm:$0xff]
    %v2393 = vld [vmem:[#allocation11 + $0x548] sm:$0xff]
    %v2394 = vld [vmem:[#allocation11 + $0x550] sm:$0xff]
    %v2395 = vld [vmem:[#allocation11 + $0x558] sm:$0xff]
    %v2396 = vld [vmem:[#allocation11 + $0x560] sm:$0xff]
    %v2397 = vld [vmem:[#allocation11 + $0x568] sm:$0xff]
    %v2398 = vld [vmem:[#allocation11 + $0x570] sm:$0xff]
    %v2399 = vld [vmem:[#allocation11 + $0x578] sm:$0xff]
    %v2400 = vld [vmem:[#allocation11 + $0x580] sm:$0xff]
    %v2401 = vld [vmem:[#allocation11 + $0x588] sm:$0xff]
    %v2402 = vld [vmem:[#allocation11 + $0x590] sm:$0xff]
    %v2403 = vld [vmem:[#allocation11 + $0x598] sm:$0xff]
    %v2404 = vld [vmem:[#allocation11 + $0x5a0] sm:$0xff]
    %v2405 = vld [vmem:[#allocation11 + $0x5a8] sm:$0xff]
    %v2406 = vld [vmem:[#allocation11 + $0x5b0] sm:$0xff]
    %v2407 = vld [vmem:[#allocation11 + $0x5b8] sm:$0xff]
    %v2408 = vld [vmem:[#allocation11 + $0x5c0] sm:$0xff]
    %v2409 = vld [vmem:[#allocation11 + $0x5c8] sm:$0xff]
    %v2410 = vld [vmem:[#allocation11 + $0x5d0] sm:$0xff]
    %v2411 = vld [vmem:[#allocation11 + $0x5d8] sm:$0xff]
    %v2412 = vld [vmem:[#allocation11 + $0x5e0] sm:$0xff]
    %v2413 = vld [vmem:[#allocation11 + $0x5e8] sm:$0xff]
    %v2414 = vld [vmem:[#allocation11 + $0x5f0] sm:$0xff]
    %v2415 = vld [vmem:[#allocation11 + $0x5f8] sm:$0xff]
    %2416 = vmatprep.subr.mxu0 %v2285
    %2417 = vmatpush1.msra.mxu0 %v2284
    %2418 = vmatprep.subr.mxu0 %v2281
    %2419 = vmatpush1.msra.mxu0 %v2280
    %2420 = vmatprep.subr.mxu0 %v2277
    %2421 = vmatpush1.msra.mxu0 %v2276
    %2422 = vmatprep.subr.mxu0 %v2273
    %2423 = vmatpush1.msra.mxu0 %v2272
    %2424 = vmatprep.subr.mxu0 %v2269
    %2425 = vmatpush1.msra.mxu0 %v2268
    %2426 = vmatprep.subr.mxu0 %v2265
    %2427 = vmatpush1.msra.mxu0 %v2264
    %2428 = vmatprep.subr.mxu0 %v2261
    %2429 = vmatpush1.msra.mxu0 %v2260
    %2430 = vmatprep.subr.mxu0 %v2257
    %2431 = vmatpush1.msra.mxu0 %v2256
    %2432 = vmatprep.subr.mxu0 %v2253
    %2433 = vmatpush1.msra.mxu0 %v2252
    %2434 = vmatprep.subr.mxu0 %v2249
    %2435 = vmatpush1.msra.mxu0 %v2248
    %2436 = vmatprep.subr.mxu0 %v2245
    %2437 = vmatpush1.msra.mxu0 %v2244
    %2438 = vmatprep.subr.mxu0 %v2241
    %2439 = vmatpush1.msra.mxu0 %v2240
    %2440 = vmatprep.subr.mxu0 %v2237
    %2441 = vmatpush1.msra.mxu0 %v2236
    %2442 = vmatprep.subr.mxu0 %v2233
    %2443 = vmatpush1.msra.mxu0 %v2232
    %2444 = vmatprep.subr.mxu0 %v2229
    %2445 = vmatpush1.msra.mxu0 %v2228
    %2446 = vmatprep.subr.mxu0 %v2225
    %2447 = vmatpush1.msra.mxu0 %v2224
    %2448 = vmatprep.subr.mxu0 %v2349
    %2449 = vmatpush2.msra.mxu0 %v2348
    %2450 = vmatprep.subr.mxu0 %v2345
    %2451 = vmatpush2.msra.mxu0 %v2344
    %2452 = vmatprep.subr.mxu0 %v2341
    %2453 = vmatpush2.msra.mxu0 %v2340
    %2454 = vmatprep.subr.mxu0 %v2337
    %2455 = vmatpush2.msra.mxu0 %v2336
    %2456 = vmatprep.subr.mxu0 %v2333
    %2457 = vmatpush2.msra.mxu0 %v2332
    %2458 = vmatprep.subr.mxu0 %v2329
    %2459 = vmatpush2.msra.mxu0 %v2328
    %2460 = vmatprep.subr.mxu0 %v2325
    %2461 = vmatpush2.msra.mxu0 %v2324
    %2462 = vmatprep.subr.mxu0 %v2321
    %2463 = vmatpush2.msra.mxu0 %v2320
    %2464 = vmatprep.subr.mxu0 %v2317
    %2465 = vmatpush2.msra.mxu0 %v2316
    %2466 = vmatprep.subr.mxu0 %v2313
    %2467 = vmatpush2.msra.mxu0 %v2312
    %2468 = vmatprep.subr.mxu0 %v2309
    %2469 = vmatpush2.msra.mxu0 %v2308
    %2470 = vmatprep.subr.mxu0 %v2305
    %2471 = vmatpush2.msra.mxu0 %v2304
    %2472 = vmatprep.subr.mxu0 %v2301
    %2473 = vmatpush2.msra.mxu0 %v2300
    %2474 = vmatprep.subr.mxu0 %v2297
    %2475 = vmatpush2.msra.mxu0 %v2296
    %2476 = vmatprep.subr.mxu0 %v2293
    %2477 = vmatpush2.msra.mxu0 %v2292
    %2478 = vmatprep.subr.mxu0 %v2289
    %2479 = vmatpush2.msra.mxu0 %v2288
    %2480 = vmatprep.mubr.f32.mxu0 %v2221
    %2481 = vmatmul.mubr.f32.gmra.mxu0 %v972
    %v2482 = vpop.f32.mrf.mxu0
    %v2483 = vadd.f32 %v434, %v2482
    %v2484 = vpop.f32.mrf.mxu0
    %v2485 = vadd.f32 %v438, %v2484
    %2486 = vdwg.mxu0
    %2487 = vmatprep.subr.mxu0 %v2413
    %2488 = vmatpush1.msra.mxu0 %v2412
    %2489 = vmatprep.subr.mxu0 %v2409
    %2490 = vmatpush1.msra.mxu0 %v2408
    %2491 = vmatprep.subr.mxu0 %v2405
    %2492 = vmatpush1.msra.mxu0 %v2404
    %2493 = vmatprep.subr.mxu0 %v2401
    %2494 = vmatpush1.msra.mxu0 %v2400
    %2495 = vmatprep.subr.mxu0 %v2397
    %2496 = vmatpush1.msra.mxu0 %v2396
    %2497 = vmatprep.subr.mxu0 %v2393
    %2498 = vmatpush1.msra.mxu0 %v2392
    %2499 = vmatprep.subr.mxu0 %v2389
    %2500 = vmatpush1.msra.mxu0 %v2388
    %2501 = vmatprep.subr.mxu0 %v2385
    %2502 = vmatpush1.msra.mxu0 %v2384
    %2503 = vmatprep.subr.mxu0 %v2381
    %2504 = vmatpush1.msra.mxu0 %v2380
    %2505 = vmatprep.subr.mxu0 %v2377
    %2506 = vmatpush1.msra.mxu0 %v2376
    %2507 = vmatprep.subr.mxu0 %v2373
    %2508 = vmatpush1.msra.mxu0 %v2372
    %2509 = vmatprep.subr.mxu0 %v2369
    %2510 = vmatpush1.msra.mxu0 %v2368
    %2511 = vmatprep.subr.mxu0 %v2365
    %2512 = vmatpush1.msra.mxu0 %v2364
    %2513 = vmatprep.subr.mxu0 %v2361
    %2514 = vmatpush1.msra.mxu0 %v2360
    %2515 = vmatprep.subr.mxu0 %v2357
    %2516 = vmatpush1.msra.mxu0 %v2356
    %2517 = vmatprep.subr.mxu0 %v2353
    %2518 = vmatpush1.msra.mxu0 %v2352
    %2519 = vmatprep.subr.mxu0 0.0
    %2520 = vmatpush2.msra.mxu0 0.0
    %2521 = vmatprep.subr.mxu0 0.0
    %2522 = vmatpush2.msra.mxu0 0.0
    %2523 = vmatprep.subr.mxu0 0.0
    %2524 = vmatpush2.msra.mxu0 0.0
    %2525 = vmatprep.subr.mxu0 0.0
    %2526 = vmatpush2.msra.mxu0 0.0
    %2527 = vmatprep.subr.mxu0 0.0
    %2528 = vmatpush2.msra.mxu0 0.0
    %2529 = vmatprep.subr.mxu0 0.0
    %2530 = vmatpush2.msra.mxu0 0.0
    %2531 = vmatprep.subr.mxu0 0.0
    %2532 = vmatpush2.msra.mxu0 0.0
    %2533 = vmatprep.subr.mxu0 0.0
    %2534 = vmatpush2.msra.mxu0 0.0
    %2535 = vmatprep.subr.mxu0 0.0
    %2536 = vmatpush2.msra.mxu0 0.0
    %2537 = vmatprep.subr.mxu0 0.0
    %2538 = vmatpush2.msra.mxu0 0.0
    %2539 = vmatprep.subr.mxu0 0.0
    %2540 = vmatpush2.msra.mxu0 0.0
    %2541 = vmatprep.subr.mxu0 0.0
    %2542 = vmatpush2.msra.mxu0 0.0
    %2543 = vmatprep.subr.mxu0 0.0
    %2544 = vmatpush2.msra.mxu0 0.0
    %2545 = vmatprep.subr.mxu0 0.0
    %2546 = vmatpush2.msra.mxu0 0.0
    %2547 = vmatprep.subr.mxu0 0.0
    %2548 = vmatpush2.msra.mxu0 0.0
    %2549 = vmatprep.subr.mxu0 0.0
    %2550 = vmatpush2.msra.mxu0 0.0
    %2551 = vmatprep.mubr.f32.mxu0 0.0
    %2552 = vmatmul.mubr.f32.gmra.mxu0 %v470
    %v2553 = vpop.f32.mrf.mxu0
    %v2554 = vadd.f32 %v2483, %v2553
    %v2555 = vpop.f32.mrf.mxu0
    %v2556 = vadd.f32 %v2485, %v2555
    %2557 = vdwg.mxu0
    %2558 = vmatprep.subr.mxu0 %v2287
    %2559 = vmatpush1.msra.mxu0 %v2286
    %2560 = vmatprep.subr.mxu0 %v2283
    %2561 = vmatpush1.msra.mxu0 %v2282
    %2562 = vmatprep.subr.mxu0 %v2279
    %2563 = vmatpush1.msra.mxu0 %v2278
    %2564 = vmatprep.subr.mxu0 %v2275
    %2565 = vmatpush1.msra.mxu0 %v2274
    %2566 = vmatprep.subr.mxu0 %v2271
    %2567 = vmatpush1.msra.mxu0 %v2270
    %2568 = vmatprep.subr.mxu0 %v2267
    %2569 = vmatpush1.msra.mxu0 %v2266
    %2570 = vmatprep.subr.mxu0 %v2263
    %2571 = vmatpush1.msra.mxu0 %v2262
    %2572 = vmatprep.subr.mxu0 %v2259
    %2573 = vmatpush1.msra.mxu0 %v2258
    %2574 = vmatprep.subr.mxu0 %v2255
    %2575 = vmatpush1.msra.mxu0 %v2254
    %2576 = vmatprep.subr.mxu0 %v2251
    %2577 = vmatpush1.msra.mxu0 %v2250
    %2578 = vmatprep.subr.mxu0 %v2247
    %2579 = vmatpush1.msra.mxu0 %v2246
    %2580 = vmatprep.subr.mxu0 %v2243
    %2581 = vmatpush1.msra.mxu0 %v2242
    %2582 = vmatprep.subr.mxu0 %v2239
    %2583 = vmatpush1.msra.mxu0 %v2238
    %2584 = vmatprep.subr.mxu0 %v2235
    %2585 = vmatpush1.msra.mxu0 %v2234
    %2586 = vmatprep.subr.mxu0 %v2231
    %2587 = vmatpush1.msra.mxu0 %v2230
    %2588 = vmatprep.subr.mxu0 %v2227
    %2589 = vmatpush1.msra.mxu0 %v2226
    %2590 = vmatprep.subr.mxu0 %v2351
    %2591 = vmatpush2.msra.mxu0 %v2350
    %2592 = vmatprep.subr.mxu0 %v2347
    %2593 = vmatpush2.msra.mxu0 %v2346
    %2594 = vmatprep.subr.mxu0 %v2343
    %2595 = vmatpush2.msra.mxu0 %v2342
    %2596 = vmatprep.subr.mxu0 %v2339
    %2597 = vmatpush2.msra.mxu0 %v2338
    %2598 = vmatprep.subr.mxu0 %v2335
    %2599 = vmatpush2.msra.mxu0 %v2334
    %2600 = vmatprep.subr.mxu0 %v2331
    %2601 = vmatpush2.msra.mxu0 %v2330
    %2602 = vmatprep.subr.mxu0 %v2327
    %2603 = vmatpush2.msra.mxu0 %v2326
    %2604 = vmatprep.subr.mxu0 %v2323
    %2605 = vmatpush2.msra.mxu0 %v2322
    %2606 = vmatprep.subr.mxu0 %v2319
    %2607 = vmatpush2.msra.mxu0 %v2318
    %2608 = vmatprep.subr.mxu0 %v2315
    %2609 = vmatpush2.msra.mxu0 %v2314
    %2610 = vmatprep.subr.mxu0 %v2311
    %2611 = vmatpush2.msra.mxu0 %v2310
    %2612 = vmatprep.subr.mxu0 %v2307
    %2613 = vmatpush2.msra.mxu0 %v2306
    %2614 = vmatprep.subr.mxu0 %v2303
    %2615 = vmatpush2.msra.mxu0 %v2302
    %2616 = vmatprep.subr.mxu0 %v2299
    %2617 = vmatpush2.msra.mxu0 %v2298
    %2618 = vmatprep.subr.mxu0 %v2295
    %2619 = vmatpush2.msra.mxu0 %v2294
    %2620 = vmatprep.subr.mxu0 %v2291
    %2621 = vmatpush2.msra.mxu0 %v2290
    %2622 = vmatprep.mubr.f32.mxu0 %v2221
    %2623 = vmatmul.mubr.f32.gmra.mxu0 %v972
    %v2624 = vpop.f32.mrf.mxu0
    %v2625 = vadd.f32 %v442, %v2624
    %v2626 = vpop.f32.mrf.mxu0
    %v2627 = vadd.f32 %v446, %v2626
    %2628 = vdwg.mxu0
    %2629 = vmatprep.subr.mxu0 %v2415
    %2630 = vmatpush1.msra.mxu0 %v2414
    %2631 = vmatprep.subr.mxu0 %v2411
    %2632 = vmatpush1.msra.mxu0 %v2410
    %2633 = vmatprep.subr.mxu0 %v2407
    %2634 = vmatpush1.msra.mxu0 %v2406
    %2635 = vmatprep.subr.mxu0 %v2403
    %2636 = vmatpush1.msra.mxu0 %v2402
    %2637 = vmatprep.subr.mxu0 %v2399
    %2638 = vmatpush1.msra.mxu0 %v2398
    %2639 = vmatprep.subr.mxu0 %v2395
    %2640 = vmatpush1.msra.mxu0 %v2394
    %2641 = vmatprep.subr.mxu0 %v2391
    %2642 = vmatpush1.msra.mxu0 %v2390
    %2643 = vmatprep.subr.mxu0 %v2387
    %2644 = vmatpush1.msra.mxu0 %v2386
    %2645 = vmatprep.subr.mxu0 %v2383
    %2646 = vmatpush1.msra.mxu0 %v2382
    %2647 = vmatprep.subr.mxu0 %v2379
    %2648 = vmatpush1.msra.mxu0 %v2378
    %2649 = vmatprep.subr.mxu0 %v2375
    %2650 = vmatpush1.msra.mxu0 %v2374
    %2651 = vmatprep.subr.mxu0 %v2371
    %2652 = vmatpush1.msra.mxu0 %v2370
    %2653 = vmatprep.subr.mxu0 %v2367
    %2654 = vmatpush1.msra.mxu0 %v2366
    %2655 = vmatprep.subr.mxu0 %v2363
    %2656 = vmatpush1.msra.mxu0 %v2362
    %2657 = vmatprep.subr.mxu0 %v2359
    %2658 = vmatpush1.msra.mxu0 %v2358
    %2659 = vmatprep.subr.mxu0 %v2355
    %2660 = vmatpush1.msra.mxu0 %v2354
    %2661 = vmatprep.subr.mxu0 0.0
    %2662 = vmatpush2.msra.mxu0 0.0
    %2663 = vmatprep.subr.mxu0 0.0
    %2664 = vmatpush2.msra.mxu0 0.0
    %2665 = vmatprep.subr.mxu0 0.0
    %2666 = vmatpush2.msra.mxu0 0.0
    %2667 = vmatprep.subr.mxu0 0.0
    %2668 = vmatpush2.msra.mxu0 0.0
    %2669 = vmatprep.subr.mxu0 0.0
    %2670 = vmatpush2.msra.mxu0 0.0
    %2671 = vmatprep.subr.mxu0 0.0
    %2672 = vmatpush2.msra.mxu0 0.0
    %2673 = vmatprep.subr.mxu0 0.0
    %2674 = vmatpush2.msra.mxu0 0.0
    %2675 = vmatprep.subr.mxu0 0.0
    %2676 = vmatpush2.msra.mxu0 0.0
    %2677 = vmatprep.subr.mxu0 0.0
    %2678 = vmatpush2.msra.mxu0 0.0
    %2679 = vmatprep.subr.mxu0 0.0
    %2680 = vmatpush2.msra.mxu0 0.0
    %2681 = vmatprep.subr.mxu0 0.0
    %2682 = vmatpush2.msra.mxu0 0.0
    %2683 = vmatprep.subr.mxu0 0.0
    %2684 = vmatpush2.msra.mxu0 0.0
    %2685 = vmatprep.subr.mxu0 0.0
    %2686 = vmatpush2.msra.mxu0 0.0
    %2687 = vmatprep.subr.mxu0 0.0
    %2688 = vmatpush2.msra.mxu0 0.0
    %2689 = vmatprep.subr.mxu0 0.0
    %2690 = vmatpush2.msra.mxu0 0.0
    %2691 = vmatprep.subr.mxu0 0.0
    %2692 = vmatpush2.msra.mxu0 0.0
    %2693 = vmatprep.mubr.f32.mxu0 0.0
    %2694 = vmatmul.mubr.f32.gmra.mxu0 %v470
    %v2695 = vpop.f32.mrf.mxu0
    %v2696 = vadd.f32 %v2625, %v2695
    %v2697 = vpop.f32.mrf.mxu0
    %v2698 = vadd.f32 %v2627, %v2697
    %2699 = vdwg.mxu0
    %v2700 = vxor.u32 %v2554, 2147483648
    %v2701 = vmul.f32 %v2700, 1.442695
    %v2702 = vpow.pop %v2701
    %v2703 = vadd.f32 %v2702, 1.0
    %v2704 = vrcp.pop %v2703
    %v2705 = vmul.f32 1.0, %v2704
    %v2706 = vxor.u32 %v2556, 2147483648
    %v2707 = vmul.f32 %v2706, 1.442695
    %v2708 = vpow.pop %v2707
    %v2709 = vadd.f32 %v2708, 1.0
    %v2710 = vrcp.pop %v2709
    %v2711 = vmul.f32 1.0, %v2710
    %v2712 = vtanh.pop %v2696
    %v2713 = vxor.u32 %v2698, 2147483648
    %v2714 = vmul.f32 %v2713, 1.442695
    %v2715 = vpow.pop %v2714
    %v2716 = vadd.f32 %v2715, 1.0
    %v2717 = vrcp.pop %v2716
    %v2718 = vmul.f32 1.0, %v2717
    %v2719 = vmul.f32 %v2711, 0.0
    %v2720 = vmul.f32 %v2705, %v2712
    %v2721 = vadd.f32 %v2719, %v2720
    %v2722 = vtanh.pop %v2721
    %v2723 = vmul.f32 %v2718, %v2722
    %v2724 = vld [vmem:[%s12] sm:$0xff]
    %v2725 = vld [vmem:[%s12 + $0x8] sm:$0xff]
    %v2726 = vld [vmem:[%s12 + $0x10] sm:$0xff]
    %v2727 = vld [vmem:[%s12 + $0x18] sm:$0xff]
    %v2728 = vld [vmem:[%s12 + $0x20] sm:$0xff]
    %v2729 = vld [vmem:[%s12 + $0x28] sm:$0xff]
    %v2730 = vld [vmem:[%s12 + $0x30] sm:$0xff]
    %v2731 = vld [vmem:[%s12 + $0x38] sm:$0xff]
    %v2732 = vld [vmem:[%s12 + $0x40] sm:$0xff]
    %v2733 = vld [vmem:[%s12 + $0x48] sm:$0xff]
    %v2734 = vld [vmem:[%s12 + $0x50] sm:$0xff]
    %v2735 = vld [vmem:[%s12 + $0x58] sm:$0xff]
    %v2736 = vld [vmem:[%s12 + $0x60] sm:$0xff]
    %v2737 = vld [vmem:[%s12 + $0x68] sm:$0xff]
    %v2738 = vld [vmem:[%s12 + $0x70] sm:$0xff]
    %v2739 = vld [vmem:[%s12 + $0x78] sm:$0xff]
    %v2740 = vld [vmem:[%s12 + $0x80] sm:$0xff]
    %v2741 = vld [vmem:[%s12 + $0x88] sm:$0xff]
    %v2742 = vld [vmem:[%s12 + $0x90] sm:$0xff]
    %v2743 = vld [vmem:[%s12 + $0x98] sm:$0xff]
    %v2744 = vld [vmem:[%s12 + $0xa0] sm:$0xff]
    %v2745 = vld [vmem:[%s12 + $0xa8] sm:$0xff]
    %v2746 = vld [vmem:[%s12 + $0xb0] sm:$0xff]
    %v2747 = vld [vmem:[%s12 + $0xb8] sm:$0xff]
    %v2748 = vld [vmem:[%s12 + $0xc0] sm:$0xff]
    %v2749 = vld [vmem:[%s12 + $0xc8] sm:$0xff]
    %v2750 = vld [vmem:[%s12 + $0xd0] sm:$0xff]
    %v2751 = vld [vmem:[%s12 + $0xd8] sm:$0xff]
    %v2752 = vld [vmem:[%s12 + $0xe0] sm:$0xff]
    %v2753 = vld [vmem:[%s12 + $0xe8] sm:$0xff]
    %v2754 = vld [vmem:[%s12 + $0xf0] sm:$0xff]
    %v2755 = vld [vmem:[%s12 + $0xf8] sm:$0xff]
    %2756 = vmatprep.subr.mxu0 0.0
    %2757 = vmatpush1.msra.mxu0 %v2739
    %2758 = vmatprep.subr.mxu0 0.0
    %2759 = vmatpush1.msra.mxu0 %v2738
    %2760 = vmatprep.subr.mxu0 0.0
    %2761 = vmatpush1.msra.mxu0 %v2737
    %2762 = vmatprep.subr.mxu0 0.0
    %2763 = vmatpush1.msra.mxu0 %v2736
    %2764 = vmatprep.subr.mxu0 0.0
    %2765 = vmatpush1.msra.mxu0 %v2735
    %2766 = vmatprep.subr.mxu0 0.0
    %2767 = vmatpush1.msra.mxu0 %v2734
    %2768 = vmatprep.subr.mxu0 0.0
    %2769 = vmatpush1.msra.mxu0 %v2733
    %2770 = vmatprep.subr.mxu0 0.0
    %2771 = vmatpush1.msra.mxu0 %v2732
    %2772 = vmatprep.subr.mxu0 0.0
    %2773 = vmatpush1.msra.mxu0 %v2731
    %2774 = vmatprep.subr.mxu0 0.0
    %2775 = vmatpush1.msra.mxu0 %v2730
    %2776 = vmatprep.subr.mxu0 0.0
    %2777 = vmatpush1.msra.mxu0 %v2729
    %2778 = vmatprep.subr.mxu0 0.0
    %2779 = vmatpush1.msra.mxu0 %v2728
    %2780 = vmatprep.subr.mxu0 0.0
    %2781 = vmatpush1.msra.mxu0 %v2727
    %2782 = vmatprep.subr.mxu0 0.0
    %2783 = vmatpush1.msra.mxu0 %v2726
    %2784 = vmatprep.subr.mxu0 0.0
    %2785 = vmatpush1.msra.mxu0 %v2725
    %2786 = vmatprep.subr.mxu0 0.0
    %2787 = vmatpush1.msra.mxu0 %v2724
    %2788 = vmatprep.subr.mxu0 0.0
    %2789 = vmatpush2.msra.mxu0 %v2755
    %2790 = vmatprep.subr.mxu0 0.0
    %2791 = vmatpush2.msra.mxu0 %v2754
    %2792 = vmatprep.subr.mxu0 0.0
    %2793 = vmatpush2.msra.mxu0 %v2753
    %2794 = vmatprep.subr.mxu0 0.0
    %2795 = vmatpush2.msra.mxu0 %v2752
    %2796 = vmatprep.subr.mxu0 0.0
    %2797 = vmatpush2.msra.mxu0 %v2751
    %2798 = vmatprep.subr.mxu0 0.0
    %2799 = vmatpush2.msra.mxu0 %v2750
    %2800 = vmatprep.subr.mxu0 0.0
    %2801 = vmatpush2.msra.mxu0 %v2749
    %2802 = vmatprep.subr.mxu0 0.0
    %2803 = vmatpush2.msra.mxu0 %v2748
    %2804 = vmatprep.subr.mxu0 0.0
    %2805 = vmatpush2.msra.mxu0 %v2747
    %2806 = vmatprep.subr.mxu0 0.0
    %2807 = vmatpush2.msra.mxu0 %v2746
    %2808 = vmatprep.subr.mxu0 0.0
    %2809 = vmatpush2.msra.mxu0 %v2745
    %2810 = vmatprep.subr.mxu0 0.0
    %2811 = vmatpush2.msra.mxu0 %v2744
    %2812 = vmatprep.subr.mxu0 0.0
    %2813 = vmatpush2.msra.mxu0 %v2743
    %2814 = vmatprep.subr.mxu0 0.0
    %2815 = vmatpush2.msra.mxu0 %v2742
    %2816 = vmatprep.subr.mxu0 0.0
    %2817 = vmatpush2.msra.mxu0 %v2741
    %2818 = vmatprep.subr.mxu0 0.0
    %2819 = vmatpush2.msra.mxu0 %v2740
    %2820 = vmatprep.mubr.f32.mxu0 %v2221
    %2821 = vmatmul.mubr.f32.gmra.mxu0 %v2723
    %v2822 = vpop.f32.mrf.mxu0
    %v2823 = vadd.f32 %v456, %v2822
    %v2824 = vpop.f32.mrf.mxu0
    %2825 = vdwg.mxu0
    %vm2826 = vcmask 72704
    %v2827 = vsel %vm2826, %v2823, 0.0
    %v2828 = vsel %vm1075, %v2827, %v1930
    %v2829 = vsel %vm2139, %v2828, 0.0
    %2830 = vst [vmem:[#allocation14] sm:$0xff] %v2829
    %s2831 = scalar_lea.vmem [#allocation2], 8
    %v2832 = vld [vmem:[%s2831] sm:$0xff]
    %v2833 = vld [vmem:[#allocation9] sm:$0xff]
    %v2834 = vld [vmem:[#allocation9 + $0x8] sm:$0xff]
    %v2835 = vld [vmem:[#allocation9 + $0x10] sm:$0xff]
    %v2836 = vld [vmem:[#allocation9 + $0x18] sm:$0xff]
    %v2837 = vld [vmem:[#allocation9 + $0x20] sm:$0xff]
    %v2838 = vld [vmem:[#allocation9 + $0x28] sm:$0xff]
    %v2839 = vld [vmem:[#allocation9 + $0x30] sm:$0xff]
    %v2840 = vld [vmem:[#allocation9 + $0x38] sm:$0xff]
    %v2841 = vld [vmem:[#allocation9 + $0x40] sm:$0xff]
    %v2842 = vld [vmem:[#allocation9 + $0x48] sm:$0xff]
    %v2843 = vld [vmem:[#allocation9 + $0x50] sm:$0xff]
    %v2844 = vld [vmem:[#allocation9 + $0x58] sm:$0xff]
    %v2845 = vld [vmem:[#allocation9 + $0x60] sm:$0xff]
    %v2846 = vld [vmem:[#allocation9 + $0x68] sm:$0xff]
    %v2847 = vld [vmem:[#allocation9 + $0x70] sm:$0xff]
    %v2848 = vld [vmem:[#allocation9 + $0x78] sm:$0xff]
    %v2849 = vld [vmem:[#allocation9 + $0x80] sm:$0xff]
    %v2850 = vld [vmem:[#allocation9 + $0x88] sm:$0xff]
    %v2851 = vld [vmem:[#allocation9 + $0x90] sm:$0xff]
    %v2852 = vld [vmem:[#allocation9 + $0x98] sm:$0xff]
    %v2853 = vld [vmem:[#allocation9 + $0xa0] sm:$0xff]
    %v2854 = vld [vmem:[#allocation9 + $0xa8] sm:$0xff]
    %v2855 = vld [vmem:[#allocation9 + $0xb0] sm:$0xff]
    %v2856 = vld [vmem:[#allocation9 + $0xb8] sm:$0xff]
    %v2857 = vld [vmem:[#allocation9 + $0xc0] sm:$0xff]
    %v2858 = vld [vmem:[#allocation9 + $0xc8] sm:$0xff]
    %v2859 = vld [vmem:[#allocation9 + $0xd0] sm:$0xff]
    %v2860 = vld [vmem:[#allocation9 + $0xd8] sm:$0xff]
    %v2861 = vld [vmem:[#allocation9 + $0xe0] sm:$0xff]
    %v2862 = vld [vmem:[#allocation9 + $0xe8] sm:$0xff]
    %v2863 = vld [vmem:[#allocation9 + $0xf0] sm:$0xff]
    %v2864 = vld [vmem:[#allocation9 + $0xf8] sm:$0xff]
    %v2865 = vld [vmem:[#allocation9 + $0x100] sm:$0xff]
    %v2866 = vld [vmem:[#allocation9 + $0x108] sm:$0xff]
    %v2867 = vld [vmem:[#allocation9 + $0x110] sm:$0xff]
    %v2868 = vld [vmem:[#allocation9 + $0x118] sm:$0xff]
    %v2869 = vld [vmem:[#allocation9 + $0x120] sm:$0xff]
    %v2870 = vld [vmem:[#allocation9 + $0x128] sm:$0xff]
    %v2871 = vld [vmem:[#allocation9 + $0x130] sm:$0xff]
    %v2872 = vld [vmem:[#allocation9 + $0x138] sm:$0xff]
    %v2873 = vld [vmem:[#allocation9 + $0x140] sm:$0xff]
    %v2874 = vld [vmem:[#allocation9 + $0x148] sm:$0xff]
    %v2875 = vld [vmem:[#allocation9 + $0x150] sm:$0xff]
    %v2876 = vld [vmem:[#allocation9 + $0x158] sm:$0xff]
    %v2877 = vld [vmem:[#allocation9 + $0x160] sm:$0xff]
    %v2878 = vld [vmem:[#allocation9 + $0x168] sm:$0xff]
    %v2879 = vld [vmem:[#allocation9 + $0x170] sm:$0xff]
    %v2880 = vld [vmem:[#allocation9 + $0x178] sm:$0xff]
    %v2881 = vld [vmem:[#allocation9 + $0x180] sm:$0xff]
    %v2882 = vld [vmem:[#allocation9 + $0x188] sm:$0xff]
    %v2883 = vld [vmem:[#allocation9 + $0x190] sm:$0xff]
    %v2884 = vld [vmem:[#allocation9 + $0x198] sm:$0xff]
    %v2885 = vld [vmem:[#allocation9 + $0x1a0] sm:$0xff]
    %v2886 = vld [vmem:[#allocation9 + $0x1a8] sm:$0xff]
    %v2887 = vld [vmem:[#allocation9 + $0x1b0] sm:$0xff]
    %v2888 = vld [vmem:[#allocation9 + $0x1b8] sm:$0xff]
    %v2889 = vld [vmem:[#allocation9 + $0x1c0] sm:$0xff]
    %v2890 = vld [vmem:[#allocation9 + $0x1c8] sm:$0xff]
    %v2891 = vld [vmem:[#allocation9 + $0x1d0] sm:$0xff]
    %v2892 = vld [vmem:[#allocation9 + $0x1d8] sm:$0xff]
    %v2893 = vld [vmem:[#allocation9 + $0x1e0] sm:$0xff]
    %v2894 = vld [vmem:[#allocation9 + $0x1e8] sm:$0xff]
    %v2895 = vld [vmem:[#allocation9 + $0x1f0] sm:$0xff]
    %v2896 = vld [vmem:[#allocation9 + $0x1f8] sm:$0xff]
    %v2897 = vld [vmem:[#allocation9 + $0x200] sm:$0xff]
    %v2898 = vld [vmem:[#allocation9 + $0x208] sm:$0xff]
    %v2899 = vld [vmem:[#allocation9 + $0x210] sm:$0xff]
    %v2900 = vld [vmem:[#allocation9 + $0x218] sm:$0xff]
    %v2901 = vld [vmem:[#allocation9 + $0x220] sm:$0xff]
    %v2902 = vld [vmem:[#allocation9 + $0x228] sm:$0xff]
    %v2903 = vld [vmem:[#allocation9 + $0x230] sm:$0xff]
    %v2904 = vld [vmem:[#allocation9 + $0x238] sm:$0xff]
    %v2905 = vld [vmem:[#allocation9 + $0x240] sm:$0xff]
    %v2906 = vld [vmem:[#allocation9 + $0x248] sm:$0xff]
    %v2907 = vld [vmem:[#allocation9 + $0x250] sm:$0xff]
    %v2908 = vld [vmem:[#allocation9 + $0x258] sm:$0xff]
    %v2909 = vld [vmem:[#allocation9 + $0x260] sm:$0xff]
    %v2910 = vld [vmem:[#allocation9 + $0x268] sm:$0xff]
    %v2911 = vld [vmem:[#allocation9 + $0x270] sm:$0xff]
    %v2912 = vld [vmem:[#allocation9 + $0x278] sm:$0xff]
    %v2913 = vld [vmem:[#allocation9 + $0x280] sm:$0xff]
    %v2914 = vld [vmem:[#allocation9 + $0x288] sm:$0xff]
    %v2915 = vld [vmem:[#allocation9 + $0x290] sm:$0xff]
    %v2916 = vld [vmem:[#allocation9 + $0x298] sm:$0xff]
    %v2917 = vld [vmem:[#allocation9 + $0x2a0] sm:$0xff]
    %v2918 = vld [vmem:[#allocation9 + $0x2a8] sm:$0xff]
    %v2919 = vld [vmem:[#allocation9 + $0x2b0] sm:$0xff]
    %v2920 = vld [vmem:[#allocation9 + $0x2b8] sm:$0xff]
    %v2921 = vld [vmem:[#allocation9 + $0x2c0] sm:$0xff]
    %v2922 = vld [vmem:[#allocation9 + $0x2c8] sm:$0xff]
    %v2923 = vld [vmem:[#allocation9 + $0x2d0] sm:$0xff]
    %v2924 = vld [vmem:[#allocation9 + $0x2d8] sm:$0xff]
    %v2925 = vld [vmem:[#allocation9 + $0x2e0] sm:$0xff]
    %v2926 = vld [vmem:[#allocation9 + $0x2e8] sm:$0xff]
    %v2927 = vld [vmem:[#allocation9 + $0x2f0] sm:$0xff]
    %v2928 = vld [vmem:[#allocation9 + $0x2f8] sm:$0xff]
    %v2929 = vld [vmem:[#allocation9 + $0x300] sm:$0xff]
    %v2930 = vld [vmem:[#allocation9 + $0x308] sm:$0xff]
    %v2931 = vld [vmem:[#allocation9 + $0x310] sm:$0xff]
    %v2932 = vld [vmem:[#allocation9 + $0x318] sm:$0xff]
    %v2933 = vld [vmem:[#allocation9 + $0x320] sm:$0xff]
    %v2934 = vld [vmem:[#allocation9 + $0x328] sm:$0xff]
    %v2935 = vld [vmem:[#allocation9 + $0x330] sm:$0xff]
    %v2936 = vld [vmem:[#allocation9 + $0x338] sm:$0xff]
    %v2937 = vld [vmem:[#allocation9 + $0x340] sm:$0xff]
    %v2938 = vld [vmem:[#allocation9 + $0x348] sm:$0xff]
    %v2939 = vld [vmem:[#allocation9 + $0x350] sm:$0xff]
    %v2940 = vld [vmem:[#allocation9 + $0x358] sm:$0xff]
    %v2941 = vld [vmem:[#allocation9 + $0x360] sm:$0xff]
    %v2942 = vld [vmem:[#allocation9 + $0x368] sm:$0xff]
    %v2943 = vld [vmem:[#allocation9 + $0x370] sm:$0xff]
    %v2944 = vld [vmem:[#allocation9 + $0x378] sm:$0xff]
    %v2945 = vld [vmem:[#allocation9 + $0x380] sm:$0xff]
    %v2946 = vld [vmem:[#allocation9 + $0x388] sm:$0xff]
    %v2947 = vld [vmem:[#allocation9 + $0x390] sm:$0xff]
    %v2948 = vld [vmem:[#allocation9 + $0x398] sm:$0xff]
    %v2949 = vld [vmem:[#allocation9 + $0x3a0] sm:$0xff]
    %v2950 = vld [vmem:[#allocation9 + $0x3a8] sm:$0xff]
    %v2951 = vld [vmem:[#allocation9 + $0x3b0] sm:$0xff]
    %v2952 = vld [vmem:[#allocation9 + $0x3b8] sm:$0xff]
    %v2953 = vld [vmem:[#allocation9 + $0x3c0] sm:$0xff]
    %v2954 = vld [vmem:[#allocation9 + $0x3c8] sm:$0xff]
    %v2955 = vld [vmem:[#allocation9 + $0x3d0] sm:$0xff]
    %v2956 = vld [vmem:[#allocation9 + $0x3d8] sm:$0xff]
    %v2957 = vld [vmem:[#allocation9 + $0x3e0] sm:$0xff]
    %v2958 = vld [vmem:[#allocation9 + $0x3e8] sm:$0xff]
    %v2959 = vld [vmem:[#allocation9 + $0x3f0] sm:$0xff]
    %v2960 = vld [vmem:[#allocation9 + $0x3f8] sm:$0xff]
    %v2961 = vld [vmem:[#allocation9 + $0x400] sm:$0xff]
    %v2962 = vld [vmem:[#allocation9 + $0x408] sm:$0xff]
    %v2963 = vld [vmem:[#allocation9 + $0x410] sm:$0xff]
    %v2964 = vld [vmem:[#allocation9 + $0x418] sm:$0xff]
    %v2965 = vld [vmem:[#allocation9 + $0x420] sm:$0xff]
    %v2966 = vld [vmem:[#allocation9 + $0x428] sm:$0xff]
    %v2967 = vld [vmem:[#allocation9 + $0x430] sm:$0xff]
    %v2968 = vld [vmem:[#allocation9 + $0x438] sm:$0xff]
    %v2969 = vld [vmem:[#allocation9 + $0x440] sm:$0xff]
    %v2970 = vld [vmem:[#allocation9 + $0x448] sm:$0xff]
    %v2971 = vld [vmem:[#allocation9 + $0x450] sm:$0xff]
    %v2972 = vld [vmem:[#allocation9 + $0x458] sm:$0xff]
    %v2973 = vld [vmem:[#allocation9 + $0x460] sm:$0xff]
    %v2974 = vld [vmem:[#allocation9 + $0x468] sm:$0xff]
    %v2975 = vld [vmem:[#allocation9 + $0x470] sm:$0xff]
    %v2976 = vld [vmem:[#allocation9 + $0x478] sm:$0xff]
    %v2977 = vld [vmem:[#allocation9 + $0x480] sm:$0xff]
    %v2978 = vld [vmem:[#allocation9 + $0x488] sm:$0xff]
    %v2979 = vld [vmem:[#allocation9 + $0x490] sm:$0xff]
    %v2980 = vld [vmem:[#allocation9 + $0x498] sm:$0xff]
    %v2981 = vld [vmem:[#allocation9 + $0x4a0] sm:$0xff]
    %v2982 = vld [vmem:[#allocation9 + $0x4a8] sm:$0xff]
    %v2983 = vld [vmem:[#allocation9 + $0x4b0] sm:$0xff]
    %v2984 = vld [vmem:[#allocation9 + $0x4b8] sm:$0xff]
    %v2985 = vld [vmem:[#allocation9 + $0x4c0] sm:$0xff]
    %v2986 = vld [vmem:[#allocation9 + $0x4c8] sm:$0xff]
    %v2987 = vld [vmem:[#allocation9 + $0x4d0] sm:$0xff]
    %v2988 = vld [vmem:[#allocation9 + $0x4d8] sm:$0xff]
    %v2989 = vld [vmem:[#allocation9 + $0x4e0] sm:$0xff]
    %v2990 = vld [vmem:[#allocation9 + $0x4e8] sm:$0xff]
    %v2991 = vld [vmem:[#allocation9 + $0x4f0] sm:$0xff]
    %v2992 = vld [vmem:[#allocation9 + $0x4f8] sm:$0xff]
    %v2993 = vld [vmem:[#allocation9 + $0x500] sm:$0xff]
    %v2994 = vld [vmem:[#allocation9 + $0x508] sm:$0xff]
    %v2995 = vld [vmem:[#allocation9 + $0x510] sm:$0xff]
    %v2996 = vld [vmem:[#allocation9 + $0x518] sm:$0xff]
    %v2997 = vld [vmem:[#allocation9 + $0x520] sm:$0xff]
    %v2998 = vld [vmem:[#allocation9 + $0x528] sm:$0xff]
    %v2999 = vld [vmem:[#allocation9 + $0x530] sm:$0xff]
    %v3000 = vld [vmem:[#allocation9 + $0x538] sm:$0xff]
    %v3001 = vld [vmem:[#allocation9 + $0x540] sm:$0xff]
    %v3002 = vld [vmem:[#allocation9 + $0x548] sm:$0xff]
    %v3003 = vld [vmem:[#allocation9 + $0x550] sm:$0xff]
    %v3004 = vld [vmem:[#allocation9 + $0x558] sm:$0xff]
    %v3005 = vld [vmem:[#allocation9 + $0x560] sm:$0xff]
    %v3006 = vld [vmem:[#allocation9 + $0x568] sm:$0xff]
    %v3007 = vld [vmem:[#allocation9 + $0x570] sm:$0xff]
    %v3008 = vld [vmem:[#allocation9 + $0x578] sm:$0xff]
    %v3009 = vld [vmem:[#allocation9 + $0x580] sm:$0xff]
    %v3010 = vld [vmem:[#allocation9 + $0x588] sm:$0xff]
    %v3011 = vld [vmem:[#allocation9 + $0x590] sm:$0xff]
    %v3012 = vld [vmem:[#allocation9 + $0x598] sm:$0xff]
    %v3013 = vld [vmem:[#allocation9 + $0x5a0] sm:$0xff]
    %v3014 = vld [vmem:[#allocation9 + $0x5a8] sm:$0xff]
    %v3015 = vld [vmem:[#allocation9 + $0x5b0] sm:$0xff]
    %v3016 = vld [vmem:[#allocation9 + $0x5b8] sm:$0xff]
    %v3017 = vld [vmem:[#allocation9 + $0x5c0] sm:$0xff]
    %v3018 = vld [vmem:[#allocation9 + $0x5c8] sm:$0xff]
    %v3019 = vld [vmem:[#allocation9 + $0x5d0] sm:$0xff]
    %v3020 = vld [vmem:[#allocation9 + $0x5d8] sm:$0xff]
    %v3021 = vld [vmem:[#allocation9 + $0x5e0] sm:$0xff]
    %v3022 = vld [vmem:[#allocation9 + $0x5e8] sm:$0xff]
    %v3023 = vld [vmem:[#allocation9 + $0x5f0] sm:$0xff]
    %v3024 = vld [vmem:[#allocation9 + $0x5f8] sm:$0xff]
    %3025 = vmatprep.subr.mxu0 %v2894
    %3026 = vmatpush1.msra.mxu0 %v2893
    %3027 = vmatprep.subr.mxu0 %v2890
    %3028 = vmatpush1.msra.mxu0 %v2889
    %3029 = vmatprep.subr.mxu0 %v2886
    %3030 = vmatpush1.msra.mxu0 %v2885
    %3031 = vmatprep.subr.mxu0 %v2882
    %3032 = vmatpush1.msra.mxu0 %v2881
    %3033 = vmatprep.subr.mxu0 %v2878
    %3034 = vmatpush1.msra.mxu0 %v2877
    %3035 = vmatprep.subr.mxu0 %v2874
    %3036 = vmatpush1.msra.mxu0 %v2873
    %3037 = vmatprep.subr.mxu0 %v2870
    %3038 = vmatpush1.msra.mxu0 %v2869
    %3039 = vmatprep.subr.mxu0 %v2866
    %3040 = vmatpush1.msra.mxu0 %v2865
    %3041 = vmatprep.subr.mxu0 %v2862
    %3042 = vmatpush1.msra.mxu0 %v2861
    %3043 = vmatprep.subr.mxu0 %v2858
    %3044 = vmatpush1.msra.mxu0 %v2857
    %3045 = vmatprep.subr.mxu0 %v2854
    %3046 = vmatpush1.msra.mxu0 %v2853
    %3047 = vmatprep.subr.mxu0 %v2850
    %3048 = vmatpush1.msra.mxu0 %v2849
    %3049 = vmatprep.subr.mxu0 %v2846
    %3050 = vmatpush1.msra.mxu0 %v2845
    %3051 = vmatprep.subr.mxu0 %v2842
    %3052 = vmatpush1.msra.mxu0 %v2841
    %3053 = vmatprep.subr.mxu0 %v2838
    %3054 = vmatpush1.msra.mxu0 %v2837
    %3055 = vmatprep.subr.mxu0 %v2834
    %3056 = vmatpush1.msra.mxu0 %v2833
    %3057 = vmatprep.subr.mxu0 %v2958
    %3058 = vmatpush2.msra.mxu0 %v2957
    %3059 = vmatprep.subr.mxu0 %v2954
    %3060 = vmatpush2.msra.mxu0 %v2953
    %3061 = vmatprep.subr.mxu0 %v2950
    %3062 = vmatpush2.msra.mxu0 %v2949
    %3063 = vmatprep.subr.mxu0 %v2946
    %3064 = vmatpush2.msra.mxu0 %v2945
    %3065 = vmatprep.subr.mxu0 %v2942
    %3066 = vmatpush2.msra.mxu0 %v2941
    %3067 = vmatprep.subr.mxu0 %v2938
    %3068 = vmatpush2.msra.mxu0 %v2937
    %3069 = vmatprep.subr.mxu0 %v2934
    %3070 = vmatpush2.msra.mxu0 %v2933
    %3071 = vmatprep.subr.mxu0 %v2930
    %3072 = vmatpush2.msra.mxu0 %v2929
    %3073 = vmatprep.subr.mxu0 %v2926
    %3074 = vmatpush2.msra.mxu0 %v2925
    %3075 = vmatprep.subr.mxu0 %v2922
    %3076 = vmatpush2.msra.mxu0 %v2921
    %3077 = vmatprep.subr.mxu0 %v2918
    %3078 = vmatpush2.msra.mxu0 %v2917
    %3079 = vmatprep.subr.mxu0 %v2914
    %3080 = vmatpush2.msra.mxu0 %v2913
    %3081 = vmatprep.subr.mxu0 %v2910
    %3082 = vmatpush2.msra.mxu0 %v2909
    %3083 = vmatprep.subr.mxu0 %v2906
    %3084 = vmatpush2.msra.mxu0 %v2905
    %3085 = vmatprep.subr.mxu0 %v2902
    %3086 = vmatpush2.msra.mxu0 %v2901
    %3087 = vmatprep.subr.mxu0 %v2898
    %3088 = vmatpush2.msra.mxu0 %v2897
    %3089 = vmatprep.mubr.f32.mxu0 %v2221
    %3090 = vmatmul.mubr.f32.gmra.mxu0 %v2832
    %v3091 = vpop.f32.mrf.mxu0
    %v3092 = vadd.f32 %v412, %v3091
    %v3093 = vpop.f32.mrf.mxu0
    %v3094 = vadd.f32 %v416, %v3093
    %3095 = vdwg.mxu0
    %3096 = vmatprep.subr.mxu0 %v3022
    %3097 = vmatpush1.msra.mxu0 %v3021
    %3098 = vmatprep.subr.mxu0 %v3018
    %3099 = vmatpush1.msra.mxu0 %v3017
    %3100 = vmatprep.subr.mxu0 %v3014
    %3101 = vmatpush1.msra.mxu0 %v3013
    %3102 = vmatprep.subr.mxu0 %v3010
    %3103 = vmatpush1.msra.mxu0 %v3009
    %3104 = vmatprep.subr.mxu0 %v3006
    %3105 = vmatpush1.msra.mxu0 %v3005
    %3106 = vmatprep.subr.mxu0 %v3002
    %3107 = vmatpush1.msra.mxu0 %v3001
    %3108 = vmatprep.subr.mxu0 %v2998
    %3109 = vmatpush1.msra.mxu0 %v2997
    %3110 = vmatprep.subr.mxu0 %v2994
    %3111 = vmatpush1.msra.mxu0 %v2993
    %3112 = vmatprep.subr.mxu0 %v2990
    %3113 = vmatpush1.msra.mxu0 %v2989
    %3114 = vmatprep.subr.mxu0 %v2986
    %3115 = vmatpush1.msra.mxu0 %v2985
    %3116 = vmatprep.subr.mxu0 %v2982
    %3117 = vmatpush1.msra.mxu0 %v2981
    %3118 = vmatprep.subr.mxu0 %v2978
    %3119 = vmatpush1.msra.mxu0 %v2977
    %3120 = vmatprep.subr.mxu0 %v2974
    %3121 = vmatpush1.msra.mxu0 %v2973
    %3122 = vmatprep.subr.mxu0 %v2970
    %3123 = vmatpush1.msra.mxu0 %v2969
    %3124 = vmatprep.subr.mxu0 %v2966
    %3125 = vmatpush1.msra.mxu0 %v2965
    %3126 = vmatprep.subr.mxu0 %v2962
    %3127 = vmatpush1.msra.mxu0 %v2961
    %3128 = vmatprep.subr.mxu0 0.0
    %3129 = vmatpush2.msra.mxu0 0.0
    %3130 = vmatprep.subr.mxu0 0.0
    %3131 = vmatpush2.msra.mxu0 0.0
    %3132 = vmatprep.subr.mxu0 0.0
    %3133 = vmatpush2.msra.mxu0 0.0
    %3134 = vmatprep.subr.mxu0 0.0
    %3135 = vmatpush2.msra.mxu0 0.0
    %3136 = vmatprep.subr.mxu0 0.0
    %3137 = vmatpush2.msra.mxu0 0.0
    %3138 = vmatprep.subr.mxu0 0.0
    %3139 = vmatpush2.msra.mxu0 0.0
    %3140 = vmatprep.subr.mxu0 0.0
    %3141 = vmatpush2.msra.mxu0 0.0
    %3142 = vmatprep.subr.mxu0 0.0
    %3143 = vmatpush2.msra.mxu0 0.0
    %3144 = vmatprep.subr.mxu0 0.0
    %3145 = vmatpush2.msra.mxu0 0.0
    %3146 = vmatprep.subr.mxu0 0.0
    %3147 = vmatpush2.msra.mxu0 0.0
    %3148 = vmatprep.subr.mxu0 0.0
    %3149 = vmatpush2.msra.mxu0 0.0
    %3150 = vmatprep.subr.mxu0 0.0
    %3151 = vmatpush2.msra.mxu0 0.0
    %3152 = vmatprep.subr.mxu0 0.0
    %3153 = vmatpush2.msra.mxu0 0.0
    %3154 = vmatprep.subr.mxu0 0.0
    %3155 = vmatpush2.msra.mxu0 0.0
    %3156 = vmatprep.subr.mxu0 0.0
    %3157 = vmatpush2.msra.mxu0 0.0
    %3158 = vmatprep.subr.mxu0 0.0
    %3159 = vmatpush2.msra.mxu0 0.0
    %3160 = vmatprep.mubr.f32.mxu0 0.0
    %3161 = vmatmul.mubr.f32.gmra.mxu0 %v972
    %v3162 = vpop.f32.mrf.mxu0
    %v3163 = vadd.f32 %v3092, %v3162
    %v3164 = vpop.f32.mrf.mxu0
    %v3165 = vadd.f32 %v3094, %v3164
    %3166 = vdwg.mxu0
    %3167 = vmatprep.subr.mxu0 %v2896
    %3168 = vmatpush1.msra.mxu0 %v2895
    %3169 = vmatprep.subr.mxu0 %v2892
    %3170 = vmatpush1.msra.mxu0 %v2891
    %3171 = vmatprep.subr.mxu0 %v2888
    %3172 = vmatpush1.msra.mxu0 %v2887
    %3173 = vmatprep.subr.mxu0 %v2884
    %3174 = vmatpush1.msra.mxu0 %v2883
    %3175 = vmatprep.subr.mxu0 %v2880
    %3176 = vmatpush1.msra.mxu0 %v2879
    %3177 = vmatprep.subr.mxu0 %v2876
    %3178 = vmatpush1.msra.mxu0 %v2875
    %3179 = vmatprep.subr.mxu0 %v2872
    %3180 = vmatpush1.msra.mxu0 %v2871
    %3181 = vmatprep.subr.mxu0 %v2868
    %3182 = vmatpush1.msra.mxu0 %v2867
    %3183 = vmatprep.subr.mxu0 %v2864
    %3184 = vmatpush1.msra.mxu0 %v2863
    %3185 = vmatprep.subr.mxu0 %v2860
    %3186 = vmatpush1.msra.mxu0 %v2859
    %3187 = vmatprep.subr.mxu0 %v2856
    %3188 = vmatpush1.msra.mxu0 %v2855
    %3189 = vmatprep.subr.mxu0 %v2852
    %3190 = vmatpush1.msra.mxu0 %v2851
    %3191 = vmatprep.subr.mxu0 %v2848
    %3192 = vmatpush1.msra.mxu0 %v2847
    %3193 = vmatprep.subr.mxu0 %v2844
    %3194 = vmatpush1.msra.mxu0 %v2843
    %3195 = vmatprep.subr.mxu0 %v2840
    %3196 = vmatpush1.msra.mxu0 %v2839
    %3197 = vmatprep.subr.mxu0 %v2836
    %3198 = vmatpush1.msra.mxu0 %v2835
    %3199 = vmatprep.subr.mxu0 %v2960
    %3200 = vmatpush2.msra.mxu0 %v2959
    %3201 = vmatprep.subr.mxu0 %v2956
    %3202 = vmatpush2.msra.mxu0 %v2955
    %3203 = vmatprep.subr.mxu0 %v2952
    %3204 = vmatpush2.msra.mxu0 %v2951
    %3205 = vmatprep.subr.mxu0 %v2948
    %3206 = vmatpush2.msra.mxu0 %v2947
    %3207 = vmatprep.subr.mxu0 %v2944
    %3208 = vmatpush2.msra.mxu0 %v2943
    %3209 = vmatprep.subr.mxu0 %v2940
    %3210 = vmatpush2.msra.mxu0 %v2939
    %3211 = vmatprep.subr.mxu0 %v2936
    %3212 = vmatpush2.msra.mxu0 %v2935
    %3213 = vmatprep.subr.mxu0 %v2932
    %3214 = vmatpush2.msra.mxu0 %v2931
    %3215 = vmatprep.subr.mxu0 %v2928
    %3216 = vmatpush2.msra.mxu0 %v2927
    %3217 = vmatprep.subr.mxu0 %v2924
    %3218 = vmatpush2.msra.mxu0 %v2923
    %3219 = vmatprep.subr.mxu0 %v2920
    %3220 = vmatpush2.msra.mxu0 %v2919
    %3221 = vmatprep.subr.mxu0 %v2916
    %3222 = vmatpush2.msra.mxu0 %v2915
    %3223 = vmatprep.subr.mxu0 %v2912
    %3224 = vmatpush2.msra.mxu0 %v2911
    %3225 = vmatprep.subr.mxu0 %v2908
    %3226 = vmatpush2.msra.mxu0 %v2907
    %3227 = vmatprep.subr.mxu0 %v2904
    %3228 = vmatpush2.msra.mxu0 %v2903
    %3229 = vmatprep.subr.mxu0 %v2900
    %3230 = vmatpush2.msra.mxu0 %v2899
    %3231 = vmatprep.mubr.f32.mxu0 %v2221
    %3232 = vmatmul.mubr.f32.gmra.mxu0 %v2832
    %v3233 = vpop.f32.mrf.mxu0
    %v3234 = vadd.f32 %v420, %v3233
    %v3235 = vpop.f32.mrf.mxu0
    %v3236 = vadd.f32 %v424, %v3235
    %3237 = vdwg.mxu0
    %3238 = vmatprep.subr.mxu0 %v3024
    %3239 = vmatpush1.msra.mxu0 %v3023
    %3240 = vmatprep.subr.mxu0 %v3020
    %3241 = vmatpush1.msra.mxu0 %v3019
    %3242 = vmatprep.subr.mxu0 %v3016
    %3243 = vmatpush1.msra.mxu0 %v3015
    %3244 = vmatprep.subr.mxu0 %v3012
    %3245 = vmatpush1.msra.mxu0 %v3011
    %3246 = vmatprep.subr.mxu0 %v3008
    %3247 = vmatpush1.msra.mxu0 %v3007
    %3248 = vmatprep.subr.mxu0 %v3004
    %3249 = vmatpush1.msra.mxu0 %v3003
    %3250 = vmatprep.subr.mxu0 %v3000
    %3251 = vmatpush1.msra.mxu0 %v2999
    %3252 = vmatprep.subr.mxu0 %v2996
    %3253 = vmatpush1.msra.mxu0 %v2995
    %3254 = vmatprep.subr.mxu0 %v2992
    %3255 = vmatpush1.msra.mxu0 %v2991
    %3256 = vmatprep.subr.mxu0 %v2988
    %3257 = vmatpush1.msra.mxu0 %v2987
    %3258 = vmatprep.subr.mxu0 %v2984
    %3259 = vmatpush1.msra.mxu0 %v2983
    %3260 = vmatprep.subr.mxu0 %v2980
    %3261 = vmatpush1.msra.mxu0 %v2979
    %3262 = vmatprep.subr.mxu0 %v2976
    %3263 = vmatpush1.msra.mxu0 %v2975
    %3264 = vmatprep.subr.mxu0 %v2972
    %3265 = vmatpush1.msra.mxu0 %v2971
    %3266 = vmatprep.subr.mxu0 %v2968
    %3267 = vmatpush1.msra.mxu0 %v2967
    %3268 = vmatprep.subr.mxu0 %v2964
    %3269 = vmatpush1.msra.mxu0 %v2963
    %3270 = vmatprep.subr.mxu0 0.0
    %3271 = vmatpush2.msra.mxu0 0.0
    %3272 = vmatprep.subr.mxu0 0.0
    %3273 = vmatpush2.msra.mxu0 0.0
    %3274 = vmatprep.subr.mxu0 0.0
    %3275 = vmatpush2.msra.mxu0 0.0
    %3276 = vmatprep.subr.mxu0 0.0
    %3277 = vmatpush2.msra.mxu0 0.0
    %3278 = vmatprep.subr.mxu0 0.0
    %3279 = vmatpush2.msra.mxu0 0.0
    %3280 = vmatprep.subr.mxu0 0.0
    %3281 = vmatpush2.msra.mxu0 0.0
    %3282 = vmatprep.subr.mxu0 0.0
    %3283 = vmatpush2.msra.mxu0 0.0
    %3284 = vmatprep.subr.mxu0 0.0
    %3285 = vmatpush2.msra.mxu0 0.0
    %3286 = vmatprep.subr.mxu0 0.0
    %3287 = vmatpush2.msra.mxu0 0.0
    %3288 = vmatprep.subr.mxu0 0.0
    %3289 = vmatpush2.msra.mxu0 0.0
    %3290 = vmatprep.subr.mxu0 0.0
    %3291 = vmatpush2.msra.mxu0 0.0
    %3292 = vmatprep.subr.mxu0 0.0
    %3293 = vmatpush2.msra.mxu0 0.0
    %3294 = vmatprep.subr.mxu0 0.0
    %3295 = vmatpush2.msra.mxu0 0.0
    %3296 = vmatprep.subr.mxu0 0.0
    %3297 = vmatpush2.msra.mxu0 0.0
    %3298 = vmatprep.subr.mxu0 0.0
    %3299 = vmatpush2.msra.mxu0 0.0
    %3300 = vmatprep.subr.mxu0 0.0
    %3301 = vmatpush2.msra.mxu0 0.0
    %3302 = vmatprep.mubr.f32.mxu0 0.0
    %3303 = vmatmul.mubr.f32.gmra.mxu0 %v972
    %v3304 = vpop.f32.mrf.mxu0
    %v3305 = vadd.f32 %v3234, %v3304
    %v3306 = vpop.f32.mrf.mxu0
    %v3307 = vadd.f32 %v3236, %v3306
    %3308 = vdwg.mxu0
    %v3309 = vxor.u32 %v3163, 2147483648
    %v3310 = vmul.f32 %v3309, 1.442695
    %v3311 = vpow.pop %v3310
    %v3312 = vadd.f32 %v3311, 1.0
    %v3313 = vrcp.pop %v3312
    %v3314 = vmul.f32 1.0, %v3313
    %v3315 = vxor.u32 %v3165, 2147483648
    %v3316 = vmul.f32 %v3315, 1.442695
    %v3317 = vpow.pop %v3316
    %v3318 = vadd.f32 %v3317, 1.0
    %v3319 = vrcp.pop %v3318
    %v3320 = vmul.f32 1.0, %v3319
    %v3321 = vtanh.pop %v3305
    %v3322 = vxor.u32 %v3307, 2147483648
    %v3323 = vmul.f32 %v3322, 1.442695
    %v3324 = vpow.pop %v3323
    %v3325 = vadd.f32 %v3324, 1.0
    %v3326 = vrcp.pop %v3325
    %v3327 = vmul.f32 1.0, %v3326
    %v3328 = vmul.f32 %v3320, %v970
    %v3329 = vmul.f32 %v3314, %v3321
    %v3330 = vadd.f32 %v3328, %v3329
    %v3331 = vtanh.pop %v3330
    %v3332 = vmul.f32 %v3327, %v3331
    %v3333 = vld [vmem:[%s9] sm:$0xff]
    %v3334 = vld [vmem:[%s9 + $0x8] sm:$0xff]
    %v3335 = vld [vmem:[%s9 + $0x10] sm:$0xff]
    %v3336 = vld [vmem:[%s9 + $0x18] sm:$0xff]
    %v3337 = vld [vmem:[%s9 + $0x20] sm:$0xff]
    %v3338 = vld [vmem:[%s9 + $0x28] sm:$0xff]
    %v3339 = vld [vmem:[%s9 + $0x30] sm:$0xff]
    %v3340 = vld [vmem:[%s9 + $0x38] sm:$0xff]
    %v3341 = vld [vmem:[%s9 + $0x40] sm:$0xff]
    %v3342 = vld [vmem:[%s9 + $0x48] sm:$0xff]
    %v3343 = vld [vmem:[%s9 + $0x50] sm:$0xff]
    %v3344 = vld [vmem:[%s9 + $0x58] sm:$0xff]
    %v3345 = vld [vmem:[%s9 + $0x60] sm:$0xff]
    %v3346 = vld [vmem:[%s9 + $0x68] sm:$0xff]
    %v3347 = vld [vmem:[%s9 + $0x70] sm:$0xff]
    %v3348 = vld [vmem:[%s9 + $0x78] sm:$0xff]
    %3349 = vmatprep.subr.mxu0 0.0
    %3350 = vmatpush1.msra.mxu0 %v3348
    %3351 = vmatprep.subr.mxu0 0.0
    %3352 = vmatpush1.msra.mxu0 %v3347
    %3353 = vmatprep.subr.mxu0 0.0
    %3354 = vmatpush1.msra.mxu0 %v3346
    %3355 = vmatprep.subr.mxu0 0.0
    %3356 = vmatpush1.msra.mxu0 %v3345
    %3357 = vmatprep.subr.mxu0 0.0
    %3358 = vmatpush1.msra.mxu0 %v3344
    %3359 = vmatprep.subr.mxu0 0.0
    %3360 = vmatpush1.msra.mxu0 %v3343
    %3361 = vmatprep.subr.mxu0 0.0
    %3362 = vmatpush1.msra.mxu0 %v3342
    %3363 = vmatprep.subr.mxu0 0.0
    %3364 = vmatpush1.msra.mxu0 %v3341
    %3365 = vmatprep.subr.mxu0 0.0
    %3366 = vmatpush1.msra.mxu0 %v3340
    %3367 = vmatprep.subr.mxu0 0.0
    %3368 = vmatpush1.msra.mxu0 %v3339
    %3369 = vmatprep.subr.mxu0 0.0
    %3370 = vmatpush1.msra.mxu0 %v3338
    %3371 = vmatprep.subr.mxu0 0.0
    %3372 = vmatpush1.msra.mxu0 %v3337
    %3373 = vmatprep.subr.mxu0 0.0
    %3374 = vmatpush1.msra.mxu0 %v3336
    %3375 = vmatprep.subr.mxu0 0.0
    %3376 = vmatpush1.msra.mxu0 %v3335
    %3377 = vmatprep.subr.mxu0 0.0
    %3378 = vmatpush1.msra.mxu0 %v3334
    %3379 = vmatprep.subr.mxu0 0.0
    %3380 = vmatpush1.msra.mxu0 %v3333
    %3381 = vmatprep.subr.mxu0 0.0
    %3382 = vmatpush2.msra.mxu0 0.0
    %3383 = vmatprep.subr.mxu0 0.0
    %3384 = vmatpush2.msra.mxu0 0.0
    %3385 = vmatprep.subr.mxu0 0.0
    %3386 = vmatpush2.msra.mxu0 0.0
    %3387 = vmatprep.subr.mxu0 0.0
    %3388 = vmatpush2.msra.mxu0 0.0
    %3389 = vmatprep.subr.mxu0 0.0
    %3390 = vmatpush2.msra.mxu0 0.0
    %3391 = vmatprep.subr.mxu0 0.0
    %3392 = vmatpush2.msra.mxu0 0.0
    %3393 = vmatprep.subr.mxu0 0.0
    %3394 = vmatpush2.msra.mxu0 0.0
    %3395 = vmatprep.subr.mxu0 0.0
    %3396 = vmatpush2.msra.mxu0 0.0
    %3397 = vmatprep.subr.mxu0 0.0
    %3398 = vmatpush2.msra.mxu0 0.0
    %3399 = vmatprep.subr.mxu0 0.0
    %3400 = vmatpush2.msra.mxu0 0.0
    %3401 = vmatprep.subr.mxu0 0.0
    %3402 = vmatpush2.msra.mxu0 0.0
    %3403 = vmatprep.subr.mxu0 0.0
    %3404 = vmatpush2.msra.mxu0 0.0
    %3405 = vmatprep.subr.mxu0 0.0
    %3406 = vmatpush2.msra.mxu0 0.0
    %3407 = vmatprep.subr.mxu0 0.0
    %3408 = vmatpush2.msra.mxu0 0.0
    %3409 = vmatprep.subr.mxu0 0.0
    %3410 = vmatpush2.msra.mxu0 0.0
    %3411 = vmatprep.subr.mxu0 0.0
    %3412 = vmatpush2.msra.mxu0 0.0
    %3413 = vmatprep.mubr.f32.mxu0 0.0
    %3414 = vmatmul.mubr.f32.gmra.mxu0 %v3332
    %v3415 = vpop.f32.mrf.mxu0
    %v3416 = vadd.f32 0.0, %v3415
    %v3417 = vpop.f32.mrf.mxu0
    %3418 = vdwg.mxu0
    %3427 = vset.pattern.permute.xlu0 0
    %3428 = vperm.xlu0 %3427, %v1770
    %v3429 = vpop.permute.xlu0 %3428
    %3430 = vset.pattern.permute.xlu0 0
    %3431 = vperm.xlu0 %3430, %v1771
    %v3432 = vpop.permute.xlu0 %3431
    %3433 = vset.pattern.permute.xlu0 0
    %3434 = vperm.xlu0 %3433, %v1772
    %v3435 = vpop.permute.xlu0 %3434
    %3436 = vset.pattern.permute.xlu0 0
    %3437 = vperm.xlu0 %3436, %v1773
    %v3438 = vpop.permute.xlu0 %3437
    %3439 = vset.pattern.permute.xlu0 0
    %3440 = vperm.xlu0 %3439, %v1774
    %v3441 = vpop.permute.xlu0 %3440
    %3442 = vset.pattern.permute.xlu0 0
    %3443 = vperm.xlu0 %3442, %v1775
    %v3444 = vpop.permute.xlu0 %3443
    %3445 = vset.pattern.permute.xlu0 0
    %3446 = vperm.xlu0 %3445, %v1776
    %v3447 = vpop.permute.xlu0 %3446
    %3448 = vset.pattern.permute.xlu0 0
    %3449 = vperm.xlu0 %3448, %v1777
    %v3450 = vpop.permute.xlu0 %3449
    %v3451 = vlaneseq
    %v3452 = vshrl.u32 %v3451, 7
    %v3453 = vsub.s32 %v1850, %v3452
    %v3454 = vrot.slane %v3429, %v3453
    %v3455 = vlaneseq
    %v3456 = vshrl.u32 %v3455, 7
    %v3457 = vsub.s32 %v1850, %v3456
    %v3458 = vrot.slane %v3432, %v3457
    %v3459 = vlaneseq
    %v3460 = vshrl.u32 %v3459, 7
    %v3461 = vsub.s32 %v1850, %v3460
    %v3462 = vrot.slane %v3435, %v3461
    %v3463 = vlaneseq
    %v3464 = vshrl.u32 %v3463, 7
    %v3465 = vsub.s32 %v1850, %v3464
    %v3466 = vrot.slane %v3438, %v3465
    %v3467 = vlaneseq
    %v3468 = vshrl.u32 %v3467, 7
    %v3469 = vsub.s32 %v1850, %v3468
    %v3470 = vrot.slane %v3441, %v3469
    %v3471 = vlaneseq
    %v3472 = vshrl.u32 %v3471, 7
    %v3473 = vsub.s32 %v1850, %v3472
    %v3474 = vrot.slane %v3444, %v3473
    %v3475 = vlaneseq
    %v3476 = vshrl.u32 %v3475, 7
    %v3477 = vsub.s32 %v1850, %v3476
    %v3478 = vrot.slane %v3447, %v3477
    %v3479 = vlaneseq
    %v3480 = vshrl.u32 %v3479, 7
    %v3481 = vsub.s32 %v1850, %v3480
    %v3482 = vrot.slane %v3450, %v3481
    %v3483 = vsel %vm1702, %v3458, %v3454
    %v3484 = vsel %vm1704, %v3462, %v3483
    %v3485 = vsel %vm1706, %v3466, %v3484
    %v3486 = vsel %vm1708, %v3470, %v3485
    %v3487 = vsel %vm1710, %v3474, %v3486
    %v3488 = vsel %vm1712, %v3478, %v3487
    %v3489 = vsel %vm1714, %v3482, %v3488
    %v3491 = vsel %vm136, %v1848, %v3489
    %v3492 = vld [vmem:[#allocation12] sm:$0xff]
    %v3493 = vld [vmem:[#allocation12 + $0x8] sm:$0xff]
    %v3494 = vld [vmem:[#allocation12 + $0x10] sm:$0xff]
    %v3495 = vld [vmem:[#allocation12 + $0x18] sm:$0xff]
    %v3496 = vld [vmem:[#allocation12 + $0x20] sm:$0xff]
    %v3497 = vld [vmem:[#allocation12 + $0x28] sm:$0xff]
    %v3498 = vld [vmem:[#allocation12 + $0x30] sm:$0xff]
    %v3499 = vld [vmem:[#allocation12 + $0x38] sm:$0xff]
    %v3500 = vld [vmem:[#allocation12 + $0x40] sm:$0xff]
    %v3501 = vld [vmem:[#allocation12 + $0x48] sm:$0xff]
    %v3502 = vld [vmem:[#allocation12 + $0x50] sm:$0xff]
    %v3503 = vld [vmem:[#allocation12 + $0x58] sm:$0xff]
    %v3504 = vld [vmem:[#allocation12 + $0x60] sm:$0xff]
    %v3505 = vld [vmem:[#allocation12 + $0x68] sm:$0xff]
    %v3506 = vld [vmem:[#allocation12 + $0x70] sm:$0xff]
    %v3507 = vld [vmem:[#allocation12 + $0x78] sm:$0xff]
    %v3509 = vsel %vm1075, %v3491, 0
    %3511 = vmatprep.subr.mxu0 0.0
    %3512 = vmatpush1.msra.mxu0 0.0
    %3513 = vmatprep.subr.mxu0 0.0
    %3514 = vmatpush1.msra.mxu0 0.0
    %3515 = vmatprep.subr.mxu0 0.0
    %3516 = vmatpush1.msra.mxu0 0.0
    %3517 = vmatprep.subr.mxu0 0.0
    %3518 = vmatpush1.msra.mxu0 0.0
    %3519 = vmatprep.subr.mxu0 0.0
    %3520 = vmatpush1.msra.mxu0 0.0
    %3521 = vmatprep.subr.mxu0 0.0
    %3522 = vmatpush1.msra.mxu0 0.0
    %3523 = vmatprep.subr.mxu0 0.0
    %3524 = vmatpush1.msra.mxu0 0.0
    %3525 = vmatprep.subr.mxu0 0.0
    %3526 = vmatpush1.msra.mxu0 0.0
    %3527 = vmatprep.subr.mxu0 0.0
    %3528 = vmatpush1.msra.mxu0 0.0
    %3529 = vmatprep.subr.mxu0 0.0
    %3530 = vmatpush1.msra.mxu0 0.0
    %3531 = vmatprep.subr.mxu0 0.0
    %3532 = vmatpush1.msra.mxu0 0.0
    %3533 = vmatprep.subr.mxu0 0.0
    %3534 = vmatpush1.msra.mxu0 0.0
    %3535 = vmatprep.subr.mxu0 0.0
    %3536 = vmatpush1.msra.mxu0 0.0
    %3537 = vmatprep.subr.mxu0 0.0
    %3538 = vmatpush1.msra.mxu0 0.0
    %3539 = vmatprep.subr.mxu0 %v3501
    %3540 = vmatpush1.msra.mxu0 %v3500
    %3541 = vmatprep.subr.mxu0 %v3493
    %3542 = vmatpush1.msra.mxu0 %v3492
    %3543 = vmatprep.subr.mxu0 0.0
    %3544 = vmatpush2.msra.mxu0 0.0
    %3545 = vmatprep.subr.mxu0 0.0
    %3546 = vmatpush2.msra.mxu0 0.0
    %3547 = vmatprep.subr.mxu0 0.0
    %3548 = vmatpush2.msra.mxu0 0.0
    %3549 = vmatprep.subr.mxu0 0.0
    %3550 = vmatpush2.msra.mxu0 0.0
    %3551 = vmatprep.subr.mxu0 0.0
    %3552 = vmatpush2.msra.mxu0 0.0
    %3553 = vmatprep.subr.mxu0 0.0
    %3554 = vmatpush2.msra.mxu0 0.0
    %3555 = vmatprep.subr.mxu0 0.0
    %3556 = vmatpush2.msra.mxu0 0.0
    %3557 = vmatprep.subr.mxu0 0.0
    %3558 = vmatpush2.msra.mxu0 0.0
    %3559 = vmatprep.subr.mxu0 0.0
    %3560 = vmatpush2.msra.mxu0 0.0
    %3561 = vmatprep.subr.mxu0 0.0
    %3562 = vmatpush2.msra.mxu0 0.0
    %3563 = vmatprep.subr.mxu0 0.0
    %3564 = vmatpush2.msra.mxu0 0.0
    %3565 = vmatprep.subr.mxu0 0.0
    %3566 = vmatpush2.msra.mxu0 0.0
    %3567 = vmatprep.subr.mxu0 0.0
    %3568 = vmatpush2.msra.mxu0 0.0
    %3569 = vmatprep.subr.mxu0 0.0
    %3570 = vmatpush2.msra.mxu0 0.0
    %3571 = vmatprep.subr.mxu0 0.0
    %3572 = vmatpush2.msra.mxu0 0.0
    %3573 = vmatprep.subr.mxu0 0.0
    %3574 = vmatpush2.msra.mxu0 0.0
    %3575 = vmatprep.mubr.f32.mxu0 0.0
    %3576 = vmatmul.mubr.f32.gmra.mxu0 %v3509
    %v3577 = vpop.f32.mrf.mxu0
    %v3578 = vadd.f32 0.0, %v3577
    %v3579 = vpop.f32.mrf.mxu0
    %v3580 = vadd.f32 0.0, %v3579
    %3581 = vdwg.mxu0
    %3582 = vmatprep.subr.mxu0 0.0
    %3583 = vmatpush1.msra.mxu0 0.0
    %3584 = vmatprep.subr.mxu0 0.0
    %3585 = vmatpush1.msra.mxu0 0.0
    %3586 = vmatprep.subr.mxu0 0.0
    %3587 = vmatpush1.msra.mxu0 0.0
    %3588 = vmatprep.subr.mxu0 0.0
    %3589 = vmatpush1.msra.mxu0 0.0
    %3590 = vmatprep.subr.mxu0 0.0
    %3591 = vmatpush1.msra.mxu0 0.0
    %3592 = vmatprep.subr.mxu0 0.0
    %3593 = vmatpush1.msra.mxu0 0.0
    %3594 = vmatprep.subr.mxu0 0.0
    %3595 = vmatpush1.msra.mxu0 0.0
    %3596 = vmatprep.subr.mxu0 0.0
    %3597 = vmatpush1.msra.mxu0 0.0
    %3598 = vmatprep.subr.mxu0 0.0
    %3599 = vmatpush1.msra.mxu0 0.0
    %3600 = vmatprep.subr.mxu0 0.0
    %3601 = vmatpush1.msra.mxu0 0.0
    %3602 = vmatprep.subr.mxu0 0.0
    %3603 = vmatpush1.msra.mxu0 0.0
    %3604 = vmatprep.subr.mxu0 0.0
    %3605 = vmatpush1.msra.mxu0 0.0
    %3606 = vmatprep.subr.mxu0 0.0
    %3607 = vmatpush1.msra.mxu0 0.0
    %3608 = vmatprep.subr.mxu0 0.0
    %3609 = vmatpush1.msra.mxu0 0.0
    %3610 = vmatprep.subr.mxu0 %v3503
    %3611 = vmatpush1.msra.mxu0 %v3502
    %3612 = vmatprep.subr.mxu0 %v3495
    %3613 = vmatpush1.msra.mxu0 %v3494
    %3614 = vmatprep.subr.mxu0 0.0
    %3615 = vmatpush2.msra.mxu0 0.0
    %3616 = vmatprep.subr.mxu0 0.0
    %3617 = vmatpush2.msra.mxu0 0.0
    %3618 = vmatprep.subr.mxu0 0.0
    %3619 = vmatpush2.msra.mxu0 0.0
    %3620 = vmatprep.subr.mxu0 0.0
    %3621 = vmatpush2.msra.mxu0 0.0
    %3622 = vmatprep.subr.mxu0 0.0
    %3623 = vmatpush2.msra.mxu0 0.0
    %3624 = vmatprep.subr.mxu0 0.0
    %3625 = vmatpush2.msra.mxu0 0.0
    %3626 = vmatprep.subr.mxu0 0.0
    %3627 = vmatpush2.msra.mxu0 0.0
    %3628 = vmatprep.subr.mxu0 0.0
    %3629 = vmatpush2.msra.mxu0 0.0
    %3630 = vmatprep.subr.mxu0 0.0
    %3631 = vmatpush2.msra.mxu0 0.0
    %3632 = vmatprep.subr.mxu0 0.0
    %3633 = vmatpush2.msra.mxu0 0.0
    %3634 = vmatprep.subr.mxu0 0.0
    %3635 = vmatpush2.msra.mxu0 0.0
    %3636 = vmatprep.subr.mxu0 0.0
    %3637 = vmatpush2.msra.mxu0 0.0
    %3638 = vmatprep.subr.mxu0 0.0
    %3639 = vmatpush2.msra.mxu0 0.0
    %3640 = vmatprep.subr.mxu0 0.0
    %3641 = vmatpush2.msra.mxu0 0.0
    %3642 = vmatprep.subr.mxu0 0.0
    %3643 = vmatpush2.msra.mxu0 0.0
    %3644 = vmatprep.subr.mxu0 0.0
    %3645 = vmatpush2.msra.mxu0 0.0
    %3646 = vmatprep.mubr.f32.mxu0 0.0
    %3647 = vmatmul.mubr.f32.gmra.mxu0 %v3509
    %v3648 = vpop.f32.mrf.mxu0
    %v3649 = vadd.f32 0.0, %v3648
    %v3650 = vpop.f32.mrf.mxu0
    %v3651 = vadd.f32 0.0, %v3650
    %3652 = vdwg.mxu0
    %3653 = vmatprep.subr.mxu0 0.0
    %3654 = vmatpush1.msra.mxu0 0.0
    %3655 = vmatprep.subr.mxu0 0.0
    %3656 = vmatpush1.msra.mxu0 0.0
    %3657 = vmatprep.subr.mxu0 0.0
    %3658 = vmatpush1.msra.mxu0 0.0
    %3659 = vmatprep.subr.mxu0 0.0
    %3660 = vmatpush1.msra.mxu0 0.0
    %3661 = vmatprep.subr.mxu0 0.0
    %3662 = vmatpush1.msra.mxu0 0.0
    %3663 = vmatprep.subr.mxu0 0.0
    %3664 = vmatpush1.msra.mxu0 0.0
    %3665 = vmatprep.subr.mxu0 0.0
    %3666 = vmatpush1.msra.mxu0 0.0
    %3667 = vmatprep.subr.mxu0 0.0
    %3668 = vmatpush1.msra.mxu0 0.0
    %3669 = vmatprep.subr.mxu0 0.0
    %3670 = vmatpush1.msra.mxu0 0.0
    %3671 = vmatprep.subr.mxu0 0.0
    %3672 = vmatpush1.msra.mxu0 0.0
    %3673 = vmatprep.subr.mxu0 0.0
    %3674 = vmatpush1.msra.mxu0 0.0
    %3675 = vmatprep.subr.mxu0 0.0
    %3676 = vmatpush1.msra.mxu0 0.0
    %3677 = vmatprep.subr.mxu0 0.0
    %3678 = vmatpush1.msra.mxu0 0.0
    %3679 = vmatprep.subr.mxu0 0.0
    %3680 = vmatpush1.msra.mxu0 0.0
    %3681 = vmatprep.subr.mxu0 %v3505
    %3682 = vmatpush1.msra.mxu0 %v3504
    %3683 = vmatprep.subr.mxu0 %v3497
    %3684 = vmatpush1.msra.mxu0 %v3496
    %3685 = vmatprep.subr.mxu0 0.0
    %3686 = vmatpush2.msra.mxu0 0.0
    %3687 = vmatprep.subr.mxu0 0.0
    %3688 = vmatpush2.msra.mxu0 0.0
    %3689 = vmatprep.subr.mxu0 0.0
    %3690 = vmatpush2.msra.mxu0 0.0
    %3691 = vmatprep.subr.mxu0 0.0
    %3692 = vmatpush2.msra.mxu0 0.0
    %3693 = vmatprep.subr.mxu0 0.0
    %3694 = vmatpush2.msra.mxu0 0.0
    %3695 = vmatprep.subr.mxu0 0.0
    %3696 = vmatpush2.msra.mxu0 0.0
    %3697 = vmatprep.subr.mxu0 0.0
    %3698 = vmatpush2.msra.mxu0 0.0
    %3699 = vmatprep.subr.mxu0 0.0
    %3700 = vmatpush2.msra.mxu0 0.0
    %3701 = vmatprep.subr.mxu0 0.0
    %3702 = vmatpush2.msra.mxu0 0.0
    %3703 = vmatprep.subr.mxu0 0.0
    %3704 = vmatpush2.msra.mxu0 0.0
    %3705 = vmatprep.subr.mxu0 0.0
    %3706 = vmatpush2.msra.mxu0 0.0
    %3707 = vmatprep.subr.mxu0 0.0
    %3708 = vmatpush2.msra.mxu0 0.0
    %3709 = vmatprep.subr.mxu0 0.0
    %3710 = vmatpush2.msra.mxu0 0.0
    %3711 = vmatprep.subr.mxu0 0.0
    %3712 = vmatpush2.msra.mxu0 0.0
    %3713 = vmatprep.subr.mxu0 0.0
    %3714 = vmatpush2.msra.mxu0 0.0
    %3715 = vmatprep.subr.mxu0 0.0
    %3716 = vmatpush2.msra.mxu0 0.0
    %3717 = vmatprep.mubr.f32.mxu0 0.0
    %3718 = vmatmul.mubr.f32.gmra.mxu0 %v3509
    %v3719 = vpop.f32.mrf.mxu0
    %v3720 = vadd.f32 0.0, %v3719
    %v3721 = vpop.f32.mrf.mxu0
    %v3722 = vadd.f32 0.0, %v3721
    %3723 = vdwg.mxu0
    %3724 = vmatprep.subr.mxu0 0.0
    %3725 = vmatpush1.msra.mxu0 0.0
    %3726 = vmatprep.subr.mxu0 0.0
    %3727 = vmatpush1.msra.mxu0 0.0
    %3728 = vmatprep.subr.mxu0 0.0
    %3729 = vmatpush1.msra.mxu0 0.0
    %3730 = vmatprep.subr.mxu0 0.0
    %3731 = vmatpush1.msra.mxu0 0.0
    %3732 = vmatprep.subr.mxu0 0.0
    %3733 = vmatpush1.msra.mxu0 0.0
    %3734 = vmatprep.subr.mxu0 0.0
    %3735 = vmatpush1.msra.mxu0 0.0
    %3736 = vmatprep.subr.mxu0 0.0
    %3737 = vmatpush1.msra.mxu0 0.0
    %3738 = vmatprep.subr.mxu0 0.0
    %3739 = vmatpush1.msra.mxu0 0.0
    %3740 = vmatprep.subr.mxu0 0.0
    %3741 = vmatpush1.msra.mxu0 0.0
    %3742 = vmatprep.subr.mxu0 0.0
    %3743 = vmatpush1.msra.mxu0 0.0
    %3744 = vmatprep.subr.mxu0 0.0
    %3745 = vmatpush1.msra.mxu0 0.0
    %3746 = vmatprep.subr.mxu0 0.0
    %3747 = vmatpush1.msra.mxu0 0.0
    %3748 = vmatprep.subr.mxu0 0.0
    %3749 = vmatpush1.msra.mxu0 0.0
    %3750 = vmatprep.subr.mxu0 0.0
    %3751 = vmatpush1.msra.mxu0 0.0
    %3752 = vmatprep.subr.mxu0 %v3507
    %3753 = vmatpush1.msra.mxu0 %v3506
    %3754 = vmatprep.subr.mxu0 %v3499
    %3755 = vmatpush1.msra.mxu0 %v3498
    %3756 = vmatprep.subr.mxu0 0.0
    %3757 = vmatpush2.msra.mxu0 0.0
    %3758 = vmatprep.subr.mxu0 0.0
    %3759 = vmatpush2.msra.mxu0 0.0
    %3760 = vmatprep.subr.mxu0 0.0
    %3761 = vmatpush2.msra.mxu0 0.0
    %3762 = vmatprep.subr.mxu0 0.0
    %3763 = vmatpush2.msra.mxu0 0.0
    %3764 = vmatprep.subr.mxu0 0.0
    %3765 = vmatpush2.msra.mxu0 0.0
    %3766 = vmatprep.subr.mxu0 0.0
    %3767 = vmatpush2.msra.mxu0 0.0
    %3768 = vmatprep.subr.mxu0 0.0
    %3769 = vmatpush2.msra.mxu0 0.0
    %3770 = vmatprep.subr.mxu0 0.0
    %3771 = vmatpush2.msra.mxu0 0.0
    %3772 = vmatprep.subr.mxu0 0.0
    %3773 = vmatpush2.msra.mxu0 0.0
    %3774 = vmatprep.subr.mxu0 0.0
    %3775 = vmatpush2.msra.mxu0 0.0
    %3776 = vmatprep.subr.mxu0 0.0
    %3777 = vmatpush2.msra.mxu0 0.0
    %3778 = vmatprep.subr.mxu0 0.0
    %3779 = vmatpush2.msra.mxu0 0.0
    %3780 = vmatprep.subr.mxu0 0.0
    %3781 = vmatpush2.msra.mxu0 0.0
    %3782 = vmatprep.subr.mxu0 0.0
    %3783 = vmatpush2.msra.mxu0 0.0
    %3784 = vmatprep.subr.mxu0 0.0
    %3785 = vmatpush2.msra.mxu0 0.0
    %3786 = vmatprep.subr.mxu0 0.0
    %3787 = vmatpush2.msra.mxu0 0.0
    %3788 = vmatprep.mubr.f32.mxu0 0.0
    %3789 = vmatmul.mubr.f32.gmra.mxu0 %v3509
    %v3790 = vpop.f32.mrf.mxu0
    %v3791 = vadd.f32 0.0, %v3790
    %v3792 = vpop.f32.mrf.mxu0
    %v3793 = vadd.f32 0.0, %v3792
    %3794 = vdwg.mxu0
    %v3795 = vadd.f32 %v3416, %v3578
    %v3796 = vadd.f32 %v3416, %v3580
    %v3797 = vadd.f32 %v3416, %v3649
    %v3798 = vadd.f32 %v3416, %v3651
    %v3799 = vadd.f32 %v3416, %v3720
    %v3800 = vadd.f32 %v3416, %v3722
    %v3801 = vadd.f32 %v3416, %v3791
    %v3802 = vadd.f32 %v3416, %v3793
    %v3803 = vadd.f32 %v3795, %v347
    %v3804 = vadd.f32 %v3796, %v348
    %v3805 = vadd.f32 %v3797, %v349
    %v3806 = vadd.f32 %v3798, %v350
    %v3807 = vadd.f32 %v3799, %v351
    %v3808 = vadd.f32 %v3800, %v352
    %v3809 = vadd.f32 %v3801, %v353
    %v3810 = vadd.f32 %v3802, %v354
    %v3811 = vtanh.pop %v3803
    %v3812 = vtanh.pop %v3804
    %v3813 = vtanh.pop %v3805
    %v3814 = vtanh.pop %v3806
    %v3815 = vtanh.pop %v3807
    %v3816 = vtanh.pop %v3808
    %v3817 = vtanh.pop %v3809
    %v3818 = vtanh.pop %v3810
    %v3819 = vmul.f32 %v3811, %v370
    %v3820 = vmul.f32 %v3812, %v374
    %v3821 = vmul.f32 %v3813, %v378
    %v3822 = vmul.f32 %v3814, %v382
    %v3823 = vmul.f32 %v3815, %v386
    %v3824 = vmul.f32 %v3816, %v390
    %v3825 = vmul.f32 %v3817, %v394
    %v3826 = vmul.f32 %v3818, %v398
    %v3827 = vcombine.low %v3819, %v3821
    %v3828 = vcombine.high %v3819, %v3821
    %v3830 = vunpack.c.l.s4 1983009808
    %v3831 = vunpack.c.0.s8 %v3830
    %v3832 = vlaneseq
    %v3833 = vshrl.u32 %v3832, 7
    %v3834 = vsub.s32 %v3831, %v3833
    %v3835 = vrot.slane %v3827, %v3834
    %v3837 = vunpack.c.l.s4 1983009808
    %v3838 = vunpack.c.0.s8 %v3837
    %v3839 = vlaneseq
    %v3840 = vshrl.u32 %v3839, 7
    %v3841 = vsub.s32 %v3838, %v3840
    %v3842 = vrot.slane %v3828, %v3841
    %v3843 = vcombine.low %v3820, %v3822
    %v3844 = vcombine.high %v3820, %v3822
    %v3846 = vunpack.c.l.s4 1983009808
    %v3847 = vunpack.c.0.s8 %v3846
    %v3848 = vlaneseq
    %v3849 = vshrl.u32 %v3848, 7
    %v3850 = vsub.s32 %v3847, %v3849
    %v3851 = vrot.slane %v3843, %v3850
    %v3853 = vunpack.c.l.s4 1983009808
    %v3854 = vunpack.c.0.s8 %v3853
    %v3855 = vlaneseq
    %v3856 = vshrl.u32 %v3855, 7
    %v3857 = vsub.s32 %v3854, %v3856
    %v3858 = vrot.slane %v3844, %v3857
    %v3859 = vcombine.low %v3823, %v3825
    %v3860 = vcombine.high %v3823, %v3825
    %v3862 = vunpack.c.l.s4 1983009808
    %v3863 = vunpack.c.0.s8 %v3862
    %v3864 = vlaneseq
    %v3865 = vshrl.u32 %v3864, 7
    %v3866 = vsub.s32 %v3863, %v3865
    %v3867 = vrot.slane %v3859, %v3866
    %v3869 = vunpack.c.l.s4 1983009808
    %v3870 = vunpack.c.0.s8 %v3869
    %v3871 = vlaneseq
    %v3872 = vshrl.u32 %v3871, 7
    %v3873 = vsub.s32 %v3870, %v3872
    %v3874 = vrot.slane %v3860, %v3873
    %v3875 = vcombine.low %v3824, %v3826
    %v3876 = vcombine.high %v3824, %v3826
    %v3878 = vunpack.c.l.s4 1983009808
    %v3879 = vunpack.c.0.s8 %v3878
    %v3880 = vlaneseq
    %v3881 = vshrl.u32 %v3880, 7
    %v3882 = vsub.s32 %v3879, %v3881
    %v3883 = vrot.slane %v3875, %v3882
    %v3885 = vunpack.c.l.s4 1983009808
    %v3886 = vunpack.c.0.s8 %v3885
    %v3887 = vlaneseq
    %v3888 = vshrl.u32 %v3887, 7
    %v3889 = vsub.s32 %v3886, %v3888
    %v3890 = vrot.slane %v3876, %v3889
    %v3891 = vcombine.low %v3835, %v3851
    %v3892 = vcombine.high %v3835, %v3851
    %v3894 = vunpack.c.l.s4 1934713408
    %v3895 = vunpack.c.0.s8 %v3894
    %v3896 = vlaneseq
    %v3897 = vshrl.u32 %v3896, 7
    %v3898 = vsub.s32 %v3895, %v3897
    %v3899 = vrot.slane %v3891, %v3898
    %v3901 = vunpack.c.l.s4 1934713408
    %v3902 = vunpack.c.0.s8 %v3901
    %v3903 = vlaneseq
    %v3904 = vshrl.u32 %v3903, 7
    %v3905 = vsub.s32 %v3902, %v3904
    %v3906 = vrot.slane %v3892, %v3905
    %v3907 = vcombine.low %v3842, %v3858
    %v3908 = vcombine.high %v3842, %v3858
    %v3910 = vunpack.c.l.s4 1934713408
    %v3911 = vunpack.c.0.s8 %v3910
    %v3912 = vlaneseq
    %v3913 = vshrl.u32 %v3912, 7
    %v3914 = vsub.s32 %v3911, %v3913
    %v3915 = vrot.slane %v3907, %v3914
    %v3917 = vunpack.c.l.s4 1934713408
    %v3918 = vunpack.c.0.s8 %v3917
    %v3919 = vlaneseq
    %v3920 = vshrl.u32 %v3919, 7
    %v3921 = vsub.s32 %v3918, %v3920
    %v3922 = vrot.slane %v3908, %v3921
    %v3923 = vcombine.low %v3867, %v3883
    %v3924 = vcombine.high %v3867, %v3883
    %v3926 = vunpack.c.l.s4 1934713408
    %v3927 = vunpack.c.0.s8 %v3926
    %v3928 = vlaneseq
    %v3929 = vshrl.u32 %v3928, 7
    %v3930 = vsub.s32 %v3927, %v3929
    %v3931 = vrot.slane %v3923, %v3930
    %v3933 = vunpack.c.l.s4 1934713408
    %v3934 = vunpack.c.0.s8 %v3933
    %v3935 = vlaneseq
    %v3936 = vshrl.u32 %v3935, 7
    %v3937 = vsub.s32 %v3934, %v3936
    %v3938 = vrot.slane %v3924, %v3937
    %v3939 = vcombine.low %v3874, %v3890
    %v3940 = vcombine.high %v3874, %v3890
    %v3942 = vunpack.c.l.s4 1934713408
    %v3943 = vunpack.c.0.s8 %v3942
    %v3944 = vlaneseq
    %v3945 = vshrl.u32 %v3944, 7
    %v3946 = vsub.s32 %v3943, %v3945
    %v3947 = vrot.slane %v3939, %v3946
    %v3949 = vunpack.c.l.s4 1934713408
    %v3950 = vunpack.c.0.s8 %v3949
    %v3951 = vlaneseq
    %v3952 = vshrl.u32 %v3951, 7
    %v3953 = vsub.s32 %v3950, %v3952
    %v3954 = vrot.slane %v3940, %v3953
    %v3955 = vcombine.low %v3899, %v3931
    %v3956 = vcombine.high %v3899, %v3931
    %v3957 = vcombine.low %v3906, %v3938
    %v3958 = vcombine.high %v3906, %v3938
    %v3959 = vcombine.low %v3915, %v3947
    %v3960 = vcombine.high %v3915, %v3947
    %v3961 = vcombine.low %v3922, %v3954
    %v3962 = vcombine.high %v3922, %v3954
    %3963 = vadd.xlane.f32.xlu0 %v3955
    %v3964 = vpop.xlane.xlu0 %3963
    %3965 = vadd.xlane.f32.xlu0 %v3956
    %v3966 = vpop.xlane.xlu0 %3965
    %3967 = vadd.xlane.f32.xlu0 %v3957
    %v3968 = vpop.xlane.xlu0 %3967
    %3969 = vadd.xlane.f32.xlu0 %v3958
    %v3970 = vpop.xlane.xlu0 %3969
    %3971 = vadd.xlane.f32.xlu0 %v3959
    %v3972 = vpop.xlane.xlu0 %3971
    %3973 = vadd.xlane.f32.xlu0 %v3960
    %v3974 = vpop.xlane.xlu0 %3973
    %3975 = vadd.xlane.f32.xlu0 %v3961
    %v3976 = vpop.xlane.xlu0 %3975
    %3977 = vadd.xlane.f32.xlu0 %v3962
    %v3978 = vpop.xlane.xlu0 %3977
    %v3979 = vadd.f32 %v3964, %v1554
    %v3980 = vadd.f32 %v3966, %v1561
    %v3981 = vadd.f32 %v3968, %v1568
    %v3982 = vadd.f32 %v3970, %v1575
    %v3983 = vadd.f32 %v3972, %v1582
    %v3984 = vadd.f32 %v3974, %v1589
    %v3985 = vadd.f32 %v3976, %v1596
    %v3986 = vadd.f32 %v3978, %v1603
    %v3987 = vmul.f32 %v3979, 1.442695
    %v3988 = vpow.pop %v3987
    %v3989 = vmul.f32 %v3980, 1.442695
    %v3990 = vpow.pop %v3989
    %v3991 = vmul.f32 %v3981, 1.442695
    %v3992 = vpow.pop %v3991
    %v3993 = vmul.f32 %v3982, 1.442695
    %v3994 = vpow.pop %v3993
    %v3995 = vmul.f32 %v3983, 1.442695
    %v3996 = vpow.pop %v3995
    %v3997 = vmul.f32 %v3984, 1.442695
    %v3998 = vpow.pop %v3997
    %v3999 = vmul.f32 %v3985, 1.442695
    %v4000 = vpow.pop %v3999
    %v4001 = vmul.f32 %v3986, 1.442695
    %v4002 = vpow.pop %v4001
    %4011 = vset.pattern.permute.xlu0 0
    %4012 = vperm.xlu0 %4011, %v3988
    %v4013 = vpop.permute.xlu0 %4012
    %4014 = vset.pattern.permute.xlu0 0
    %4015 = vperm.xlu0 %4014, %v3990
    %v4016 = vpop.permute.xlu0 %4015
    %4017 = vset.pattern.permute.xlu0 0
    %4018 = vperm.xlu0 %4017, %v3992
    %v4019 = vpop.permute.xlu0 %4018
    %4020 = vset.pattern.permute.xlu0 0
    %4021 = vperm.xlu0 %4020, %v3994
    %v4022 = vpop.permute.xlu0 %4021
    %4023 = vset.pattern.permute.xlu0 0
    %4024 = vperm.xlu0 %4023, %v3996
    %v4025 = vpop.permute.xlu0 %4024
    %4026 = vset.pattern.permute.xlu0 0
    %4027 = vperm.xlu0 %4026, %v3998
    %v4028 = vpop.permute.xlu0 %4027
    %4029 = vset.pattern.permute.xlu0 0
    %4030 = vperm.xlu0 %4029, %v4000
    %v4031 = vpop.permute.xlu0 %4030
    %4032 = vset.pattern.permute.xlu0 0
    %4033 = vperm.xlu0 %4032, %v4002
    %v4034 = vpop.permute.xlu0 %4033
    %v4035 = vlaneseq
    %v4036 = vshrl.u32 %v4035, 7
    %v4037 = vsub.s32 %v1669, %v4036
    %v4038 = vrot.slane %v4013, %v4037
    %v4039 = vlaneseq
    %v4040 = vshrl.u32 %v4039, 7
    %v4041 = vsub.s32 %v1669, %v4040
    %v4042 = vrot.slane %v4016, %v4041
    %v4043 = vlaneseq
    %v4044 = vshrl.u32 %v4043, 7
    %v4045 = vsub.s32 %v1669, %v4044
    %v4046 = vrot.slane %v4019, %v4045
    %v4047 = vlaneseq
    %v4048 = vshrl.u32 %v4047, 7
    %v4049 = vsub.s32 %v1669, %v4048
    %v4050 = vrot.slane %v4022, %v4049
    %v4051 = vlaneseq
    %v4052 = vshrl.u32 %v4051, 7
    %v4053 = vsub.s32 %v1669, %v4052
    %v4054 = vrot.slane %v4025, %v4053
    %v4055 = vlaneseq
    %v4056 = vshrl.u32 %v4055, 7
    %v4057 = vsub.s32 %v1669, %v4056
    %v4058 = vrot.slane %v4028, %v4057
    %v4059 = vlaneseq
    %v4060 = vshrl.u32 %v4059, 7
    %v4061 = vsub.s32 %v1669, %v4060
    %v4062 = vrot.slane %v4031, %v4061
    %v4063 = vlaneseq
    %v4064 = vshrl.u32 %v4063, 7
    %v4065 = vsub.s32 %v1669, %v4064
    %v4066 = vrot.slane %v4034, %v4065
    %v4067 = vsel %vm1702, %v4042, %v4038
    %v4068 = vsel %vm1704, %v4046, %v4067
    %v4069 = vsel %vm1706, %v4050, %v4068
    %v4070 = vsel %vm1708, %v4054, %v4069
    %v4071 = vsel %vm1710, %v4058, %v4070
    %v4072 = vsel %vm1712, %v4062, %v4071
    %v4073 = vsel %vm1714, %v4066, %v4072
    %v4075 = vsel %vm136, %v4073, 0.0
    %4076 = vadd.xlane.f32.xlu0 %v4075
    %v4077 = vpop.xlane.xlu0 %4076
    %v4078 = vrcp.pop %v4077
    %v4080 = vlaneseq
    %v4081 = vshrl.u32 %v4080, 7
    %v4082 = vsub.s32 0, %v4081
    %v4083 = vrot.slane %v4078, %v4082
    %v4084 = vlaneseq
    %v4085 = vshrl.u32 %v4084, 7
    %v4086 = vsub.s32 1, %v4085
    %v4087 = vrot.slane %v4078, %v4086
    %v4088 = vlaneseq
    %v4089 = vshrl.u32 %v4088, 7
    %v4090 = vsub.s32 2, %v4089
    %v4091 = vrot.slane %v4078, %v4090
    %v4092 = vlaneseq
    %v4093 = vshrl.u32 %v4092, 7
    %v4094 = vsub.s32 3, %v4093
    %v4095 = vrot.slane %v4078, %v4094
    %v4096 = vlaneseq
    %v4097 = vshrl.u32 %v4096, 7
    %v4098 = vsub.s32 4, %v4097
    %v4099 = vrot.slane %v4078, %v4098
    %v4100 = vlaneseq
    %v4101 = vshrl.u32 %v4100, 7
    %v4102 = vsub.s32 5, %v4101
    %v4103 = vrot.slane %v4078, %v4102
    %v4104 = vlaneseq
    %v4105 = vshrl.u32 %v4104, 7
    %v4106 = vsub.s32 6, %v4105
    %v4107 = vrot.slane %v4078, %v4106
    %v4108 = vlaneseq
    %v4109 = vshrl.u32 %v4108, 7
    %v4110 = vsub.s32 7, %v4109
    %v4111 = vrot.slane %v4078, %v4110
    %v4120 = vmul.f32 %v3988, %v4083
    %v4121 = vmul.f32 %v3990, %v4087
    %v4122 = vmul.f32 %v3992, %v4091
    %v4123 = vmul.f32 %v3994, %v4095
    %v4124 = vmul.f32 %v3996, %v4099
    %v4125 = vmul.f32 %v3998, %v4103
    %v4126 = vmul.f32 %v4000, %v4107
    %v4127 = vmul.f32 %v4002, %v4111
    %v4128 = vadd.f32 %v1770, %v4120
    %v4129 = vadd.f32 %v1771, %v4121
    %v4130 = vadd.f32 %v1772, %v4122
    %v4131 = vadd.f32 %v1773, %v4123
    %v4132 = vadd.f32 %v1774, %v4124
    %v4133 = vadd.f32 %v1775, %v4125
    %v4134 = vadd.f32 %v1776, %v4126
    %v4135 = vadd.f32 %v1777, %v4127
    %4144 = vset.pattern.permute.xlu0 0
    %4145 = vperm.xlu0 %4144, %v4120
    %v4146 = vpop.permute.xlu0 %4145
    %4147 = vset.pattern.permute.xlu0 0
    %4148 = vperm.xlu0 %4147, %v4121
    %v4149 = vpop.permute.xlu0 %4148
    %4150 = vset.pattern.permute.xlu0 0
    %4151 = vperm.xlu0 %4150, %v4122
    %v4152 = vpop.permute.xlu0 %4151
    %4153 = vset.pattern.permute.xlu0 0
    %4154 = vperm.xlu0 %4153, %v4123
    %v4155 = vpop.permute.xlu0 %4154
    %4156 = vset.pattern.permute.xlu0 0
    %4157 = vperm.xlu0 %4156, %v4124
    %v4158 = vpop.permute.xlu0 %4157
    %4159 = vset.pattern.permute.xlu0 0
    %4160 = vperm.xlu0 %4159, %v4125
    %v4161 = vpop.permute.xlu0 %4160
    %4162 = vset.pattern.permute.xlu0 0
    %4163 = vperm.xlu0 %4162, %v4126
    %v4164 = vpop.permute.xlu0 %4163
    %4165 = vset.pattern.permute.xlu0 0
    %4166 = vperm.xlu0 %4165, %v4127
    %v4167 = vpop.permute.xlu0 %4166
    %v4168 = vlaneseq
    %v4169 = vshrl.u32 %v4168, 7
    %v4170 = vsub.s32 %v1669, %v4169
    %v4171 = vrot.slane %v4146, %v4170
    %v4172 = vlaneseq
    %v4173 = vshrl.u32 %v4172, 7
    %v4174 = vsub.s32 %v1669, %v4173
    %v4175 = vrot.slane %v4149, %v4174
    %v4176 = vlaneseq
    %v4177 = vshrl.u32 %v4176, 7
    %v4178 = vsub.s32 %v1669, %v4177
    %v4179 = vrot.slane %v4152, %v4178
    %v4180 = vlaneseq
    %v4181 = vshrl.u32 %v4180, 7
    %v4182 = vsub.s32 %v1669, %v4181
    %v4183 = vrot.slane %v4155, %v4182
    %v4184 = vlaneseq
    %v4185 = vshrl.u32 %v4184, 7
    %v4186 = vsub.s32 %v1669, %v4185
    %v4187 = vrot.slane %v4158, %v4186
    %v4188 = vlaneseq
    %v4189 = vshrl.u32 %v4188, 7
    %v4190 = vsub.s32 %v1669, %v4189
    %v4191 = vrot.slane %v4161, %v4190
    %v4192 = vlaneseq
    %v4193 = vshrl.u32 %v4192, 7
    %v4194 = vsub.s32 %v1669, %v4193
    %v4195 = vrot.slane %v4164, %v4194
    %v4196 = vlaneseq
    %v4197 = vshrl.u32 %v4196, 7
    %v4198 = vsub.s32 %v1669, %v4197
    %v4199 = vrot.slane %v4167, %v4198
    %v4200 = vsel %vm1702, %v4175, %v4171
    %v4201 = vsel %vm1704, %v4179, %v4200
    %v4202 = vsel %vm1706, %v4183, %v4201
    %v4203 = vsel %vm1708, %v4187, %v4202
    %v4204 = vsel %vm1710, %v4191, %v4203
    %v4205 = vsel %vm1712, %v4195, %v4204
    %v4206 = vsel %vm1714, %v4199, %v4205
    %v4208 = vlaneseq
    %v4209 = vshrl.u32 %v4208, 7
    %v4210 = vsub.s32 %v1850, %v4209
    %v4211 = vrot.slane %v4146, %v4210
    %v4212 = vlaneseq
    %v4213 = vshrl.u32 %v4212, 7
    %v4214 = vsub.s32 %v1850, %v4213
    %v4215 = vrot.slane %v4149, %v4214
    %v4216 = vlaneseq
    %v4217 = vshrl.u32 %v4216, 7
    %v4218 = vsub.s32 %v1850, %v4217
    %v4219 = vrot.slane %v4152, %v4218
    %v4220 = vlaneseq
    %v4221 = vshrl.u32 %v4220, 7
    %v4222 = vsub.s32 %v1850, %v4221
    %v4223 = vrot.slane %v4155, %v4222
    %v4224 = vlaneseq
    %v4225 = vshrl.u32 %v4224, 7
    %v4226 = vsub.s32 %v1850, %v4225
    %v4227 = vrot.slane %v4158, %v4226
    %v4228 = vlaneseq
    %v4229 = vshrl.u32 %v4228, 7
    %v4230 = vsub.s32 %v1850, %v4229
    %v4231 = vrot.slane %v4161, %v4230
    %v4232 = vlaneseq
    %v4233 = vshrl.u32 %v4232, 7
    %v4234 = vsub.s32 %v1850, %v4233
    %v4235 = vrot.slane %v4164, %v4234
    %v4236 = vlaneseq
    %v4237 = vshrl.u32 %v4236, 7
    %v4238 = vsub.s32 %v1850, %v4237
    %v4239 = vrot.slane %v4167, %v4238
    %v4240 = vsel %vm1702, %v4215, %v4211
    %v4241 = vsel %vm1704, %v4219, %v4240
    %v4242 = vsel %vm1706, %v4223, %v4241
    %v4243 = vsel %vm1708, %v4227, %v4242
    %v4244 = vsel %vm1710, %v4231, %v4243
    %v4245 = vsel %vm1712, %v4235, %v4244
    %v4246 = vsel %vm1714, %v4239, %v4245
    %v4248 = vlaneseq
    %v4249 = vshrl.u32 %v4248, 7
    %v4250 = vsub.s32 %v1891, %v4249
    %v4251 = vrot.slane %v4146, %v4250
    %v4252 = vlaneseq
    %v4253 = vshrl.u32 %v4252, 7
    %v4254 = vsub.s32 %v1891, %v4253
    %v4255 = vrot.slane %v4149, %v4254
    %v4256 = vlaneseq
    %v4257 = vshrl.u32 %v4256, 7
    %v4258 = vsub.s32 %v1891, %v4257
    %v4259 = vrot.slane %v4152, %v4258
    %v4260 = vlaneseq
    %v4261 = vshrl.u32 %v4260, 7
    %v4262 = vsub.s32 %v1891, %v4261
    %v4263 = vrot.slane %v4155, %v4262
    %v4264 = vlaneseq
    %v4265 = vshrl.u32 %v4264, 7
    %v4266 = vsub.s32 %v1891, %v4265
    %v4267 = vrot.slane %v4158, %v4266
    %v4268 = vlaneseq
    %v4269 = vshrl.u32 %v4268, 7
    %v4270 = vsub.s32 %v1891, %v4269
    %v4271 = vrot.slane %v4161, %v4270
    %v4272 = vlaneseq
    %v4273 = vshrl.u32 %v4272, 7
    %v4274 = vsub.s32 %v1891, %v4273
    %v4275 = vrot.slane %v4164, %v4274
    %v4276 = vlaneseq
    %v4277 = vshrl.u32 %v4276, 7
    %v4278 = vsub.s32 %v1891, %v4277
    %v4279 = vrot.slane %v4167, %v4278
    %v4280 = vsel %vm1702, %v4255, %v4251
    %v4281 = vsel %vm1704, %v4259, %v4280
    %v4282 = vsel %vm1706, %v4263, %v4281
    %v4283 = vsel %vm1708, %v4267, %v4282
    %v4284 = vsel %vm1710, %v4271, %v4283
    %v4285 = vsel %vm1712, %v4275, %v4284
    %v4286 = vsel %vm1714, %v4279, %v4285
    %v4288 = vlaneseq
    %v4289 = vshrl.u32 %v4288, 7
    %v4290 = vsub.s32 %v1932, %v4289
    %v4291 = vrot.slane %v4146, %v4290
    %v4292 = vlaneseq
    %v4293 = vshrl.u32 %v4292, 7
    %v4294 = vsub.s32 %v1932, %v4293
    %v4295 = vrot.slane %v4149, %v4294
    %v4296 = vlaneseq
    %v4297 = vshrl.u32 %v4296, 7
    %v4298 = vsub.s32 %v1932, %v4297
    %v4299 = vrot.slane %v4152, %v4298
    %v4300 = vlaneseq
    %v4301 = vshrl.u32 %v4300, 7
    %v4302 = vsub.s32 %v1932, %v4301
    %v4303 = vrot.slane %v4155, %v4302
    %v4304 = vlaneseq
    %v4305 = vshrl.u32 %v4304, 7
    %v4306 = vsub.s32 %v1932, %v4305
    %v4307 = vrot.slane %v4158, %v4306
    %v4308 = vlaneseq
    %v4309 = vshrl.u32 %v4308, 7
    %v4310 = vsub.s32 %v1932, %v4309
    %v4311 = vrot.slane %v4161, %v4310
    %v4312 = vlaneseq
    %v4313 = vshrl.u32 %v4312, 7
    %v4314 = vsub.s32 %v1932, %v4313
    %v4315 = vrot.slane %v4164, %v4314
    %v4316 = vlaneseq
    %v4317 = vshrl.u32 %v4316, 7
    %v4318 = vsub.s32 %v1932, %v4317
    %v4319 = vrot.slane %v4167, %v4318
    %v4320 = vsel %vm1702, %v4295, %v4291
    %v4321 = vsel %vm1704, %v4299, %v4320
    %v4322 = vsel %vm1706, %v4303, %v4321
    %v4323 = vsel %vm1708, %v4307, %v4322
    %v4324 = vsel %vm1710, %v4311, %v4323
    %v4325 = vsel %vm1712, %v4315, %v4324
    %v4326 = vsel %vm1714, %v4319, %v4325
    %v4328 = vlaneseq
    %v4329 = vshrl.u32 %v4328, 7
    %v4330 = vsub.s32 %v1973, %v4329
    %v4331 = vrot.slane %v4146, %v4330
    %v4332 = vlaneseq
    %v4333 = vshrl.u32 %v4332, 7
    %v4334 = vsub.s32 %v1973, %v4333
    %v4335 = vrot.slane %v4149, %v4334
    %v4336 = vlaneseq
    %v4337 = vshrl.u32 %v4336, 7
    %v4338 = vsub.s32 %v1973, %v4337
    %v4339 = vrot.slane %v4152, %v4338
    %v4340 = vlaneseq
    %v4341 = vshrl.u32 %v4340, 7
    %v4342 = vsub.s32 %v1973, %v4341
    %v4343 = vrot.slane %v4155, %v4342
    %v4344 = vlaneseq
    %v4345 = vshrl.u32 %v4344, 7
    %v4346 = vsub.s32 %v1973, %v4345
    %v4347 = vrot.slane %v4158, %v4346
    %v4348 = vlaneseq
    %v4349 = vshrl.u32 %v4348, 7
    %v4350 = vsub.s32 %v1973, %v4349
    %v4351 = vrot.slane %v4161, %v4350
    %v4352 = vlaneseq
    %v4353 = vshrl.u32 %v4352, 7
    %v4354 = vsub.s32 %v1973, %v4353
    %v4355 = vrot.slane %v4164, %v4354
    %v4356 = vlaneseq
    %v4357 = vshrl.u32 %v4356, 7
    %v4358 = vsub.s32 %v1973, %v4357
    %v4359 = vrot.slane %v4167, %v4358
    %v4360 = vsel %vm1702, %v4335, %v4331
    %v4361 = vsel %vm1704, %v4339, %v4360
    %v4362 = vsel %vm1706, %v4343, %v4361
    %v4363 = vsel %vm1708, %v4347, %v4362
    %v4364 = vsel %vm1710, %v4351, %v4363
    %v4365 = vsel %vm1712, %v4355, %v4364
    %v4366 = vsel %vm1714, %v4359, %v4365
    %v4368 = vlaneseq
    %v4369 = vshrl.u32 %v4368, 7
    %v4370 = vsub.s32 %v2014, %v4369
    %v4371 = vrot.slane %v4146, %v4370
    %v4372 = vlaneseq
    %v4373 = vshrl.u32 %v4372, 7
    %v4374 = vsub.s32 %v2014, %v4373
    %v4375 = vrot.slane %v4149, %v4374
    %v4376 = vlaneseq
    %v4377 = vshrl.u32 %v4376, 7
    %v4378 = vsub.s32 %v2014, %v4377
    %v4379 = vrot.slane %v4152, %v4378
    %v4380 = vlaneseq
    %v4381 = vshrl.u32 %v4380, 7
    %v4382 = vsub.s32 %v2014, %v4381
    %v4383 = vrot.slane %v4155, %v4382
    %v4384 = vlaneseq
    %v4385 = vshrl.u32 %v4384, 7
    %v4386 = vsub.s32 %v2014, %v4385
    %v4387 = vrot.slane %v4158, %v4386
    %v4388 = vlaneseq
    %v4389 = vshrl.u32 %v4388, 7
    %v4390 = vsub.s32 %v2014, %v4389
    %v4391 = vrot.slane %v4161, %v4390
    %v4392 = vlaneseq
    %v4393 = vshrl.u32 %v4392, 7
    %v4394 = vsub.s32 %v2014, %v4393
    %v4395 = vrot.slane %v4164, %v4394
    %v4396 = vlaneseq
    %v4397 = vshrl.u32 %v4396, 7
    %v4398 = vsub.s32 %v2014, %v4397
    %v4399 = vrot.slane %v4167, %v4398
    %v4400 = vsel %vm1702, %v4375, %v4371
    %v4401 = vsel %vm1704, %v4379, %v4400
    %v4402 = vsel %vm1706, %v4383, %v4401
    %v4403 = vsel %vm1708, %v4387, %v4402
    %v4404 = vsel %vm1710, %v4391, %v4403
    %v4405 = vsel %vm1712, %v4395, %v4404
    %v4406 = vsel %vm1714, %v4399, %v4405
    %v4408 = vlaneseq
    %v4409 = vshrl.u32 %v4408, 7
    %v4410 = vsub.s32 %v2055, %v4409
    %v4411 = vrot.slane %v4146, %v4410
    %v4412 = vlaneseq
    %v4413 = vshrl.u32 %v4412, 7
    %v4414 = vsub.s32 %v2055, %v4413
    %v4415 = vrot.slane %v4149, %v4414
    %v4416 = vlaneseq
    %v4417 = vshrl.u32 %v4416, 7
    %v4418 = vsub.s32 %v2055, %v4417
    %v4419 = vrot.slane %v4152, %v4418
    %v4420 = vlaneseq
    %v4421 = vshrl.u32 %v4420, 7
    %v4422 = vsub.s32 %v2055, %v4421
    %v4423 = vrot.slane %v4155, %v4422
    %v4424 = vlaneseq
    %v4425 = vshrl.u32 %v4424, 7
    %v4426 = vsub.s32 %v2055, %v4425
    %v4427 = vrot.slane %v4158, %v4426
    %v4428 = vlaneseq
    %v4429 = vshrl.u32 %v4428, 7
    %v4430 = vsub.s32 %v2055, %v4429
    %v4431 = vrot.slane %v4161, %v4430
    %v4432 = vlaneseq
    %v4433 = vshrl.u32 %v4432, 7
    %v4434 = vsub.s32 %v2055, %v4433
    %v4435 = vrot.slane %v4164, %v4434
    %v4436 = vlaneseq
    %v4437 = vshrl.u32 %v4436, 7
    %v4438 = vsub.s32 %v2055, %v4437
    %v4439 = vrot.slane %v4167, %v4438
    %v4440 = vsel %vm1702, %v4415, %v4411
    %v4441 = vsel %vm1704, %v4419, %v4440
    %v4442 = vsel %vm1706, %v4423, %v4441
    %v4443 = vsel %vm1708, %v4427, %v4442
    %v4444 = vsel %vm1710, %v4431, %v4443
    %v4445 = vsel %vm1712, %v4435, %v4444
    %v4446 = vsel %vm1714, %v4439, %v4445
    %v4448 = vlaneseq
    %v4449 = vshrl.u32 %v4448, 7
    %v4450 = vsub.s32 %v2096, %v4449
    %v4451 = vrot.slane %v4146, %v4450
    %v4452 = vlaneseq
    %v4453 = vshrl.u32 %v4452, 7
    %v4454 = vsub.s32 %v2096, %v4453
    %v4455 = vrot.slane %v4149, %v4454
    %v4456 = vlaneseq
    %v4457 = vshrl.u32 %v4456, 7
    %v4458 = vsub.s32 %v2096, %v4457
    %v4459 = vrot.slane %v4152, %v4458
    %v4460 = vlaneseq
    %v4461 = vshrl.u32 %v4460, 7
    %v4462 = vsub.s32 %v2096, %v4461
    %v4463 = vrot.slane %v4155, %v4462
    %v4464 = vlaneseq
    %v4465 = vshrl.u32 %v4464, 7
    %v4466 = vsub.s32 %v2096, %v4465
    %v4467 = vrot.slane %v4158, %v4466
    %v4468 = vlaneseq
    %v4469 = vshrl.u32 %v4468, 7
    %v4470 = vsub.s32 %v2096, %v4469
    %v4471 = vrot.slane %v4161, %v4470
    %v4472 = vlaneseq
    %v4473 = vshrl.u32 %v4472, 7
    %v4474 = vsub.s32 %v2096, %v4473
    %v4475 = vrot.slane %v4164, %v4474
    %v4476 = vlaneseq
    %v4477 = vshrl.u32 %v4476, 7
    %v4478 = vsub.s32 %v2096, %v4477
    %v4479 = vrot.slane %v4167, %v4478
    %v4480 = vsel %vm1702, %v4455, %v4451
    %v4481 = vsel %vm1704, %v4459, %v4480
    %v4482 = vsel %vm1706, %v4463, %v4481
    %v4483 = vsel %vm1708, %v4467, %v4482
    %v4484 = vsel %vm1710, %v4471, %v4483
    %v4485 = vsel %vm1712, %v4475, %v4484
    %v4486 = vsel %vm1714, %v4479, %v4485
    %v4488 = vsel %vm136, %v4206, %v4246
    %v4489 = vsel %vm1075, %v4488, %v4286
    %v4490 = vsel %vm2139, %v4489, %v4326
    %v4491 = vsel %vm2141, %v4490, %v4366
    %v4492 = vsel %vm2143, %v4491, %v4406
    %v4493 = vsel %vm2145, %v4492, %v4446
    %v4494 = vsel %vm2147, %v4493, %v4486
    %v4495 = vmul.f32 %v4494, %v364
    %v4497 = vsel %vm2150, %v4495, 0
    %4499 = vmatprep.subr.mxu0 0.0
    %4500 = vmatpush1.msra.mxu0 0.0
    %4501 = vmatprep.subr.mxu0 0.0
    %4502 = vmatpush1.msra.mxu0 0.0
    %4503 = vmatprep.subr.mxu0 0.0
    %4504 = vmatpush1.msra.mxu0 0.0
    %4505 = vmatprep.subr.mxu0 0.0
    %4506 = vmatpush1.msra.mxu0 0.0
    %4507 = vmatprep.subr.mxu0 0.0
    %4508 = vmatpush1.msra.mxu0 0.0
    %4509 = vmatprep.subr.mxu0 0.0
    %4510 = vmatpush1.msra.mxu0 0.0
    %4511 = vmatprep.subr.mxu0 0.0
    %4512 = vmatpush1.msra.mxu0 0.0
    %4513 = vmatprep.subr.mxu0 0.0
    %4514 = vmatpush1.msra.mxu0 0.0
    %4515 = vmatprep.subr.mxu0 0.0
    %4516 = vmatpush1.msra.mxu0 %v363
    %4517 = vmatprep.subr.mxu0 0.0
    %4518 = vmatpush1.msra.mxu0 %v362
    %4519 = vmatprep.subr.mxu0 0.0
    %4520 = vmatpush1.msra.mxu0 %v361
    %4521 = vmatprep.subr.mxu0 0.0
    %4522 = vmatpush1.msra.mxu0 %v360
    %4523 = vmatprep.subr.mxu0 0.0
    %4524 = vmatpush1.msra.mxu0 %v359
    %4525 = vmatprep.subr.mxu0 0.0
    %4526 = vmatpush1.msra.mxu0 %v358
    %4527 = vmatprep.subr.mxu0 0.0
    %4528 = vmatpush1.msra.mxu0 %v357
    %4529 = vmatprep.subr.mxu0 0.0
    %4530 = vmatpush1.msra.mxu0 %v356
    %4531 = vmatprep.subr.mxu0 0.0
    %4532 = vmatpush2.msra.mxu0 0.0
    %4533 = vmatprep.subr.mxu0 0.0
    %4534 = vmatpush2.msra.mxu0 0.0
    %4535 = vmatprep.subr.mxu0 0.0
    %4536 = vmatpush2.msra.mxu0 0.0
    %4537 = vmatprep.subr.mxu0 0.0
    %4538 = vmatpush2.msra.mxu0 0.0
    %4539 = vmatprep.subr.mxu0 0.0
    %4540 = vmatpush2.msra.mxu0 0.0
    %4541 = vmatprep.subr.mxu0 0.0
    %4542 = vmatpush2.msra.mxu0 0.0
    %4543 = vmatprep.subr.mxu0 0.0
    %4544 = vmatpush2.msra.mxu0 0.0
    %4545 = vmatprep.subr.mxu0 0.0
    %4546 = vmatpush2.msra.mxu0 0.0
    %4547 = vmatprep.subr.mxu0 0.0
    %4548 = vmatpush2.msra.mxu0 0.0
    %4549 = vmatprep.subr.mxu0 0.0
    %4550 = vmatpush2.msra.mxu0 0.0
    %4551 = vmatprep.subr.mxu0 0.0
    %4552 = vmatpush2.msra.mxu0 0.0
    %4553 = vmatprep.subr.mxu0 0.0
    %4554 = vmatpush2.msra.mxu0 0.0
    %4555 = vmatprep.subr.mxu0 0.0
    %4556 = vmatpush2.msra.mxu0 0.0
    %4557 = vmatprep.subr.mxu0 0.0
    %4558 = vmatpush2.msra.mxu0 0.0
    %4559 = vmatprep.subr.mxu0 0.0
    %4560 = vmatpush2.msra.mxu0 0.0
    %4561 = vmatprep.subr.mxu0 0.0
    %4562 = vmatpush2.msra.mxu0 0.0
    %4563 = vmatprep.mubr.f32.mxu0 0.0
    %4564 = vmatmul.mubr.f32.gmra.mxu0 %v4497
    %v4565 = vpop.f32.mrf.mxu0
    %v4566 = vadd.f32 0.0, %v4565
    %v4567 = vpop.f32.mrf.mxu0
    %4568 = vdwg.mxu0
    %v4569 = vld [vmem:[#allocation11] sm:$0xff]
    %v4570 = vld [vmem:[#allocation11 + $0x8] sm:$0xff]
    %v4571 = vld [vmem:[#allocation11 + $0x10] sm:$0xff]
    %v4572 = vld [vmem:[#allocation11 + $0x18] sm:$0xff]
    %v4573 = vld [vmem:[#allocation11 + $0x20] sm:$0xff]
    %v4574 = vld [vmem:[#allocation11 + $0x28] sm:$0xff]
    %v4575 = vld [vmem:[#allocation11 + $0x30] sm:$0xff]
    %v4576 = vld [vmem:[#allocation11 + $0x38] sm:$0xff]
    %v4577 = vld [vmem:[#allocation11 + $0x40] sm:$0xff]
    %v4578 = vld [vmem:[#allocation11 + $0x48] sm:$0xff]
    %v4579 = vld [vmem:[#allocation11 + $0x50] sm:$0xff]
    %v4580 = vld [vmem:[#allocation11 + $0x58] sm:$0xff]
    %v4581 = vld [vmem:[#allocation11 + $0x60] sm:$0xff]
    %v4582 = vld [vmem:[#allocation11 + $0x68] sm:$0xff]
    %v4583 = vld [vmem:[#allocation11 + $0x70] sm:$0xff]
    %v4584 = vld [vmem:[#allocation11 + $0x78] sm:$0xff]
    %v4585 = vld [vmem:[#allocation11 + $0x80] sm:$0xff]
    %v4586 = vld [vmem:[#allocation11 + $0x88] sm:$0xff]
    %v4587 = vld [vmem:[#allocation11 + $0x90] sm:$0xff]
    %v4588 = vld [vmem:[#allocation11 + $0x98] sm:$0xff]
    %v4589 = vld [vmem:[#allocation11 + $0xa0] sm:$0xff]
    %v4590 = vld [vmem:[#allocation11 + $0xa8] sm:$0xff]
    %v4591 = vld [vmem:[#allocation11 + $0xb0] sm:$0xff]
    %v4592 = vld [vmem:[#allocation11 + $0xb8] sm:$0xff]
    %v4593 = vld [vmem:[#allocation11 + $0xc0] sm:$0xff]
    %v4594 = vld [vmem:[#allocation11 + $0xc8] sm:$0xff]
    %v4595 = vld [vmem:[#allocation11 + $0xd0] sm:$0xff]
    %v4596 = vld [vmem:[#allocation11 + $0xd8] sm:$0xff]
    %v4597 = vld [vmem:[#allocation11 + $0xe0] sm:$0xff]
    %v4598 = vld [vmem:[#allocation11 + $0xe8] sm:$0xff]
    %v4599 = vld [vmem:[#allocation11 + $0xf0] sm:$0xff]
    %v4600 = vld [vmem:[#allocation11 + $0xf8] sm:$0xff]
    %v4601 = vld [vmem:[#allocation11 + $0x100] sm:$0xff]
    %v4602 = vld [vmem:[#allocation11 + $0x108] sm:$0xff]
    %v4603 = vld [vmem:[#allocation11 + $0x110] sm:$0xff]
    %v4604 = vld [vmem:[#allocation11 + $0x118] sm:$0xff]
    %v4605 = vld [vmem:[#allocation11 + $0x120] sm:$0xff]
    %v4606 = vld [vmem:[#allocation11 + $0x128] sm:$0xff]
    %v4607 = vld [vmem:[#allocation11 + $0x130] sm:$0xff]
    %v4608 = vld [vmem:[#allocation11 + $0x138] sm:$0xff]
    %v4609 = vld [vmem:[#allocation11 + $0x140] sm:$0xff]
    %v4610 = vld [vmem:[#allocation11 + $0x148] sm:$0xff]
    %v4611 = vld [vmem:[#allocation11 + $0x150] sm:$0xff]
    %v4612 = vld [vmem:[#allocation11 + $0x158] sm:$0xff]
    %v4613 = vld [vmem:[#allocation11 + $0x160] sm:$0xff]
    %v4614 = vld [vmem:[#allocation11 + $0x168] sm:$0xff]
    %v4615 = vld [vmem:[#allocation11 + $0x170] sm:$0xff]
    %v4616 = vld [vmem:[#allocation11 + $0x178] sm:$0xff]
    %v4617 = vld [vmem:[#allocation11 + $0x180] sm:$0xff]
    %v4618 = vld [vmem:[#allocation11 + $0x188] sm:$0xff]
    %v4619 = vld [vmem:[#allocation11 + $0x190] sm:$0xff]
    %v4620 = vld [vmem:[#allocation11 + $0x198] sm:$0xff]
    %v4621 = vld [vmem:[#allocation11 + $0x1a0] sm:$0xff]
    %v4622 = vld [vmem:[#allocation11 + $0x1a8] sm:$0xff]
    %v4623 = vld [vmem:[#allocation11 + $0x1b0] sm:$0xff]
    %v4624 = vld [vmem:[#allocation11 + $0x1b8] sm:$0xff]
    %v4625 = vld [vmem:[#allocation11 + $0x1c0] sm:$0xff]
    %v4626 = vld [vmem:[#allocation11 + $0x1c8] sm:$0xff]
    %v4627 = vld [vmem:[#allocation11 + $0x1d0] sm:$0xff]
    %v4628 = vld [vmem:[#allocation11 + $0x1d8] sm:$0xff]
    %v4629 = vld [vmem:[#allocation11 + $0x1e0] sm:$0xff]
    %v4630 = vld [vmem:[#allocation11 + $0x1e8] sm:$0xff]
    %v4631 = vld [vmem:[#allocation11 + $0x1f0] sm:$0xff]
    %v4632 = vld [vmem:[#allocation11 + $0x1f8] sm:$0xff]
    %v4633 = vld [vmem:[#allocation11 + $0x200] sm:$0xff]
    %v4634 = vld [vmem:[#allocation11 + $0x208] sm:$0xff]
    %v4635 = vld [vmem:[#allocation11 + $0x210] sm:$0xff]
    %v4636 = vld [vmem:[#allocation11 + $0x218] sm:$0xff]
    %v4637 = vld [vmem:[#allocation11 + $0x220] sm:$0xff]
    %v4638 = vld [vmem:[#allocation11 + $0x228] sm:$0xff]
    %v4639 = vld [vmem:[#allocation11 + $0x230] sm:$0xff]
    %v4640 = vld [vmem:[#allocation11 + $0x238] sm:$0xff]
    %v4641 = vld [vmem:[#allocation11 + $0x240] sm:$0xff]
    %v4642 = vld [vmem:[#allocation11 + $0x248] sm:$0xff]
    %v4643 = vld [vmem:[#allocation11 + $0x250] sm:$0xff]
    %v4644 = vld [vmem:[#allocation11 + $0x258] sm:$0xff]
    %v4645 = vld [vmem:[#allocation11 + $0x260] sm:$0xff]
    %v4646 = vld [vmem:[#allocation11 + $0x268] sm:$0xff]
    %v4647 = vld [vmem:[#allocation11 + $0x270] sm:$0xff]
    %v4648 = vld [vmem:[#allocation11 + $0x278] sm:$0xff]
    %v4649 = vld [vmem:[#allocation11 + $0x280] sm:$0xff]
    %v4650 = vld [vmem:[#allocation11 + $0x288] sm:$0xff]
    %v4651 = vld [vmem:[#allocation11 + $0x290] sm:$0xff]
    %v4652 = vld [vmem:[#allocation11 + $0x298] sm:$0xff]
    %v4653 = vld [vmem:[#allocation11 + $0x2a0] sm:$0xff]
    %v4654 = vld [vmem:[#allocation11 + $0x2a8] sm:$0xff]
    %v4655 = vld [vmem:[#allocation11 + $0x2b0] sm:$0xff]
    %v4656 = vld [vmem:[#allocation11 + $0x2b8] sm:$0xff]
    %v4657 = vld [vmem:[#allocation11 + $0x2c0] sm:$0xff]
    %v4658 = vld [vmem:[#allocation11 + $0x2c8] sm:$0xff]
    %v4659 = vld [vmem:[#allocation11 + $0x2d0] sm:$0xff]
    %v4660 = vld [vmem:[#allocation11 + $0x2d8] sm:$0xff]
    %v4661 = vld [vmem:[#allocation11 + $0x2e0] sm:$0xff]
    %v4662 = vld [vmem:[#allocation11 + $0x2e8] sm:$0xff]
    %v4663 = vld [vmem:[#allocation11 + $0x2f0] sm:$0xff]
    %v4664 = vld [vmem:[#allocation11 + $0x2f8] sm:$0xff]
    %v4665 = vld [vmem:[#allocation11 + $0x300] sm:$0xff]
    %v4666 = vld [vmem:[#allocation11 + $0x308] sm:$0xff]
    %v4667 = vld [vmem:[#allocation11 + $0x310] sm:$0xff]
    %v4668 = vld [vmem:[#allocation11 + $0x318] sm:$0xff]
    %v4669 = vld [vmem:[#allocation11 + $0x320] sm:$0xff]
    %v4670 = vld [vmem:[#allocation11 + $0x328] sm:$0xff]
    %v4671 = vld [vmem:[#allocation11 + $0x330] sm:$0xff]
    %v4672 = vld [vmem:[#allocation11 + $0x338] sm:$0xff]
    %v4673 = vld [vmem:[#allocation11 + $0x340] sm:$0xff]
    %v4674 = vld [vmem:[#allocation11 + $0x348] sm:$0xff]
    %v4675 = vld [vmem:[#allocation11 + $0x350] sm:$0xff]
    %v4676 = vld [vmem:[#allocation11 + $0x358] sm:$0xff]
    %v4677 = vld [vmem:[#allocation11 + $0x360] sm:$0xff]
    %v4678 = vld [vmem:[#allocation11 + $0x368] sm:$0xff]
    %v4679 = vld [vmem:[#allocation11 + $0x370] sm:$0xff]
    %v4680 = vld [vmem:[#allocation11 + $0x378] sm:$0xff]
    %v4681 = vld [vmem:[#allocation11 + $0x380] sm:$0xff]
    %v4682 = vld [vmem:[#allocation11 + $0x388] sm:$0xff]
    %v4683 = vld [vmem:[#allocation11 + $0x390] sm:$0xff]
    %v4684 = vld [vmem:[#allocation11 + $0x398] sm:$0xff]
    %v4685 = vld [vmem:[#allocation11 + $0x3a0] sm:$0xff]
    %v4686 = vld [vmem:[#allocation11 + $0x3a8] sm:$0xff]
    %v4687 = vld [vmem:[#allocation11 + $0x3b0] sm:$0xff]
    %v4688 = vld [vmem:[#allocation11 + $0x3b8] sm:$0xff]
    %v4689 = vld [vmem:[#allocation11 + $0x3c0] sm:$0xff]
    %v4690 = vld [vmem:[#allocation11 + $0x3c8] sm:$0xff]
    %v4691 = vld [vmem:[#allocation11 + $0x3d0] sm:$0xff]
    %v4692 = vld [vmem:[#allocation11 + $0x3d8] sm:$0xff]
    %v4693 = vld [vmem:[#allocation11 + $0x3e0] sm:$0xff]
    %v4694 = vld [vmem:[#allocation11 + $0x3e8] sm:$0xff]
    %v4695 = vld [vmem:[#allocation11 + $0x3f0] sm:$0xff]
    %v4696 = vld [vmem:[#allocation11 + $0x3f8] sm:$0xff]
    %v4697 = vld [vmem:[#allocation11 + $0x400] sm:$0xff]
    %v4698 = vld [vmem:[#allocation11 + $0x408] sm:$0xff]
    %v4699 = vld [vmem:[#allocation11 + $0x410] sm:$0xff]
    %v4700 = vld [vmem:[#allocation11 + $0x418] sm:$0xff]
    %v4701 = vld [vmem:[#allocation11 + $0x420] sm:$0xff]
    %v4702 = vld [vmem:[#allocation11 + $0x428] sm:$0xff]
    %v4703 = vld [vmem:[#allocation11 + $0x430] sm:$0xff]
    %v4704 = vld [vmem:[#allocation11 + $0x438] sm:$0xff]
    %v4705 = vld [vmem:[#allocation11 + $0x440] sm:$0xff]
    %v4706 = vld [vmem:[#allocation11 + $0x448] sm:$0xff]
    %v4707 = vld [vmem:[#allocation11 + $0x450] sm:$0xff]
    %v4708 = vld [vmem:[#allocation11 + $0x458] sm:$0xff]
    %v4709 = vld [vmem:[#allocation11 + $0x460] sm:$0xff]
    %v4710 = vld [vmem:[#allocation11 + $0x468] sm:$0xff]
    %v4711 = vld [vmem:[#allocation11 + $0x470] sm:$0xff]
    %v4712 = vld [vmem:[#allocation11 + $0x478] sm:$0xff]
    %v4713 = vld [vmem:[#allocation11 + $0x480] sm:$0xff]
    %v4714 = vld [vmem:[#allocation11 + $0x488] sm:$0xff]
    %v4715 = vld [vmem:[#allocation11 + $0x490] sm:$0xff]
    %v4716 = vld [vmem:[#allocation11 + $0x498] sm:$0xff]
    %v4717 = vld [vmem:[#allocation11 + $0x4a0] sm:$0xff]
    %v4718 = vld [vmem:[#allocation11 + $0x4a8] sm:$0xff]
    %v4719 = vld [vmem:[#allocation11 + $0x4b0] sm:$0xff]
    %v4720 = vld [vmem:[#allocation11 + $0x4b8] sm:$0xff]
    %v4721 = vld [vmem:[#allocation11 + $0x4c0] sm:$0xff]
    %v4722 = vld [vmem:[#allocation11 + $0x4c8] sm:$0xff]
    %v4723 = vld [vmem:[#allocation11 + $0x4d0] sm:$0xff]
    %v4724 = vld [vmem:[#allocation11 + $0x4d8] sm:$0xff]
    %v4725 = vld [vmem:[#allocation11 + $0x4e0] sm:$0xff]
    %v4726 = vld [vmem:[#allocation11 + $0x4e8] sm:$0xff]
    %v4727 = vld [vmem:[#allocation11 + $0x4f0] sm:$0xff]
    %v4728 = vld [vmem:[#allocation11 + $0x4f8] sm:$0xff]
    %v4729 = vld [vmem:[#allocation11 + $0x500] sm:$0xff]
    %v4730 = vld [vmem:[#allocation11 + $0x508] sm:$0xff]
    %v4731 = vld [vmem:[#allocation11 + $0x510] sm:$0xff]
    %v4732 = vld [vmem:[#allocation11 + $0x518] sm:$0xff]
    %v4733 = vld [vmem:[#allocation11 + $0x520] sm:$0xff]
    %v4734 = vld [vmem:[#allocation11 + $0x528] sm:$0xff]
    %v4735 = vld [vmem:[#allocation11 + $0x530] sm:$0xff]
    %v4736 = vld [vmem:[#allocation11 + $0x538] sm:$0xff]
    %v4737 = vld [vmem:[#allocation11 + $0x540] sm:$0xff]
    %v4738 = vld [vmem:[#allocation11 + $0x548] sm:$0xff]
    %v4739 = vld [vmem:[#allocation11 + $0x550] sm:$0xff]
    %v4740 = vld [vmem:[#allocation11 + $0x558] sm:$0xff]
    %v4741 = vld [vmem:[#allocation11 + $0x560] sm:$0xff]
    %v4742 = vld [vmem:[#allocation11 + $0x568] sm:$0xff]
    %v4743 = vld [vmem:[#allocation11 + $0x570] sm:$0xff]
    %v4744 = vld [vmem:[#allocation11 + $0x578] sm:$0xff]
    %v4745 = vld [vmem:[#allocation11 + $0x580] sm:$0xff]
    %v4746 = vld [vmem:[#allocation11 + $0x588] sm:$0xff]
    %v4747 = vld [vmem:[#allocation11 + $0x590] sm:$0xff]
    %v4748 = vld [vmem:[#allocation11 + $0x598] sm:$0xff]
    %v4749 = vld [vmem:[#allocation11 + $0x5a0] sm:$0xff]
    %v4750 = vld [vmem:[#allocation11 + $0x5a8] sm:$0xff]
    %v4751 = vld [vmem:[#allocation11 + $0x5b0] sm:$0xff]
    %v4752 = vld [vmem:[#allocation11 + $0x5b8] sm:$0xff]
    %v4753 = vld [vmem:[#allocation11 + $0x5c0] sm:$0xff]
    %v4754 = vld [vmem:[#allocation11 + $0x5c8] sm:$0xff]
    %v4755 = vld [vmem:[#allocation11 + $0x5d0] sm:$0xff]
    %v4756 = vld [vmem:[#allocation11 + $0x5d8] sm:$0xff]
    %v4757 = vld [vmem:[#allocation11 + $0x5e0] sm:$0xff]
    %v4758 = vld [vmem:[#allocation11 + $0x5e8] sm:$0xff]
    %v4759 = vld [vmem:[#allocation11 + $0x5f0] sm:$0xff]
    %v4760 = vld [vmem:[#allocation11 + $0x5f8] sm:$0xff]
    %4761 = vmatprep.subr.mxu0 %v4630
    %4762 = vmatpush1.msra.mxu0 %v4629
    %4763 = vmatprep.subr.mxu0 %v4626
    %4764 = vmatpush1.msra.mxu0 %v4625
    %4765 = vmatprep.subr.mxu0 %v4622
    %4766 = vmatpush1.msra.mxu0 %v4621
    %4767 = vmatprep.subr.mxu0 %v4618
    %4768 = vmatpush1.msra.mxu0 %v4617
    %4769 = vmatprep.subr.mxu0 %v4614
    %4770 = vmatpush1.msra.mxu0 %v4613
    %4771 = vmatprep.subr.mxu0 %v4610
    %4772 = vmatpush1.msra.mxu0 %v4609
    %4773 = vmatprep.subr.mxu0 %v4606
    %4774 = vmatpush1.msra.mxu0 %v4605
    %4775 = vmatprep.subr.mxu0 %v4602
    %4776 = vmatpush1.msra.mxu0 %v4601
    %4777 = vmatprep.subr.mxu0 %v4598
    %4778 = vmatpush1.msra.mxu0 %v4597
    %4779 = vmatprep.subr.mxu0 %v4594
    %4780 = vmatpush1.msra.mxu0 %v4593
    %4781 = vmatprep.subr.mxu0 %v4590
    %4782 = vmatpush1.msra.mxu0 %v4589
    %4783 = vmatprep.subr.mxu0 %v4586
    %4784 = vmatpush1.msra.mxu0 %v4585
    %4785 = vmatprep.subr.mxu0 %v4582
    %4786 = vmatpush1.msra.mxu0 %v4581
    %4787 = vmatprep.subr.mxu0 %v4578
    %4788 = vmatpush1.msra.mxu0 %v4577
    %4789 = vmatprep.subr.mxu0 %v4574
    %4790 = vmatpush1.msra.mxu0 %v4573
    %4791 = vmatprep.subr.mxu0 %v4570
    %4792 = vmatpush1.msra.mxu0 %v4569
    %4793 = vmatprep.subr.mxu0 %v4694
    %4794 = vmatpush2.msra.mxu0 %v4693
    %4795 = vmatprep.subr.mxu0 %v4690
    %4796 = vmatpush2.msra.mxu0 %v4689
    %4797 = vmatprep.subr.mxu0 %v4686
    %4798 = vmatpush2.msra.mxu0 %v4685
    %4799 = vmatprep.subr.mxu0 %v4682
    %4800 = vmatpush2.msra.mxu0 %v4681
    %4801 = vmatprep.subr.mxu0 %v4678
    %4802 = vmatpush2.msra.mxu0 %v4677
    %4803 = vmatprep.subr.mxu0 %v4674
    %4804 = vmatpush2.msra.mxu0 %v4673
    %4805 = vmatprep.subr.mxu0 %v4670
    %4806 = vmatpush2.msra.mxu0 %v4669
    %4807 = vmatprep.subr.mxu0 %v4666
    %4808 = vmatpush2.msra.mxu0 %v4665
    %4809 = vmatprep.subr.mxu0 %v4662
    %4810 = vmatpush2.msra.mxu0 %v4661
    %4811 = vmatprep.subr.mxu0 %v4658
    %4812 = vmatpush2.msra.mxu0 %v4657
    %4813 = vmatprep.subr.mxu0 %v4654
    %4814 = vmatpush2.msra.mxu0 %v4653
    %4815 = vmatprep.subr.mxu0 %v4650
    %4816 = vmatpush2.msra.mxu0 %v4649
    %4817 = vmatprep.subr.mxu0 %v4646
    %4818 = vmatpush2.msra.mxu0 %v4645
    %4819 = vmatprep.subr.mxu0 %v4642
    %4820 = vmatpush2.msra.mxu0 %v4641
    %4821 = vmatprep.subr.mxu0 %v4638
    %4822 = vmatpush2.msra.mxu0 %v4637
    %4823 = vmatprep.subr.mxu0 %v4634
    %4824 = vmatpush2.msra.mxu0 %v4633
    %4825 = vmatprep.mubr.f32.mxu0 %v4566
    %4826 = vmatmul.mubr.f32.gmra.mxu0 %v3332
    %v4827 = vpop.f32.mrf.mxu0
    %v4828 = vadd.f32 %v434, %v4827
    %v4829 = vpop.f32.mrf.mxu0
    %v4830 = vadd.f32 %v438, %v4829
    %4831 = vdwg.mxu0
    %4832 = vmatprep.subr.mxu0 %v4758
    %4833 = vmatpush1.msra.mxu0 %v4757
    %4834 = vmatprep.subr.mxu0 %v4754
    %4835 = vmatpush1.msra.mxu0 %v4753
    %4836 = vmatprep.subr.mxu0 %v4750
    %4837 = vmatpush1.msra.mxu0 %v4749
    %4838 = vmatprep.subr.mxu0 %v4746
    %4839 = vmatpush1.msra.mxu0 %v4745
    %4840 = vmatprep.subr.mxu0 %v4742
    %4841 = vmatpush1.msra.mxu0 %v4741
    %4842 = vmatprep.subr.mxu0 %v4738
    %4843 = vmatpush1.msra.mxu0 %v4737
    %4844 = vmatprep.subr.mxu0 %v4734
    %4845 = vmatpush1.msra.mxu0 %v4733
    %4846 = vmatprep.subr.mxu0 %v4730
    %4847 = vmatpush1.msra.mxu0 %v4729
    %4848 = vmatprep.subr.mxu0 %v4726
    %4849 = vmatpush1.msra.mxu0 %v4725
    %4850 = vmatprep.subr.mxu0 %v4722
    %4851 = vmatpush1.msra.mxu0 %v4721
    %4852 = vmatprep.subr.mxu0 %v4718
    %4853 = vmatpush1.msra.mxu0 %v4717
    %4854 = vmatprep.subr.mxu0 %v4714
    %4855 = vmatpush1.msra.mxu0 %v4713
    %4856 = vmatprep.subr.mxu0 %v4710
    %4857 = vmatpush1.msra.mxu0 %v4709
    %4858 = vmatprep.subr.mxu0 %v4706
    %4859 = vmatpush1.msra.mxu0 %v4705
    %4860 = vmatprep.subr.mxu0 %v4702
    %4861 = vmatpush1.msra.mxu0 %v4701
    %4862 = vmatprep.subr.mxu0 %v4698
    %4863 = vmatpush1.msra.mxu0 %v4697
    %4864 = vmatprep.subr.mxu0 0.0
    %4865 = vmatpush2.msra.mxu0 0.0
    %4866 = vmatprep.subr.mxu0 0.0
    %4867 = vmatpush2.msra.mxu0 0.0
    %4868 = vmatprep.subr.mxu0 0.0
    %4869 = vmatpush2.msra.mxu0 0.0
    %4870 = vmatprep.subr.mxu0 0.0
    %4871 = vmatpush2.msra.mxu0 0.0
    %4872 = vmatprep.subr.mxu0 0.0
    %4873 = vmatpush2.msra.mxu0 0.0
    %4874 = vmatprep.subr.mxu0 0.0
    %4875 = vmatpush2.msra.mxu0 0.0
    %4876 = vmatprep.subr.mxu0 0.0
    %4877 = vmatpush2.msra.mxu0 0.0
    %4878 = vmatprep.subr.mxu0 0.0
    %4879 = vmatpush2.msra.mxu0 0.0
    %4880 = vmatprep.subr.mxu0 0.0
    %4881 = vmatpush2.msra.mxu0 0.0
    %4882 = vmatprep.subr.mxu0 0.0
    %4883 = vmatpush2.msra.mxu0 0.0
    %4884 = vmatprep.subr.mxu0 0.0
    %4885 = vmatpush2.msra.mxu0 0.0
    %4886 = vmatprep.subr.mxu0 0.0
    %4887 = vmatpush2.msra.mxu0 0.0
    %4888 = vmatprep.subr.mxu0 0.0
    %4889 = vmatpush2.msra.mxu0 0.0
    %4890 = vmatprep.subr.mxu0 0.0
    %4891 = vmatpush2.msra.mxu0 0.0
    %4892 = vmatprep.subr.mxu0 0.0
    %4893 = vmatpush2.msra.mxu0 0.0
    %4894 = vmatprep.subr.mxu0 0.0
    %4895 = vmatpush2.msra.mxu0 0.0
    %4896 = vmatprep.mubr.f32.mxu0 0.0
    %4897 = vmatmul.mubr.f32.gmra.mxu0 %v2723
    %v4898 = vpop.f32.mrf.mxu0
    %v4899 = vadd.f32 %v4828, %v4898
    %v4900 = vpop.f32.mrf.mxu0
    %v4901 = vadd.f32 %v4830, %v4900
    %4902 = vdwg.mxu0
    %4903 = vmatprep.subr.mxu0 %v4632
    %4904 = vmatpush1.msra.mxu0 %v4631
    %4905 = vmatprep.subr.mxu0 %v4628
    %4906 = vmatpush1.msra.mxu0 %v4627
    %4907 = vmatprep.subr.mxu0 %v4624
    %4908 = vmatpush1.msra.mxu0 %v4623
    %4909 = vmatprep.subr.mxu0 %v4620
    %4910 = vmatpush1.msra.mxu0 %v4619
    %4911 = vmatprep.subr.mxu0 %v4616
    %4912 = vmatpush1.msra.mxu0 %v4615
    %4913 = vmatprep.subr.mxu0 %v4612
    %4914 = vmatpush1.msra.mxu0 %v4611
    %4915 = vmatprep.subr.mxu0 %v4608
    %4916 = vmatpush1.msra.mxu0 %v4607
    %4917 = vmatprep.subr.mxu0 %v4604
    %4918 = vmatpush1.msra.mxu0 %v4603
    %4919 = vmatprep.subr.mxu0 %v4600
    %4920 = vmatpush1.msra.mxu0 %v4599
    %4921 = vmatprep.subr.mxu0 %v4596
    %4922 = vmatpush1.msra.mxu0 %v4595
    %4923 = vmatprep.subr.mxu0 %v4592
    %4924 = vmatpush1.msra.mxu0 %v4591
    %4925 = vmatprep.subr.mxu0 %v4588
    %4926 = vmatpush1.msra.mxu0 %v4587
    %4927 = vmatprep.subr.mxu0 %v4584
    %4928 = vmatpush1.msra.mxu0 %v4583
    %4929 = vmatprep.subr.mxu0 %v4580
    %4930 = vmatpush1.msra.mxu0 %v4579
    %4931 = vmatprep.subr.mxu0 %v4576
    %4932 = vmatpush1.msra.mxu0 %v4575
    %4933 = vmatprep.subr.mxu0 %v4572
    %4934 = vmatpush1.msra.mxu0 %v4571
    %4935 = vmatprep.subr.mxu0 %v4696
    %4936 = vmatpush2.msra.mxu0 %v4695
    %4937 = vmatprep.subr.mxu0 %v4692
    %4938 = vmatpush2.msra.mxu0 %v4691
    %4939 = vmatprep.subr.mxu0 %v4688
    %4940 = vmatpush2.msra.mxu0 %v4687
    %4941 = vmatprep.subr.mxu0 %v4684
    %4942 = vmatpush2.msra.mxu0 %v4683
    %4943 = vmatprep.subr.mxu0 %v4680
    %4944 = vmatpush2.msra.mxu0 %v4679
    %4945 = vmatprep.subr.mxu0 %v4676
    %4946 = vmatpush2.msra.mxu0 %v4675
    %4947 = vmatprep.subr.mxu0 %v4672
    %4948 = vmatpush2.msra.mxu0 %v4671
    %4949 = vmatprep.subr.mxu0 %v4668
    %4950 = vmatpush2.msra.mxu0 %v4667
    %4951 = vmatprep.subr.mxu0 %v4664
    %4952 = vmatpush2.msra.mxu0 %v4663
    %4953 = vmatprep.subr.mxu0 %v4660
    %4954 = vmatpush2.msra.mxu0 %v4659
    %4955 = vmatprep.subr.mxu0 %v4656
    %4956 = vmatpush2.msra.mxu0 %v4655
    %4957 = vmatprep.subr.mxu0 %v4652
    %4958 = vmatpush2.msra.mxu0 %v4651
    %4959 = vmatprep.subr.mxu0 %v4648
    %4960 = vmatpush2.msra.mxu0 %v4647
    %4961 = vmatprep.subr.mxu0 %v4644
    %4962 = vmatpush2.msra.mxu0 %v4643
    %4963 = vmatprep.subr.mxu0 %v4640
    %4964 = vmatpush2.msra.mxu0 %v4639
    %4965 = vmatprep.subr.mxu0 %v4636
    %4966 = vmatpush2.msra.mxu0 %v4635
    %4967 = vmatprep.mubr.f32.mxu0 %v4566
    %4968 = vmatmul.mubr.f32.gmra.mxu0 %v3332
    %v4969 = vpop.f32.mrf.mxu0
    %v4970 = vadd.f32 %v442, %v4969
    %v4971 = vpop.f32.mrf.mxu0
    %v4972 = vadd.f32 %v446, %v4971
    %4973 = vdwg.mxu0
    %4974 = vmatprep.subr.mxu0 %v4760
    %4975 = vmatpush1.msra.mxu0 %v4759
    %4976 = vmatprep.subr.mxu0 %v4756
    %4977 = vmatpush1.msra.mxu0 %v4755
    %4978 = vmatprep.subr.mxu0 %v4752
    %4979 = vmatpush1.msra.mxu0 %v4751
    %4980 = vmatprep.subr.mxu0 %v4748
    %4981 = vmatpush1.msra.mxu0 %v4747
    %4982 = vmatprep.subr.mxu0 %v4744
    %4983 = vmatpush1.msra.mxu0 %v4743
    %4984 = vmatprep.subr.mxu0 %v4740
    %4985 = vmatpush1.msra.mxu0 %v4739
    %4986 = vmatprep.subr.mxu0 %v4736
    %4987 = vmatpush1.msra.mxu0 %v4735
    %4988 = vmatprep.subr.mxu0 %v4732
    %4989 = vmatpush1.msra.mxu0 %v4731
    %4990 = vmatprep.subr.mxu0 %v4728
    %4991 = vmatpush1.msra.mxu0 %v4727
    %4992 = vmatprep.subr.mxu0 %v4724
    %4993 = vmatpush1.msra.mxu0 %v4723
    %4994 = vmatprep.subr.mxu0 %v4720
    %4995 = vmatpush1.msra.mxu0 %v4719
    %4996 = vmatprep.subr.mxu0 %v4716
    %4997 = vmatpush1.msra.mxu0 %v4715
    %4998 = vmatprep.subr.mxu0 %v4712
    %4999 = vmatpush1.msra.mxu0 %v4711
    %5000 = vmatprep.subr.mxu0 %v4708
    %5001 = vmatpush1.msra.mxu0 %v4707
    %5002 = vmatprep.subr.mxu0 %v4704
    %5003 = vmatpush1.msra.mxu0 %v4703
    %5004 = vmatprep.subr.mxu0 %v4700
    %5005 = vmatpush1.msra.mxu0 %v4699
    %5006 = vmatprep.subr.mxu0 0.0
    %5007 = vmatpush2.msra.mxu0 0.0
    %5008 = vmatprep.subr.mxu0 0.0
    %5009 = vmatpush2.msra.mxu0 0.0
    %5010 = vmatprep.subr.mxu0 0.0
    %5011 = vmatpush2.msra.mxu0 0.0
    %5012 = vmatprep.subr.mxu0 0.0
    %5013 = vmatpush2.msra.mxu0 0.0
    %5014 = vmatprep.subr.mxu0 0.0
    %5015 = vmatpush2.msra.mxu0 0.0
    %5016 = vmatprep.subr.mxu0 0.0
    %5017 = vmatpush2.msra.mxu0 0.0
    %5018 = vmatprep.subr.mxu0 0.0
    %5019 = vmatpush2.msra.mxu0 0.0
    %5020 = vmatprep.subr.mxu0 0.0
    %5021 = vmatpush2.msra.mxu0 0.0
    %5022 = vmatprep.subr.mxu0 0.0
    %5023 = vmatpush2.msra.mxu0 0.0
    %5024 = vmatprep.subr.mxu0 0.0
    %5025 = vmatpush2.msra.mxu0 0.0
    %5026 = vmatprep.subr.mxu0 0.0
    %5027 = vmatpush2.msra.mxu0 0.0
    %5028 = vmatprep.subr.mxu0 0.0
    %5029 = vmatpush2.msra.mxu0 0.0
    %5030 = vmatprep.subr.mxu0 0.0
    %5031 = vmatpush2.msra.mxu0 0.0
    %5032 = vmatprep.subr.mxu0 0.0
    %5033 = vmatpush2.msra.mxu0 0.0
    %5034 = vmatprep.subr.mxu0 0.0
    %5035 = vmatpush2.msra.mxu0 0.0
    %5036 = vmatprep.subr.mxu0 0.0
    %5037 = vmatpush2.msra.mxu0 0.0
    %5038 = vmatprep.mubr.f32.mxu0 0.0
    %5039 = vmatmul.mubr.f32.gmra.mxu0 %v2723
    %v5040 = vpop.f32.mrf.mxu0
    %v5041 = vadd.f32 %v4970, %v5040
    %v5042 = vpop.f32.mrf.mxu0
    %v5043 = vadd.f32 %v4972, %v5042
    %5044 = vdwg.mxu0
    %v5045 = vxor.u32 %v4899, 2147483648
    %v5046 = vmul.f32 %v5045, 1.442695
    %v5047 = vpow.pop %v5046
    %v5048 = vadd.f32 %v5047, 1.0
    %v5049 = vrcp.pop %v5048
    %v5050 = vmul.f32 1.0, %v5049
    %v5051 = vxor.u32 %v4901, 2147483648
    %v5052 = vmul.f32 %v5051, 1.442695
    %v5053 = vpow.pop %v5052
    %v5054 = vadd.f32 %v5053, 1.0
    %v5055 = vrcp.pop %v5054
    %v5056 = vmul.f32 1.0, %v5055
    %v5057 = vtanh.pop %v5041
    %v5058 = vxor.u32 %v5043, 2147483648
    %v5059 = vmul.f32 %v5058, 1.442695
    %v5060 = vpow.pop %v5059
    %v5061 = vadd.f32 %v5060, 1.0
    %v5062 = vrcp.pop %v5061
    %v5063 = vmul.f32 1.0, %v5062
    %v5064 = vmul.f32 %v5056, %v2721
    %v5065 = vmul.f32 %v5050, %v5057
    %v5066 = vadd.f32 %v5064, %v5065
    %v5067 = vtanh.pop %v5066
    %v5068 = vmul.f32 %v5063, %v5067
    %v5069 = vld [vmem:[%s12] sm:$0xff]
    %v5070 = vld [vmem:[%s12 + $0x8] sm:$0xff]
    %v5071 = vld [vmem:[%s12 + $0x10] sm:$0xff]
    %v5072 = vld [vmem:[%s12 + $0x18] sm:$0xff]
    %v5073 = vld [vmem:[%s12 + $0x20] sm:$0xff]
    %v5074 = vld [vmem:[%s12 + $0x28] sm:$0xff]
    %v5075 = vld [vmem:[%s12 + $0x30] sm:$0xff]
    %v5076 = vld [vmem:[%s12 + $0x38] sm:$0xff]
    %v5077 = vld [vmem:[%s12 + $0x40] sm:$0xff]
    %v5078 = vld [vmem:[%s12 + $0x48] sm:$0xff]
    %v5079 = vld [vmem:[%s12 + $0x50] sm:$0xff]
    %v5080 = vld [vmem:[%s12 + $0x58] sm:$0xff]
    %v5081 = vld [vmem:[%s12 + $0x60] sm:$0xff]
    %v5082 = vld [vmem:[%s12 + $0x68] sm:$0xff]
    %v5083 = vld [vmem:[%s12 + $0x70] sm:$0xff]
    %v5084 = vld [vmem:[%s12 + $0x78] sm:$0xff]
    %v5085 = vld [vmem:[%s12 + $0x80] sm:$0xff]
    %v5086 = vld [vmem:[%s12 + $0x88] sm:$0xff]
    %v5087 = vld [vmem:[%s12 + $0x90] sm:$0xff]
    %v5088 = vld [vmem:[%s12 + $0x98] sm:$0xff]
    %v5089 = vld [vmem:[%s12 + $0xa0] sm:$0xff]
    %v5090 = vld [vmem:[%s12 + $0xa8] sm:$0xff]
    %v5091 = vld [vmem:[%s12 + $0xb0] sm:$0xff]
    %v5092 = vld [vmem:[%s12 + $0xb8] sm:$0xff]
    %v5093 = vld [vmem:[%s12 + $0xc0] sm:$0xff]
    %v5094 = vld [vmem:[%s12 + $0xc8] sm:$0xff]
    %v5095 = vld [vmem:[%s12 + $0xd0] sm:$0xff]
    %v5096 = vld [vmem:[%s12 + $0xd8] sm:$0xff]
    %v5097 = vld [vmem:[%s12 + $0xe0] sm:$0xff]
    %v5098 = vld [vmem:[%s12 + $0xe8] sm:$0xff]
    %v5099 = vld [vmem:[%s12 + $0xf0] sm:$0xff]
    %v5100 = vld [vmem:[%s12 + $0xf8] sm:$0xff]
    %5101 = vmatprep.subr.mxu0 0.0
    %5102 = vmatpush1.msra.mxu0 %v5084
    %5103 = vmatprep.subr.mxu0 0.0
    %5104 = vmatpush1.msra.mxu0 %v5083
    %5105 = vmatprep.subr.mxu0 0.0
    %5106 = vmatpush1.msra.mxu0 %v5082
    %5107 = vmatprep.subr.mxu0 0.0
    %5108 = vmatpush1.msra.mxu0 %v5081
    %5109 = vmatprep.subr.mxu0 0.0
    %5110 = vmatpush1.msra.mxu0 %v5080
    %5111 = vmatprep.subr.mxu0 0.0
    %5112 = vmatpush1.msra.mxu0 %v5079
    %5113 = vmatprep.subr.mxu0 0.0
    %5114 = vmatpush1.msra.mxu0 %v5078
    %5115 = vmatprep.subr.mxu0 0.0
    %5116 = vmatpush1.msra.mxu0 %v5077
    %5117 = vmatprep.subr.mxu0 0.0
    %5118 = vmatpush1.msra.mxu0 %v5076
    %5119 = vmatprep.subr.mxu0 0.0
    %5120 = vmatpush1.msra.mxu0 %v5075
    %5121 = vmatprep.subr.mxu0 0.0
    %5122 = vmatpush1.msra.mxu0 %v5074
    %5123 = vmatprep.subr.mxu0 0.0
    %5124 = vmatpush1.msra.mxu0 %v5073
    %5125 = vmatprep.subr.mxu0 0.0
    %5126 = vmatpush1.msra.mxu0 %v5072
    %5127 = vmatprep.subr.mxu0 0.0
    %5128 = vmatpush1.msra.mxu0 %v5071
    %5129 = vmatprep.subr.mxu0 0.0
    %5130 = vmatpush1.msra.mxu0 %v5070
    %5131 = vmatprep.subr.mxu0 0.0
    %5132 = vmatpush1.msra.mxu0 %v5069
    %5133 = vmatprep.subr.mxu0 0.0
    %5134 = vmatpush2.msra.mxu0 %v5100
    %5135 = vmatprep.subr.mxu0 0.0
    %5136 = vmatpush2.msra.mxu0 %v5099
    %5137 = vmatprep.subr.mxu0 0.0
    %5138 = vmatpush2.msra.mxu0 %v5098
    %5139 = vmatprep.subr.mxu0 0.0
    %5140 = vmatpush2.msra.mxu0 %v5097
    %5141 = vmatprep.subr.mxu0 0.0
    %5142 = vmatpush2.msra.mxu0 %v5096
    %5143 = vmatprep.subr.mxu0 0.0
    %5144 = vmatpush2.msra.mxu0 %v5095
    %5145 = vmatprep.subr.mxu0 0.0
    %5146 = vmatpush2.msra.mxu0 %v5094
    %5147 = vmatprep.subr.mxu0 0.0
    %5148 = vmatpush2.msra.mxu0 %v5093
    %5149 = vmatprep.subr.mxu0 0.0
    %5150 = vmatpush2.msra.mxu0 %v5092
    %5151 = vmatprep.subr.mxu0 0.0
    %5152 = vmatpush2.msra.mxu0 %v5091
    %5153 = vmatprep.subr.mxu0 0.0
    %5154 = vmatpush2.msra.mxu0 %v5090
    %5155 = vmatprep.subr.mxu0 0.0
    %5156 = vmatpush2.msra.mxu0 %v5089
    %5157 = vmatprep.subr.mxu0 0.0
    %5158 = vmatpush2.msra.mxu0 %v5088
    %5159 = vmatprep.subr.mxu0 0.0
    %5160 = vmatpush2.msra.mxu0 %v5087
    %5161 = vmatprep.subr.mxu0 0.0
    %5162 = vmatpush2.msra.mxu0 %v5086
    %5163 = vmatprep.subr.mxu0 0.0
    %5164 = vmatpush2.msra.mxu0 %v5085
    %5165 = vmatprep.mubr.f32.mxu0 %v4566
    %5166 = vmatmul.mubr.f32.gmra.mxu0 %v5068
    %v5167 = vpop.f32.mrf.mxu0
    %v5168 = vadd.f32 %v456, %v5167
    %v5169 = vpop.f32.mrf.mxu0
    %5170 = vdwg.mxu0
    %v5171 = vsel %vm2826, %v5168, 0.0
    %v5172 = vsel %vm1075, %v5171, %v4286
    %v5173 = vsel %vm2139, %v5172, 0.0
    %s5174 = scalar_lea.vmem [#allocation14], 8
    %5175 = vst [vmem:[%s5174] sm:$0xff] %v5173
    %s5176 = scalar_lea.vmem [#allocation2], 16
    %v5177 = vld [vmem:[%s5176] sm:$0xff]
    %v5178 = vld [vmem:[#allocation9] sm:$0xff]
    %v5179 = vld [vmem:[#allocation9 + $0x8] sm:$0xff]
    %v5180 = vld [vmem:[#allocation9 + $0x10] sm:$0xff]
    %v5181 = vld [vmem:[#allocation9 + $0x18] sm:$0xff]
    %v5182 = vld [vmem:[#allocation9 + $0x20] sm:$0xff]
    %v5183 = vld [vmem:[#allocation9 + $0x28] sm:$0xff]
    %v5184 = vld [vmem:[#allocation9 + $0x30] sm:$0xff]
    %v5185 = vld [vmem:[#allocation9 + $0x38] sm:$0xff]
    %v5186 = vld [vmem:[#allocation9 + $0x40] sm:$0xff]
    %v5187 = vld [vmem:[#allocation9 + $0x48] sm:$0xff]
    %v5188 = vld [vmem:[#allocation9 + $0x50] sm:$0xff]
    %v5189 = vld [vmem:[#allocation9 + $0x58] sm:$0xff]
    %v5190 = vld [vmem:[#allocation9 + $0x60] sm:$0xff]
    %v5191 = vld [vmem:[#allocation9 + $0x68] sm:$0xff]
    %v5192 = vld [vmem:[#allocation9 + $0x70] sm:$0xff]
    %v5193 = vld [vmem:[#allocation9 + $0x78] sm:$0xff]
    %v5194 = vld [vmem:[#allocation9 + $0x80] sm:$0xff]
    %v5195 = vld [vmem:[#allocation9 + $0x88] sm:$0xff]
    %v5196 = vld [vmem:[#allocation9 + $0x90] sm:$0xff]
    %v5197 = vld [vmem:[#allocation9 + $0x98] sm:$0xff]
    %v5198 = vld [vmem:[#allocation9 + $0xa0] sm:$0xff]
    %v5199 = vld [vmem:[#allocation9 + $0xa8] sm:$0xff]
    %v5200 = vld [vmem:[#allocation9 + $0xb0] sm:$0xff]
    %v5201 = vld [vmem:[#allocation9 + $0xb8] sm:$0xff]
    %v5202 = vld [vmem:[#allocation9 + $0xc0] sm:$0xff]
    %v5203 = vld [vmem:[#allocation9 + $0xc8] sm:$0xff]
    %v5204 = vld [vmem:[#allocation9 + $0xd0] sm:$0xff]
    %v5205 = vld [vmem:[#allocation9 + $0xd8] sm:$0xff]
    %v5206 = vld [vmem:[#allocation9 + $0xe0] sm:$0xff]
    %v5207 = vld [vmem:[#allocation9 + $0xe8] sm:$0xff]
    %v5208 = vld [vmem:[#allocation9 + $0xf0] sm:$0xff]
    %v5209 = vld [vmem:[#allocation9 + $0xf8] sm:$0xff]
    %v5210 = vld [vmem:[#allocation9 + $0x100] sm:$0xff]
    %v5211 = vld [vmem:[#allocation9 + $0x108] sm:$0xff]
    %v5212 = vld [vmem:[#allocation9 + $0x110] sm:$0xff]
    %v5213 = vld [vmem:[#allocation9 + $0x118] sm:$0xff]
    %v5214 = vld [vmem:[#allocation9 + $0x120] sm:$0xff]
    %v5215 = vld [vmem:[#allocation9 + $0x128] sm:$0xff]
    %v5216 = vld [vmem:[#allocation9 + $0x130] sm:$0xff]
    %v5217 = vld [vmem:[#allocation9 + $0x138] sm:$0xff]
    %v5218 = vld [vmem:[#allocation9 + $0x140] sm:$0xff]
    %v5219 = vld [vmem:[#allocation9 + $0x148] sm:$0xff]
    %v5220 = vld [vmem:[#allocation9 + $0x150] sm:$0xff]
    %v5221 = vld [vmem:[#allocation9 + $0x158] sm:$0xff]
    %v5222 = vld [vmem:[#allocation9 + $0x160] sm:$0xff]
    %v5223 = vld [vmem:[#allocation9 + $0x168] sm:$0xff]
    %v5224 = vld [vmem:[#allocation9 + $0x170] sm:$0xff]
    %v5225 = vld [vmem:[#allocation9 + $0x178] sm:$0xff]
    %v5226 = vld [vmem:[#allocation9 + $0x180] sm:$0xff]
    %v5227 = vld [vmem:[#allocation9 + $0x188] sm:$0xff]
    %v5228 = vld [vmem:[#allocation9 + $0x190] sm:$0xff]
    %v5229 = vld [vmem:[#allocation9 + $0x198] sm:$0xff]
    %v5230 = vld [vmem:[#allocation9 + $0x1a0] sm:$0xff]
    %v5231 = vld [vmem:[#allocation9 + $0x1a8] sm:$0xff]
    %v5232 = vld [vmem:[#allocation9 + $0x1b0] sm:$0xff]
    %v5233 = vld [vmem:[#allocation9 + $0x1b8] sm:$0xff]
    %v5234 = vld [vmem:[#allocation9 + $0x1c0] sm:$0xff]
    %v5235 = vld [vmem:[#allocation9 + $0x1c8] sm:$0xff]
    %v5236 = vld [vmem:[#allocation9 + $0x1d0] sm:$0xff]
    %v5237 = vld [vmem:[#allocation9 + $0x1d8] sm:$0xff]
    %v5238 = vld [vmem:[#allocation9 + $0x1e0] sm:$0xff]
    %v5239 = vld [vmem:[#allocation9 + $0x1e8] sm:$0xff]
    %v5240 = vld [vmem:[#allocation9 + $0x1f0] sm:$0xff]
    %v5241 = vld [vmem:[#allocation9 + $0x1f8] sm:$0xff]
    %v5242 = vld [vmem:[#allocation9 + $0x200] sm:$0xff]
    %v5243 = vld [vmem:[#allocation9 + $0x208] sm:$0xff]
    %v5244 = vld [vmem:[#allocation9 + $0x210] sm:$0xff]
    %v5245 = vld [vmem:[#allocation9 + $0x218] sm:$0xff]
    %v5246 = vld [vmem:[#allocation9 + $0x220] sm:$0xff]
    %v5247 = vld [vmem:[#allocation9 + $0x228] sm:$0xff]
    %v5248 = vld [vmem:[#allocation9 + $0x230] sm:$0xff]
    %v5249 = vld [vmem:[#allocation9 + $0x238] sm:$0xff]
    %v5250 = vld [vmem:[#allocation9 + $0x240] sm:$0xff]
    %v5251 = vld [vmem:[#allocation9 + $0x248] sm:$0xff]
    %v5252 = vld [vmem:[#allocation9 + $0x250] sm:$0xff]
    %v5253 = vld [vmem:[#allocation9 + $0x258] sm:$0xff]
    %v5254 = vld [vmem:[#allocation9 + $0x260] sm:$0xff]
    %v5255 = vld [vmem:[#allocation9 + $0x268] sm:$0xff]
    %v5256 = vld [vmem:[#allocation9 + $0x270] sm:$0xff]
    %v5257 = vld [vmem:[#allocation9 + $0x278] sm:$0xff]
    %v5258 = vld [vmem:[#allocation9 + $0x280] sm:$0xff]
    %v5259 = vld [vmem:[#allocation9 + $0x288] sm:$0xff]
    %v5260 = vld [vmem:[#allocation9 + $0x290] sm:$0xff]
    %v5261 = vld [vmem:[#allocation9 + $0x298] sm:$0xff]
    %v5262 = vld [vmem:[#allocation9 + $0x2a0] sm:$0xff]
    %v5263 = vld [vmem:[#allocation9 + $0x2a8] sm:$0xff]
    %v5264 = vld [vmem:[#allocation9 + $0x2b0] sm:$0xff]
    %v5265 = vld [vmem:[#allocation9 + $0x2b8] sm:$0xff]
    %v5266 = vld [vmem:[#allocation9 + $0x2c0] sm:$0xff]
    %v5267 = vld [vmem:[#allocation9 + $0x2c8] sm:$0xff]
    %v5268 = vld [vmem:[#allocation9 + $0x2d0] sm:$0xff]
    %v5269 = vld [vmem:[#allocation9 + $0x2d8] sm:$0xff]
    %v5270 = vld [vmem:[#allocation9 + $0x2e0] sm:$0xff]
    %v5271 = vld [vmem:[#allocation9 + $0x2e8] sm:$0xff]
    %v5272 = vld [vmem:[#allocation9 + $0x2f0] sm:$0xff]
    %v5273 = vld [vmem:[#allocation9 + $0x2f8] sm:$0xff]
    %v5274 = vld [vmem:[#allocation9 + $0x300] sm:$0xff]
    %v5275 = vld [vmem:[#allocation9 + $0x308] sm:$0xff]
    %v5276 = vld [vmem:[#allocation9 + $0x310] sm:$0xff]
    %v5277 = vld [vmem:[#allocation9 + $0x318] sm:$0xff]
    %v5278 = vld [vmem:[#allocation9 + $0x320] sm:$0xff]
    %v5279 = vld [vmem:[#allocation9 + $0x328] sm:$0xff]
    %v5280 = vld [vmem:[#allocation9 + $0x330] sm:$0xff]
    %v5281 = vld [vmem:[#allocation9 + $0x338] sm:$0xff]
    %v5282 = vld [vmem:[#allocation9 + $0x340] sm:$0xff]
    %v5283 = vld [vmem:[#allocation9 + $0x348] sm:$0xff]
    %v5284 = vld [vmem:[#allocation9 + $0x350] sm:$0xff]
    %v5285 = vld [vmem:[#allocation9 + $0x358] sm:$0xff]
    %v5286 = vld [vmem:[#allocation9 + $0x360] sm:$0xff]
    %v5287 = vld [vmem:[#allocation9 + $0x368] sm:$0xff]
    %v5288 = vld [vmem:[#allocation9 + $0x370] sm:$0xff]
    %v5289 = vld [vmem:[#allocation9 + $0x378] sm:$0xff]
    %v5290 = vld [vmem:[#allocation9 + $0x380] sm:$0xff]
    %v5291 = vld [vmem:[#allocation9 + $0x388] sm:$0xff]
    %v5292 = vld [vmem:[#allocation9 + $0x390] sm:$0xff]
    %v5293 = vld [vmem:[#allocation9 + $0x398] sm:$0xff]
    %v5294 = vld [vmem:[#allocation9 + $0x3a0] sm:$0xff]
    %v5295 = vld [vmem:[#allocation9 + $0x3a8] sm:$0xff]
    %v5296 = vld [vmem:[#allocation9 + $0x3b0] sm:$0xff]
    %v5297 = vld [vmem:[#allocation9 + $0x3b8] sm:$0xff]
    %v5298 = vld [vmem:[#allocation9 + $0x3c0] sm:$0xff]
    %v5299 = vld [vmem:[#allocation9 + $0x3c8] sm:$0xff]
    %v5300 = vld [vmem:[#allocation9 + $0x3d0] sm:$0xff]
    %v5301 = vld [vmem:[#allocation9 + $0x3d8] sm:$0xff]
    %v5302 = vld [vmem:[#allocation9 + $0x3e0] sm:$0xff]
    %v5303 = vld [vmem:[#allocation9 + $0x3e8] sm:$0xff]
    %v5304 = vld [vmem:[#allocation9 + $0x3f0] sm:$0xff]
    %v5305 = vld [vmem:[#allocation9 + $0x3f8] sm:$0xff]
    %v5306 = vld [vmem:[#allocation9 + $0x400] sm:$0xff]
    %v5307 = vld [vmem:[#allocation9 + $0x408] sm:$0xff]
    %v5308 = vld [vmem:[#allocation9 + $0x410] sm:$0xff]
    %v5309 = vld [vmem:[#allocation9 + $0x418] sm:$0xff]
    %v5310 = vld [vmem:[#allocation9 + $0x420] sm:$0xff]
    %v5311 = vld [vmem:[#allocation9 + $0x428] sm:$0xff]
    %v5312 = vld [vmem:[#allocation9 + $0x430] sm:$0xff]
    %v5313 = vld [vmem:[#allocation9 + $0x438] sm:$0xff]
    %v5314 = vld [vmem:[#allocation9 + $0x440] sm:$0xff]
    %v5315 = vld [vmem:[#allocation9 + $0x448] sm:$0xff]
    %v5316 = vld [vmem:[#allocation9 + $0x450] sm:$0xff]
    %v5317 = vld [vmem:[#allocation9 + $0x458] sm:$0xff]
    %v5318 = vld [vmem:[#allocation9 + $0x460] sm:$0xff]
    %v5319 = vld [vmem:[#allocation9 + $0x468] sm:$0xff]
    %v5320 = vld [vmem:[#allocation9 + $0x470] sm:$0xff]
    %v5321 = vld [vmem:[#allocation9 + $0x478] sm:$0xff]
    %v5322 = vld [vmem:[#allocation9 + $0x480] sm:$0xff]
    %v5323 = vld [vmem:[#allocation9 + $0x488] sm:$0xff]
    %v5324 = vld [vmem:[#allocation9 + $0x490] sm:$0xff]
    %v5325 = vld [vmem:[#allocation9 + $0x498] sm:$0xff]
    %v5326 = vld [vmem:[#allocation9 + $0x4a0] sm:$0xff]
    %v5327 = vld [vmem:[#allocation9 + $0x4a8] sm:$0xff]
    %v5328 = vld [vmem:[#allocation9 + $0x4b0] sm:$0xff]
    %v5329 = vld [vmem:[#allocation9 + $0x4b8] sm:$0xff]
    %v5330 = vld [vmem:[#allocation9 + $0x4c0] sm:$0xff]
    %v5331 = vld [vmem:[#allocation9 + $0x4c8] sm:$0xff]
    %v5332 = vld [vmem:[#allocation9 + $0x4d0] sm:$0xff]
    %v5333 = vld [vmem:[#allocation9 + $0x4d8] sm:$0xff]
    %v5334 = vld [vmem:[#allocation9 + $0x4e0] sm:$0xff]
    %v5335 = vld [vmem:[#allocation9 + $0x4e8] sm:$0xff]
    %v5336 = vld [vmem:[#allocation9 + $0x4f0] sm:$0xff]
    %v5337 = vld [vmem:[#allocation9 + $0x4f8] sm:$0xff]
    %v5338 = vld [vmem:[#allocation9 + $0x500] sm:$0xff]
    %v5339 = vld [vmem:[#allocation9 + $0x508] sm:$0xff]
    %v5340 = vld [vmem:[#allocation9 + $0x510] sm:$0xff]
    %v5341 = vld [vmem:[#allocation9 + $0x518] sm:$0xff]
    %v5342 = vld [vmem:[#allocation9 + $0x520] sm:$0xff]
    %v5343 = vld [vmem:[#allocation9 + $0x528] sm:$0xff]
    %v5344 = vld [vmem:[#allocation9 + $0x530] sm:$0xff]
    %v5345 = vld [vmem:[#allocation9 + $0x538] sm:$0xff]
    %v5346 = vld [vmem:[#allocation9 + $0x540] sm:$0xff]
    %v5347 = vld [vmem:[#allocation9 + $0x548] sm:$0xff]
    %v5348 = vld [vmem:[#allocation9 + $0x550] sm:$0xff]
    %v5349 = vld [vmem:[#allocation9 + $0x558] sm:$0xff]
    %v5350 = vld [vmem:[#allocation9 + $0x560] sm:$0xff]
    %v5351 = vld [vmem:[#allocation9 + $0x568] sm:$0xff]
    %v5352 = vld [vmem:[#allocation9 + $0x570] sm:$0xff]
    %v5353 = vld [vmem:[#allocation9 + $0x578] sm:$0xff]
    %v5354 = vld [vmem:[#allocation9 + $0x580] sm:$0xff]
    %v5355 = vld [vmem:[#allocation9 + $0x588] sm:$0xff]
    %v5356 = vld [vmem:[#allocation9 + $0x590] sm:$0xff]
    %v5357 = vld [vmem:[#allocation9 + $0x598] sm:$0xff]
    %v5358 = vld [vmem:[#allocation9 + $0x5a0] sm:$0xff]
    %v5359 = vld [vmem:[#allocation9 + $0x5a8] sm:$0xff]
    %v5360 = vld [vmem:[#allocation9 + $0x5b0] sm:$0xff]
    %v5361 = vld [vmem:[#allocation9 + $0x5b8] sm:$0xff]
    %v5362 = vld [vmem:[#allocation9 + $0x5c0] sm:$0xff]
    %v5363 = vld [vmem:[#allocation9 + $0x5c8] sm:$0xff]
    %v5364 = vld [vmem:[#allocation9 + $0x5d0] sm:$0xff]
    %v5365 = vld [vmem:[#allocation9 + $0x5d8] sm:$0xff]
    %v5366 = vld [vmem:[#allocation9 + $0x5e0] sm:$0xff]
    %v5367 = vld [vmem:[#allocation9 + $0x5e8] sm:$0xff]
    %v5368 = vld [vmem:[#allocation9 + $0x5f0] sm:$0xff]
    %v5369 = vld [vmem:[#allocation9 + $0x5f8] sm:$0xff]
    %5370 = vmatprep.subr.mxu0 %v5239
    %5371 = vmatpush1.msra.mxu0 %v5238
    %5372 = vmatprep.subr.mxu0 %v5235
    %5373 = vmatpush1.msra.mxu0 %v5234
    %5374 = vmatprep.subr.mxu0 %v5231
    %5375 = vmatpush1.msra.mxu0 %v5230
    %5376 = vmatprep.subr.mxu0 %v5227
    %5377 = vmatpush1.msra.mxu0 %v5226
    %5378 = vmatprep.subr.mxu0 %v5223
    %5379 = vmatpush1.msra.mxu0 %v5222
    %5380 = vmatprep.subr.mxu0 %v5219
    %5381 = vmatpush1.msra.mxu0 %v5218
    %5382 = vmatprep.subr.mxu0 %v5215
    %5383 = vmatpush1.msra.mxu0 %v5214
    %5384 = vmatprep.subr.mxu0 %v5211
    %5385 = vmatpush1.msra.mxu0 %v5210
    %5386 = vmatprep.subr.mxu0 %v5207
    %5387 = vmatpush1.msra.mxu0 %v5206
    %5388 = vmatprep.subr.mxu0 %v5203
    %5389 = vmatpush1.msra.mxu0 %v5202
    %5390 = vmatprep.subr.mxu0 %v5199
    %5391 = vmatpush1.msra.mxu0 %v5198
    %5392 = vmatprep.subr.mxu0 %v5195
    %5393 = vmatpush1.msra.mxu0 %v5194
    %5394 = vmatprep.subr.mxu0 %v5191
    %5395 = vmatpush1.msra.mxu0 %v5190
    %5396 = vmatprep.subr.mxu0 %v5187
    %5397 = vmatpush1.msra.mxu0 %v5186
    %5398 = vmatprep.subr.mxu0 %v5183
    %5399 = vmatpush1.msra.mxu0 %v5182
    %5400 = vmatprep.subr.mxu0 %v5179
    %5401 = vmatpush1.msra.mxu0 %v5178
    %5402 = vmatprep.subr.mxu0 %v5303
    %5403 = vmatpush2.msra.mxu0 %v5302
    %5404 = vmatprep.subr.mxu0 %v5299
    %5405 = vmatpush2.msra.mxu0 %v5298
    %5406 = vmatprep.subr.mxu0 %v5295
    %5407 = vmatpush2.msra.mxu0 %v5294
    %5408 = vmatprep.subr.mxu0 %v5291
    %5409 = vmatpush2.msra.mxu0 %v5290
    %5410 = vmatprep.subr.mxu0 %v5287
    %5411 = vmatpush2.msra.mxu0 %v5286
    %5412 = vmatprep.subr.mxu0 %v5283
    %5413 = vmatpush2.msra.mxu0 %v5282
    %5414 = vmatprep.subr.mxu0 %v5279
    %5415 = vmatpush2.msra.mxu0 %v5278
    %5416 = vmatprep.subr.mxu0 %v5275
    %5417 = vmatpush2.msra.mxu0 %v5274
    %5418 = vmatprep.subr.mxu0 %v5271
    %5419 = vmatpush2.msra.mxu0 %v5270
    %5420 = vmatprep.subr.mxu0 %v5267
    %5421 = vmatpush2.msra.mxu0 %v5266
    %5422 = vmatprep.subr.mxu0 %v5263
    %5423 = vmatpush2.msra.mxu0 %v5262
    %5424 = vmatprep.subr.mxu0 %v5259
    %5425 = vmatpush2.msra.mxu0 %v5258
    %5426 = vmatprep.subr.mxu0 %v5255
    %5427 = vmatpush2.msra.mxu0 %v5254
    %5428 = vmatprep.subr.mxu0 %v5251
    %5429 = vmatpush2.msra.mxu0 %v5250
    %5430 = vmatprep.subr.mxu0 %v5247
    %5431 = vmatpush2.msra.mxu0 %v5246
    %5432 = vmatprep.subr.mxu0 %v5243
    %5433 = vmatpush2.msra.mxu0 %v5242
    %5434 = vmatprep.mubr.f32.mxu0 %v4566
    %5435 = vmatmul.mubr.f32.gmra.mxu0 %v5177
    %v5436 = vpop.f32.mrf.mxu0
    %v5437 = vadd.f32 %v412, %v5436
    %v5438 = vpop.f32.mrf.mxu0
    %v5439 = vadd.f32 %v416, %v5438
    %5440 = vdwg.mxu0
    %5441 = vmatprep.subr.mxu0 %v5367
    %5442 = vmatpush1.msra.mxu0 %v5366
    %5443 = vmatprep.subr.mxu0 %v5363
    %5444 = vmatpush1.msra.mxu0 %v5362
    %5445 = vmatprep.subr.mxu0 %v5359
    %5446 = vmatpush1.msra.mxu0 %v5358
    %5447 = vmatprep.subr.mxu0 %v5355
    %5448 = vmatpush1.msra.mxu0 %v5354
    %5449 = vmatprep.subr.mxu0 %v5351
    %5450 = vmatpush1.msra.mxu0 %v5350
    %5451 = vmatprep.subr.mxu0 %v5347
    %5452 = vmatpush1.msra.mxu0 %v5346
    %5453 = vmatprep.subr.mxu0 %v5343
    %5454 = vmatpush1.msra.mxu0 %v5342
    %5455 = vmatprep.subr.mxu0 %v5339
    %5456 = vmatpush1.msra.mxu0 %v5338
    %5457 = vmatprep.subr.mxu0 %v5335
    %5458 = vmatpush1.msra.mxu0 %v5334
    %5459 = vmatprep.subr.mxu0 %v5331
    %5460 = vmatpush1.msra.mxu0 %v5330
    %5461 = vmatprep.subr.mxu0 %v5327
    %5462 = vmatpush1.msra.mxu0 %v5326
    %5463 = vmatprep.subr.mxu0 %v5323
    %5464 = vmatpush1.msra.mxu0 %v5322
    %5465 = vmatprep.subr.mxu0 %v5319
    %5466 = vmatpush1.msra.mxu0 %v5318
    %5467 = vmatprep.subr.mxu0 %v5315
    %5468 = vmatpush1.msra.mxu0 %v5314
    %5469 = vmatprep.subr.mxu0 %v5311
    %5470 = vmatpush1.msra.mxu0 %v5310
    %5471 = vmatprep.subr.mxu0 %v5307
    %5472 = vmatpush1.msra.mxu0 %v5306
    %5473 = vmatprep.subr.mxu0 0.0
    %5474 = vmatpush2.msra.mxu0 0.0
    %5475 = vmatprep.subr.mxu0 0.0
    %5476 = vmatpush2.msra.mxu0 0.0
    %5477 = vmatprep.subr.mxu0 0.0
    %5478 = vmatpush2.msra.mxu0 0.0
    %5479 = vmatprep.subr.mxu0 0.0
    %5480 = vmatpush2.msra.mxu0 0.0
    %5481 = vmatprep.subr.mxu0 0.0
    %5482 = vmatpush2.msra.mxu0 0.0
    %5483 = vmatprep.subr.mxu0 0.0
    %5484 = vmatpush2.msra.mxu0 0.0
    %5485 = vmatprep.subr.mxu0 0.0
    %5486 = vmatpush2.msra.mxu0 0.0
    %5487 = vmatprep.subr.mxu0 0.0
    %5488 = vmatpush2.msra.mxu0 0.0
    %5489 = vmatprep.subr.mxu0 0.0
    %5490 = vmatpush2.msra.mxu0 0.0
    %5491 = vmatprep.subr.mxu0 0.0
    %5492 = vmatpush2.msra.mxu0 0.0
    %5493 = vmatprep.subr.mxu0 0.0
    %5494 = vmatpush2.msra.mxu0 0.0
    %5495 = vmatprep.subr.mxu0 0.0
    %5496 = vmatpush2.msra.mxu0 0.0
    %5497 = vmatprep.subr.mxu0 0.0
    %5498 = vmatpush2.msra.mxu0 0.0
    %5499 = vmatprep.subr.mxu0 0.0
    %5500 = vmatpush2.msra.mxu0 0.0
    %5501 = vmatprep.subr.mxu0 0.0
    %5502 = vmatpush2.msra.mxu0 0.0
    %5503 = vmatprep.subr.mxu0 0.0
    %5504 = vmatpush2.msra.mxu0 0.0
    %5505 = vmatprep.mubr.f32.mxu0 0.0
    %5506 = vmatmul.mubr.f32.gmra.mxu0 %v3332
    %v5507 = vpop.f32.mrf.mxu0
    %v5508 = vadd.f32 %v5437, %v5507
    %v5509 = vpop.f32.mrf.mxu0
    %v5510 = vadd.f32 %v5439, %v5509
    %5511 = vdwg.mxu0
    %5512 = vmatprep.subr.mxu0 %v5241
    %5513 = vmatpush1.msra.mxu0 %v5240
    %5514 = vmatprep.subr.mxu0 %v5237
    %5515 = vmatpush1.msra.mxu0 %v5236
    %5516 = vmatprep.subr.mxu0 %v5233
    %5517 = vmatpush1.msra.mxu0 %v5232
    %5518 = vmatprep.subr.mxu0 %v5229
    %5519 = vmatpush1.msra.mxu0 %v5228
    %5520 = vmatprep.subr.mxu0 %v5225
    %5521 = vmatpush1.msra.mxu0 %v5224
    %5522 = vmatprep.subr.mxu0 %v5221
    %5523 = vmatpush1.msra.mxu0 %v5220
    %5524 = vmatprep.subr.mxu0 %v5217
    %5525 = vmatpush1.msra.mxu0 %v5216
    %5526 = vmatprep.subr.mxu0 %v5213
    %5527 = vmatpush1.msra.mxu0 %v5212
    %5528 = vmatprep.subr.mxu0 %v5209
    %5529 = vmatpush1.msra.mxu0 %v5208
    %5530 = vmatprep.subr.mxu0 %v5205
    %5531 = vmatpush1.msra.mxu0 %v5204
    %5532 = vmatprep.subr.mxu0 %v5201
    %5533 = vmatpush1.msra.mxu0 %v5200
    %5534 = vmatprep.subr.mxu0 %v5197
    %5535 = vmatpush1.msra.mxu0 %v5196
    %5536 = vmatprep.subr.mxu0 %v5193
    %5537 = vmatpush1.msra.mxu0 %v5192
    %5538 = vmatprep.subr.mxu0 %v5189
    %5539 = vmatpush1.msra.mxu0 %v5188
    %5540 = vmatprep.subr.mxu0 %v5185
    %5541 = vmatpush1.msra.mxu0 %v5184
    %5542 = vmatprep.subr.mxu0 %v5181
    %5543 = vmatpush1.msra.mxu0 %v5180
    %5544 = vmatprep.subr.mxu0 %v5305
    %5545 = vmatpush2.msra.mxu0 %v5304
    %5546 = vmatprep.subr.mxu0 %v5301
    %5547 = vmatpush2.msra.mxu0 %v5300
    %5548 = vmatprep.subr.mxu0 %v5297
    %5549 = vmatpush2.msra.mxu0 %v5296
    %5550 = vmatprep.subr.mxu0 %v5293
    %5551 = vmatpush2.msra.mxu0 %v5292
    %5552 = vmatprep.subr.mxu0 %v5289
    %5553 = vmatpush2.msra.mxu0 %v5288
    %5554 = vmatprep.subr.mxu0 %v5285
    %5555 = vmatpush2.msra.mxu0 %v5284
    %5556 = vmatprep.subr.mxu0 %v5281
    %5557 = vmatpush2.msra.mxu0 %v5280
    %5558 = vmatprep.subr.mxu0 %v5277
    %5559 = vmatpush2.msra.mxu0 %v5276
    %5560 = vmatprep.subr.mxu0 %v5273
    %5561 = vmatpush2.msra.mxu0 %v5272
    %5562 = vmatprep.subr.mxu0 %v5269
    %5563 = vmatpush2.msra.mxu0 %v5268
    %5564 = vmatprep.subr.mxu0 %v5265
    %5565 = vmatpush2.msra.mxu0 %v5264
    %5566 = vmatprep.subr.mxu0 %v5261
    %5567 = vmatpush2.msra.mxu0 %v5260
    %5568 = vmatprep.subr.mxu0 %v5257
    %5569 = vmatpush2.msra.mxu0 %v5256
    %5570 = vmatprep.subr.mxu0 %v5253
    %5571 = vmatpush2.msra.mxu0 %v5252
    %5572 = vmatprep.subr.mxu0 %v5249
    %5573 = vmatpush2.msra.mxu0 %v5248
    %5574 = vmatprep.subr.mxu0 %v5245
    %5575 = vmatpush2.msra.mxu0 %v5244
    %5576 = vmatprep.mubr.f32.mxu0 %v4566
    %5577 = vmatmul.mubr.f32.gmra.mxu0 %v5177
    %v5578 = vpop.f32.mrf.mxu0
    %v5579 = vadd.f32 %v420, %v5578
    %v5580 = vpop.f32.mrf.mxu0
    %v5581 = vadd.f32 %v424, %v5580
    %5582 = vdwg.mxu0
    %5583 = vmatprep.subr.mxu0 %v5369
    %5584 = vmatpush1.msra.mxu0 %v5368
    %5585 = vmatprep.subr.mxu0 %v5365
    %5586 = vmatpush1.msra.mxu0 %v5364
    %5587 = vmatprep.subr.mxu0 %v5361
    %5588 = vmatpush1.msra.mxu0 %v5360
    %5589 = vmatprep.subr.mxu0 %v5357
    %5590 = vmatpush1.msra.mxu0 %v5356
    %5591 = vmatprep.subr.mxu0 %v5353
    %5592 = vmatpush1.msra.mxu0 %v5352
    %5593 = vmatprep.subr.mxu0 %v5349
    %5594 = vmatpush1.msra.mxu0 %v5348
    %5595 = vmatprep.subr.mxu0 %v5345
    %5596 = vmatpush1.msra.mxu0 %v5344
    %5597 = vmatprep.subr.mxu0 %v5341
    %5598 = vmatpush1.msra.mxu0 %v5340
    %5599 = vmatprep.subr.mxu0 %v5337
    %5600 = vmatpush1.msra.mxu0 %v5336
    %5601 = vmatprep.subr.mxu0 %v5333
    %5602 = vmatpush1.msra.mxu0 %v5332
    %5603 = vmatprep.subr.mxu0 %v5329
    %5604 = vmatpush1.msra.mxu0 %v5328
    %5605 = vmatprep.subr.mxu0 %v5325
    %5606 = vmatpush1.msra.mxu0 %v5324
    %5607 = vmatprep.subr.mxu0 %v5321
    %5608 = vmatpush1.msra.mxu0 %v5320
    %5609 = vmatprep.subr.mxu0 %v5317
    %5610 = vmatpush1.msra.mxu0 %v5316
    %5611 = vmatprep.subr.mxu0 %v5313
    %5612 = vmatpush1.msra.mxu0 %v5312
    %5613 = vmatprep.subr.mxu0 %v5309
    %5614 = vmatpush1.msra.mxu0 %v5308
    %5615 = vmatprep.subr.mxu0 0.0
    %5616 = vmatpush2.msra.mxu0 0.0
    %5617 = vmatprep.subr.mxu0 0.0
    %5618 = vmatpush2.msra.mxu0 0.0
    %5619 = vmatprep.subr.mxu0 0.0
    %5620 = vmatpush2.msra.mxu0 0.0
    %5621 = vmatprep.subr.mxu0 0.0
    %5622 = vmatpush2.msra.mxu0 0.0
    %5623 = vmatprep.subr.mxu0 0.0
    %5624 = vmatpush2.msra.mxu0 0.0
    %5625 = vmatprep.subr.mxu0 0.0
    %5626 = vmatpush2.msra.mxu0 0.0
    %5627 = vmatprep.subr.mxu0 0.0
    %5628 = vmatpush2.msra.mxu0 0.0
    %5629 = vmatprep.subr.mxu0 0.0
    %5630 = vmatpush2.msra.mxu0 0.0
    %5631 = vmatprep.subr.mxu0 0.0
    %5632 = vmatpush2.msra.mxu0 0.0
    %5633 = vmatprep.subr.mxu0 0.0
    %5634 = vmatpush2.msra.mxu0 0.0
    %5635 = vmatprep.subr.mxu0 0.0
    %5636 = vmatpush2.msra.mxu0 0.0
    %5637 = vmatprep.subr.mxu0 0.0
    %5638 = vmatpush2.msra.mxu0 0.0
    %5639 = vmatprep.subr.mxu0 0.0
    %5640 = vmatpush2.msra.mxu0 0.0
    %5641 = vmatprep.subr.mxu0 0.0
    %5642 = vmatpush2.msra.mxu0 0.0
    %5643 = vmatprep.subr.mxu0 0.0
    %5644 = vmatpush2.msra.mxu0 0.0
    %5645 = vmatprep.subr.mxu0 0.0
    %5646 = vmatpush2.msra.mxu0 0.0
    %5647 = vmatprep.mubr.f32.mxu0 0.0
    %5648 = vmatmul.mubr.f32.gmra.mxu0 %v3332
    %v5649 = vpop.f32.mrf.mxu0
    %v5650 = vadd.f32 %v5579, %v5649
    %v5651 = vpop.f32.mrf.mxu0
    %v5652 = vadd.f32 %v5581, %v5651
    %5653 = vdwg.mxu0
    %v5654 = vxor.u32 %v5508, 2147483648
    %v5655 = vmul.f32 %v5654, 1.442695
    %v5656 = vpow.pop %v5655
    %v5657 = vadd.f32 %v5656, 1.0
    %v5658 = vrcp.pop %v5657
    %v5659 = vmul.f32 1.0, %v5658
    %v5660 = vxor.u32 %v5510, 2147483648
    %v5661 = vmul.f32 %v5660, 1.442695
    %v5662 = vpow.pop %v5661
    %v5663 = vadd.f32 %v5662, 1.0
    %v5664 = vrcp.pop %v5663
    %v5665 = vmul.f32 1.0, %v5664
    %v5666 = vtanh.pop %v5650
    %v5667 = vxor.u32 %v5652, 2147483648
    %v5668 = vmul.f32 %v5667, 1.442695
    %v5669 = vpow.pop %v5668
    %v5670 = vadd.f32 %v5669, 1.0
    %v5671 = vrcp.pop %v5670
    %v5672 = vmul.f32 1.0, %v5671
    %v5673 = vmul.f32 %v5665, %v3330
    %v5674 = vmul.f32 %v5659, %v5666
    %v5675 = vadd.f32 %v5673, %v5674
    %v5676 = vtanh.pop %v5675
    %v5677 = vmul.f32 %v5672, %v5676
    %v5678 = vld [vmem:[%s9] sm:$0xff]
    %v5679 = vld [vmem:[%s9 + $0x8] sm:$0xff]
    %v5680 = vld [vmem:[%s9 + $0x10] sm:$0xff]
    %v5681 = vld [vmem:[%s9 + $0x18] sm:$0xff]
    %v5682 = vld [vmem:[%s9 + $0x20] sm:$0xff]
    %v5683 = vld [vmem:[%s9 + $0x28] sm:$0xff]
    %v5684 = vld [vmem:[%s9 + $0x30] sm:$0xff]
    %v5685 = vld [vmem:[%s9 + $0x38] sm:$0xff]
    %v5686 = vld [vmem:[%s9 + $0x40] sm:$0xff]
    %v5687 = vld [vmem:[%s9 + $0x48] sm:$0xff]
    %v5688 = vld [vmem:[%s9 + $0x50] sm:$0xff]
    %v5689 = vld [vmem:[%s9 + $0x58] sm:$0xff]
    %v5690 = vld [vmem:[%s9 + $0x60] sm:$0xff]
    %v5691 = vld [vmem:[%s9 + $0x68] sm:$0xff]
    %v5692 = vld [vmem:[%s9 + $0x70] sm:$0xff]
    %v5693 = vld [vmem:[%s9 + $0x78] sm:$0xff]
    %5694 = vmatprep.subr.mxu0 0.0
    %5695 = vmatpush1.msra.mxu0 %v5693
    %5696 = vmatprep.subr.mxu0 0.0
    %5697 = vmatpush1.msra.mxu0 %v5692
    %5698 = vmatprep.subr.mxu0 0.0
    %5699 = vmatpush1.msra.mxu0 %v5691
    %5700 = vmatprep.subr.mxu0 0.0
    %5701 = vmatpush1.msra.mxu0 %v5690
    %5702 = vmatprep.subr.mxu0 0.0
    %5703 = vmatpush1.msra.mxu0 %v5689
    %5704 = vmatprep.subr.mxu0 0.0
    %5705 = vmatpush1.msra.mxu0 %v5688
    %5706 = vmatprep.subr.mxu0 0.0
    %5707 = vmatpush1.msra.mxu0 %v5687
    %5708 = vmatprep.subr.mxu0 0.0
    %5709 = vmatpush1.msra.mxu0 %v5686
    %5710 = vmatprep.subr.mxu0 0.0
    %5711 = vmatpush1.msra.mxu0 %v5685
    %5712 = vmatprep.subr.mxu0 0.0
    %5713 = vmatpush1.msra.mxu0 %v5684
    %5714 = vmatprep.subr.mxu0 0.0
    %5715 = vmatpush1.msra.mxu0 %v5683
    %5716 = vmatprep.subr.mxu0 0.0
    %5717 = vmatpush1.msra.mxu0 %v5682
    %5718 = vmatprep.subr.mxu0 0.0
    %5719 = vmatpush1.msra.mxu0 %v5681
    %5720 = vmatprep.subr.mxu0 0.0
    %5721 = vmatpush1.msra.mxu0 %v5680
    %5722 = vmatprep.subr.mxu0 0.0
    %5723 = vmatpush1.msra.mxu0 %v5679
    %5724 = vmatprep.subr.mxu0 0.0
    %5725 = vmatpush1.msra.mxu0 %v5678
    %5726 = vmatprep.subr.mxu0 0.0
    %5727 = vmatpush2.msra.mxu0 0.0
    %5728 = vmatprep.subr.mxu0 0.0
    %5729 = vmatpush2.msra.mxu0 0.0
    %5730 = vmatprep.subr.mxu0 0.0
    %5731 = vmatpush2.msra.mxu0 0.0
    %5732 = vmatprep.subr.mxu0 0.0
    %5733 = vmatpush2.msra.mxu0 0.0
    %5734 = vmatprep.subr.mxu0 0.0
    %5735 = vmatpush2.msra.mxu0 0.0
    %5736 = vmatprep.subr.mxu0 0.0
    %5737 = vmatpush2.msra.mxu0 0.0
    %5738 = vmatprep.subr.mxu0 0.0
    %5739 = vmatpush2.msra.mxu0 0.0
    %5740 = vmatprep.subr.mxu0 0.0
    %5741 = vmatpush2.msra.mxu0 0.0
    %5742 = vmatprep.subr.mxu0 0.0
    %5743 = vmatpush2.msra.mxu0 0.0
    %5744 = vmatprep.subr.mxu0 0.0
    %5745 = vmatpush2.msra.mxu0 0.0
    %5746 = vmatprep.subr.mxu0 0.0
    %5747 = vmatpush2.msra.mxu0 0.0
    %5748 = vmatprep.subr.mxu0 0.0
    %5749 = vmatpush2.msra.mxu0 0.0
    %5750 = vmatprep.subr.mxu0 0.0
    %5751 = vmatpush2.msra.mxu0 0.0
    %5752 = vmatprep.subr.mxu0 0.0
    %5753 = vmatpush2.msra.mxu0 0.0
    %5754 = vmatprep.subr.mxu0 0.0
    %5755 = vmatpush2.msra.mxu0 0.0
    %5756 = vmatprep.subr.mxu0 0.0
    %5757 = vmatpush2.msra.mxu0 0.0
    %5758 = vmatprep.mubr.f32.mxu0 0.0
    %5759 = vmatmul.mubr.f32.gmra.mxu0 %v5677
    %v5760 = vpop.f32.mrf.mxu0
    %v5761 = vadd.f32 0.0, %v5760
    %v5762 = vpop.f32.mrf.mxu0
    %5763 = vdwg.mxu0
    %5772 = vset.pattern.permute.xlu0 0
    %5773 = vperm.xlu0 %5772, %v4128
    %v5774 = vpop.permute.xlu0 %5773
    %5775 = vset.pattern.permute.xlu0 0
    %5776 = vperm.xlu0 %5775, %v4129
    %v5777 = vpop.permute.xlu0 %5776
    %5778 = vset.pattern.permute.xlu0 0
    %5779 = vperm.xlu0 %5778, %v4130
    %v5780 = vpop.permute.xlu0 %5779
    %5781 = vset.pattern.permute.xlu0 0
    %5782 = vperm.xlu0 %5781, %v4131
    %v5783 = vpop.permute.xlu0 %5782
    %5784 = vset.pattern.permute.xlu0 0
    %5785 = vperm.xlu0 %5784, %v4132
    %v5786 = vpop.permute.xlu0 %5785
    %5787 = vset.pattern.permute.xlu0 0
    %5788 = vperm.xlu0 %5787, %v4133
    %v5789 = vpop.permute.xlu0 %5788
    %5790 = vset.pattern.permute.xlu0 0
    %5791 = vperm.xlu0 %5790, %v4134
    %v5792 = vpop.permute.xlu0 %5791
    %5793 = vset.pattern.permute.xlu0 0
    %5794 = vperm.xlu0 %5793, %v4135
    %v5795 = vpop.permute.xlu0 %5794
    %v5796 = vlaneseq
    %v5797 = vshrl.u32 %v5796, 7
    %v5798 = vsub.s32 %v1850, %v5797
    %v5799 = vrot.slane %v5774, %v5798
    %v5800 = vlaneseq
    %v5801 = vshrl.u32 %v5800, 7
    %v5802 = vsub.s32 %v1850, %v5801
    %v5803 = vrot.slane %v5777, %v5802
    %v5804 = vlaneseq
    %v5805 = vshrl.u32 %v5804, 7
    %v5806 = vsub.s32 %v1850, %v5805
    %v5807 = vrot.slane %v5780, %v5806
    %v5808 = vlaneseq
    %v5809 = vshrl.u32 %v5808, 7
    %v5810 = vsub.s32 %v1850, %v5809
    %v5811 = vrot.slane %v5783, %v5810
    %v5812 = vlaneseq
    %v5813 = vshrl.u32 %v5812, 7
    %v5814 = vsub.s32 %v1850, %v5813
    %v5815 = vrot.slane %v5786, %v5814
    %v5816 = vlaneseq
    %v5817 = vshrl.u32 %v5816, 7
    %v5818 = vsub.s32 %v1850, %v5817
    %v5819 = vrot.slane %v5789, %v5818
    %v5820 = vlaneseq
    %v5821 = vshrl.u32 %v5820, 7
    %v5822 = vsub.s32 %v1850, %v5821
    %v5823 = vrot.slane %v5792, %v5822
    %v5824 = vlaneseq
    %v5825 = vshrl.u32 %v5824, 7
    %v5826 = vsub.s32 %v1850, %v5825
    %v5827 = vrot.slane %v5795, %v5826
    %v5828 = vsel %vm1702, %v5803, %v5799
    %v5829 = vsel %vm1704, %v5807, %v5828
    %v5830 = vsel %vm1706, %v5811, %v5829
    %v5831 = vsel %vm1708, %v5815, %v5830
    %v5832 = vsel %vm1710, %v5819, %v5831
    %v5833 = vsel %vm1712, %v5823, %v5832
    %v5834 = vsel %vm1714, %v5827, %v5833
    %v5836 = vsel %vm136, %v4206, %v5834
    %v5837 = vld [vmem:[#allocation12] sm:$0xff]
    %v5838 = vld [vmem:[#allocation12 + $0x8] sm:$0xff]
    %v5839 = vld [vmem:[#allocation12 + $0x10] sm:$0xff]
    %v5840 = vld [vmem:[#allocation12 + $0x18] sm:$0xff]
    %v5841 = vld [vmem:[#allocation12 + $0x20] sm:$0xff]
    %v5842 = vld [vmem:[#allocation12 + $0x28] sm:$0xff]
    %v5843 = vld [vmem:[#allocation12 + $0x30] sm:$0xff]
    %v5844 = vld [vmem:[#allocation12 + $0x38] sm:$0xff]
    %v5845 = vld [vmem:[#allocation12 + $0x40] sm:$0xff]
    %v5846 = vld [vmem:[#allocation12 + $0x48] sm:$0xff]
    %v5847 = vld [vmem:[#allocation12 + $0x50] sm:$0xff]
    %v5848 = vld [vmem:[#allocation12 + $0x58] sm:$0xff]
    %v5849 = vld [vmem:[#allocation12 + $0x60] sm:$0xff]
    %v5850 = vld [vmem:[#allocation12 + $0x68] sm:$0xff]
    %v5851 = vld [vmem:[#allocation12 + $0x70] sm:$0xff]
    %v5852 = vld [vmem:[#allocation12 + $0x78] sm:$0xff]
    %v5854 = vsel %vm1075, %v5836, 0
    %5856 = vmatprep.subr.mxu0 0.0
    %5857 = vmatpush1.msra.mxu0 0.0
    %5858 = vmatprep.subr.mxu0 0.0
    %5859 = vmatpush1.msra.mxu0 0.0
    %5860 = vmatprep.subr.mxu0 0.0
    %5861 = vmatpush1.msra.mxu0 0.0
    %5862 = vmatprep.subr.mxu0 0.0
    %5863 = vmatpush1.msra.mxu0 0.0
    %5864 = vmatprep.subr.mxu0 0.0
    %5865 = vmatpush1.msra.mxu0 0.0
    %5866 = vmatprep.subr.mxu0 0.0
    %5867 = vmatpush1.msra.mxu0 0.0
    %5868 = vmatprep.subr.mxu0 0.0
    %5869 = vmatpush1.msra.mxu0 0.0
    %5870 = vmatprep.subr.mxu0 0.0
    %5871 = vmatpush1.msra.mxu0 0.0
    %5872 = vmatprep.subr.mxu0 0.0
    %5873 = vmatpush1.msra.mxu0 0.0
    %5874 = vmatprep.subr.mxu0 0.0
    %5875 = vmatpush1.msra.mxu0 0.0
    %5876 = vmatprep.subr.mxu0 0.0
    %5877 = vmatpush1.msra.mxu0 0.0
    %5878 = vmatprep.subr.mxu0 0.0
    %5879 = vmatpush1.msra.mxu0 0.0
    %5880 = vmatprep.subr.mxu0 0.0
    %5881 = vmatpush1.msra.mxu0 0.0
    %5882 = vmatprep.subr.mxu0 0.0
    %5883 = vmatpush1.msra.mxu0 0.0
    %5884 = vmatprep.subr.mxu0 %v5846
    %5885 = vmatpush1.msra.mxu0 %v5845
    %5886 = vmatprep.subr.mxu0 %v5838
    %5887 = vmatpush1.msra.mxu0 %v5837
    %5888 = vmatprep.subr.mxu0 0.0
    %5889 = vmatpush2.msra.mxu0 0.0
    %5890 = vmatprep.subr.mxu0 0.0
    %5891 = vmatpush2.msra.mxu0 0.0
    %5892 = vmatprep.subr.mxu0 0.0
    %5893 = vmatpush2.msra.mxu0 0.0
    %5894 = vmatprep.subr.mxu0 0.0
    %5895 = vmatpush2.msra.mxu0 0.0
    %5896 = vmatprep.subr.mxu0 0.0
    %5897 = vmatpush2.msra.mxu0 0.0
    %5898 = vmatprep.subr.mxu0 0.0
    %5899 = vmatpush2.msra.mxu0 0.0
    %5900 = vmatprep.subr.mxu0 0.0
    %5901 = vmatpush2.msra.mxu0 0.0
    %5902 = vmatprep.subr.mxu0 0.0
    %5903 = vmatpush2.msra.mxu0 0.0
    %5904 = vmatprep.subr.mxu0 0.0
    %5905 = vmatpush2.msra.mxu0 0.0
    %5906 = vmatprep.subr.mxu0 0.0
    %5907 = vmatpush2.msra.mxu0 0.0
    %5908 = vmatprep.subr.mxu0 0.0
    %5909 = vmatpush2.msra.mxu0 0.0
    %5910 = vmatprep.subr.mxu0 0.0
    %5911 = vmatpush2.msra.mxu0 0.0
    %5912 = vmatprep.subr.mxu0 0.0
    %5913 = vmatpush2.msra.mxu0 0.0
    %5914 = vmatprep.subr.mxu0 0.0
    %5915 = vmatpush2.msra.mxu0 0.0
    %5916 = vmatprep.subr.mxu0 0.0
    %5917 = vmatpush2.msra.mxu0 0.0
    %5918 = vmatprep.subr.mxu0 0.0
    %5919 = vmatpush2.msra.mxu0 0.0
    %5920 = vmatprep.mubr.f32.mxu0 0.0
    %5921 = vmatmul.mubr.f32.gmra.mxu0 %v5854
    %v5922 = vpop.f32.mrf.mxu0
    %v5923 = vadd.f32 0.0, %v5922
    %v5924 = vpop.f32.mrf.mxu0
    %v5925 = vadd.f32 0.0, %v5924
    %5926 = vdwg.mxu0
    %5927 = vmatprep.subr.mxu0 0.0
    %5928 = vmatpush1.msra.mxu0 0.0
    %5929 = vmatprep.subr.mxu0 0.0
    %5930 = vmatpush1.msra.mxu0 0.0
    %5931 = vmatprep.subr.mxu0 0.0
    %5932 = vmatpush1.msra.mxu0 0.0
    %5933 = vmatprep.subr.mxu0 0.0
    %5934 = vmatpush1.msra.mxu0 0.0
    %5935 = vmatprep.subr.mxu0 0.0
    %5936 = vmatpush1.msra.mxu0 0.0
    %5937 = vmatprep.subr.mxu0 0.0
    %5938 = vmatpush1.msra.mxu0 0.0
    %5939 = vmatprep.subr.mxu0 0.0
    %5940 = vmatpush1.msra.mxu0 0.0
    %5941 = vmatprep.subr.mxu0 0.0
    %5942 = vmatpush1.msra.mxu0 0.0
    %5943 = vmatprep.subr.mxu0 0.0
    %5944 = vmatpush1.msra.mxu0 0.0
    %5945 = vmatprep.subr.mxu0 0.0
    %5946 = vmatpush1.msra.mxu0 0.0
    %5947 = vmatprep.subr.mxu0 0.0
    %5948 = vmatpush1.msra.mxu0 0.0
    %5949 = vmatprep.subr.mxu0 0.0
    %5950 = vmatpush1.msra.mxu0 0.0
    %5951 = vmatprep.subr.mxu0 0.0
    %5952 = vmatpush1.msra.mxu0 0.0
    %5953 = vmatprep.subr.mxu0 0.0
    %5954 = vmatpush1.msra.mxu0 0.0
    %5955 = vmatprep.subr.mxu0 %v5848
    %5956 = vmatpush1.msra.mxu0 %v5847
    %5957 = vmatprep.subr.mxu0 %v5840
    %5958 = vmatpush1.msra.mxu0 %v5839
    %5959 = vmatprep.subr.mxu0 0.0
    %5960 = vmatpush2.msra.mxu0 0.0
    %5961 = vmatprep.subr.mxu0 0.0
    %5962 = vmatpush2.msra.mxu0 0.0
    %5963 = vmatprep.subr.mxu0 0.0
    %5964 = vmatpush2.msra.mxu0 0.0
    %5965 = vmatprep.subr.mxu0 0.0
    %5966 = vmatpush2.msra.mxu0 0.0
    %5967 = vmatprep.subr.mxu0 0.0
    %5968 = vmatpush2.msra.mxu0 0.0
    %5969 = vmatprep.subr.mxu0 0.0
    %5970 = vmatpush2.msra.mxu0 0.0
    %5971 = vmatprep.subr.mxu0 0.0
    %5972 = vmatpush2.msra.mxu0 0.0
    %5973 = vmatprep.subr.mxu0 0.0
    %5974 = vmatpush2.msra.mxu0 0.0
    %5975 = vmatprep.subr.mxu0 0.0
    %5976 = vmatpush2.msra.mxu0 0.0
    %5977 = vmatprep.subr.mxu0 0.0
    %5978 = vmatpush2.msra.mxu0 0.0
    %5979 = vmatprep.subr.mxu0 0.0
    %5980 = vmatpush2.msra.mxu0 0.0
    %5981 = vmatprep.subr.mxu0 0.0
    %5982 = vmatpush2.msra.mxu0 0.0
    %5983 = vmatprep.subr.mxu0 0.0
    %5984 = vmatpush2.msra.mxu0 0.0
    %5985 = vmatprep.subr.mxu0 0.0
    %5986 = vmatpush2.msra.mxu0 0.0
    %5987 = vmatprep.subr.mxu0 0.0
    %5988 = vmatpush2.msra.mxu0 0.0
    %5989 = vmatprep.subr.mxu0 0.0
    %5990 = vmatpush2.msra.mxu0 0.0
    %5991 = vmatprep.mubr.f32.mxu0 0.0
    %5992 = vmatmul.mubr.f32.gmra.mxu0 %v5854
    %v5993 = vpop.f32.mrf.mxu0
    %v5994 = vadd.f32 0.0, %v5993
    %v5995 = vpop.f32.mrf.mxu0
    %v5996 = vadd.f32 0.0, %v5995
    %5997 = vdwg.mxu0
    %5998 = vmatprep.subr.mxu0 0.0
    %5999 = vmatpush1.msra.mxu0 0.0
    %6000 = vmatprep.subr.mxu0 0.0
    %6001 = vmatpush1.msra.mxu0 0.0
    %6002 = vmatprep.subr.mxu0 0.0
    %6003 = vmatpush1.msra.mxu0 0.0
    %6004 = vmatprep.subr.mxu0 0.0
    %6005 = vmatpush1.msra.mxu0 0.0
    %6006 = vmatprep.subr.mxu0 0.0
    %6007 = vmatpush1.msra.mxu0 0.0
    %6008 = vmatprep.subr.mxu0 0.0
    %6009 = vmatpush1.msra.mxu0 0.0
    %6010 = vmatprep.subr.mxu0 0.0
    %6011 = vmatpush1.msra.mxu0 0.0
    %6012 = vmatprep.subr.mxu0 0.0
    %6013 = vmatpush1.msra.mxu0 0.0
    %6014 = vmatprep.subr.mxu0 0.0
    %6015 = vmatpush1.msra.mxu0 0.0
    %6016 = vmatprep.subr.mxu0 0.0
    %6017 = vmatpush1.msra.mxu0 0.0
    %6018 = vmatprep.subr.mxu0 0.0
    %6019 = vmatpush1.msra.mxu0 0.0
    %6020 = vmatprep.subr.mxu0 0.0
    %6021 = vmatpush1.msra.mxu0 0.0
    %6022 = vmatprep.subr.mxu0 0.0
    %6023 = vmatpush1.msra.mxu0 0.0
    %6024 = vmatprep.subr.mxu0 0.0
    %6025 = vmatpush1.msra.mxu0 0.0
    %6026 = vmatprep.subr.mxu0 %v5850
    %6027 = vmatpush1.msra.mxu0 %v5849
    %6028 = vmatprep.subr.mxu0 %v5842
    %6029 = vmatpush1.msra.mxu0 %v5841
    %6030 = vmatprep.subr.mxu0 0.0
    %6031 = vmatpush2.msra.mxu0 0.0
    %6032 = vmatprep.subr.mxu0 0.0
    %6033 = vmatpush2.msra.mxu0 0.0
    %6034 = vmatprep.subr.mxu0 0.0
    %6035 = vmatpush2.msra.mxu0 0.0
    %6036 = vmatprep.subr.mxu0 0.0
    %6037 = vmatpush2.msra.mxu0 0.0
    %6038 = vmatprep.subr.mxu0 0.0
    %6039 = vmatpush2.msra.mxu0 0.0
    %6040 = vmatprep.subr.mxu0 0.0
    %6041 = vmatpush2.msra.mxu0 0.0
    %6042 = vmatprep.subr.mxu0 0.0
    %6043 = vmatpush2.msra.mxu0 0.0
    %6044 = vmatprep.subr.mxu0 0.0
    %6045 = vmatpush2.msra.mxu0 0.0
    %6046 = vmatprep.subr.mxu0 0.0
    %6047 = vmatpush2.msra.mxu0 0.0
    %6048 = vmatprep.subr.mxu0 0.0
    %6049 = vmatpush2.msra.mxu0 0.0
    %6050 = vmatprep.subr.mxu0 0.0
    %6051 = vmatpush2.msra.mxu0 0.0
    %6052 = vmatprep.subr.mxu0 0.0
    %6053 = vmatpush2.msra.mxu0 0.0
    %6054 = vmatprep.subr.mxu0 0.0
    %6055 = vmatpush2.msra.mxu0 0.0
    %6056 = vmatprep.subr.mxu0 0.0
    %6057 = vmatpush2.msra.mxu0 0.0
    %6058 = vmatprep.subr.mxu0 0.0
    %6059 = vmatpush2.msra.mxu0 0.0
    %6060 = vmatprep.subr.mxu0 0.0
    %6061 = vmatpush2.msra.mxu0 0.0
    %6062 = vmatprep.mubr.f32.mxu0 0.0
    %6063 = vmatmul.mubr.f32.gmra.mxu0 %v5854
    %v6064 = vpop.f32.mrf.mxu0
    %v6065 = vadd.f32 0.0, %v6064
    %v6066 = vpop.f32.mrf.mxu0
    %v6067 = vadd.f32 0.0, %v6066
    %6068 = vdwg.mxu0
    %6069 = vmatprep.subr.mxu0 0.0
    %6070 = vmatpush1.msra.mxu0 0.0
    %6071 = vmatprep.subr.mxu0 0.0
    %6072 = vmatpush1.msra.mxu0 0.0
    %6073 = vmatprep.subr.mxu0 0.0
    %6074 = vmatpush1.msra.mxu0 0.0
    %6075 = vmatprep.subr.mxu0 0.0
    %6076 = vmatpush1.msra.mxu0 0.0
    %6077 = vmatprep.subr.mxu0 0.0
    %6078 = vmatpush1.msra.mxu0 0.0
    %6079 = vmatprep.subr.mxu0 0.0
    %6080 = vmatpush1.msra.mxu0 0.0
    %6081 = vmatprep.subr.mxu0 0.0
    %6082 = vmatpush1.msra.mxu0 0.0
    %6083 = vmatprep.subr.mxu0 0.0
    %6084 = vmatpush1.msra.mxu0 0.0
    %6085 = vmatprep.subr.mxu0 0.0
    %6086 = vmatpush1.msra.mxu0 0.0
    %6087 = vmatprep.subr.mxu0 0.0
    %6088 = vmatpush1.msra.mxu0 0.0
    %6089 = vmatprep.subr.mxu0 0.0
    %6090 = vmatpush1.msra.mxu0 0.0
    %6091 = vmatprep.subr.mxu0 0.0
    %6092 = vmatpush1.msra.mxu0 0.0
    %6093 = vmatprep.subr.mxu0 0.0
    %6094 = vmatpush1.msra.mxu0 0.0
    %6095 = vmatprep.subr.mxu0 0.0
    %6096 = vmatpush1.msra.mxu0 0.0
    %6097 = vmatprep.subr.mxu0 %v5852
    %6098 = vmatpush1.msra.mxu0 %v5851
    %6099 = vmatprep.subr.mxu0 %v5844
    %6100 = vmatpush1.msra.mxu0 %v5843
    %6101 = vmatprep.subr.mxu0 0.0
    %6102 = vmatpush2.msra.mxu0 0.0
    %6103 = vmatprep.subr.mxu0 0.0
    %6104 = vmatpush2.msra.mxu0 0.0
    %6105 = vmatprep.subr.mxu0 0.0
    %6106 = vmatpush2.msra.mxu0 0.0
    %6107 = vmatprep.subr.mxu0 0.0
    %6108 = vmatpush2.msra.mxu0 0.0
    %6109 = vmatprep.subr.mxu0 0.0
    %6110 = vmatpush2.msra.mxu0 0.0
    %6111 = vmatprep.subr.mxu0 0.0
    %6112 = vmatpush2.msra.mxu0 0.0
    %6113 = vmatprep.subr.mxu0 0.0
    %6114 = vmatpush2.msra.mxu0 0.0
    %6115 = vmatprep.subr.mxu0 0.0
    %6116 = vmatpush2.msra.mxu0 0.0
    %6117 = vmatprep.subr.mxu0 0.0
    %6118 = vmatpush2.msra.mxu0 0.0
    %6119 = vmatprep.subr.mxu0 0.0
    %6120 = vmatpush2.msra.mxu0 0.0
    %6121 = vmatprep.subr.mxu0 0.0
    %6122 = vmatpush2.msra.mxu0 0.0
    %6123 = vmatprep.subr.mxu0 0.0
    %6124 = vmatpush2.msra.mxu0 0.0
    %6125 = vmatprep.subr.mxu0 0.0
    %6126 = vmatpush2.msra.mxu0 0.0
    %6127 = vmatprep.subr.mxu0 0.0
    %6128 = vmatpush2.msra.mxu0 0.0
    %6129 = vmatprep.subr.mxu0 0.0
    %6130 = vmatpush2.msra.mxu0 0.0
    %6131 = vmatprep.subr.mxu0 0.0
    %6132 = vmatpush2.msra.mxu0 0.0
    %6133 = vmatprep.mubr.f32.mxu0 0.0
    %6134 = vmatmul.mubr.f32.gmra.mxu0 %v5854
    %v6135 = vpop.f32.mrf.mxu0
    %v6136 = vadd.f32 0.0, %v6135
    %v6137 = vpop.f32.mrf.mxu0
    %v6138 = vadd.f32 0.0, %v6137
    %6139 = vdwg.mxu0
    %v6140 = vadd.f32 %v5761, %v5923
    %v6141 = vadd.f32 %v5761, %v5925
    %v6142 = vadd.f32 %v5761, %v5994
    %v6143 = vadd.f32 %v5761, %v5996
    %v6144 = vadd.f32 %v5761, %v6065
    %v6145 = vadd.f32 %v5761, %v6067
    %v6146 = vadd.f32 %v5761, %v6136
    %v6147 = vadd.f32 %v5761, %v6138
    %v6148 = vadd.f32 %v6140, %v347
    %v6149 = vadd.f32 %v6141, %v348
    %v6150 = vadd.f32 %v6142, %v349
    %v6151 = vadd.f32 %v6143, %v350
    %v6152 = vadd.f32 %v6144, %v351
    %v6153 = vadd.f32 %v6145, %v352
    %v6154 = vadd.f32 %v6146, %v353
    %v6155 = vadd.f32 %v6147, %v354
    %v6156 = vtanh.pop %v6148
    %v6157 = vtanh.pop %v6149
    %v6158 = vtanh.pop %v6150
    %v6159 = vtanh.pop %v6151
    %v6160 = vtanh.pop %v6152
    %v6161 = vtanh.pop %v6153
    %v6162 = vtanh.pop %v6154
    %v6163 = vtanh.pop %v6155
    %v6164 = vmul.f32 %v6156, %v370
    %v6165 = vmul.f32 %v6157, %v374
    %v6166 = vmul.f32 %v6158, %v378
    %v6167 = vmul.f32 %v6159, %v382
    %v6168 = vmul.f32 %v6160, %v386
    %v6169 = vmul.f32 %v6161, %v390
    %v6170 = vmul.f32 %v6162, %v394
    %v6171 = vmul.f32 %v6163, %v398
    %v6172 = vcombine.low %v6164, %v6166
    %v6173 = vcombine.high %v6164, %v6166
    %v6175 = vunpack.c.l.s4 1983009808
    %v6176 = vunpack.c.0.s8 %v6175
    %v6177 = vlaneseq
    %v6178 = vshrl.u32 %v6177, 7
    %v6179 = vsub.s32 %v6176, %v6178
    %v6180 = vrot.slane %v6172, %v6179
    %v6182 = vunpack.c.l.s4 1983009808
    %v6183 = vunpack.c.0.s8 %v6182
    %v6184 = vlaneseq
    %v6185 = vshrl.u32 %v6184, 7
    %v6186 = vsub.s32 %v6183, %v6185
    %v6187 = vrot.slane %v6173, %v6186
    %v6188 = vcombine.low %v6165, %v6167
    %v6189 = vcombine.high %v6165, %v6167
    %v6191 = vunpack.c.l.s4 1983009808
    %v6192 = vunpack.c.0.s8 %v6191
    %v6193 = vlaneseq
    %v6194 = vshrl.u32 %v6193, 7
    %v6195 = vsub.s32 %v6192, %v6194
    %v6196 = vrot.slane %v6188, %v6195
    %v6198 = vunpack.c.l.s4 1983009808
    %v6199 = vunpack.c.0.s8 %v6198
    %v6200 = vlaneseq
    %v6201 = vshrl.u32 %v6200, 7
    %v6202 = vsub.s32 %v6199, %v6201
    %v6203 = vrot.slane %v6189, %v6202
    %v6204 = vcombine.low %v6168, %v6170
    %v6205 = vcombine.high %v6168, %v6170
    %v6207 = vunpack.c.l.s4 1983009808
    %v6208 = vunpack.c.0.s8 %v6207
    %v6209 = vlaneseq
    %v6210 = vshrl.u32 %v6209, 7
    %v6211 = vsub.s32 %v6208, %v6210
    %v6212 = vrot.slane %v6204, %v6211
    %v6214 = vunpack.c.l.s4 1983009808
    %v6215 = vunpack.c.0.s8 %v6214
    %v6216 = vlaneseq
    %v6217 = vshrl.u32 %v6216, 7
    %v6218 = vsub.s32 %v6215, %v6217
    %v6219 = vrot.slane %v6205, %v6218
    %v6220 = vcombine.low %v6169, %v6171
    %v6221 = vcombine.high %v6169, %v6171
    %v6223 = vunpack.c.l.s4 1983009808
    %v6224 = vunpack.c.0.s8 %v6223
    %v6225 = vlaneseq
    %v6226 = vshrl.u32 %v6225, 7
    %v6227 = vsub.s32 %v6224, %v6226
    %v6228 = vrot.slane %v6220, %v6227
    %v6230 = vunpack.c.l.s4 1983009808
    %v6231 = vunpack.c.0.s8 %v6230
    %v6232 = vlaneseq
    %v6233 = vshrl.u32 %v6232, 7
    %v6234 = vsub.s32 %v6231, %v6233
    %v6235 = vrot.slane %v6221, %v6234
    %v6236 = vcombine.low %v6180, %v6196
    %v6237 = vcombine.high %v6180, %v6196
    %v6239 = vunpack.c.l.s4 1934713408
    %v6240 = vunpack.c.0.s8 %v6239
    %v6241 = vlaneseq
    %v6242 = vshrl.u32 %v6241, 7
    %v6243 = vsub.s32 %v6240, %v6242
    %v6244 = vrot.slane %v6236, %v6243
    %v6246 = vunpack.c.l.s4 1934713408
    %v6247 = vunpack.c.0.s8 %v6246
    %v6248 = vlaneseq
    %v6249 = vshrl.u32 %v6248, 7
    %v6250 = vsub.s32 %v6247, %v6249
    %v6251 = vrot.slane %v6237, %v6250
    %v6252 = vcombine.low %v6187, %v6203
    %v6253 = vcombine.high %v6187, %v6203
    %v6255 = vunpack.c.l.s4 1934713408
    %v6256 = vunpack.c.0.s8 %v6255
    %v6257 = vlaneseq
    %v6258 = vshrl.u32 %v6257, 7
    %v6259 = vsub.s32 %v6256, %v6258
    %v6260 = vrot.slane %v6252, %v6259
    %v6262 = vunpack.c.l.s4 1934713408
    %v6263 = vunpack.c.0.s8 %v6262
    %v6264 = vlaneseq
    %v6265 = vshrl.u32 %v6264, 7
    %v6266 = vsub.s32 %v6263, %v6265
    %v6267 = vrot.slane %v6253, %v6266
    %v6268 = vcombine.low %v6212, %v6228
    %v6269 = vcombine.high %v6212, %v6228
    %v6271 = vunpack.c.l.s4 1934713408
    %v6272 = vunpack.c.0.s8 %v6271
    %v6273 = vlaneseq
    %v6274 = vshrl.u32 %v6273, 7
    %v6275 = vsub.s32 %v6272, %v6274
    %v6276 = vrot.slane %v6268, %v6275
    %v6278 = vunpack.c.l.s4 1934713408
    %v6279 = vunpack.c.0.s8 %v6278
    %v6280 = vlaneseq
    %v6281 = vshrl.u32 %v6280, 7
    %v6282 = vsub.s32 %v6279, %v6281
    %v6283 = vrot.slane %v6269, %v6282
    %v6284 = vcombine.low %v6219, %v6235
    %v6285 = vcombine.high %v6219, %v6235
    %v6287 = vunpack.c.l.s4 1934713408
    %v6288 = vunpack.c.0.s8 %v6287
    %v6289 = vlaneseq
    %v6290 = vshrl.u32 %v6289, 7
    %v6291 = vsub.s32 %v6288, %v6290
    %v6292 = vrot.slane %v6284, %v6291
    %v6294 = vunpack.c.l.s4 1934713408
    %v6295 = vunpack.c.0.s8 %v6294
    %v6296 = vlaneseq
    %v6297 = vshrl.u32 %v6296, 7
    %v6298 = vsub.s32 %v6295, %v6297
    %v6299 = vrot.slane %v6285, %v6298
    %v6300 = vcombine.low %v6244, %v6276
    %v6301 = vcombine.high %v6244, %v6276
    %v6302 = vcombine.low %v6251, %v6283
    %v6303 = vcombine.high %v6251, %v6283
    %v6304 = vcombine.low %v6260, %v6292
    %v6305 = vcombine.high %v6260, %v6292
    %v6306 = vcombine.low %v6267, %v6299
    %v6307 = vcombine.high %v6267, %v6299
    %6308 = vadd.xlane.f32.xlu0 %v6300
    %v6309 = vpop.xlane.xlu0 %6308
    %6310 = vadd.xlane.f32.xlu0 %v6301
    %v6311 = vpop.xlane.xlu0 %6310
    %6312 = vadd.xlane.f32.xlu0 %v6302
    %v6313 = vpop.xlane.xlu0 %6312
    %6314 = vadd.xlane.f32.xlu0 %v6303
    %v6315 = vpop.xlane.xlu0 %6314
    %6316 = vadd.xlane.f32.xlu0 %v6304
    %v6317 = vpop.xlane.xlu0 %6316
    %6318 = vadd.xlane.f32.xlu0 %v6305
    %v6319 = vpop.xlane.xlu0 %6318
    %6320 = vadd.xlane.f32.xlu0 %v6306
    %v6321 = vpop.xlane.xlu0 %6320
    %6322 = vadd.xlane.f32.xlu0 %v6307
    %v6323 = vpop.xlane.xlu0 %6322
    %v6324 = vadd.f32 %v6309, %v1554
    %v6325 = vadd.f32 %v6311, %v1561
    %v6326 = vadd.f32 %v6313, %v1568
    %v6327 = vadd.f32 %v6315, %v1575
    %v6328 = vadd.f32 %v6317, %v1582
    %v6329 = vadd.f32 %v6319, %v1589
    %v6330 = vadd.f32 %v6321, %v1596
    %v6331 = vadd.f32 %v6323, %v1603
    %v6332 = vmul.f32 %v6324, 1.442695
    %v6333 = vpow.pop %v6332
    %v6334 = vmul.f32 %v6325, 1.442695
    %v6335 = vpow.pop %v6334
    %v6336 = vmul.f32 %v6326, 1.442695
    %v6337 = vpow.pop %v6336
    %v6338 = vmul.f32 %v6327, 1.442695
    %v6339 = vpow.pop %v6338
    %v6340 = vmul.f32 %v6328, 1.442695
    %v6341 = vpow.pop %v6340
    %v6342 = vmul.f32 %v6329, 1.442695
    %v6343 = vpow.pop %v6342
    %v6344 = vmul.f32 %v6330, 1.442695
    %v6345 = vpow.pop %v6344
    %v6346 = vmul.f32 %v6331, 1.442695
    %v6347 = vpow.pop %v6346
    %6356 = vset.pattern.permute.xlu0 0
    %6357 = vperm.xlu0 %6356, %v6333
    %v6358 = vpop.permute.xlu0 %6357
    %6359 = vset.pattern.permute.xlu0 0
    %6360 = vperm.xlu0 %6359, %v6335
    %v6361 = vpop.permute.xlu0 %6360
    %6362 = vset.pattern.permute.xlu0 0
    %6363 = vperm.xlu0 %6362, %v6337
    %v6364 = vpop.permute.xlu0 %6363
    %6365 = vset.pattern.permute.xlu0 0
    %6366 = vperm.xlu0 %6365, %v6339
    %v6367 = vpop.permute.xlu0 %6366
    %6368 = vset.pattern.permute.xlu0 0
    %6369 = vperm.xlu0 %6368, %v6341
    %v6370 = vpop.permute.xlu0 %6369
    %6371 = vset.pattern.permute.xlu0 0
    %6372 = vperm.xlu0 %6371, %v6343
    %v6373 = vpop.permute.xlu0 %6372
    %6374 = vset.pattern.permute.xlu0 0
    %6375 = vperm.xlu0 %6374, %v6345
    %v6376 = vpop.permute.xlu0 %6375
    %6377 = vset.pattern.permute.xlu0 0
    %6378 = vperm.xlu0 %6377, %v6347
    %v6379 = vpop.permute.xlu0 %6378
    %v6380 = vlaneseq
    %v6381 = vshrl.u32 %v6380, 7
    %v6382 = vsub.s32 %v1669, %v6381
    %v6383 = vrot.slane %v6358, %v6382
    %v6384 = vlaneseq
    %v6385 = vshrl.u32 %v6384, 7
    %v6386 = vsub.s32 %v1669, %v6385
    %v6387 = vrot.slane %v6361, %v6386
    %v6388 = vlaneseq
    %v6389 = vshrl.u32 %v6388, 7
    %v6390 = vsub.s32 %v1669, %v6389
    %v6391 = vrot.slane %v6364, %v6390
    %v6392 = vlaneseq
    %v6393 = vshrl.u32 %v6392, 7
    %v6394 = vsub.s32 %v1669, %v6393
    %v6395 = vrot.slane %v6367, %v6394
    %v6396 = vlaneseq
    %v6397 = vshrl.u32 %v6396, 7
    %v6398 = vsub.s32 %v1669, %v6397
    %v6399 = vrot.slane %v6370, %v6398
    %v6400 = vlaneseq
    %v6401 = vshrl.u32 %v6400, 7
    %v6402 = vsub.s32 %v1669, %v6401
    %v6403 = vrot.slane %v6373, %v6402
    %v6404 = vlaneseq
    %v6405 = vshrl.u32 %v6404, 7
    %v6406 = vsub.s32 %v1669, %v6405
    %v6407 = vrot.slane %v6376, %v6406
    %v6408 = vlaneseq
    %v6409 = vshrl.u32 %v6408, 7
    %v6410 = vsub.s32 %v1669, %v6409
    %v6411 = vrot.slane %v6379, %v6410
    %v6412 = vsel %vm1702, %v6387, %v6383
    %v6413 = vsel %vm1704, %v6391, %v6412
    %v6414 = vsel %vm1706, %v6395, %v6413
    %v6415 = vsel %vm1708, %v6399, %v6414
    %v6416 = vsel %vm1710, %v6403, %v6415
    %v6417 = vsel %vm1712, %v6407, %v6416
    %v6418 = vsel %vm1714, %v6411, %v6417
    %v6420 = vsel %vm136, %v6418, 0.0
    %6421 = vadd.xlane.f32.xlu0 %v6420
    %v6422 = vpop.xlane.xlu0 %6421
    %v6423 = vrcp.pop %v6422
    %v6425 = vlaneseq
    %v6426 = vshrl.u32 %v6425, 7
    %v6427 = vsub.s32 0, %v6426
    %v6428 = vrot.slane %v6423, %v6427
    %v6429 = vlaneseq
    %v6430 = vshrl.u32 %v6429, 7
    %v6431 = vsub.s32 1, %v6430
    %v6432 = vrot.slane %v6423, %v6431
    %v6433 = vlaneseq
    %v6434 = vshrl.u32 %v6433, 7
    %v6435 = vsub.s32 2, %v6434
    %v6436 = vrot.slane %v6423, %v6435
    %v6437 = vlaneseq
    %v6438 = vshrl.u32 %v6437, 7
    %v6439 = vsub.s32 3, %v6438
    %v6440 = vrot.slane %v6423, %v6439
    %v6441 = vlaneseq
    %v6442 = vshrl.u32 %v6441, 7
    %v6443 = vsub.s32 4, %v6442
    %v6444 = vrot.slane %v6423, %v6443
    %v6445 = vlaneseq
    %v6446 = vshrl.u32 %v6445, 7
    %v6447 = vsub.s32 5, %v6446
    %v6448 = vrot.slane %v6423, %v6447
    %v6449 = vlaneseq
    %v6450 = vshrl.u32 %v6449, 7
    %v6451 = vsub.s32 6, %v6450
    %v6452 = vrot.slane %v6423, %v6451
    %v6453 = vlaneseq
    %v6454 = vshrl.u32 %v6453, 7
    %v6455 = vsub.s32 7, %v6454
    %v6456 = vrot.slane %v6423, %v6455
    %v6465 = vmul.f32 %v6333, %v6428
    %v6466 = vmul.f32 %v6335, %v6432
    %v6467 = vmul.f32 %v6337, %v6436
    %v6468 = vmul.f32 %v6339, %v6440
    %v6469 = vmul.f32 %v6341, %v6444
    %v6470 = vmul.f32 %v6343, %v6448
    %v6471 = vmul.f32 %v6345, %v6452
    %v6472 = vmul.f32 %v6347, %v6456
    %v6473 = vadd.f32 %v4128, %v6465
    %v6474 = vadd.f32 %v4129, %v6466
    %v6475 = vadd.f32 %v4130, %v6467
    %v6476 = vadd.f32 %v4131, %v6468
    %v6477 = vadd.f32 %v4132, %v6469
    %v6478 = vadd.f32 %v4133, %v6470
    %v6479 = vadd.f32 %v4134, %v6471
    %v6480 = vadd.f32 %v4135, %v6472
    %6489 = vset.pattern.permute.xlu0 0
    %6490 = vperm.xlu0 %6489, %v6465
    %v6491 = vpop.permute.xlu0 %6490
    %6492 = vset.pattern.permute.xlu0 0
    %6493 = vperm.xlu0 %6492, %v6466
    %v6494 = vpop.permute.xlu0 %6493
    %6495 = vset.pattern.permute.xlu0 0
    %6496 = vperm.xlu0 %6495, %v6467
    %v6497 = vpop.permute.xlu0 %6496
    %6498 = vset.pattern.permute.xlu0 0
    %6499 = vperm.xlu0 %6498, %v6468
    %v6500 = vpop.permute.xlu0 %6499
    %6501 = vset.pattern.permute.xlu0 0
    %6502 = vperm.xlu0 %6501, %v6469
    %v6503 = vpop.permute.xlu0 %6502
    %6504 = vset.pattern.permute.xlu0 0
    %6505 = vperm.xlu0 %6504, %v6470
    %v6506 = vpop.permute.xlu0 %6505
    %6507 = vset.pattern.permute.xlu0 0
    %6508 = vperm.xlu0 %6507, %v6471
    %v6509 = vpop.permute.xlu0 %6508
    %6510 = vset.pattern.permute.xlu0 0
    %6511 = vperm.xlu0 %6510, %v6472
    %v6512 = vpop.permute.xlu0 %6511
    %v6513 = vlaneseq
    %v6514 = vshrl.u32 %v6513, 7
    %v6515 = vsub.s32 %v1669, %v6514
    %v6516 = vrot.slane %v6491, %v6515
    %v6517 = vlaneseq
    %v6518 = vshrl.u32 %v6517, 7
    %v6519 = vsub.s32 %v1669, %v6518
    %v6520 = vrot.slane %v6494, %v6519
    %v6521 = vlaneseq
    %v6522 = vshrl.u32 %v6521, 7
    %v6523 = vsub.s32 %v1669, %v6522
    %v6524 = vrot.slane %v6497, %v6523
    %v6525 = vlaneseq
    %v6526 = vshrl.u32 %v6525, 7
    %v6527 = vsub.s32 %v1669, %v6526
    %v6528 = vrot.slane %v6500, %v6527
    %v6529 = vlaneseq
    %v6530 = vshrl.u32 %v6529, 7
    %v6531 = vsub.s32 %v1669, %v6530
    %v6532 = vrot.slane %v6503, %v6531
    %v6533 = vlaneseq
    %v6534 = vshrl.u32 %v6533, 7
    %v6535 = vsub.s32 %v1669, %v6534
    %v6536 = vrot.slane %v6506, %v6535
    %v6537 = vlaneseq
    %v6538 = vshrl.u32 %v6537, 7
    %v6539 = vsub.s32 %v1669, %v6538
    %v6540 = vrot.slane %v6509, %v6539
    %v6541 = vlaneseq
    %v6542 = vshrl.u32 %v6541, 7
    %v6543 = vsub.s32 %v1669, %v6542
    %v6544 = vrot.slane %v6512, %v6543
    %v6545 = vsel %vm1702, %v6520, %v6516
    %v6546 = vsel %vm1704, %v6524, %v6545
    %v6547 = vsel %vm1706, %v6528, %v6546
    %v6548 = vsel %vm1708, %v6532, %v6547
    %v6549 = vsel %vm1710, %v6536, %v6548
    %v6550 = vsel %vm1712, %v6540, %v6549
    %v6551 = vsel %vm1714, %v6544, %v6550
    %v6553 = vlaneseq
    %v6554 = vshrl.u32 %v6553, 7
    %v6555 = vsub.s32 %v1850, %v6554
    %v6556 = vrot.slane %v6491, %v6555
    %v6557 = vlaneseq
    %v6558 = vshrl.u32 %v6557, 7
    %v6559 = vsub.s32 %v1850, %v6558
    %v6560 = vrot.slane %v6494, %v6559
    %v6561 = vlaneseq
    %v6562 = vshrl.u32 %v6561, 7
    %v6563 = vsub.s32 %v1850, %v6562
    %v6564 = vrot.slane %v6497, %v6563
    %v6565 = vlaneseq
    %v6566 = vshrl.u32 %v6565, 7
    %v6567 = vsub.s32 %v1850, %v6566
    %v6568 = vrot.slane %v6500, %v6567
    %v6569 = vlaneseq
    %v6570 = vshrl.u32 %v6569, 7
    %v6571 = vsub.s32 %v1850, %v6570
    %v6572 = vrot.slane %v6503, %v6571
    %v6573 = vlaneseq
    %v6574 = vshrl.u32 %v6573, 7
    %v6575 = vsub.s32 %v1850, %v6574
    %v6576 = vrot.slane %v6506, %v6575
    %v6577 = vlaneseq
    %v6578 = vshrl.u32 %v6577, 7
    %v6579 = vsub.s32 %v1850, %v6578
    %v6580 = vrot.slane %v6509, %v6579
    %v6581 = vlaneseq
    %v6582 = vshrl.u32 %v6581, 7
    %v6583 = vsub.s32 %v1850, %v6582
    %v6584 = vrot.slane %v6512, %v6583
    %v6585 = vsel %vm1702, %v6560, %v6556
    %v6586 = vsel %vm1704, %v6564, %v6585
    %v6587 = vsel %vm1706, %v6568, %v6586
    %v6588 = vsel %vm1708, %v6572, %v6587
    %v6589 = vsel %vm1710, %v6576, %v6588
    %v6590 = vsel %vm1712, %v6580, %v6589
    %v6591 = vsel %vm1714, %v6584, %v6590
    %v6593 = vlaneseq
    %v6594 = vshrl.u32 %v6593, 7
    %v6595 = vsub.s32 %v1891, %v6594
    %v6596 = vrot.slane %v6491, %v6595
    %v6597 = vlaneseq
    %v6598 = vshrl.u32 %v6597, 7
    %v6599 = vsub.s32 %v1891, %v6598
    %v6600 = vrot.slane %v6494, %v6599
    %v6601 = vlaneseq
    %v6602 = vshrl.u32 %v6601, 7
    %v6603 = vsub.s32 %v1891, %v6602
    %v6604 = vrot.slane %v6497, %v6603
    %v6605 = vlaneseq
    %v6606 = vshrl.u32 %v6605, 7
    %v6607 = vsub.s32 %v1891, %v6606
    %v6608 = vrot.slane %v6500, %v6607
    %v6609 = vlaneseq
    %v6610 = vshrl.u32 %v6609, 7
    %v6611 = vsub.s32 %v1891, %v6610
    %v6612 = vrot.slane %v6503, %v6611
    %v6613 = vlaneseq
    %v6614 = vshrl.u32 %v6613, 7
    %v6615 = vsub.s32 %v1891, %v6614
    %v6616 = vrot.slane %v6506, %v6615
    %v6617 = vlaneseq
    %v6618 = vshrl.u32 %v6617, 7
    %v6619 = vsub.s32 %v1891, %v6618
    %v6620 = vrot.slane %v6509, %v6619
    %v6621 = vlaneseq
    %v6622 = vshrl.u32 %v6621, 7
    %v6623 = vsub.s32 %v1891, %v6622
    %v6624 = vrot.slane %v6512, %v6623
    %v6625 = vsel %vm1702, %v6600, %v6596
    %v6626 = vsel %vm1704, %v6604, %v6625
    %v6627 = vsel %vm1706, %v6608, %v6626
    %v6628 = vsel %vm1708, %v6612, %v6627
    %v6629 = vsel %vm1710, %v6616, %v6628
    %v6630 = vsel %vm1712, %v6620, %v6629
    %v6631 = vsel %vm1714, %v6624, %v6630
    %v6633 = vlaneseq
    %v6634 = vshrl.u32 %v6633, 7
    %v6635 = vsub.s32 %v1932, %v6634
    %v6636 = vrot.slane %v6491, %v6635
    %v6637 = vlaneseq
    %v6638 = vshrl.u32 %v6637, 7
    %v6639 = vsub.s32 %v1932, %v6638
    %v6640 = vrot.slane %v6494, %v6639
    %v6641 = vlaneseq
    %v6642 = vshrl.u32 %v6641, 7
    %v6643 = vsub.s32 %v1932, %v6642
    %v6644 = vrot.slane %v6497, %v6643
    %v6645 = vlaneseq
    %v6646 = vshrl.u32 %v6645, 7
    %v6647 = vsub.s32 %v1932, %v6646
    %v6648 = vrot.slane %v6500, %v6647
    %v6649 = vlaneseq
    %v6650 = vshrl.u32 %v6649, 7
    %v6651 = vsub.s32 %v1932, %v6650
    %v6652 = vrot.slane %v6503, %v6651
    %v6653 = vlaneseq
    %v6654 = vshrl.u32 %v6653, 7
    %v6655 = vsub.s32 %v1932, %v6654
    %v6656 = vrot.slane %v6506, %v6655
    %v6657 = vlaneseq
    %v6658 = vshrl.u32 %v6657, 7
    %v6659 = vsub.s32 %v1932, %v6658
    %v6660 = vrot.slane %v6509, %v6659
    %v6661 = vlaneseq
    %v6662 = vshrl.u32 %v6661, 7
    %v6663 = vsub.s32 %v1932, %v6662
    %v6664 = vrot.slane %v6512, %v6663
    %v6665 = vsel %vm1702, %v6640, %v6636
    %v6666 = vsel %vm1704, %v6644, %v6665
    %v6667 = vsel %vm1706, %v6648, %v6666
    %v6668 = vsel %vm1708, %v6652, %v6667
    %v6669 = vsel %vm1710, %v6656, %v6668
    %v6670 = vsel %vm1712, %v6660, %v6669
    %v6671 = vsel %vm1714, %v6664, %v6670
    %v6673 = vlaneseq
    %v6674 = vshrl.u32 %v6673, 7
    %v6675 = vsub.s32 %v1973, %v6674
    %v6676 = vrot.slane %v6491, %v6675
    %v6677 = vlaneseq
    %v6678 = vshrl.u32 %v6677, 7
    %v6679 = vsub.s32 %v1973, %v6678
    %v6680 = vrot.slane %v6494, %v6679
    %v6681 = vlaneseq
    %v6682 = vshrl.u32 %v6681, 7
    %v6683 = vsub.s32 %v1973, %v6682
    %v6684 = vrot.slane %v6497, %v6683
    %v6685 = vlaneseq
    %v6686 = vshrl.u32 %v6685, 7
    %v6687 = vsub.s32 %v1973, %v6686
    %v6688 = vrot.slane %v6500, %v6687
    %v6689 = vlaneseq
    %v6690 = vshrl.u32 %v6689, 7
    %v6691 = vsub.s32 %v1973, %v6690
    %v6692 = vrot.slane %v6503, %v6691
    %v6693 = vlaneseq
    %v6694 = vshrl.u32 %v6693, 7
    %v6695 = vsub.s32 %v1973, %v6694
    %v6696 = vrot.slane %v6506, %v6695
    %v6697 = vlaneseq
    %v6698 = vshrl.u32 %v6697, 7
    %v6699 = vsub.s32 %v1973, %v6698
    %v6700 = vrot.slane %v6509, %v6699
    %v6701 = vlaneseq
    %v6702 = vshrl.u32 %v6701, 7
    %v6703 = vsub.s32 %v1973, %v6702
    %v6704 = vrot.slane %v6512, %v6703
    %v6705 = vsel %vm1702, %v6680, %v6676
    %v6706 = vsel %vm1704, %v6684, %v6705
    %v6707 = vsel %vm1706, %v6688, %v6706
    %v6708 = vsel %vm1708, %v6692, %v6707
    %v6709 = vsel %vm1710, %v6696, %v6708
    %v6710 = vsel %vm1712, %v6700, %v6709
    %v6711 = vsel %vm1714, %v6704, %v6710
    %v6713 = vlaneseq
    %v6714 = vshrl.u32 %v6713, 7
    %v6715 = vsub.s32 %v2014, %v6714
    %v6716 = vrot.slane %v6491, %v6715
    %v6717 = vlaneseq
    %v6718 = vshrl.u32 %v6717, 7
    %v6719 = vsub.s32 %v2014, %v6718
    %v6720 = vrot.slane %v6494, %v6719
    %v6721 = vlaneseq
    %v6722 = vshrl.u32 %v6721, 7
    %v6723 = vsub.s32 %v2014, %v6722
    %v6724 = vrot.slane %v6497, %v6723
    %v6725 = vlaneseq
    %v6726 = vshrl.u32 %v6725, 7
    %v6727 = vsub.s32 %v2014, %v6726
    %v6728 = vrot.slane %v6500, %v6727
    %v6729 = vlaneseq
    %v6730 = vshrl.u32 %v6729, 7
    %v6731 = vsub.s32 %v2014, %v6730
    %v6732 = vrot.slane %v6503, %v6731
    %v6733 = vlaneseq
    %v6734 = vshrl.u32 %v6733, 7
    %v6735 = vsub.s32 %v2014, %v6734
    %v6736 = vrot.slane %v6506, %v6735
    %v6737 = vlaneseq
    %v6738 = vshrl.u32 %v6737, 7
    %v6739 = vsub.s32 %v2014, %v6738
    %v6740 = vrot.slane %v6509, %v6739
    %v6741 = vlaneseq
    %v6742 = vshrl.u32 %v6741, 7
    %v6743 = vsub.s32 %v2014, %v6742
    %v6744 = vrot.slane %v6512, %v6743
    %v6745 = vsel %vm1702, %v6720, %v6716
    %v6746 = vsel %vm1704, %v6724, %v6745
    %v6747 = vsel %vm1706, %v6728, %v6746
    %v6748 = vsel %vm1708, %v6732, %v6747
    %v6749 = vsel %vm1710, %v6736, %v6748
    %v6750 = vsel %vm1712, %v6740, %v6749
    %v6751 = vsel %vm1714, %v6744, %v6750
    %v6753 = vlaneseq
    %v6754 = vshrl.u32 %v6753, 7
    %v6755 = vsub.s32 %v2055, %v6754
    %v6756 = vrot.slane %v6491, %v6755
    %v6757 = vlaneseq
    %v6758 = vshrl.u32 %v6757, 7
    %v6759 = vsub.s32 %v2055, %v6758
    %v6760 = vrot.slane %v6494, %v6759
    %v6761 = vlaneseq
    %v6762 = vshrl.u32 %v6761, 7
    %v6763 = vsub.s32 %v2055, %v6762
    %v6764 = vrot.slane %v6497, %v6763
    %v6765 = vlaneseq
    %v6766 = vshrl.u32 %v6765, 7
    %v6767 = vsub.s32 %v2055, %v6766
    %v6768 = vrot.slane %v6500, %v6767
    %v6769 = vlaneseq
    %v6770 = vshrl.u32 %v6769, 7
    %v6771 = vsub.s32 %v2055, %v6770
    %v6772 = vrot.slane %v6503, %v6771
    %v6773 = vlaneseq
    %v6774 = vshrl.u32 %v6773, 7
    %v6775 = vsub.s32 %v2055, %v6774
    %v6776 = vrot.slane %v6506, %v6775
    %v6777 = vlaneseq
    %v6778 = vshrl.u32 %v6777, 7
    %v6779 = vsub.s32 %v2055, %v6778
    %v6780 = vrot.slane %v6509, %v6779
    %v6781 = vlaneseq
    %v6782 = vshrl.u32 %v6781, 7
    %v6783 = vsub.s32 %v2055, %v6782
    %v6784 = vrot.slane %v6512, %v6783
    %v6785 = vsel %vm1702, %v6760, %v6756
    %v6786 = vsel %vm1704, %v6764, %v6785
    %v6787 = vsel %vm1706, %v6768, %v6786
    %v6788 = vsel %vm1708, %v6772, %v6787
    %v6789 = vsel %vm1710, %v6776, %v6788
    %v6790 = vsel %vm1712, %v6780, %v6789
    %v6791 = vsel %vm1714, %v6784, %v6790
    %v6793 = vlaneseq
    %v6794 = vshrl.u32 %v6793, 7
    %v6795 = vsub.s32 %v2096, %v6794
    %v6796 = vrot.slane %v6491, %v6795
    %v6797 = vlaneseq
    %v6798 = vshrl.u32 %v6797, 7
    %v6799 = vsub.s32 %v2096, %v6798
    %v6800 = vrot.slane %v6494, %v6799
    %v6801 = vlaneseq
    %v6802 = vshrl.u32 %v6801, 7
    %v6803 = vsub.s32 %v2096, %v6802
    %v6804 = vrot.slane %v6497, %v6803
    %v6805 = vlaneseq
    %v6806 = vshrl.u32 %v6805, 7
    %v6807 = vsub.s32 %v2096, %v6806
    %v6808 = vrot.slane %v6500, %v6807
    %v6809 = vlaneseq
    %v6810 = vshrl.u32 %v6809, 7
    %v6811 = vsub.s32 %v2096, %v6810
    %v6812 = vrot.slane %v6503, %v6811
    %v6813 = vlaneseq
    %v6814 = vshrl.u32 %v6813, 7
    %v6815 = vsub.s32 %v2096, %v6814
    %v6816 = vrot.slane %v6506, %v6815
    %v6817 = vlaneseq
    %v6818 = vshrl.u32 %v6817, 7
    %v6819 = vsub.s32 %v2096, %v6818
    %v6820 = vrot.slane %v6509, %v6819
    %v6821 = vlaneseq
    %v6822 = vshrl.u32 %v6821, 7
    %v6823 = vsub.s32 %v2096, %v6822
    %v6824 = vrot.slane %v6512, %v6823
    %v6825 = vsel %vm1702, %v6800, %v6796
    %v6826 = vsel %vm1704, %v6804, %v6825
    %v6827 = vsel %vm1706, %v6808, %v6826
    %v6828 = vsel %vm1708, %v6812, %v6827
    %v6829 = vsel %vm1710, %v6816, %v6828
    %v6830 = vsel %vm1712, %v6820, %v6829
    %v6831 = vsel %vm1714, %v6824, %v6830
    %v6833 = vsel %vm136, %v6551, %v6591
    %v6834 = vsel %vm1075, %v6833, %v6631
    %v6835 = vsel %vm2139, %v6834, %v6671
    %v6836 = vsel %vm2141, %v6835, %v6711
    %v6837 = vsel %vm2143, %v6836, %v6751
    %v6838 = vsel %vm2145, %v6837, %v6791
    %v6839 = vsel %vm2147, %v6838, %v6831
    %v6840 = vmul.f32 %v6839, %v364
    %v6842 = vsel %vm2150, %v6840, 0
    %6844 = vmatprep.subr.mxu0 0.0
    %6845 = vmatpush1.msra.mxu0 0.0
    %6846 = vmatprep.subr.mxu0 0.0
    %6847 = vmatpush1.msra.mxu0 0.0
    %6848 = vmatprep.subr.mxu0 0.0
    %6849 = vmatpush1.msra.mxu0 0.0
    %6850 = vmatprep.subr.mxu0 0.0
    %6851 = vmatpush1.msra.mxu0 0.0
    %6852 = vmatprep.subr.mxu0 0.0
    %6853 = vmatpush1.msra.mxu0 0.0
    %6854 = vmatprep.subr.mxu0 0.0
    %6855 = vmatpush1.msra.mxu0 0.0
    %6856 = vmatprep.subr.mxu0 0.0
    %6857 = vmatpush1.msra.mxu0 0.0
    %6858 = vmatprep.subr.mxu0 0.0
    %6859 = vmatpush1.msra.mxu0 0.0
    %6860 = vmatprep.subr.mxu0 0.0
    %6861 = vmatpush1.msra.mxu0 %v363
    %6862 = vmatprep.subr.mxu0 0.0
    %6863 = vmatpush1.msra.mxu0 %v362
    %6864 = vmatprep.subr.mxu0 0.0
    %6865 = vmatpush1.msra.mxu0 %v361
    %6866 = vmatprep.subr.mxu0 0.0
    %6867 = vmatpush1.msra.mxu0 %v360
    %6868 = vmatprep.subr.mxu0 0.0
    %6869 = vmatpush1.msra.mxu0 %v359
    %6870 = vmatprep.subr.mxu0 0.0
    %6871 = vmatpush1.msra.mxu0 %v358
    %6872 = vmatprep.subr.mxu0 0.0
    %6873 = vmatpush1.msra.mxu0 %v357
    %6874 = vmatprep.subr.mxu0 0.0
    %6875 = vmatpush1.msra.mxu0 %v356
    %6876 = vmatprep.subr.mxu0 0.0
    %6877 = vmatpush2.msra.mxu0 0.0
    %6878 = vmatprep.subr.mxu0 0.0
    %6879 = vmatpush2.msra.mxu0 0.0
    %6880 = vmatprep.subr.mxu0 0.0
    %6881 = vmatpush2.msra.mxu0 0.0
    %6882 = vmatprep.subr.mxu0 0.0
    %6883 = vmatpush2.msra.mxu0 0.0
    %6884 = vmatprep.subr.mxu0 0.0
    %6885 = vmatpush2.msra.mxu0 0.0
    %6886 = vmatprep.subr.mxu0 0.0
    %6887 = vmatpush2.msra.mxu0 0.0
    %6888 = vmatprep.subr.mxu0 0.0
    %6889 = vmatpush2.msra.mxu0 0.0
    %6890 = vmatprep.subr.mxu0 0.0
    %6891 = vmatpush2.msra.mxu0 0.0
    %6892 = vmatprep.subr.mxu0 0.0
    %6893 = vmatpush2.msra.mxu0 0.0
    %6894 = vmatprep.subr.mxu0 0.0
    %6895 = vmatpush2.msra.mxu0 0.0
    %6896 = vmatprep.subr.mxu0 0.0
    %6897 = vmatpush2.msra.mxu0 0.0
    %6898 = vmatprep.subr.mxu0 0.0
    %6899 = vmatpush2.msra.mxu0 0.0
    %6900 = vmatprep.subr.mxu0 0.0
    %6901 = vmatpush2.msra.mxu0 0.0
    %6902 = vmatprep.subr.mxu0 0.0
    %6903 = vmatpush2.msra.mxu0 0.0
    %6904 = vmatprep.subr.mxu0 0.0
    %6905 = vmatpush2.msra.mxu0 0.0
    %6906 = vmatprep.subr.mxu0 0.0
    %6907 = vmatpush2.msra.mxu0 0.0
    %6908 = vmatprep.mubr.f32.mxu0 0.0
    %6909 = vmatmul.mubr.f32.gmra.mxu0 %v6842
    %v6910 = vpop.f32.mrf.mxu0
    %v6911 = vadd.f32 0.0, %v6910
    %v6912 = vpop.f32.mrf.mxu0
    %6913 = vdwg.mxu0
    %v6914 = vld [vmem:[#allocation11] sm:$0xff]
    %v6915 = vld [vmem:[#allocation11 + $0x8] sm:$0xff]
    %v6916 = vld [vmem:[#allocation11 + $0x10] sm:$0xff]
    %v6917 = vld [vmem:[#allocation11 + $0x18] sm:$0xff]
    %v6918 = vld [vmem:[#allocation11 + $0x20] sm:$0xff]
    %v6919 = vld [vmem:[#allocation11 + $0x28] sm:$0xff]
    %v6920 = vld [vmem:[#allocation11 + $0x30] sm:$0xff]
    %v6921 = vld [vmem:[#allocation11 + $0x38] sm:$0xff]
    %v6922 = vld [vmem:[#allocation11 + $0x40] sm:$0xff]
    %v6923 = vld [vmem:[#allocation11 + $0x48] sm:$0xff]
    %v6924 = vld [vmem:[#allocation11 + $0x50] sm:$0xff]
    %v6925 = vld [vmem:[#allocation11 + $0x58] sm:$0xff]
    %v6926 = vld [vmem:[#allocation11 + $0x60] sm:$0xff]
    %v6927 = vld [vmem:[#allocation11 + $0x68] sm:$0xff]
    %v6928 = vld [vmem:[#allocation11 + $0x70] sm:$0xff]
    %v6929 = vld [vmem:[#allocation11 + $0x78] sm:$0xff]
    %v6930 = vld [vmem:[#allocation11 + $0x80] sm:$0xff]
    %v6931 = vld [vmem:[#allocation11 + $0x88] sm:$0xff]
    %v6932 = vld [vmem:[#allocation11 + $0x90] sm:$0xff]
    %v6933 = vld [vmem:[#allocation11 + $0x98] sm:$0xff]
    %v6934 = vld [vmem:[#allocation11 + $0xa0] sm:$0xff]
    %v6935 = vld [vmem:[#allocation11 + $0xa8] sm:$0xff]
    %v6936 = vld [vmem:[#allocation11 + $0xb0] sm:$0xff]
    %v6937 = vld [vmem:[#allocation11 + $0xb8] sm:$0xff]
    %v6938 = vld [vmem:[#allocation11 + $0xc0] sm:$0xff]
    %v6939 = vld [vmem:[#allocation11 + $0xc8] sm:$0xff]
    %v6940 = vld [vmem:[#allocation11 + $0xd0] sm:$0xff]
    %v6941 = vld [vmem:[#allocation11 + $0xd8] sm:$0xff]
    %v6942 = vld [vmem:[#allocation11 + $0xe0] sm:$0xff]
    %v6943 = vld [vmem:[#allocation11 + $0xe8] sm:$0xff]
    %v6944 = vld [vmem:[#allocation11 + $0xf0] sm:$0xff]
    %v6945 = vld [vmem:[#allocation11 + $0xf8] sm:$0xff]
    %v6946 = vld [vmem:[#allocation11 + $0x100] sm:$0xff]
    %v6947 = vld [vmem:[#allocation11 + $0x108] sm:$0xff]
    %v6948 = vld [vmem:[#allocation11 + $0x110] sm:$0xff]
    %v6949 = vld [vmem:[#allocation11 + $0x118] sm:$0xff]
    %v6950 = vld [vmem:[#allocation11 + $0x120] sm:$0xff]
    %v6951 = vld [vmem:[#allocation11 + $0x128] sm:$0xff]
    %v6952 = vld [vmem:[#allocation11 + $0x130] sm:$0xff]
    %v6953 = vld [vmem:[#allocation11 + $0x138] sm:$0xff]
    %v6954 = vld [vmem:[#allocation11 + $0x140] sm:$0xff]
    %v6955 = vld [vmem:[#allocation11 + $0x148] sm:$0xff]
    %v6956 = vld [vmem:[#allocation11 + $0x150] sm:$0xff]
    %v6957 = vld [vmem:[#allocation11 + $0x158] sm:$0xff]
    %v6958 = vld [vmem:[#allocation11 + $0x160] sm:$0xff]
    %v6959 = vld [vmem:[#allocation11 + $0x168] sm:$0xff]
    %v6960 = vld [vmem:[#allocation11 + $0x170] sm:$0xff]
    %v6961 = vld [vmem:[#allocation11 + $0x178] sm:$0xff]
    %v6962 = vld [vmem:[#allocation11 + $0x180] sm:$0xff]
    %v6963 = vld [vmem:[#allocation11 + $0x188] sm:$0xff]
    %v6964 = vld [vmem:[#allocation11 + $0x190] sm:$0xff]
    %v6965 = vld [vmem:[#allocation11 + $0x198] sm:$0xff]
    %v6966 = vld [vmem:[#allocation11 + $0x1a0] sm:$0xff]
    %v6967 = vld [vmem:[#allocation11 + $0x1a8] sm:$0xff]
    %v6968 = vld [vmem:[#allocation11 + $0x1b0] sm:$0xff]
    %v6969 = vld [vmem:[#allocation11 + $0x1b8] sm:$0xff]
    %v6970 = vld [vmem:[#allocation11 + $0x1c0] sm:$0xff]
    %v6971 = vld [vmem:[#allocation11 + $0x1c8] sm:$0xff]
    %v6972 = vld [vmem:[#allocation11 + $0x1d0] sm:$0xff]
    %v6973 = vld [vmem:[#allocation11 + $0x1d8] sm:$0xff]
    %v6974 = vld [vmem:[#allocation11 + $0x1e0] sm:$0xff]
    %v6975 = vld [vmem:[#allocation11 + $0x1e8] sm:$0xff]
    %v6976 = vld [vmem:[#allocation11 + $0x1f0] sm:$0xff]
    %v6977 = vld [vmem:[#allocation11 + $0x1f8] sm:$0xff]
    %v6978 = vld [vmem:[#allocation11 + $0x200] sm:$0xff]
    %v6979 = vld [vmem:[#allocation11 + $0x208] sm:$0xff]
    %v6980 = vld [vmem:[#allocation11 + $0x210] sm:$0xff]
    %v6981 = vld [vmem:[#allocation11 + $0x218] sm:$0xff]
    %v6982 = vld [vmem:[#allocation11 + $0x220] sm:$0xff]
    %v6983 = vld [vmem:[#allocation11 + $0x228] sm:$0xff]
    %v6984 = vld [vmem:[#allocation11 + $0x230] sm:$0xff]
    %v6985 = vld [vmem:[#allocation11 + $0x238] sm:$0xff]
    %v6986 = vld [vmem:[#allocation11 + $0x240] sm:$0xff]
    %v6987 = vld [vmem:[#allocation11 + $0x248] sm:$0xff]
    %v6988 = vld [vmem:[#allocation11 + $0x250] sm:$0xff]
    %v6989 = vld [vmem:[#allocation11 + $0x258] sm:$0xff]
    %v6990 = vld [vmem:[#allocation11 + $0x260] sm:$0xff]
    %v6991 = vld [vmem:[#allocation11 + $0x268] sm:$0xff]
    %v6992 = vld [vmem:[#allocation11 + $0x270] sm:$0xff]
    %v6993 = vld [vmem:[#allocation11 + $0x278] sm:$0xff]
    %v6994 = vld [vmem:[#allocation11 + $0x280] sm:$0xff]
    %v6995 = vld [vmem:[#allocation11 + $0x288] sm:$0xff]
    %v6996 = vld [vmem:[#allocation11 + $0x290] sm:$0xff]
    %v6997 = vld [vmem:[#allocation11 + $0x298] sm:$0xff]
    %v6998 = vld [vmem:[#allocation11 + $0x2a0] sm:$0xff]
    %v6999 = vld [vmem:[#allocation11 + $0x2a8] sm:$0xff]
    %v7000 = vld [vmem:[#allocation11 + $0x2b0] sm:$0xff]
    %v7001 = vld [vmem:[#allocation11 + $0x2b8] sm:$0xff]
    %v7002 = vld [vmem:[#allocation11 + $0x2c0] sm:$0xff]
    %v7003 = vld [vmem:[#allocation11 + $0x2c8] sm:$0xff]
    %v7004 = vld [vmem:[#allocation11 + $0x2d0] sm:$0xff]
    %v7005 = vld [vmem:[#allocation11 + $0x2d8] sm:$0xff]
    %v7006 = vld [vmem:[#allocation11 + $0x2e0] sm:$0xff]
    %v7007 = vld [vmem:[#allocation11 + $0x2e8] sm:$0xff]
    %v7008 = vld [vmem:[#allocation11 + $0x2f0] sm:$0xff]
    %v7009 = vld [vmem:[#allocation11 + $0x2f8] sm:$0xff]
    %v7010 = vld [vmem:[#allocation11 + $0x300] sm:$0xff]
    %v7011 = vld [vmem:[#allocation11 + $0x308] sm:$0xff]
    %v7012 = vld [vmem:[#allocation11 + $0x310] sm:$0xff]
    %v7013 = vld [vmem:[#allocation11 + $0x318] sm:$0xff]
    %v7014 = vld [vmem:[#allocation11 + $0x320] sm:$0xff]
    %v7015 = vld [vmem:[#allocation11 + $0x328] sm:$0xff]
    %v7016 = vld [vmem:[#allocation11 + $0x330] sm:$0xff]
    %v7017 = vld [vmem:[#allocation11 + $0x338] sm:$0xff]
    %v7018 = vld [vmem:[#allocation11 + $0x340] sm:$0xff]
    %v7019 = vld [vmem:[#allocation11 + $0x348] sm:$0xff]
    %v7020 = vld [vmem:[#allocation11 + $0x350] sm:$0xff]
    %v7021 = vld [vmem:[#allocation11 + $0x358] sm:$0xff]
    %v7022 = vld [vmem:[#allocation11 + $0x360] sm:$0xff]
    %v7023 = vld [vmem:[#allocation11 + $0x368] sm:$0xff]
    %v7024 = vld [vmem:[#allocation11 + $0x370] sm:$0xff]
    %v7025 = vld [vmem:[#allocation11 + $0x378] sm:$0xff]
    %v7026 = vld [vmem:[#allocation11 + $0x380] sm:$0xff]
    %v7027 = vld [vmem:[#allocation11 + $0x388] sm:$0xff]
    %v7028 = vld [vmem:[#allocation11 + $0x390] sm:$0xff]
    %v7029 = vld [vmem:[#allocation11 + $0x398] sm:$0xff]
    %v7030 = vld [vmem:[#allocation11 + $0x3a0] sm:$0xff]
    %v7031 = vld [vmem:[#allocation11 + $0x3a8] sm:$0xff]
    %v7032 = vld [vmem:[#allocation11 + $0x3b0] sm:$0xff]
    %v7033 = vld [vmem:[#allocation11 + $0x3b8] sm:$0xff]
    %v7034 = vld [vmem:[#allocation11 + $0x3c0] sm:$0xff]
    %v7035 = vld [vmem:[#allocation11 + $0x3c8] sm:$0xff]
    %v7036 = vld [vmem:[#allocation11 + $0x3d0] sm:$0xff]
    %v7037 = vld [vmem:[#allocation11 + $0x3d8] sm:$0xff]
    %v7038 = vld [vmem:[#allocation11 + $0x3e0] sm:$0xff]
    %v7039 = vld [vmem:[#allocation11 + $0x3e8] sm:$0xff]
    %v7040 = vld [vmem:[#allocation11 + $0x3f0] sm:$0xff]
    %v7041 = vld [vmem:[#allocation11 + $0x3f8] sm:$0xff]
    %v7042 = vld [vmem:[#allocation11 + $0x400] sm:$0xff]
    %v7043 = vld [vmem:[#allocation11 + $0x408] sm:$0xff]
    %v7044 = vld [vmem:[#allocation11 + $0x410] sm:$0xff]
    %v7045 = vld [vmem:[#allocation11 + $0x418] sm:$0xff]
    %v7046 = vld [vmem:[#allocation11 + $0x420] sm:$0xff]
    %v7047 = vld [vmem:[#allocation11 + $0x428] sm:$0xff]
    %v7048 = vld [vmem:[#allocation11 + $0x430] sm:$0xff]
    %v7049 = vld [vmem:[#allocation11 + $0x438] sm:$0xff]
    %v7050 = vld [vmem:[#allocation11 + $0x440] sm:$0xff]
    %v7051 = vld [vmem:[#allocation11 + $0x448] sm:$0xff]
    %v7052 = vld [vmem:[#allocation11 + $0x450] sm:$0xff]
    %v7053 = vld [vmem:[#allocation11 + $0x458] sm:$0xff]
    %v7054 = vld [vmem:[#allocation11 + $0x460] sm:$0xff]
    %v7055 = vld [vmem:[#allocation11 + $0x468] sm:$0xff]
    %v7056 = vld [vmem:[#allocation11 + $0x470] sm:$0xff]
    %v7057 = vld [vmem:[#allocation11 + $0x478] sm:$0xff]
    %v7058 = vld [vmem:[#allocation11 + $0x480] sm:$0xff]
    %v7059 = vld [vmem:[#allocation11 + $0x488] sm:$0xff]
    %v7060 = vld [vmem:[#allocation11 + $0x490] sm:$0xff]
    %v7061 = vld [vmem:[#allocation11 + $0x498] sm:$0xff]
    %v7062 = vld [vmem:[#allocation11 + $0x4a0] sm:$0xff]
    %v7063 = vld [vmem:[#allocation11 + $0x4a8] sm:$0xff]
    %v7064 = vld [vmem:[#allocation11 + $0x4b0] sm:$0xff]
    %v7065 = vld [vmem:[#allocation11 + $0x4b8] sm:$0xff]
    %v7066 = vld [vmem:[#allocation11 + $0x4c0] sm:$0xff]
    %v7067 = vld [vmem:[#allocation11 + $0x4c8] sm:$0xff]
    %v7068 = vld [vmem:[#allocation11 + $0x4d0] sm:$0xff]
    %v7069 = vld [vmem:[#allocation11 + $0x4d8] sm:$0xff]
    %v7070 = vld [vmem:[#allocation11 + $0x4e0] sm:$0xff]
    %v7071 = vld [vmem:[#allocation11 + $0x4e8] sm:$0xff]
    %v7072 = vld [vmem:[#allocation11 + $0x4f0] sm:$0xff]
    %v7073 = vld [vmem:[#allocation11 + $0x4f8] sm:$0xff]
    %v7074 = vld [vmem:[#allocation11 + $0x500] sm:$0xff]
    %v7075 = vld [vmem:[#allocation11 + $0x508] sm:$0xff]
    %v7076 = vld [vmem:[#allocation11 + $0x510] sm:$0xff]
    %v7077 = vld [vmem:[#allocation11 + $0x518] sm:$0xff]
    %v7078 = vld [vmem:[#allocation11 + $0x520] sm:$0xff]
    %v7079 = vld [vmem:[#allocation11 + $0x528] sm:$0xff]
    %v7080 = vld [vmem:[#allocation11 + $0x530] sm:$0xff]
    %v7081 = vld [vmem:[#allocation11 + $0x538] sm:$0xff]
    %v7082 = vld [vmem:[#allocation11 + $0x540] sm:$0xff]
    %v7083 = vld [vmem:[#allocation11 + $0x548] sm:$0xff]
    %v7084 = vld [vmem:[#allocation11 + $0x550] sm:$0xff]
    %v7085 = vld [vmem:[#allocation11 + $0x558] sm:$0xff]
    %v7086 = vld [vmem:[#allocation11 + $0x560] sm:$0xff]
    %v7087 = vld [vmem:[#allocation11 + $0x568] sm:$0xff]
    %v7088 = vld [vmem:[#allocation11 + $0x570] sm:$0xff]
    %v7089 = vld [vmem:[#allocation11 + $0x578] sm:$0xff]
    %v7090 = vld [vmem:[#allocation11 + $0x580] sm:$0xff]
    %v7091 = vld [vmem:[#allocation11 + $0x588] sm:$0xff]
    %v7092 = vld [vmem:[#allocation11 + $0x590] sm:$0xff]
    %v7093 = vld [vmem:[#allocation11 + $0x598] sm:$0xff]
    %v7094 = vld [vmem:[#allocation11 + $0x5a0] sm:$0xff]
    %v7095 = vld [vmem:[#allocation11 + $0x5a8] sm:$0xff]
    %v7096 = vld [vmem:[#allocation11 + $0x5b0] sm:$0xff]
    %v7097 = vld [vmem:[#allocation11 + $0x5b8] sm:$0xff]
    %v7098 = vld [vmem:[#allocation11 + $0x5c0] sm:$0xff]
    %v7099 = vld [vmem:[#allocation11 + $0x5c8] sm:$0xff]
    %v7100 = vld [vmem:[#allocation11 + $0x5d0] sm:$0xff]
    %v7101 = vld [vmem:[#allocation11 + $0x5d8] sm:$0xff]
    %v7102 = vld [vmem:[#allocation11 + $0x5e0] sm:$0xff]
    %v7103 = vld [vmem:[#allocation11 + $0x5e8] sm:$0xff]
    %v7104 = vld [vmem:[#allocation11 + $0x5f0] sm:$0xff]
    %v7105 = vld [vmem:[#allocation11 + $0x5f8] sm:$0xff]
    %7106 = vmatprep.subr.mxu0 %v6975
    %7107 = vmatpush1.msra.mxu0 %v6974
    %7108 = vmatprep.subr.mxu0 %v6971
    %7109 = vmatpush1.msra.mxu0 %v6970
    %7110 = vmatprep.subr.mxu0 %v6967
    %7111 = vmatpush1.msra.mxu0 %v6966
    %7112 = vmatprep.subr.mxu0 %v6963
    %7113 = vmatpush1.msra.mxu0 %v6962
    %7114 = vmatprep.subr.mxu0 %v6959
    %7115 = vmatpush1.msra.mxu0 %v6958
    %7116 = vmatprep.subr.mxu0 %v6955
    %7117 = vmatpush1.msra.mxu0 %v6954
    %7118 = vmatprep.subr.mxu0 %v6951
    %7119 = vmatpush1.msra.mxu0 %v6950
    %7120 = vmatprep.subr.mxu0 %v6947
    %7121 = vmatpush1.msra.mxu0 %v6946
    %7122 = vmatprep.subr.mxu0 %v6943
    %7123 = vmatpush1.msra.mxu0 %v6942
    %7124 = vmatprep.subr.mxu0 %v6939
    %7125 = vmatpush1.msra.mxu0 %v6938
    %7126 = vmatprep.subr.mxu0 %v6935
    %7127 = vmatpush1.msra.mxu0 %v6934
    %7128 = vmatprep.subr.mxu0 %v6931
    %7129 = vmatpush1.msra.mxu0 %v6930
    %7130 = vmatprep.subr.mxu0 %v6927
    %7131 = vmatpush1.msra.mxu0 %v6926
    %7132 = vmatprep.subr.mxu0 %v6923
    %7133 = vmatpush1.msra.mxu0 %v6922
    %7134 = vmatprep.subr.mxu0 %v6919
    %7135 = vmatpush1.msra.mxu0 %v6918
    %7136 = vmatprep.subr.mxu0 %v6915
    %7137 = vmatpush1.msra.mxu0 %v6914
    %7138 = vmatprep.subr.mxu0 %v7039
    %7139 = vmatpush2.msra.mxu0 %v7038
    %7140 = vmatprep.subr.mxu0 %v7035
    %7141 = vmatpush2.msra.mxu0 %v7034
    %7142 = vmatprep.subr.mxu0 %v7031
    %7143 = vmatpush2.msra.mxu0 %v7030
    %7144 = vmatprep.subr.mxu0 %v7027
    %7145 = vmatpush2.msra.mxu0 %v7026
    %7146 = vmatprep.subr.mxu0 %v7023
    %7147 = vmatpush2.msra.mxu0 %v7022
    %7148 = vmatprep.subr.mxu0 %v7019
    %7149 = vmatpush2.msra.mxu0 %v7018
    %7150 = vmatprep.subr.mxu0 %v7015
    %7151 = vmatpush2.msra.mxu0 %v7014
    %7152 = vmatprep.subr.mxu0 %v7011
    %7153 = vmatpush2.msra.mxu0 %v7010
    %7154 = vmatprep.subr.mxu0 %v7007
    %7155 = vmatpush2.msra.mxu0 %v7006
    %7156 = vmatprep.subr.mxu0 %v7003
    %7157 = vmatpush2.msra.mxu0 %v7002
    %7158 = vmatprep.subr.mxu0 %v6999
    %7159 = vmatpush2.msra.mxu0 %v6998
    %7160 = vmatprep.subr.mxu0 %v6995
    %7161 = vmatpush2.msra.mxu0 %v6994
    %7162 = vmatprep.subr.mxu0 %v6991
    %7163 = vmatpush2.msra.mxu0 %v6990
    %7164 = vmatprep.subr.mxu0 %v6987
    %7165 = vmatpush2.msra.mxu0 %v6986
    %7166 = vmatprep.subr.mxu0 %v6983
    %7167 = vmatpush2.msra.mxu0 %v6982
    %7168 = vmatprep.subr.mxu0 %v6979
    %7169 = vmatpush2.msra.mxu0 %v6978
    %7170 = vmatprep.mubr.f32.mxu0 %v6911
    %7171 = vmatmul.mubr.f32.gmra.mxu0 %v5677
    %v7172 = vpop.f32.mrf.mxu0
    %v7173 = vadd.f32 %v434, %v7172
    %v7174 = vpop.f32.mrf.mxu0
    %v7175 = vadd.f32 %v438, %v7174
    %7176 = vdwg.mxu0
    %7177 = vmatprep.subr.mxu0 %v7103
    %7178 = vmatpush1.msra.mxu0 %v7102
    %7179 = vmatprep.subr.mxu0 %v7099
    %7180 = vmatpush1.msra.mxu0 %v7098
    %7181 = vmatprep.subr.mxu0 %v7095
    %7182 = vmatpush1.msra.mxu0 %v7094
    %7183 = vmatprep.subr.mxu0 %v7091
    %7184 = vmatpush1.msra.mxu0 %v7090
    %7185 = vmatprep.subr.mxu0 %v7087
    %7186 = vmatpush1.msra.mxu0 %v7086
    %7187 = vmatprep.subr.mxu0 %v7083
    %7188 = vmatpush1.msra.mxu0 %v7082
    %7189 = vmatprep.subr.mxu0 %v7079
    %7190 = vmatpush1.msra.mxu0 %v7078
    %7191 = vmatprep.subr.mxu0 %v7075
    %7192 = vmatpush1.msra.mxu0 %v7074
    %7193 = vmatprep.subr.mxu0 %v7071
    %7194 = vmatpush1.msra.mxu0 %v7070
    %7195 = vmatprep.subr.mxu0 %v7067
    %7196 = vmatpush1.msra.mxu0 %v7066
    %7197 = vmatprep.subr.mxu0 %v7063
    %7198 = vmatpush1.msra.mxu0 %v7062
    %7199 = vmatprep.subr.mxu0 %v7059
    %7200 = vmatpush1.msra.mxu0 %v7058
    %7201 = vmatprep.subr.mxu0 %v7055
    %7202 = vmatpush1.msra.mxu0 %v7054
    %7203 = vmatprep.subr.mxu0 %v7051
    %7204 = vmatpush1.msra.mxu0 %v7050
    %7205 = vmatprep.subr.mxu0 %v7047
    %7206 = vmatpush1.msra.mxu0 %v7046
    %7207 = vmatprep.subr.mxu0 %v7043
    %7208 = vmatpush1.msra.mxu0 %v7042
    %7209 = vmatprep.subr.mxu0 0.0
    %7210 = vmatpush2.msra.mxu0 0.0
    %7211 = vmatprep.subr.mxu0 0.0
    %7212 = vmatpush2.msra.mxu0 0.0
    %7213 = vmatprep.subr.mxu0 0.0
    %7214 = vmatpush2.msra.mxu0 0.0
    %7215 = vmatprep.subr.mxu0 0.0
    %7216 = vmatpush2.msra.mxu0 0.0
    %7217 = vmatprep.subr.mxu0 0.0
    %7218 = vmatpush2.msra.mxu0 0.0
    %7219 = vmatprep.subr.mxu0 0.0
    %7220 = vmatpush2.msra.mxu0 0.0
    %7221 = vmatprep.subr.mxu0 0.0
    %7222 = vmatpush2.msra.mxu0 0.0
    %7223 = vmatprep.subr.mxu0 0.0
    %7224 = vmatpush2.msra.mxu0 0.0
    %7225 = vmatprep.subr.mxu0 0.0
    %7226 = vmatpush2.msra.mxu0 0.0
    %7227 = vmatprep.subr.mxu0 0.0
    %7228 = vmatpush2.msra.mxu0 0.0
    %7229 = vmatprep.subr.mxu0 0.0
    %7230 = vmatpush2.msra.mxu0 0.0
    %7231 = vmatprep.subr.mxu0 0.0
    %7232 = vmatpush2.msra.mxu0 0.0
    %7233 = vmatprep.subr.mxu0 0.0
    %7234 = vmatpush2.msra.mxu0 0.0
    %7235 = vmatprep.subr.mxu0 0.0
    %7236 = vmatpush2.msra.mxu0 0.0
    %7237 = vmatprep.subr.mxu0 0.0
    %7238 = vmatpush2.msra.mxu0 0.0
    %7239 = vmatprep.subr.mxu0 0.0
    %7240 = vmatpush2.msra.mxu0 0.0
    %7241 = vmatprep.mubr.f32.mxu0 0.0
    %7242 = vmatmul.mubr.f32.gmra.mxu0 %v5068
    %v7243 = vpop.f32.mrf.mxu0
    %v7244 = vadd.f32 %v7173, %v7243
    %v7245 = vpop.f32.mrf.mxu0
    %v7246 = vadd.f32 %v7175, %v7245
    %7247 = vdwg.mxu0
    %7248 = vmatprep.subr.mxu0 %v6977
    %7249 = vmatpush1.msra.mxu0 %v6976
    %7250 = vmatprep.subr.mxu0 %v6973
    %7251 = vmatpush1.msra.mxu0 %v6972
    %7252 = vmatprep.subr.mxu0 %v6969
    %7253 = vmatpush1.msra.mxu0 %v6968
    %7254 = vmatprep.subr.mxu0 %v6965
    %7255 = vmatpush1.msra.mxu0 %v6964
    %7256 = vmatprep.subr.mxu0 %v6961
    %7257 = vmatpush1.msra.mxu0 %v6960
    %7258 = vmatprep.subr.mxu0 %v6957
    %7259 = vmatpush1.msra.mxu0 %v6956
    %7260 = vmatprep.subr.mxu0 %v6953
    %7261 = vmatpush1.msra.mxu0 %v6952
    %7262 = vmatprep.subr.mxu0 %v6949
    %7263 = vmatpush1.msra.mxu0 %v6948
    %7264 = vmatprep.subr.mxu0 %v6945
    %7265 = vmatpush1.msra.mxu0 %v6944
    %7266 = vmatprep.subr.mxu0 %v6941
    %7267 = vmatpush1.msra.mxu0 %v6940
    %7268 = vmatprep.subr.mxu0 %v6937
    %7269 = vmatpush1.msra.mxu0 %v6936
    %7270 = vmatprep.subr.mxu0 %v6933
    %7271 = vmatpush1.msra.mxu0 %v6932
    %7272 = vmatprep.subr.mxu0 %v6929
    %7273 = vmatpush1.msra.mxu0 %v6928
    %7274 = vmatprep.subr.mxu0 %v6925
    %7275 = vmatpush1.msra.mxu0 %v6924
    %7276 = vmatprep.subr.mxu0 %v6921
    %7277 = vmatpush1.msra.mxu0 %v6920
    %7278 = vmatprep.subr.mxu0 %v6917
    %7279 = vmatpush1.msra.mxu0 %v6916
    %7280 = vmatprep.subr.mxu0 %v7041
    %7281 = vmatpush2.msra.mxu0 %v7040
    %7282 = vmatprep.subr.mxu0 %v7037
    %7283 = vmatpush2.msra.mxu0 %v7036
    %7284 = vmatprep.subr.mxu0 %v7033
    %7285 = vmatpush2.msra.mxu0 %v7032
    %7286 = vmatprep.subr.mxu0 %v7029
    %7287 = vmatpush2.msra.mxu0 %v7028
    %7288 = vmatprep.subr.mxu0 %v7025
    %7289 = vmatpush2.msra.mxu0 %v7024
    %7290 = vmatprep.subr.mxu0 %v7021
    %7291 = vmatpush2.msra.mxu0 %v7020
    %7292 = vmatprep.subr.mxu0 %v7017
    %7293 = vmatpush2.msra.mxu0 %v7016
    %7294 = vmatprep.subr.mxu0 %v7013
    %7295 = vmatpush2.msra.mxu0 %v7012
    %7296 = vmatprep.subr.mxu0 %v7009
    %7297 = vmatpush2.msra.mxu0 %v7008
    %7298 = vmatprep.subr.mxu0 %v7005
    %7299 = vmatpush2.msra.mxu0 %v7004
    %7300 = vmatprep.subr.mxu0 %v7001
    %7301 = vmatpush2.msra.mxu0 %v7000
    %7302 = vmatprep.subr.mxu0 %v6997
    %7303 = vmatpush2.msra.mxu0 %v6996
    %7304 = vmatprep.subr.mxu0 %v6993
    %7305 = vmatpush2.msra.mxu0 %v6992
    %7306 = vmatprep.subr.mxu0 %v6989
    %7307 = vmatpush2.msra.mxu0 %v6988
    %7308 = vmatprep.subr.mxu0 %v6985
    %7309 = vmatpush2.msra.mxu0 %v6984
    %7310 = vmatprep.subr.mxu0 %v6981
    %7311 = vmatpush2.msra.mxu0 %v6980
    %7312 = vmatprep.mubr.f32.mxu0 %v6911
    %7313 = vmatmul.mubr.f32.gmra.mxu0 %v5677
    %v7314 = vpop.f32.mrf.mxu0
    %v7315 = vadd.f32 %v442, %v7314
    %v7316 = vpop.f32.mrf.mxu0
    %v7317 = vadd.f32 %v446, %v7316
    %7318 = vdwg.mxu0
    %7319 = vmatprep.subr.mxu0 %v7105
    %7320 = vmatpush1.msra.mxu0 %v7104
    %7321 = vmatprep.subr.mxu0 %v7101
    %7322 = vmatpush1.msra.mxu0 %v7100
    %7323 = vmatprep.subr.mxu0 %v7097
    %7324 = vmatpush1.msra.mxu0 %v7096
    %7325 = vmatprep.subr.mxu0 %v7093
    %7326 = vmatpush1.msra.mxu0 %v7092
    %7327 = vmatprep.subr.mxu0 %v7089
    %7328 = vmatpush1.msra.mxu0 %v7088
    %7329 = vmatprep.subr.mxu0 %v7085
    %7330 = vmatpush1.msra.mxu0 %v7084
    %7331 = vmatprep.subr.mxu0 %v7081
    %7332 = vmatpush1.msra.mxu0 %v7080
    %7333 = vmatprep.subr.mxu0 %v7077
    %7334 = vmatpush1.msra.mxu0 %v7076
    %7335 = vmatprep.subr.mxu0 %v7073
    %7336 = vmatpush1.msra.mxu0 %v7072
    %7337 = vmatprep.subr.mxu0 %v7069
    %7338 = vmatpush1.msra.mxu0 %v7068
    %7339 = vmatprep.subr.mxu0 %v7065
    %7340 = vmatpush1.msra.mxu0 %v7064
    %7341 = vmatprep.subr.mxu0 %v7061
    %7342 = vmatpush1.msra.mxu0 %v7060
    %7343 = vmatprep.subr.mxu0 %v7057
    %7344 = vmatpush1.msra.mxu0 %v7056
    %7345 = vmatprep.subr.mxu0 %v7053
    %7346 = vmatpush1.msra.mxu0 %v7052
    %7347 = vmatprep.subr.mxu0 %v7049
    %7348 = vmatpush1.msra.mxu0 %v7048
    %7349 = vmatprep.subr.mxu0 %v7045
    %7350 = vmatpush1.msra.mxu0 %v7044
    %7351 = vmatprep.subr.mxu0 0.0
    %7352 = vmatpush2.msra.mxu0 0.0
    %7353 = vmatprep.subr.mxu0 0.0
    %7354 = vmatpush2.msra.mxu0 0.0
    %7355 = vmatprep.subr.mxu0 0.0
    %7356 = vmatpush2.msra.mxu0 0.0
    %7357 = vmatprep.subr.mxu0 0.0
    %7358 = vmatpush2.msra.mxu0 0.0
    %7359 = vmatprep.subr.mxu0 0.0
    %7360 = vmatpush2.msra.mxu0 0.0
    %7361 = vmatprep.subr.mxu0 0.0
    %7362 = vmatpush2.msra.mxu0 0.0
    %7363 = vmatprep.subr.mxu0 0.0
    %7364 = vmatpush2.msra.mxu0 0.0
    %7365 = vmatprep.subr.mxu0 0.0
    %7366 = vmatpush2.msra.mxu0 0.0
    %7367 = vmatprep.subr.mxu0 0.0
    %7368 = vmatpush2.msra.mxu0 0.0
    %7369 = vmatprep.subr.mxu0 0.0
    %7370 = vmatpush2.msra.mxu0 0.0
    %7371 = vmatprep.subr.mxu0 0.0
    %7372 = vmatpush2.msra.mxu0 0.0
    %7373 = vmatprep.subr.mxu0 0.0
    %7374 = vmatpush2.msra.mxu0 0.0
    %7375 = vmatprep.subr.mxu0 0.0
    %7376 = vmatpush2.msra.mxu0 0.0
    %7377 = vmatprep.subr.mxu0 0.0
    %7378 = vmatpush2.msra.mxu0 0.0
    %7379 = vmatprep.subr.mxu0 0.0
    %7380 = vmatpush2.msra.mxu0 0.0
    %7381 = vmatprep.subr.mxu0 0.0
    %7382 = vmatpush2.msra.mxu0 0.0
    %7383 = vmatprep.mubr.f32.mxu0 0.0
    %7384 = vmatmul.mubr.f32.gmra.mxu0 %v5068
    %v7385 = vpop.f32.mrf.mxu0
    %v7386 = vadd.f32 %v7315, %v7385
    %v7387 = vpop.f32.mrf.mxu0
    %v7388 = vadd.f32 %v7317, %v7387
    %7389 = vdwg.mxu0
    %v7390 = vxor.u32 %v7244, 2147483648
    %v7391 = vmul.f32 %v7390, 1.442695
    %v7392 = vpow.pop %v7391
    %v7393 = vadd.f32 %v7392, 1.0
    %v7394 = vrcp.pop %v7393
    %v7395 = vmul.f32 1.0, %v7394
    %v7396 = vxor.u32 %v7246, 2147483648
    %v7397 = vmul.f32 %v7396, 1.442695
    %v7398 = vpow.pop %v7397
    %v7399 = vadd.f32 %v7398, 1.0
    %v7400 = vrcp.pop %v7399
    %v7401 = vmul.f32 1.0, %v7400
    %v7402 = vtanh.pop %v7386
    %v7403 = vxor.u32 %v7388, 2147483648
    %v7404 = vmul.f32 %v7403, 1.442695
    %v7405 = vpow.pop %v7404
    %v7406 = vadd.f32 %v7405, 1.0
    %v7407 = vrcp.pop %v7406
    %v7408 = vmul.f32 1.0, %v7407
    %v7409 = vmul.f32 %v7401, %v5066
    %v7410 = vmul.f32 %v7395, %v7402
    %v7411 = vadd.f32 %v7409, %v7410
    %v7412 = vtanh.pop %v7411
    %v7413 = vmul.f32 %v7408, %v7412
    %v7414 = vld [vmem:[%s12] sm:$0xff]
    %v7415 = vld [vmem:[%s12 + $0x8] sm:$0xff]
    %v7416 = vld [vmem:[%s12 + $0x10] sm:$0xff]
    %v7417 = vld [vmem:[%s12 + $0x18] sm:$0xff]
    %v7418 = vld [vmem:[%s12 + $0x20] sm:$0xff]
    %v7419 = vld [vmem:[%s12 + $0x28] sm:$0xff]
    %v7420 = vld [vmem:[%s12 + $0x30] sm:$0xff]
    %v7421 = vld [vmem:[%s12 + $0x38] sm:$0xff]
    %v7422 = vld [vmem:[%s12 + $0x40] sm:$0xff]
    %v7423 = vld [vmem:[%s12 + $0x48] sm:$0xff]
    %v7424 = vld [vmem:[%s12 + $0x50] sm:$0xff]
    %v7425 = vld [vmem:[%s12 + $0x58] sm:$0xff]
    %v7426 = vld [vmem:[%s12 + $0x60] sm:$0xff]
    %v7427 = vld [vmem:[%s12 + $0x68] sm:$0xff]
    %v7428 = vld [vmem:[%s12 + $0x70] sm:$0xff]
    %v7429 = vld [vmem:[%s12 + $0x78] sm:$0xff]
    %v7430 = vld [vmem:[%s12 + $0x80] sm:$0xff]
    %v7431 = vld [vmem:[%s12 + $0x88] sm:$0xff]
    %v7432 = vld [vmem:[%s12 + $0x90] sm:$0xff]
    %v7433 = vld [vmem:[%s12 + $0x98] sm:$0xff]
    %v7434 = vld [vmem:[%s12 + $0xa0] sm:$0xff]
    %v7435 = vld [vmem:[%s12 + $0xa8] sm:$0xff]
    %v7436 = vld [vmem:[%s12 + $0xb0] sm:$0xff]
    %v7437 = vld [vmem:[%s12 + $0xb8] sm:$0xff]
    %v7438 = vld [vmem:[%s12 + $0xc0] sm:$0xff]
    %v7439 = vld [vmem:[%s12 + $0xc8] sm:$0xff]
    %v7440 = vld [vmem:[%s12 + $0xd0] sm:$0xff]
    %v7441 = vld [vmem:[%s12 + $0xd8] sm:$0xff]
    %v7442 = vld [vmem:[%s12 + $0xe0] sm:$0xff]
    %v7443 = vld [vmem:[%s12 + $0xe8] sm:$0xff]
    %v7444 = vld [vmem:[%s12 + $0xf0] sm:$0xff]
    %v7445 = vld [vmem:[%s12 + $0xf8] sm:$0xff]
    %7446 = vmatprep.subr.mxu0 0.0
    %7447 = vmatpush1.msra.mxu0 %v7429
    %7448 = vmatprep.subr.mxu0 0.0
    %7449 = vmatpush1.msra.mxu0 %v7428
    %7450 = vmatprep.subr.mxu0 0.0
    %7451 = vmatpush1.msra.mxu0 %v7427
    %7452 = vmatprep.subr.mxu0 0.0
    %7453 = vmatpush1.msra.mxu0 %v7426
    %7454 = vmatprep.subr.mxu0 0.0
    %7455 = vmatpush1.msra.mxu0 %v7425
    %7456 = vmatprep.subr.mxu0 0.0
    %7457 = vmatpush1.msra.mxu0 %v7424
    %7458 = vmatprep.subr.mxu0 0.0
    %7459 = vmatpush1.msra.mxu0 %v7423
    %7460 = vmatprep.subr.mxu0 0.0
    %7461 = vmatpush1.msra.mxu0 %v7422
    %7462 = vmatprep.subr.mxu0 0.0
    %7463 = vmatpush1.msra.mxu0 %v7421
    %7464 = vmatprep.subr.mxu0 0.0
    %7465 = vmatpush1.msra.mxu0 %v7420
    %7466 = vmatprep.subr.mxu0 0.0
    %7467 = vmatpush1.msra.mxu0 %v7419
    %7468 = vmatprep.subr.mxu0 0.0
    %7469 = vmatpush1.msra.mxu0 %v7418
    %7470 = vmatprep.subr.mxu0 0.0
    %7471 = vmatpush1.msra.mxu0 %v7417
    %7472 = vmatprep.subr.mxu0 0.0
    %7473 = vmatpush1.msra.mxu0 %v7416
    %7474 = vmatprep.subr.mxu0 0.0
    %7475 = vmatpush1.msra.mxu0 %v7415
    %7476 = vmatprep.subr.mxu0 0.0
    %7477 = vmatpush1.msra.mxu0 %v7414
    %7478 = vmatprep.subr.mxu0 0.0
    %7479 = vmatpush2.msra.mxu0 %v7445
    %7480 = vmatprep.subr.mxu0 0.0
    %7481 = vmatpush2.msra.mxu0 %v7444
    %7482 = vmatprep.subr.mxu0 0.0
    %7483 = vmatpush2.msra.mxu0 %v7443
    %7484 = vmatprep.subr.mxu0 0.0
    %7485 = vmatpush2.msra.mxu0 %v7442
    %7486 = vmatprep.subr.mxu0 0.0
    %7487 = vmatpush2.msra.mxu0 %v7441
    %7488 = vmatprep.subr.mxu0 0.0
    %7489 = vmatpush2.msra.mxu0 %v7440
    %7490 = vmatprep.subr.mxu0 0.0
    %7491 = vmatpush2.msra.mxu0 %v7439
    %7492 = vmatprep.subr.mxu0 0.0
    %7493 = vmatpush2.msra.mxu0 %v7438
    %7494 = vmatprep.subr.mxu0 0.0
    %7495 = vmatpush2.msra.mxu0 %v7437
    %7496 = vmatprep.subr.mxu0 0.0
    %7497 = vmatpush2.msra.mxu0 %v7436
    %7498 = vmatprep.subr.mxu0 0.0
    %7499 = vmatpush2.msra.mxu0 %v7435
    %7500 = vmatprep.subr.mxu0 0.0
    %7501 = vmatpush2.msra.mxu0 %v7434
    %7502 = vmatprep.subr.mxu0 0.0
    %7503 = vmatpush2.msra.mxu0 %v7433
    %7504 = vmatprep.subr.mxu0 0.0
    %7505 = vmatpush2.msra.mxu0 %v7432
    %7506 = vmatprep.subr.mxu0 0.0
    %7507 = vmatpush2.msra.mxu0 %v7431
    %7508 = vmatprep.subr.mxu0 0.0
    %7509 = vmatpush2.msra.mxu0 %v7430
    %7510 = vmatprep.mubr.f32.mxu0 %v6911
    %7511 = vmatmul.mubr.f32.gmra.mxu0 %v7413
    %v7512 = vpop.f32.mrf.mxu0
    %v7513 = vadd.f32 %v456, %v7512
    %v7514 = vpop.f32.mrf.mxu0
    %7515 = vdwg.mxu0
    %v7516 = vsel %vm2826, %v7513, 0.0
    %v7517 = vsel %vm1075, %v7516, %v6631
    %v7518 = vsel %vm2139, %v7517, 0.0
    %s7519 = scalar_lea.vmem [#allocation14], 16
    %7520 = vst [vmem:[%s7519] sm:$0xff] %v7518
    %s7521 = scalar_lea.vmem [#allocation2], 24
    %v7522 = vld [vmem:[%s7521] sm:$0xff]
    %v7523 = vld [vmem:[#allocation9] sm:$0xff]
    %v7524 = vld [vmem:[#allocation9 + $0x8] sm:$0xff]
    %v7525 = vld [vmem:[#allocation9 + $0x10] sm:$0xff]
    %v7526 = vld [vmem:[#allocation9 + $0x18] sm:$0xff]
    %v7527 = vld [vmem:[#allocation9 + $0x20] sm:$0xff]
    %v7528 = vld [vmem:[#allocation9 + $0x28] sm:$0xff]
    %v7529 = vld [vmem:[#allocation9 + $0x30] sm:$0xff]
    %v7530 = vld [vmem:[#allocation9 + $0x38] sm:$0xff]
    %v7531 = vld [vmem:[#allocation9 + $0x40] sm:$0xff]
    %v7532 = vld [vmem:[#allocation9 + $0x48] sm:$0xff]
    %v7533 = vld [vmem:[#allocation9 + $0x50] sm:$0xff]
    %v7534 = vld [vmem:[#allocation9 + $0x58] sm:$0xff]
    %v7535 = vld [vmem:[#allocation9 + $0x60] sm:$0xff]
    %v7536 = vld [vmem:[#allocation9 + $0x68] sm:$0xff]
    %v7537 = vld [vmem:[#allocation9 + $0x70] sm:$0xff]
    %v7538 = vld [vmem:[#allocation9 + $0x78] sm:$0xff]
    %v7539 = vld [vmem:[#allocation9 + $0x80] sm:$0xff]
    %v7540 = vld [vmem:[#allocation9 + $0x88] sm:$0xff]
    %v7541 = vld [vmem:[#allocation9 + $0x90] sm:$0xff]
    %v7542 = vld [vmem:[#allocation9 + $0x98] sm:$0xff]
    %v7543 = vld [vmem:[#allocation9 + $0xa0] sm:$0xff]
    %v7544 = vld [vmem:[#allocation9 + $0xa8] sm:$0xff]
    %v7545 = vld [vmem:[#allocation9 + $0xb0] sm:$0xff]
    %v7546 = vld [vmem:[#allocation9 + $0xb8] sm:$0xff]
    %v7547 = vld [vmem:[#allocation9 + $0xc0] sm:$0xff]
    %v7548 = vld [vmem:[#allocation9 + $0xc8] sm:$0xff]
    %v7549 = vld [vmem:[#allocation9 + $0xd0] sm:$0xff]
    %v7550 = vld [vmem:[#allocation9 + $0xd8] sm:$0xff]
    %v7551 = vld [vmem:[#allocation9 + $0xe0] sm:$0xff]
    %v7552 = vld [vmem:[#allocation9 + $0xe8] sm:$0xff]
    %v7553 = vld [vmem:[#allocation9 + $0xf0] sm:$0xff]
    %v7554 = vld [vmem:[#allocation9 + $0xf8] sm:$0xff]
    %v7555 = vld [vmem:[#allocation9 + $0x100] sm:$0xff]
    %v7556 = vld [vmem:[#allocation9 + $0x108] sm:$0xff]
    %v7557 = vld [vmem:[#allocation9 + $0x110] sm:$0xff]
    %v7558 = vld [vmem:[#allocation9 + $0x118] sm:$0xff]
    %v7559 = vld [vmem:[#allocation9 + $0x120] sm:$0xff]
    %v7560 = vld [vmem:[#allocation9 + $0x128] sm:$0xff]
    %v7561 = vld [vmem:[#allocation9 + $0x130] sm:$0xff]
    %v7562 = vld [vmem:[#allocation9 + $0x138] sm:$0xff]
    %v7563 = vld [vmem:[#allocation9 + $0x140] sm:$0xff]
    %v7564 = vld [vmem:[#allocation9 + $0x148] sm:$0xff]
    %v7565 = vld [vmem:[#allocation9 + $0x150] sm:$0xff]
    %v7566 = vld [vmem:[#allocation9 + $0x158] sm:$0xff]
    %v7567 = vld [vmem:[#allocation9 + $0x160] sm:$0xff]
    %v7568 = vld [vmem:[#allocation9 + $0x168] sm:$0xff]
    %v7569 = vld [vmem:[#allocation9 + $0x170] sm:$0xff]
    %v7570 = vld [vmem:[#allocation9 + $0x178] sm:$0xff]
    %v7571 = vld [vmem:[#allocation9 + $0x180] sm:$0xff]
    %v7572 = vld [vmem:[#allocation9 + $0x188] sm:$0xff]
    %v7573 = vld [vmem:[#allocation9 + $0x190] sm:$0xff]
    %v7574 = vld [vmem:[#allocation9 + $0x198] sm:$0xff]
    %v7575 = vld [vmem:[#allocation9 + $0x1a0] sm:$0xff]
    %v7576 = vld [vmem:[#allocation9 + $0x1a8] sm:$0xff]
    %v7577 = vld [vmem:[#allocation9 + $0x1b0] sm:$0xff]
    %v7578 = vld [vmem:[#allocation9 + $0x1b8] sm:$0xff]
    %v7579 = vld [vmem:[#allocation9 + $0x1c0] sm:$0xff]
    %v7580 = vld [vmem:[#allocation9 + $0x1c8] sm:$0xff]
    %v7581 = vld [vmem:[#allocation9 + $0x1d0] sm:$0xff]
    %v7582 = vld [vmem:[#allocation9 + $0x1d8] sm:$0xff]
    %v7583 = vld [vmem:[#allocation9 + $0x1e0] sm:$0xff]
    %v7584 = vld [vmem:[#allocation9 + $0x1e8] sm:$0xff]
    %v7585 = vld [vmem:[#allocation9 + $0x1f0] sm:$0xff]
    %v7586 = vld [vmem:[#allocation9 + $0x1f8] sm:$0xff]
    %v7587 = vld [vmem:[#allocation9 + $0x200] sm:$0xff]
    %v7588 = vld [vmem:[#allocation9 + $0x208] sm:$0xff]
    %v7589 = vld [vmem:[#allocation9 + $0x210] sm:$0xff]
    %v7590 = vld [vmem:[#allocation9 + $0x218] sm:$0xff]
    %v7591 = vld [vmem:[#allocation9 + $0x220] sm:$0xff]
    %v7592 = vld [vmem:[#allocation9 + $0x228] sm:$0xff]
    %v7593 = vld [vmem:[#allocation9 + $0x230] sm:$0xff]
    %v7594 = vld [vmem:[#allocation9 + $0x238] sm:$0xff]
    %v7595 = vld [vmem:[#allocation9 + $0x240] sm:$0xff]
    %v7596 = vld [vmem:[#allocation9 + $0x248] sm:$0xff]
    %v7597 = vld [vmem:[#allocation9 + $0x250] sm:$0xff]
    %v7598 = vld [vmem:[#allocation9 + $0x258] sm:$0xff]
    %v7599 = vld [vmem:[#allocation9 + $0x260] sm:$0xff]
    %v7600 = vld [vmem:[#allocation9 + $0x268] sm:$0xff]
    %v7601 = vld [vmem:[#allocation9 + $0x270] sm:$0xff]
    %v7602 = vld [vmem:[#allocation9 + $0x278] sm:$0xff]
    %v7603 = vld [vmem:[#allocation9 + $0x280] sm:$0xff]
    %v7604 = vld [vmem:[#allocation9 + $0x288] sm:$0xff]
    %v7605 = vld [vmem:[#allocation9 + $0x290] sm:$0xff]
    %v7606 = vld [vmem:[#allocation9 + $0x298] sm:$0xff]
    %v7607 = vld [vmem:[#allocation9 + $0x2a0] sm:$0xff]
    %v7608 = vld [vmem:[#allocation9 + $0x2a8] sm:$0xff]
    %v7609 = vld [vmem:[#allocation9 + $0x2b0] sm:$0xff]
    %v7610 = vld [vmem:[#allocation9 + $0x2b8] sm:$0xff]
    %v7611 = vld [vmem:[#allocation9 + $0x2c0] sm:$0xff]
    %v7612 = vld [vmem:[#allocation9 + $0x2c8] sm:$0xff]
    %v7613 = vld [vmem:[#allocation9 + $0x2d0] sm:$0xff]
    %v7614 = vld [vmem:[#allocation9 + $0x2d8] sm:$0xff]
    %v7615 = vld [vmem:[#allocation9 + $0x2e0] sm:$0xff]
    %v7616 = vld [vmem:[#allocation9 + $0x2e8] sm:$0xff]
    %v7617 = vld [vmem:[#allocation9 + $0x2f0] sm:$0xff]
    %v7618 = vld [vmem:[#allocation9 + $0x2f8] sm:$0xff]
    %v7619 = vld [vmem:[#allocation9 + $0x300] sm:$0xff]
    %v7620 = vld [vmem:[#allocation9 + $0x308] sm:$0xff]
    %v7621 = vld [vmem:[#allocation9 + $0x310] sm:$0xff]
    %v7622 = vld [vmem:[#allocation9 + $0x318] sm:$0xff]
    %v7623 = vld [vmem:[#allocation9 + $0x320] sm:$0xff]
    %v7624 = vld [vmem:[#allocation9 + $0x328] sm:$0xff]
    %v7625 = vld [vmem:[#allocation9 + $0x330] sm:$0xff]
    %v7626 = vld [vmem:[#allocation9 + $0x338] sm:$0xff]
    %v7627 = vld [vmem:[#allocation9 + $0x340] sm:$0xff]
    %v7628 = vld [vmem:[#allocation9 + $0x348] sm:$0xff]
    %v7629 = vld [vmem:[#allocation9 + $0x350] sm:$0xff]
    %v7630 = vld [vmem:[#allocation9 + $0x358] sm:$0xff]
    %v7631 = vld [vmem:[#allocation9 + $0x360] sm:$0xff]
    %v7632 = vld [vmem:[#allocation9 + $0x368] sm:$0xff]
    %v7633 = vld [vmem:[#allocation9 + $0x370] sm:$0xff]
    %v7634 = vld [vmem:[#allocation9 + $0x378] sm:$0xff]
    %v7635 = vld [vmem:[#allocation9 + $0x380] sm:$0xff]
    %v7636 = vld [vmem:[#allocation9 + $0x388] sm:$0xff]
    %v7637 = vld [vmem:[#allocation9 + $0x390] sm:$0xff]
    %v7638 = vld [vmem:[#allocation9 + $0x398] sm:$0xff]
    %v7639 = vld [vmem:[#allocation9 + $0x3a0] sm:$0xff]
    %v7640 = vld [vmem:[#allocation9 + $0x3a8] sm:$0xff]
    %v7641 = vld [vmem:[#allocation9 + $0x3b0] sm:$0xff]
    %v7642 = vld [vmem:[#allocation9 + $0x3b8] sm:$0xff]
    %v7643 = vld [vmem:[#allocation9 + $0x3c0] sm:$0xff]
    %v7644 = vld [vmem:[#allocation9 + $0x3c8] sm:$0xff]
    %v7645 = vld [vmem:[#allocation9 + $0x3d0] sm:$0xff]
    %v7646 = vld [vmem:[#allocation9 + $0x3d8] sm:$0xff]
    %v7647 = vld [vmem:[#allocation9 + $0x3e0] sm:$0xff]
    %v7648 = vld [vmem:[#allocation9 + $0x3e8] sm:$0xff]
    %v7649 = vld [vmem:[#allocation9 + $0x3f0] sm:$0xff]
    %v7650 = vld [vmem:[#allocation9 + $0x3f8] sm:$0xff]
    %v7651 = vld [vmem:[#allocation9 + $0x400] sm:$0xff]
    %v7652 = vld [vmem:[#allocation9 + $0x408] sm:$0xff]
    %v7653 = vld [vmem:[#allocation9 + $0x410] sm:$0xff]
    %v7654 = vld [vmem:[#allocation9 + $0x418] sm:$0xff]
    %v7655 = vld [vmem:[#allocation9 + $0x420] sm:$0xff]
    %v7656 = vld [vmem:[#allocation9 + $0x428] sm:$0xff]
    %v7657 = vld [vmem:[#allocation9 + $0x430] sm:$0xff]
    %v7658 = vld [vmem:[#allocation9 + $0x438] sm:$0xff]
    %v7659 = vld [vmem:[#allocation9 + $0x440] sm:$0xff]
    %v7660 = vld [vmem:[#allocation9 + $0x448] sm:$0xff]
    %v7661 = vld [vmem:[#allocation9 + $0x450] sm:$0xff]
    %v7662 = vld [vmem:[#allocation9 + $0x458] sm:$0xff]
    %v7663 = vld [vmem:[#allocation9 + $0x460] sm:$0xff]
    %v7664 = vld [vmem:[#allocation9 + $0x468] sm:$0xff]
    %v7665 = vld [vmem:[#allocation9 + $0x470] sm:$0xff]
    %v7666 = vld [vmem:[#allocation9 + $0x478] sm:$0xff]
    %v7667 = vld [vmem:[#allocation9 + $0x480] sm:$0xff]
    %v7668 = vld [vmem:[#allocation9 + $0x488] sm:$0xff]
    %v7669 = vld [vmem:[#allocation9 + $0x490] sm:$0xff]
    %v7670 = vld [vmem:[#allocation9 + $0x498] sm:$0xff]
    %v7671 = vld [vmem:[#allocation9 + $0x4a0] sm:$0xff]
    %v7672 = vld [vmem:[#allocation9 + $0x4a8] sm:$0xff]
    %v7673 = vld [vmem:[#allocation9 + $0x4b0] sm:$0xff]
    %v7674 = vld [vmem:[#allocation9 + $0x4b8] sm:$0xff]
    %v7675 = vld [vmem:[#allocation9 + $0x4c0] sm:$0xff]
    %v7676 = vld [vmem:[#allocation9 + $0x4c8] sm:$0xff]
    %v7677 = vld [vmem:[#allocation9 + $0x4d0] sm:$0xff]
    %v7678 = vld [vmem:[#allocation9 + $0x4d8] sm:$0xff]
    %v7679 = vld [vmem:[#allocation9 + $0x4e0] sm:$0xff]
    %v7680 = vld [vmem:[#allocation9 + $0x4e8] sm:$0xff]
    %v7681 = vld [vmem:[#allocation9 + $0x4f0] sm:$0xff]
    %v7682 = vld [vmem:[#allocation9 + $0x4f8] sm:$0xff]
    %v7683 = vld [vmem:[#allocation9 + $0x500] sm:$0xff]
    %v7684 = vld [vmem:[#allocation9 + $0x508] sm:$0xff]
    %v7685 = vld [vmem:[#allocation9 + $0x510] sm:$0xff]
    %v7686 = vld [vmem:[#allocation9 + $0x518] sm:$0xff]
    %v7687 = vld [vmem:[#allocation9 + $0x520] sm:$0xff]
    %v7688 = vld [vmem:[#allocation9 + $0x528] sm:$0xff]
    %v7689 = vld [vmem:[#allocation9 + $0x530] sm:$0xff]
    %v7690 = vld [vmem:[#allocation9 + $0x538] sm:$0xff]
    %v7691 = vld [vmem:[#allocation9 + $0x540] sm:$0xff]
    %v7692 = vld [vmem:[#allocation9 + $0x548] sm:$0xff]
    %v7693 = vld [vmem:[#allocation9 + $0x550] sm:$0xff]
    %v7694 = vld [vmem:[#allocation9 + $0x558] sm:$0xff]
    %v7695 = vld [vmem:[#allocation9 + $0x560] sm:$0xff]
    %v7696 = vld [vmem:[#allocation9 + $0x568] sm:$0xff]
    %v7697 = vld [vmem:[#allocation9 + $0x570] sm:$0xff]
    %v7698 = vld [vmem:[#allocation9 + $0x578] sm:$0xff]
    %v7699 = vld [vmem:[#allocation9 + $0x580] sm:$0xff]
    %v7700 = vld [vmem:[#allocation9 + $0x588] sm:$0xff]
    %v7701 = vld [vmem:[#allocation9 + $0x590] sm:$0xff]
    %v7702 = vld [vmem:[#allocation9 + $0x598] sm:$0xff]
    %v7703 = vld [vmem:[#allocation9 + $0x5a0] sm:$0xff]
    %v7704 = vld [vmem:[#allocation9 + $0x5a8] sm:$0xff]
    %v7705 = vld [vmem:[#allocation9 + $0x5b0] sm:$0xff]
    %v7706 = vld [vmem:[#allocation9 + $0x5b8] sm:$0xff]
    %v7707 = vld [vmem:[#allocation9 + $0x5c0] sm:$0xff]
    %v7708 = vld [vmem:[#allocation9 + $0x5c8] sm:$0xff]
    %v7709 = vld [vmem:[#allocation9 + $0x5d0] sm:$0xff]
    %v7710 = vld [vmem:[#allocation9 + $0x5d8] sm:$0xff]
    %v7711 = vld [vmem:[#allocation9 + $0x5e0] sm:$0xff]
    %v7712 = vld [vmem:[#allocation9 + $0x5e8] sm:$0xff]
    %v7713 = vld [vmem:[#allocation9 + $0x5f0] sm:$0xff]
    %v7714 = vld [vmem:[#allocation9 + $0x5f8] sm:$0xff]
    %7715 = vmatprep.subr.mxu0 %v7584
    %7716 = vmatpush1.msra.mxu0 %v7583
    %7717 = vmatprep.subr.mxu0 %v7580
    %7718 = vmatpush1.msra.mxu0 %v7579
    %7719 = vmatprep.subr.mxu0 %v7576
    %7720 = vmatpush1.msra.mxu0 %v7575
    %7721 = vmatprep.subr.mxu0 %v7572
    %7722 = vmatpush1.msra.mxu0 %v7571
    %7723 = vmatprep.subr.mxu0 %v7568
    %7724 = vmatpush1.msra.mxu0 %v7567
    %7725 = vmatprep.subr.mxu0 %v7564
    %7726 = vmatpush1.msra.mxu0 %v7563
    %7727 = vmatprep.subr.mxu0 %v7560
    %7728 = vmatpush1.msra.mxu0 %v7559
    %7729 = vmatprep.subr.mxu0 %v7556
    %7730 = vmatpush1.msra.mxu0 %v7555
    %7731 = vmatprep.subr.mxu0 %v7552
    %7732 = vmatpush1.msra.mxu0 %v7551
    %7733 = vmatprep.subr.mxu0 %v7548
    %7734 = vmatpush1.msra.mxu0 %v7547
    %7735 = vmatprep.subr.mxu0 %v7544
    %7736 = vmatpush1.msra.mxu0 %v7543
    %7737 = vmatprep.subr.mxu0 %v7540
    %7738 = vmatpush1.msra.mxu0 %v7539
    %7739 = vmatprep.subr.mxu0 %v7536
    %7740 = vmatpush1.msra.mxu0 %v7535
    %7741 = vmatprep.subr.mxu0 %v7532
    %7742 = vmatpush1.msra.mxu0 %v7531
    %7743 = vmatprep.subr.mxu0 %v7528
    %7744 = vmatpush1.msra.mxu0 %v7527
    %7745 = vmatprep.subr.mxu0 %v7524
    %7746 = vmatpush1.msra.mxu0 %v7523
    %7747 = vmatprep.subr.mxu0 %v7648
    %7748 = vmatpush2.msra.mxu0 %v7647
    %7749 = vmatprep.subr.mxu0 %v7644
    %7750 = vmatpush2.msra.mxu0 %v7643
    %7751 = vmatprep.subr.mxu0 %v7640
    %7752 = vmatpush2.msra.mxu0 %v7639
    %7753 = vmatprep.subr.mxu0 %v7636
    %7754 = vmatpush2.msra.mxu0 %v7635
    %7755 = vmatprep.subr.mxu0 %v7632
    %7756 = vmatpush2.msra.mxu0 %v7631
    %7757 = vmatprep.subr.mxu0 %v7628
    %7758 = vmatpush2.msra.mxu0 %v7627
    %7759 = vmatprep.subr.mxu0 %v7624
    %7760 = vmatpush2.msra.mxu0 %v7623
    %7761 = vmatprep.subr.mxu0 %v7620
    %7762 = vmatpush2.msra.mxu0 %v7619
    %7763 = vmatprep.subr.mxu0 %v7616
    %7764 = vmatpush2.msra.mxu0 %v7615
    %7765 = vmatprep.subr.mxu0 %v7612
    %7766 = vmatpush2.msra.mxu0 %v7611
    %7767 = vmatprep.subr.mxu0 %v7608
    %7768 = vmatpush2.msra.mxu0 %v7607
    %7769 = vmatprep.subr.mxu0 %v7604
    %7770 = vmatpush2.msra.mxu0 %v7603
    %7771 = vmatprep.subr.mxu0 %v7600
    %7772 = vmatpush2.msra.mxu0 %v7599
    %7773 = vmatprep.subr.mxu0 %v7596
    %7774 = vmatpush2.msra.mxu0 %v7595
    %7775 = vmatprep.subr.mxu0 %v7592
    %7776 = vmatpush2.msra.mxu0 %v7591
    %7777 = vmatprep.subr.mxu0 %v7588
    %7778 = vmatpush2.msra.mxu0 %v7587
    %7779 = vmatprep.mubr.f32.mxu0 %v6911
    %7780 = vmatmul.mubr.f32.gmra.mxu0 %v7522
    %v7781 = vpop.f32.mrf.mxu0
    %v7782 = vadd.f32 %v412, %v7781
    %v7783 = vpop.f32.mrf.mxu0
    %v7784 = vadd.f32 %v416, %v7783
    %7785 = vdwg.mxu0
    %7786 = vmatprep.subr.mxu0 %v7712
    %7787 = vmatpush1.msra.mxu0 %v7711
    %7788 = vmatprep.subr.mxu0 %v7708
    %7789 = vmatpush1.msra.mxu0 %v7707
    %7790 = vmatprep.subr.mxu0 %v7704
    %7791 = vmatpush1.msra.mxu0 %v7703
    %7792 = vmatprep.subr.mxu0 %v7700
    %7793 = vmatpush1.msra.mxu0 %v7699
    %7794 = vmatprep.subr.mxu0 %v7696
    %7795 = vmatpush1.msra.mxu0 %v7695
    %7796 = vmatprep.subr.mxu0 %v7692
    %7797 = vmatpush1.msra.mxu0 %v7691
    %7798 = vmatprep.subr.mxu0 %v7688
    %7799 = vmatpush1.msra.mxu0 %v7687
    %7800 = vmatprep.subr.mxu0 %v7684
    %7801 = vmatpush1.msra.mxu0 %v7683
    %7802 = vmatprep.subr.mxu0 %v7680
    %7803 = vmatpush1.msra.mxu0 %v7679
    %7804 = vmatprep.subr.mxu0 %v7676
    %7805 = vmatpush1.msra.mxu0 %v7675
    %7806 = vmatprep.subr.mxu0 %v7672
    %7807 = vmatpush1.msra.mxu0 %v7671
    %7808 = vmatprep.subr.mxu0 %v7668
    %7809 = vmatpush1.msra.mxu0 %v7667
    %7810 = vmatprep.subr.mxu0 %v7664
    %7811 = vmatpush1.msra.mxu0 %v7663
    %7812 = vmatprep.subr.mxu0 %v7660
    %7813 = vmatpush1.msra.mxu0 %v7659
    %7814 = vmatprep.subr.mxu0 %v7656
    %7815 = vmatpush1.msra.mxu0 %v7655
    %7816 = vmatprep.subr.mxu0 %v7652
    %7817 = vmatpush1.msra.mxu0 %v7651
    %7818 = vmatprep.subr.mxu0 0.0
    %7819 = vmatpush2.msra.mxu0 0.0
    %7820 = vmatprep.subr.mxu0 0.0
    %7821 = vmatpush2.msra.mxu0 0.0
    %7822 = vmatprep.subr.mxu0 0.0
    %7823 = vmatpush2.msra.mxu0 0.0
    %7824 = vmatprep.subr.mxu0 0.0
    %7825 = vmatpush2.msra.mxu0 0.0
    %7826 = vmatprep.subr.mxu0 0.0
    %7827 = vmatpush2.msra.mxu0 0.0
    %7828 = vmatprep.subr.mxu0 0.0
    %7829 = vmatpush2.msra.mxu0 0.0
    %7830 = vmatprep.subr.mxu0 0.0
    %7831 = vmatpush2.msra.mxu0 0.0
    %7832 = vmatprep.subr.mxu0 0.0
    %7833 = vmatpush2.msra.mxu0 0.0
    %7834 = vmatprep.subr.mxu0 0.0
    %7835 = vmatpush2.msra.mxu0 0.0
    %7836 = vmatprep.subr.mxu0 0.0
    %7837 = vmatpush2.msra.mxu0 0.0
    %7838 = vmatprep.subr.mxu0 0.0
    %7839 = vmatpush2.msra.mxu0 0.0
    %7840 = vmatprep.subr.mxu0 0.0
    %7841 = vmatpush2.msra.mxu0 0.0
    %7842 = vmatprep.subr.mxu0 0.0
    %7843 = vmatpush2.msra.mxu0 0.0
    %7844 = vmatprep.subr.mxu0 0.0
    %7845 = vmatpush2.msra.mxu0 0.0
    %7846 = vmatprep.subr.mxu0 0.0
    %7847 = vmatpush2.msra.mxu0 0.0
    %7848 = vmatprep.subr.mxu0 0.0
    %7849 = vmatpush2.msra.mxu0 0.0
    %7850 = vmatprep.mubr.f32.mxu0 0.0
    %7851 = vmatmul.mubr.f32.gmra.mxu0 %v5677
    %v7852 = vpop.f32.mrf.mxu0
    %v7853 = vadd.f32 %v7782, %v7852
    %v7854 = vpop.f32.mrf.mxu0
    %v7855 = vadd.f32 %v7784, %v7854
    %7856 = vdwg.mxu0
    %7857 = vmatprep.subr.mxu0 %v7586
    %7858 = vmatpush1.msra.mxu0 %v7585
    %7859 = vmatprep.subr.mxu0 %v7582
    %7860 = vmatpush1.msra.mxu0 %v7581
    %7861 = vmatprep.subr.mxu0 %v7578
    %7862 = vmatpush1.msra.mxu0 %v7577
    %7863 = vmatprep.subr.mxu0 %v7574
    %7864 = vmatpush1.msra.mxu0 %v7573
    %7865 = vmatprep.subr.mxu0 %v7570
    %7866 = vmatpush1.msra.mxu0 %v7569
    %7867 = vmatprep.subr.mxu0 %v7566
    %7868 = vmatpush1.msra.mxu0 %v7565
    %7869 = vmatprep.subr.mxu0 %v7562
    %7870 = vmatpush1.msra.mxu0 %v7561
    %7871 = vmatprep.subr.mxu0 %v7558
    %7872 = vmatpush1.msra.mxu0 %v7557
    %7873 = vmatprep.subr.mxu0 %v7554
    %7874 = vmatpush1.msra.mxu0 %v7553
    %7875 = vmatprep.subr.mxu0 %v7550
    %7876 = vmatpush1.msra.mxu0 %v7549
    %7877 = vmatprep.subr.mxu0 %v7546
    %7878 = vmatpush1.msra.mxu0 %v7545
    %7879 = vmatprep.subr.mxu0 %v7542
    %7880 = vmatpush1.msra.mxu0 %v7541
    %7881 = vmatprep.subr.mxu0 %v7538
    %7882 = vmatpush1.msra.mxu0 %v7537
    %7883 = vmatprep.subr.mxu0 %v7534
    %7884 = vmatpush1.msra.mxu0 %v7533
    %7885 = vmatprep.subr.mxu0 %v7530
    %7886 = vmatpush1.msra.mxu0 %v7529
    %7887 = vmatprep.subr.mxu0 %v7526
    %7888 = vmatpush1.msra.mxu0 %v7525
    %7889 = vmatprep.subr.mxu0 %v7650
    %7890 = vmatpush2.msra.mxu0 %v7649
    %7891 = vmatprep.subr.mxu0 %v7646
    %7892 = vmatpush2.msra.mxu0 %v7645
    %7893 = vmatprep.subr.mxu0 %v7642
    %7894 = vmatpush2.msra.mxu0 %v7641
    %7895 = vmatprep.subr.mxu0 %v7638
    %7896 = vmatpush2.msra.mxu0 %v7637
    %7897 = vmatprep.subr.mxu0 %v7634
    %7898 = vmatpush2.msra.mxu0 %v7633
    %7899 = vmatprep.subr.mxu0 %v7630
    %7900 = vmatpush2.msra.mxu0 %v7629
    %7901 = vmatprep.subr.mxu0 %v7626
    %7902 = vmatpush2.msra.mxu0 %v7625
    %7903 = vmatprep.subr.mxu0 %v7622
    %7904 = vmatpush2.msra.mxu0 %v7621
    %7905 = vmatprep.subr.mxu0 %v7618
    %7906 = vmatpush2.msra.mxu0 %v7617
    %7907 = vmatprep.subr.mxu0 %v7614
    %7908 = vmatpush2.msra.mxu0 %v7613
    %7909 = vmatprep.subr.mxu0 %v7610
    %7910 = vmatpush2.msra.mxu0 %v7609
    %7911 = vmatprep.subr.mxu0 %v7606
    %7912 = vmatpush2.msra.mxu0 %v7605
    %7913 = vmatprep.subr.mxu0 %v7602
    %7914 = vmatpush2.msra.mxu0 %v7601
    %7915 = vmatprep.subr.mxu0 %v7598
    %7916 = vmatpush2.msra.mxu0 %v7597
    %7917 = vmatprep.subr.mxu0 %v7594
    %7918 = vmatpush2.msra.mxu0 %v7593
    %7919 = vmatprep.subr.mxu0 %v7590
    %7920 = vmatpush2.msra.mxu0 %v7589
    %7921 = vmatprep.mubr.f32.mxu0 %v6911
    %7922 = vmatmul.mubr.f32.gmra.mxu0 %v7522
    %v7923 = vpop.f32.mrf.mxu0
    %v7924 = vadd.f32 %v420, %v7923
    %v7925 = vpop.f32.mrf.mxu0
    %v7926 = vadd.f32 %v424, %v7925
    %7927 = vdwg.mxu0
    %7928 = vmatprep.subr.mxu0 %v7714
    %7929 = vmatpush1.msra.mxu0 %v7713
    %7930 = vmatprep.subr.mxu0 %v7710
    %7931 = vmatpush1.msra.mxu0 %v7709
    %7932 = vmatprep.subr.mxu0 %v7706
    %7933 = vmatpush1.msra.mxu0 %v7705
    %7934 = vmatprep.subr.mxu0 %v7702
    %7935 = vmatpush1.msra.mxu0 %v7701
    %7936 = vmatprep.subr.mxu0 %v7698
    %7937 = vmatpush1.msra.mxu0 %v7697
    %7938 = vmatprep.subr.mxu0 %v7694
    %7939 = vmatpush1.msra.mxu0 %v7693
    %7940 = vmatprep.subr.mxu0 %v7690
    %7941 = vmatpush1.msra.mxu0 %v7689
    %7942 = vmatprep.subr.mxu0 %v7686
    %7943 = vmatpush1.msra.mxu0 %v7685
    %7944 = vmatprep.subr.mxu0 %v7682
    %7945 = vmatpush1.msra.mxu0 %v7681
    %7946 = vmatprep.subr.mxu0 %v7678
    %7947 = vmatpush1.msra.mxu0 %v7677
    %7948 = vmatprep.subr.mxu0 %v7674
    %7949 = vmatpush1.msra.mxu0 %v7673
    %7950 = vmatprep.subr.mxu0 %v7670
    %7951 = vmatpush1.msra.mxu0 %v7669
    %7952 = vmatprep.subr.mxu0 %v7666
    %7953 = vmatpush1.msra.mxu0 %v7665
    %7954 = vmatprep.subr.mxu0 %v7662
    %7955 = vmatpush1.msra.mxu0 %v7661
    %7956 = vmatprep.subr.mxu0 %v7658
    %7957 = vmatpush1.msra.mxu0 %v7657
    %7958 = vmatprep.subr.mxu0 %v7654
    %7959 = vmatpush1.msra.mxu0 %v7653
    %7960 = vmatprep.subr.mxu0 0.0
    %7961 = vmatpush2.msra.mxu0 0.0
    %7962 = vmatprep.subr.mxu0 0.0
    %7963 = vmatpush2.msra.mxu0 0.0
    %7964 = vmatprep.subr.mxu0 0.0
    %7965 = vmatpush2.msra.mxu0 0.0
    %7966 = vmatprep.subr.mxu0 0.0
    %7967 = vmatpush2.msra.mxu0 0.0
    %7968 = vmatprep.subr.mxu0 0.0
    %7969 = vmatpush2.msra.mxu0 0.0
    %7970 = vmatprep.subr.mxu0 0.0
    %7971 = vmatpush2.msra.mxu0 0.0
    %7972 = vmatprep.subr.mxu0 0.0
    %7973 = vmatpush2.msra.mxu0 0.0
    %7974 = vmatprep.subr.mxu0 0.0
    %7975 = vmatpush2.msra.mxu0 0.0
    %7976 = vmatprep.subr.mxu0 0.0
    %7977 = vmatpush2.msra.mxu0 0.0
    %7978 = vmatprep.subr.mxu0 0.0
    %7979 = vmatpush2.msra.mxu0 0.0
    %7980 = vmatprep.subr.mxu0 0.0
    %7981 = vmatpush2.msra.mxu0 0.0
    %7982 = vmatprep.subr.mxu0 0.0
    %7983 = vmatpush2.msra.mxu0 0.0
    %7984 = vmatprep.subr.mxu0 0.0
    %7985 = vmatpush2.msra.mxu0 0.0
    %7986 = vmatprep.subr.mxu0 0.0
    %7987 = vmatpush2.msra.mxu0 0.0
    %7988 = vmatprep.subr.mxu0 0.0
    %7989 = vmatpush2.msra.mxu0 0.0
    %7990 = vmatprep.subr.mxu0 0.0
    %7991 = vmatpush2.msra.mxu0 0.0
    %7992 = vmatprep.mubr.f32.mxu0 0.0
    %7993 = vmatmul.mubr.f32.gmra.mxu0 %v5677
    %v7994 = vpop.f32.mrf.mxu0
    %v7995 = vadd.f32 %v7924, %v7994
    %v7996 = vpop.f32.mrf.mxu0
    %v7997 = vadd.f32 %v7926, %v7996
    %7998 = vdwg.mxu0
    %v7999 = vxor.u32 %v7853, 2147483648
    %v8000 = vmul.f32 %v7999, 1.442695
    %v8001 = vpow.pop %v8000
    %v8002 = vadd.f32 %v8001, 1.0
    %v8003 = vrcp.pop %v8002
    %v8004 = vmul.f32 1.0, %v8003
    %v8005 = vxor.u32 %v7855, 2147483648
    %v8006 = vmul.f32 %v8005, 1.442695
    %v8007 = vpow.pop %v8006
    %v8008 = vadd.f32 %v8007, 1.0
    %v8009 = vrcp.pop %v8008
    %v8010 = vmul.f32 1.0, %v8009
    %v8011 = vtanh.pop %v7995
    %v8012 = vxor.u32 %v7997, 2147483648
    %v8013 = vmul.f32 %v8012, 1.442695
    %v8014 = vpow.pop %v8013
    %v8015 = vadd.f32 %v8014, 1.0
    %v8016 = vrcp.pop %v8015
    %v8017 = vmul.f32 1.0, %v8016
    %v8018 = vmul.f32 %v8010, %v5675
    %v8019 = vmul.f32 %v8004, %v8011
    %v8020 = vadd.f32 %v8018, %v8019
    %v8021 = vtanh.pop %v8020
    %v8022 = vmul.f32 %v8017, %v8021
    %v8023 = vld [vmem:[%s9] sm:$0xff]
    %v8024 = vld [vmem:[%s9 + $0x8] sm:$0xff]
    %v8025 = vld [vmem:[%s9 + $0x10] sm:$0xff]
    %v8026 = vld [vmem:[%s9 + $0x18] sm:$0xff]
    %v8027 = vld [vmem:[%s9 + $0x20] sm:$0xff]
    %v8028 = vld [vmem:[%s9 + $0x28] sm:$0xff]
    %v8029 = vld [vmem:[%s9 + $0x30] sm:$0xff]
    %v8030 = vld [vmem:[%s9 + $0x38] sm:$0xff]
    %v8031 = vld [vmem:[%s9 + $0x40] sm:$0xff]
    %v8032 = vld [vmem:[%s9 + $0x48] sm:$0xff]
    %v8033 = vld [vmem:[%s9 + $0x50] sm:$0xff]
    %v8034 = vld [vmem:[%s9 + $0x58] sm:$0xff]
    %v8035 = vld [vmem:[%s9 + $0x60] sm:$0xff]
    %v8036 = vld [vmem:[%s9 + $0x68] sm:$0xff]
    %v8037 = vld [vmem:[%s9 + $0x70] sm:$0xff]
    %v8038 = vld [vmem:[%s9 + $0x78] sm:$0xff]
    %8039 = vmatprep.subr.mxu0 0.0
    %8040 = vmatpush1.msra.mxu0 %v8038
    %8041 = vmatprep.subr.mxu0 0.0
    %8042 = vmatpush1.msra.mxu0 %v8037
    %8043 = vmatprep.subr.mxu0 0.0
    %8044 = vmatpush1.msra.mxu0 %v8036
    %8045 = vmatprep.subr.mxu0 0.0
    %8046 = vmatpush1.msra.mxu0 %v8035
    %8047 = vmatprep.subr.mxu0 0.0
    %8048 = vmatpush1.msra.mxu0 %v8034
    %8049 = vmatprep.subr.mxu0 0.0
    %8050 = vmatpush1.msra.mxu0 %v8033
    %8051 = vmatprep.subr.mxu0 0.0
    %8052 = vmatpush1.msra.mxu0 %v8032
    %8053 = vmatprep.subr.mxu0 0.0
    %8054 = vmatpush1.msra.mxu0 %v8031
    %8055 = vmatprep.subr.mxu0 0.0
    %8056 = vmatpush1.msra.mxu0 %v8030
    %8057 = vmatprep.subr.mxu0 0.0
    %8058 = vmatpush1.msra.mxu0 %v8029
    %8059 = vmatprep.subr.mxu0 0.0
    %8060 = vmatpush1.msra.mxu0 %v8028
    %8061 = vmatprep.subr.mxu0 0.0
    %8062 = vmatpush1.msra.mxu0 %v8027
    %8063 = vmatprep.subr.mxu0 0.0
    %8064 = vmatpush1.msra.mxu0 %v8026
    %8065 = vmatprep.subr.mxu0 0.0
    %8066 = vmatpush1.msra.mxu0 %v8025
    %8067 = vmatprep.subr.mxu0 0.0
    %8068 = vmatpush1.msra.mxu0 %v8024
    %8069 = vmatprep.subr.mxu0 0.0
    %8070 = vmatpush1.msra.mxu0 %v8023
    %8071 = vmatprep.subr.mxu0 0.0
    %8072 = vmatpush2.msra.mxu0 0.0
    %8073 = vmatprep.subr.mxu0 0.0
    %8074 = vmatpush2.msra.mxu0 0.0
    %8075 = vmatprep.subr.mxu0 0.0
    %8076 = vmatpush2.msra.mxu0 0.0
    %8077 = vmatprep.subr.mxu0 0.0
    %8078 = vmatpush2.msra.mxu0 0.0
    %8079 = vmatprep.subr.mxu0 0.0
    %8080 = vmatpush2.msra.mxu0 0.0
    %8081 = vmatprep.subr.mxu0 0.0
    %8082 = vmatpush2.msra.mxu0 0.0
    %8083 = vmatprep.subr.mxu0 0.0
    %8084 = vmatpush2.msra.mxu0 0.0
    %8085 = vmatprep.subr.mxu0 0.0
    %8086 = vmatpush2.msra.mxu0 0.0
    %8087 = vmatprep.subr.mxu0 0.0
    %8088 = vmatpush2.msra.mxu0 0.0
    %8089 = vmatprep.subr.mxu0 0.0
    %8090 = vmatpush2.msra.mxu0 0.0
    %8091 = vmatprep.subr.mxu0 0.0
    %8092 = vmatpush2.msra.mxu0 0.0
    %8093 = vmatprep.subr.mxu0 0.0
    %8094 = vmatpush2.msra.mxu0 0.0
    %8095 = vmatprep.subr.mxu0 0.0
    %8096 = vmatpush2.msra.mxu0 0.0
    %8097 = vmatprep.subr.mxu0 0.0
    %8098 = vmatpush2.msra.mxu0 0.0
    %8099 = vmatprep.subr.mxu0 0.0
    %8100 = vmatpush2.msra.mxu0 0.0
    %8101 = vmatprep.subr.mxu0 0.0
    %8102 = vmatpush2.msra.mxu0 0.0
    %8103 = vmatprep.mubr.f32.mxu0 0.0
    %8104 = vmatmul.mubr.f32.gmra.mxu0 %v8022
    %v8105 = vpop.f32.mrf.mxu0
    %v8106 = vadd.f32 0.0, %v8105
    %v8107 = vpop.f32.mrf.mxu0
    %8108 = vdwg.mxu0
    %8117 = vset.pattern.permute.xlu0 0
    %8118 = vperm.xlu0 %8117, %v6473
    %v8119 = vpop.permute.xlu0 %8118
    %8120 = vset.pattern.permute.xlu0 0
    %8121 = vperm.xlu0 %8120, %v6474
    %v8122 = vpop.permute.xlu0 %8121
    %8123 = vset.pattern.permute.xlu0 0
    %8124 = vperm.xlu0 %8123, %v6475
    %v8125 = vpop.permute.xlu0 %8124
    %8126 = vset.pattern.permute.xlu0 0
    %8127 = vperm.xlu0 %8126, %v6476
    %v8128 = vpop.permute.xlu0 %8127
    %8129 = vset.pattern.permute.xlu0 0
    %8130 = vperm.xlu0 %8129, %v6477
    %v8131 = vpop.permute.xlu0 %8130
    %8132 = vset.pattern.permute.xlu0 0
    %8133 = vperm.xlu0 %8132, %v6478
    %v8134 = vpop.permute.xlu0 %8133
    %8135 = vset.pattern.permute.xlu0 0
    %8136 = vperm.xlu0 %8135, %v6479
    %v8137 = vpop.permute.xlu0 %8136
    %8138 = vset.pattern.permute.xlu0 0
    %8139 = vperm.xlu0 %8138, %v6480
    %v8140 = vpop.permute.xlu0 %8139
    %v8141 = vlaneseq
    %v8142 = vshrl.u32 %v8141, 7
    %v8143 = vsub.s32 %v1850, %v8142
    %v8144 = vrot.slane %v8119, %v8143
    %v8145 = vlaneseq
    %v8146 = vshrl.u32 %v8145, 7
    %v8147 = vsub.s32 %v1850, %v8146
    %v8148 = vrot.slane %v8122, %v8147
    %v8149 = vlaneseq
    %v8150 = vshrl.u32 %v8149, 7
    %v8151 = vsub.s32 %v1850, %v8150
    %v8152 = vrot.slane %v8125, %v8151
    %v8153 = vlaneseq
    %v8154 = vshrl.u32 %v8153, 7
    %v8155 = vsub.s32 %v1850, %v8154
    %v8156 = vrot.slane %v8128, %v8155
    %v8157 = vlaneseq
    %v8158 = vshrl.u32 %v8157, 7
    %v8159 = vsub.s32 %v1850, %v8158
    %v8160 = vrot.slane %v8131, %v8159
    %v8161 = vlaneseq
    %v8162 = vshrl.u32 %v8161, 7
    %v8163 = vsub.s32 %v1850, %v8162
    %v8164 = vrot.slane %v8134, %v8163
    %v8165 = vlaneseq
    %v8166 = vshrl.u32 %v8165, 7
    %v8167 = vsub.s32 %v1850, %v8166
    %v8168 = vrot.slane %v8137, %v8167
    %v8169 = vlaneseq
    %v8170 = vshrl.u32 %v8169, 7
    %v8171 = vsub.s32 %v1850, %v8170
    %v8172 = vrot.slane %v8140, %v8171
    %v8173 = vsel %vm1702, %v8148, %v8144
    %v8174 = vsel %vm1704, %v8152, %v8173
    %v8175 = vsel %vm1706, %v8156, %v8174
    %v8176 = vsel %vm1708, %v8160, %v8175
    %v8177 = vsel %vm1710, %v8164, %v8176
    %v8178 = vsel %vm1712, %v8168, %v8177
    %v8179 = vsel %vm1714, %v8172, %v8178
    %v8181 = vsel %vm136, %v6551, %v8179
    %v8182 = vld [vmem:[#allocation12] sm:$0xff]
    %v8183 = vld [vmem:[#allocation12 + $0x8] sm:$0xff]
    %v8184 = vld [vmem:[#allocation12 + $0x10] sm:$0xff]
    %v8185 = vld [vmem:[#allocation12 + $0x18] sm:$0xff]
    %v8186 = vld [vmem:[#allocation12 + $0x20] sm:$0xff]
    %v8187 = vld [vmem:[#allocation12 + $0x28] sm:$0xff]
    %v8188 = vld [vmem:[#allocation12 + $0x30] sm:$0xff]
    %v8189 = vld [vmem:[#allocation12 + $0x38] sm:$0xff]
    %v8190 = vld [vmem:[#allocation12 + $0x40] sm:$0xff]
    %v8191 = vld [vmem:[#allocation12 + $0x48] sm:$0xff]
    %v8192 = vld [vmem:[#allocation12 + $0x50] sm:$0xff]
    %v8193 = vld [vmem:[#allocation12 + $0x58] sm:$0xff]
    %v8194 = vld [vmem:[#allocation12 + $0x60] sm:$0xff]
    %v8195 = vld [vmem:[#allocation12 + $0x68] sm:$0xff]
    %v8196 = vld [vmem:[#allocation12 + $0x70] sm:$0xff]
    %v8197 = vld [vmem:[#allocation12 + $0x78] sm:$0xff]
    %v8199 = vsel %vm1075, %v8181, 0
    %8201 = vmatprep.subr.mxu0 0.0
    %8202 = vmatpush1.msra.mxu0 0.0
    %8203 = vmatprep.subr.mxu0 0.0
    %8204 = vmatpush1.msra.mxu0 0.0
    %8205 = vmatprep.subr.mxu0 0.0
    %8206 = vmatpush1.msra.mxu0 0.0
    %8207 = vmatprep.subr.mxu0 0.0
    %8208 = vmatpush1.msra.mxu0 0.0
    %8209 = vmatprep.subr.mxu0 0.0
    %8210 = vmatpush1.msra.mxu0 0.0
    %8211 = vmatprep.subr.mxu0 0.0
    %8212 = vmatpush1.msra.mxu0 0.0
    %8213 = vmatprep.subr.mxu0 0.0
    %8214 = vmatpush1.msra.mxu0 0.0
    %8215 = vmatprep.subr.mxu0 0.0
    %8216 = vmatpush1.msra.mxu0 0.0
    %8217 = vmatprep.subr.mxu0 0.0
    %8218 = vmatpush1.msra.mxu0 0.0
    %8219 = vmatprep.subr.mxu0 0.0
    %8220 = vmatpush1.msra.mxu0 0.0
    %8221 = vmatprep.subr.mxu0 0.0
    %8222 = vmatpush1.msra.mxu0 0.0
    %8223 = vmatprep.subr.mxu0 0.0
    %8224 = vmatpush1.msra.mxu0 0.0
    %8225 = vmatprep.subr.mxu0 0.0
    %8226 = vmatpush1.msra.mxu0 0.0
    %8227 = vmatprep.subr.mxu0 0.0
    %8228 = vmatpush1.msra.mxu0 0.0
    %8229 = vmatprep.subr.mxu0 %v8191
    %8230 = vmatpush1.msra.mxu0 %v8190
    %8231 = vmatprep.subr.mxu0 %v8183
    %8232 = vmatpush1.msra.mxu0 %v8182
    %8233 = vmatprep.subr.mxu0 0.0
    %8234 = vmatpush2.msra.mxu0 0.0
    %8235 = vmatprep.subr.mxu0 0.0
    %8236 = vmatpush2.msra.mxu0 0.0
    %8237 = vmatprep.subr.mxu0 0.0
    %8238 = vmatpush2.msra.mxu0 0.0
    %8239 = vmatprep.subr.mxu0 0.0
    %8240 = vmatpush2.msra.mxu0 0.0
    %8241 = vmatprep.subr.mxu0 0.0
    %8242 = vmatpush2.msra.mxu0 0.0
    %8243 = vmatprep.subr.mxu0 0.0
    %8244 = vmatpush2.msra.mxu0 0.0
    %8245 = vmatprep.subr.mxu0 0.0
    %8246 = vmatpush2.msra.mxu0 0.0
    %8247 = vmatprep.subr.mxu0 0.0
    %8248 = vmatpush2.msra.mxu0 0.0
    %8249 = vmatprep.subr.mxu0 0.0
    %8250 = vmatpush2.msra.mxu0 0.0
    %8251 = vmatprep.subr.mxu0 0.0
    %8252 = vmatpush2.msra.mxu0 0.0
    %8253 = vmatprep.subr.mxu0 0.0
    %8254 = vmatpush2.msra.mxu0 0.0
    %8255 = vmatprep.subr.mxu0 0.0
    %8256 = vmatpush2.msra.mxu0 0.0
    %8257 = vmatprep.subr.mxu0 0.0
    %8258 = vmatpush2.msra.mxu0 0.0
    %8259 = vmatprep.subr.mxu0 0.0
    %8260 = vmatpush2.msra.mxu0 0.0
    %8261 = vmatprep.subr.mxu0 0.0
    %8262 = vmatpush2.msra.mxu0 0.0
    %8263 = vmatprep.subr.mxu0 0.0
    %8264 = vmatpush2.msra.mxu0 0.0
    %8265 = vmatprep.mubr.f32.mxu0 0.0
    %8266 = vmatmul.mubr.f32.gmra.mxu0 %v8199
    %v8267 = vpop.f32.mrf.mxu0
    %v8268 = vadd.f32 0.0, %v8267
    %v8269 = vpop.f32.mrf.mxu0
    %v8270 = vadd.f32 0.0, %v8269
    %8271 = vdwg.mxu0
    %8272 = vmatprep.subr.mxu0 0.0
    %8273 = vmatpush1.msra.mxu0 0.0
    %8274 = vmatprep.subr.mxu0 0.0
    %8275 = vmatpush1.msra.mxu0 0.0
    %8276 = vmatprep.subr.mxu0 0.0
    %8277 = vmatpush1.msra.mxu0 0.0
    %8278 = vmatprep.subr.mxu0 0.0
    %8279 = vmatpush1.msra.mxu0 0.0
    %8280 = vmatprep.subr.mxu0 0.0
    %8281 = vmatpush1.msra.mxu0 0.0
    %8282 = vmatprep.subr.mxu0 0.0
    %8283 = vmatpush1.msra.mxu0 0.0
    %8284 = vmatprep.subr.mxu0 0.0
    %8285 = vmatpush1.msra.mxu0 0.0
    %8286 = vmatprep.subr.mxu0 0.0
    %8287 = vmatpush1.msra.mxu0 0.0
    %8288 = vmatprep.subr.mxu0 0.0
    %8289 = vmatpush1.msra.mxu0 0.0
    %8290 = vmatprep.subr.mxu0 0.0
    %8291 = vmatpush1.msra.mxu0 0.0
    %8292 = vmatprep.subr.mxu0 0.0
    %8293 = vmatpush1.msra.mxu0 0.0
    %8294 = vmatprep.subr.mxu0 0.0
    %8295 = vmatpush1.msra.mxu0 0.0
    %8296 = vmatprep.subr.mxu0 0.0
    %8297 = vmatpush1.msra.mxu0 0.0
    %8298 = vmatprep.subr.mxu0 0.0
    %8299 = vmatpush1.msra.mxu0 0.0
    %8300 = vmatprep.subr.mxu0 %v8193
    %8301 = vmatpush1.msra.mxu0 %v8192
    %8302 = vmatprep.subr.mxu0 %v8185
    %8303 = vmatpush1.msra.mxu0 %v8184
    %8304 = vmatprep.subr.mxu0 0.0
    %8305 = vmatpush2.msra.mxu0 0.0
    %8306 = vmatprep.subr.mxu0 0.0
    %8307 = vmatpush2.msra.mxu0 0.0
    %8308 = vmatprep.subr.mxu0 0.0
    %8309 = vmatpush2.msra.mxu0 0.0
    %8310 = vmatprep.subr.mxu0 0.0
    %8311 = vmatpush2.msra.mxu0 0.0
    %8312 = vmatprep.subr.mxu0 0.0
    %8313 = vmatpush2.msra.mxu0 0.0
    %8314 = vmatprep.subr.mxu0 0.0
    %8315 = vmatpush2.msra.mxu0 0.0
    %8316 = vmatprep.subr.mxu0 0.0
    %8317 = vmatpush2.msra.mxu0 0.0
    %8318 = vmatprep.subr.mxu0 0.0
    %8319 = vmatpush2.msra.mxu0 0.0
    %8320 = vmatprep.subr.mxu0 0.0
    %8321 = vmatpush2.msra.mxu0 0.0
    %8322 = vmatprep.subr.mxu0 0.0
    %8323 = vmatpush2.msra.mxu0 0.0
    %8324 = vmatprep.subr.mxu0 0.0
    %8325 = vmatpush2.msra.mxu0 0.0
    %8326 = vmatprep.subr.mxu0 0.0
    %8327 = vmatpush2.msra.mxu0 0.0
    %8328 = vmatprep.subr.mxu0 0.0
    %8329 = vmatpush2.msra.mxu0 0.0
    %8330 = vmatprep.subr.mxu0 0.0
    %8331 = vmatpush2.msra.mxu0 0.0
    %8332 = vmatprep.subr.mxu0 0.0
    %8333 = vmatpush2.msra.mxu0 0.0
    %8334 = vmatprep.subr.mxu0 0.0
    %8335 = vmatpush2.msra.mxu0 0.0
    %8336 = vmatprep.mubr.f32.mxu0 0.0
    %8337 = vmatmul.mubr.f32.gmra.mxu0 %v8199
    %v8338 = vpop.f32.mrf.mxu0
    %v8339 = vadd.f32 0.0, %v8338
    %v8340 = vpop.f32.mrf.mxu0
    %v8341 = vadd.f32 0.0, %v8340
    %8342 = vdwg.mxu0
    %8343 = vmatprep.subr.mxu0 0.0
    %8344 = vmatpush1.msra.mxu0 0.0
    %8345 = vmatprep.subr.mxu0 0.0
    %8346 = vmatpush1.msra.mxu0 0.0
    %8347 = vmatprep.subr.mxu0 0.0
    %8348 = vmatpush1.msra.mxu0 0.0
    %8349 = vmatprep.subr.mxu0 0.0
    %8350 = vmatpush1.msra.mxu0 0.0
    %8351 = vmatprep.subr.mxu0 0.0
    %8352 = vmatpush1.msra.mxu0 0.0
    %8353 = vmatprep.subr.mxu0 0.0
    %8354 = vmatpush1.msra.mxu0 0.0
    %8355 = vmatprep.subr.mxu0 0.0
    %8356 = vmatpush1.msra.mxu0 0.0
    %8357 = vmatprep.subr.mxu0 0.0
    %8358 = vmatpush1.msra.mxu0 0.0
    %8359 = vmatprep.subr.mxu0 0.0
    %8360 = vmatpush1.msra.mxu0 0.0
    %8361 = vmatprep.subr.mxu0 0.0
    %8362 = vmatpush1.msra.mxu0 0.0
    %8363 = vmatprep.subr.mxu0 0.0
    %8364 = vmatpush1.msra.mxu0 0.0
    %8365 = vmatprep.subr.mxu0 0.0
    %8366 = vmatpush1.msra.mxu0 0.0
    %8367 = vmatprep.subr.mxu0 0.0
    %8368 = vmatpush1.msra.mxu0 0.0
    %8369 = vmatprep.subr.mxu0 0.0
    %8370 = vmatpush1.msra.mxu0 0.0
    %8371 = vmatprep.subr.mxu0 %v8195
    %8372 = vmatpush1.msra.mxu0 %v8194
    %8373 = vmatprep.subr.mxu0 %v8187
    %8374 = vmatpush1.msra.mxu0 %v8186
    %8375 = vmatprep.subr.mxu0 0.0
    %8376 = vmatpush2.msra.mxu0 0.0
    %8377 = vmatprep.subr.mxu0 0.0
    %8378 = vmatpush2.msra.mxu0 0.0
    %8379 = vmatprep.subr.mxu0 0.0
    %8380 = vmatpush2.msra.mxu0 0.0
    %8381 = vmatprep.subr.mxu0 0.0
    %8382 = vmatpush2.msra.mxu0 0.0
    %8383 = vmatprep.subr.mxu0 0.0
    %8384 = vmatpush2.msra.mxu0 0.0
    %8385 = vmatprep.subr.mxu0 0.0
    %8386 = vmatpush2.msra.mxu0 0.0
    %8387 = vmatprep.subr.mxu0 0.0
    %8388 = vmatpush2.msra.mxu0 0.0
    %8389 = vmatprep.subr.mxu0 0.0
    %8390 = vmatpush2.msra.mxu0 0.0
    %8391 = vmatprep.subr.mxu0 0.0
    %8392 = vmatpush2.msra.mxu0 0.0
    %8393 = vmatprep.subr.mxu0 0.0
    %8394 = vmatpush2.msra.mxu0 0.0
    %8395 = vmatprep.subr.mxu0 0.0
    %8396 = vmatpush2.msra.mxu0 0.0
    %8397 = vmatprep.subr.mxu0 0.0
    %8398 = vmatpush2.msra.mxu0 0.0
    %8399 = vmatprep.subr.mxu0 0.0
    %8400 = vmatpush2.msra.mxu0 0.0
    %8401 = vmatprep.subr.mxu0 0.0
    %8402 = vmatpush2.msra.mxu0 0.0
    %8403 = vmatprep.subr.mxu0 0.0
    %8404 = vmatpush2.msra.mxu0 0.0
    %8405 = vmatprep.subr.mxu0 0.0
    %8406 = vmatpush2.msra.mxu0 0.0
    %8407 = vmatprep.mubr.f32.mxu0 0.0
    %8408 = vmatmul.mubr.f32.gmra.mxu0 %v8199
    %v8409 = vpop.f32.mrf.mxu0
    %v8410 = vadd.f32 0.0, %v8409
    %v8411 = vpop.f32.mrf.mxu0
    %v8412 = vadd.f32 0.0, %v8411
    %8413 = vdwg.mxu0
    %8414 = vmatprep.subr.mxu0 0.0
    %8415 = vmatpush1.msra.mxu0 0.0
    %8416 = vmatprep.subr.mxu0 0.0
    %8417 = vmatpush1.msra.mxu0 0.0
    %8418 = vmatprep.subr.mxu0 0.0
    %8419 = vmatpush1.msra.mxu0 0.0
    %8420 = vmatprep.subr.mxu0 0.0
    %8421 = vmatpush1.msra.mxu0 0.0
    %8422 = vmatprep.subr.mxu0 0.0
    %8423 = vmatpush1.msra.mxu0 0.0
    %8424 = vmatprep.subr.mxu0 0.0
    %8425 = vmatpush1.msra.mxu0 0.0
    %8426 = vmatprep.subr.mxu0 0.0
    %8427 = vmatpush1.msra.mxu0 0.0
    %8428 = vmatprep.subr.mxu0 0.0
    %8429 = vmatpush1.msra.mxu0 0.0
    %8430 = vmatprep.subr.mxu0 0.0
    %8431 = vmatpush1.msra.mxu0 0.0
    %8432 = vmatprep.subr.mxu0 0.0
    %8433 = vmatpush1.msra.mxu0 0.0
    %8434 = vmatprep.subr.mxu0 0.0
    %8435 = vmatpush1.msra.mxu0 0.0
    %8436 = vmatprep.subr.mxu0 0.0
    %8437 = vmatpush1.msra.mxu0 0.0
    %8438 = vmatprep.subr.mxu0 0.0
    %8439 = vmatpush1.msra.mxu0 0.0
    %8440 = vmatprep.subr.mxu0 0.0
    %8441 = vmatpush1.msra.mxu0 0.0
    %8442 = vmatprep.subr.mxu0 %v8197
    %8443 = vmatpush1.msra.mxu0 %v8196
    %8444 = vmatprep.subr.mxu0 %v8189
    %8445 = vmatpush1.msra.mxu0 %v8188
    %8446 = vmatprep.subr.mxu0 0.0
    %8447 = vmatpush2.msra.mxu0 0.0
    %8448 = vmatprep.subr.mxu0 0.0
    %8449 = vmatpush2.msra.mxu0 0.0
    %8450 = vmatprep.subr.mxu0 0.0
    %8451 = vmatpush2.msra.mxu0 0.0
    %8452 = vmatprep.subr.mxu0 0.0
    %8453 = vmatpush2.msra.mxu0 0.0
    %8454 = vmatprep.subr.mxu0 0.0
    %8455 = vmatpush2.msra.mxu0 0.0
    %8456 = vmatprep.subr.mxu0 0.0
    %8457 = vmatpush2.msra.mxu0 0.0
    %8458 = vmatprep.subr.mxu0 0.0
    %8459 = vmatpush2.msra.mxu0 0.0
    %8460 = vmatprep.subr.mxu0 0.0
    %8461 = vmatpush2.msra.mxu0 0.0
    %8462 = vmatprep.subr.mxu0 0.0
    %8463 = vmatpush2.msra.mxu0 0.0
    %8464 = vmatprep.subr.mxu0 0.0
    %8465 = vmatpush2.msra.mxu0 0.0
    %8466 = vmatprep.subr.mxu0 0.0
    %8467 = vmatpush2.msra.mxu0 0.0
    %8468 = vmatprep.subr.mxu0 0.0
    %8469 = vmatpush2.msra.mxu0 0.0
    %8470 = vmatprep.subr.mxu0 0.0
    %8471 = vmatpush2.msra.mxu0 0.0
    %8472 = vmatprep.subr.mxu0 0.0
    %8473 = vmatpush2.msra.mxu0 0.0
    %8474 = vmatprep.subr.mxu0 0.0
    %8475 = vmatpush2.msra.mxu0 0.0
    %8476 = vmatprep.subr.mxu0 0.0
    %8477 = vmatpush2.msra.mxu0 0.0
    %8478 = vmatprep.mubr.f32.mxu0 0.0
    %8479 = vmatmul.mubr.f32.gmra.mxu0 %v8199
    %v8480 = vpop.f32.mrf.mxu0
    %v8481 = vadd.f32 0.0, %v8480
    %v8482 = vpop.f32.mrf.mxu0
    %v8483 = vadd.f32 0.0, %v8482
    %8484 = vdwg.mxu0
    %v8485 = vadd.f32 %v8106, %v8268
    %v8486 = vadd.f32 %v8106, %v8270
    %v8487 = vadd.f32 %v8106, %v8339
    %v8488 = vadd.f32 %v8106, %v8341
    %v8489 = vadd.f32 %v8106, %v8410
    %v8490 = vadd.f32 %v8106, %v8412
    %v8491 = vadd.f32 %v8106, %v8481
    %v8492 = vadd.f32 %v8106, %v8483
    %v8493 = vadd.f32 %v8485, %v347
    %v8494 = vadd.f32 %v8486, %v348
    %v8495 = vadd.f32 %v8487, %v349
    %v8496 = vadd.f32 %v8488, %v350
    %v8497 = vadd.f32 %v8489, %v351
    %v8498 = vadd.f32 %v8490, %v352
    %v8499 = vadd.f32 %v8491, %v353
    %v8500 = vadd.f32 %v8492, %v354
    %v8501 = vtanh.pop %v8493
    %v8502 = vtanh.pop %v8494
    %v8503 = vtanh.pop %v8495
    %v8504 = vtanh.pop %v8496
    %v8505 = vtanh.pop %v8497
    %v8506 = vtanh.pop %v8498
    %v8507 = vtanh.pop %v8499
    %v8508 = vtanh.pop %v8500
    %v8509 = vmul.f32 %v8501, %v370
    %v8510 = vmul.f32 %v8502, %v374
    %v8511 = vmul.f32 %v8503, %v378
    %v8512 = vmul.f32 %v8504, %v382
    %v8513 = vmul.f32 %v8505, %v386
    %v8514 = vmul.f32 %v8506, %v390
    %v8515 = vmul.f32 %v8507, %v394
    %v8516 = vmul.f32 %v8508, %v398
    %v8517 = vcombine.low %v8509, %v8511
    %v8518 = vcombine.high %v8509, %v8511
    %v8520 = vunpack.c.l.s4 1983009808
    %v8521 = vunpack.c.0.s8 %v8520
    %v8522 = vlaneseq
    %v8523 = vshrl.u32 %v8522, 7
    %v8524 = vsub.s32 %v8521, %v8523
    %v8525 = vrot.slane %v8517, %v8524
    %v8527 = vunpack.c.l.s4 1983009808
    %v8528 = vunpack.c.0.s8 %v8527
    %v8529 = vlaneseq
    %v8530 = vshrl.u32 %v8529, 7
    %v8531 = vsub.s32 %v8528, %v8530
    %v8532 = vrot.slane %v8518, %v8531
    %v8533 = vcombine.low %v8510, %v8512
    %v8534 = vcombine.high %v8510, %v8512
    %v8536 = vunpack.c.l.s4 1983009808
    %v8537 = vunpack.c.0.s8 %v8536
    %v8538 = vlaneseq
    %v8539 = vshrl.u32 %v8538, 7
    %v8540 = vsub.s32 %v8537, %v8539
    %v8541 = vrot.slane %v8533, %v8540
    %v8543 = vunpack.c.l.s4 1983009808
    %v8544 = vunpack.c.0.s8 %v8543
    %v8545 = vlaneseq
    %v8546 = vshrl.u32 %v8545, 7
    %v8547 = vsub.s32 %v8544, %v8546
    %v8548 = vrot.slane %v8534, %v8547
    %v8549 = vcombine.low %v8513, %v8515
    %v8550 = vcombine.high %v8513, %v8515
    %v8552 = vunpack.c.l.s4 1983009808
    %v8553 = vunpack.c.0.s8 %v8552
    %v8554 = vlaneseq
    %v8555 = vshrl.u32 %v8554, 7
    %v8556 = vsub.s32 %v8553, %v8555
    %v8557 = vrot.slane %v8549, %v8556
    %v8559 = vunpack.c.l.s4 1983009808
    %v8560 = vunpack.c.0.s8 %v8559
    %v8561 = vlaneseq
    %v8562 = vshrl.u32 %v8561, 7
    %v8563 = vsub.s32 %v8560, %v8562
    %v8564 = vrot.slane %v8550, %v8563
    %v8565 = vcombine.low %v8514, %v8516
    %v8566 = vcombine.high %v8514, %v8516
    %v8568 = vunpack.c.l.s4 1983009808
    %v8569 = vunpack.c.0.s8 %v8568
    %v8570 = vlaneseq
    %v8571 = vshrl.u32 %v8570, 7
    %v8572 = vsub.s32 %v8569, %v8571
    %v8573 = vrot.slane %v8565, %v8572
    %v8575 = vunpack.c.l.s4 1983009808
    %v8576 = vunpack.c.0.s8 %v8575
    %v8577 = vlaneseq
    %v8578 = vshrl.u32 %v8577, 7
    %v8579 = vsub.s32 %v8576, %v8578
    %v8580 = vrot.slane %v8566, %v8579
    %v8581 = vcombine.low %v8525, %v8541
    %v8582 = vcombine.high %v8525, %v8541
    %v8584 = vunpack.c.l.s4 1934713408
    %v8585 = vunpack.c.0.s8 %v8584
    %v8586 = vlaneseq
    %v8587 = vshrl.u32 %v8586, 7
    %v8588 = vsub.s32 %v8585, %v8587
    %v8589 = vrot.slane %v8581, %v8588
    %v8591 = vunpack.c.l.s4 1934713408
    %v8592 = vunpack.c.0.s8 %v8591
    %v8593 = vlaneseq
    %v8594 = vshrl.u32 %v8593, 7
    %v8595 = vsub.s32 %v8592, %v8594
    %v8596 = vrot.slane %v8582, %v8595
    %v8597 = vcombine.low %v8532, %v8548
    %v8598 = vcombine.high %v8532, %v8548
    %v8600 = vunpack.c.l.s4 1934713408
    %v8601 = vunpack.c.0.s8 %v8600
    %v8602 = vlaneseq
    %v8603 = vshrl.u32 %v8602, 7
    %v8604 = vsub.s32 %v8601, %v8603
    %v8605 = vrot.slane %v8597, %v8604
    %v8607 = vunpack.c.l.s4 1934713408
    %v8608 = vunpack.c.0.s8 %v8607
    %v8609 = vlaneseq
    %v8610 = vshrl.u32 %v8609, 7
    %v8611 = vsub.s32 %v8608, %v8610
    %v8612 = vrot.slane %v8598, %v8611
    %v8613 = vcombine.low %v8557, %v8573
    %v8614 = vcombine.high %v8557, %v8573
    %v8616 = vunpack.c.l.s4 1934713408
    %v8617 = vunpack.c.0.s8 %v8616
    %v8618 = vlaneseq
    %v8619 = vshrl.u32 %v8618, 7
    %v8620 = vsub.s32 %v8617, %v8619
    %v8621 = vrot.slane %v8613, %v8620
    %v8623 = vunpack.c.l.s4 1934713408
    %v8624 = vunpack.c.0.s8 %v8623
    %v8625 = vlaneseq
    %v8626 = vshrl.u32 %v8625, 7
    %v8627 = vsub.s32 %v8624, %v8626
    %v8628 = vrot.slane %v8614, %v8627
    %v8629 = vcombine.low %v8564, %v8580
    %v8630 = vcombine.high %v8564, %v8580
    %v8632 = vunpack.c.l.s4 1934713408
    %v8633 = vunpack.c.0.s8 %v8632
    %v8634 = vlaneseq
    %v8635 = vshrl.u32 %v8634, 7
    %v8636 = vsub.s32 %v8633, %v8635
    %v8637 = vrot.slane %v8629, %v8636
    %v8639 = vunpack.c.l.s4 1934713408
    %v8640 = vunpack.c.0.s8 %v8639
    %v8641 = vlaneseq
    %v8642 = vshrl.u32 %v8641, 7
    %v8643 = vsub.s32 %v8640, %v8642
    %v8644 = vrot.slane %v8630, %v8643
    %v8645 = vcombine.low %v8589, %v8621
    %v8646 = vcombine.high %v8589, %v8621
    %v8647 = vcombine.low %v8596, %v8628
    %v8648 = vcombine.high %v8596, %v8628
    %v8649 = vcombine.low %v8605, %v8637
    %v8650 = vcombine.high %v8605, %v8637
    %v8651 = vcombine.low %v8612, %v8644
    %v8652 = vcombine.high %v8612, %v8644
    %8653 = vadd.xlane.f32.xlu0 %v8645
    %v8654 = vpop.xlane.xlu0 %8653
    %8655 = vadd.xlane.f32.xlu0 %v8646
    %v8656 = vpop.xlane.xlu0 %8655
    %8657 = vadd.xlane.f32.xlu0 %v8647
    %v8658 = vpop.xlane.xlu0 %8657
    %8659 = vadd.xlane.f32.xlu0 %v8648
    %v8660 = vpop.xlane.xlu0 %8659
    %8661 = vadd.xlane.f32.xlu0 %v8649
    %v8662 = vpop.xlane.xlu0 %8661
    %8663 = vadd.xlane.f32.xlu0 %v8650
    %v8664 = vpop.xlane.xlu0 %8663
    %8665 = vadd.xlane.f32.xlu0 %v8651
    %v8666 = vpop.xlane.xlu0 %8665
    %8667 = vadd.xlane.f32.xlu0 %v8652
    %v8668 = vpop.xlane.xlu0 %8667
    %v8669 = vadd.f32 %v8654, %v1554
    %v8670 = vadd.f32 %v8656, %v1561
    %v8671 = vadd.f32 %v8658, %v1568
    %v8672 = vadd.f32 %v8660, %v1575
    %v8673 = vadd.f32 %v8662, %v1582
    %v8674 = vadd.f32 %v8664, %v1589
    %v8675 = vadd.f32 %v8666, %v1596
    %v8676 = vadd.f32 %v8668, %v1603
    %v8677 = vmul.f32 %v8669, 1.442695
    %v8678 = vpow.pop %v8677
    %v8679 = vmul.f32 %v8670, 1.442695
    %v8680 = vpow.pop %v8679
    %v8681 = vmul.f32 %v8671, 1.442695
    %v8682 = vpow.pop %v8681
    %v8683 = vmul.f32 %v8672, 1.442695
    %v8684 = vpow.pop %v8683
    %v8685 = vmul.f32 %v8673, 1.442695
    %v8686 = vpow.pop %v8685
    %v8687 = vmul.f32 %v8674, 1.442695
    %v8688 = vpow.pop %v8687
    %v8689 = vmul.f32 %v8675, 1.442695
    %v8690 = vpow.pop %v8689
    %v8691 = vmul.f32 %v8676, 1.442695
    %v8692 = vpow.pop %v8691
    %8701 = vset.pattern.permute.xlu0 0
    %8702 = vperm.xlu0 %8701, %v8678
    %v8703 = vpop.permute.xlu0 %8702
    %8704 = vset.pattern.permute.xlu0 0
    %8705 = vperm.xlu0 %8704, %v8680
    %v8706 = vpop.permute.xlu0 %8705
    %8707 = vset.pattern.permute.xlu0 0
    %8708 = vperm.xlu0 %8707, %v8682
    %v8709 = vpop.permute.xlu0 %8708
    %8710 = vset.pattern.permute.xlu0 0
    %8711 = vperm.xlu0 %8710, %v8684
    %v8712 = vpop.permute.xlu0 %8711
    %8713 = vset.pattern.permute.xlu0 0
    %8714 = vperm.xlu0 %8713, %v8686
    %v8715 = vpop.permute.xlu0 %8714
    %8716 = vset.pattern.permute.xlu0 0
    %8717 = vperm.xlu0 %8716, %v8688
    %v8718 = vpop.permute.xlu0 %8717
    %8719 = vset.pattern.permute.xlu0 0
    %8720 = vperm.xlu0 %8719, %v8690
    %v8721 = vpop.permute.xlu0 %8720
    %8722 = vset.pattern.permute.xlu0 0
    %8723 = vperm.xlu0 %8722, %v8692
    %v8724 = vpop.permute.xlu0 %8723
    %v8725 = vlaneseq
    %v8726 = vshrl.u32 %v8725, 7
    %v8727 = vsub.s32 %v1669, %v8726
    %v8728 = vrot.slane %v8703, %v8727
    %v8729 = vlaneseq
    %v8730 = vshrl.u32 %v8729, 7
    %v8731 = vsub.s32 %v1669, %v8730
    %v8732 = vrot.slane %v8706, %v8731
    %v8733 = vlaneseq
    %v8734 = vshrl.u32 %v8733, 7
    %v8735 = vsub.s32 %v1669, %v8734
    %v8736 = vrot.slane %v8709, %v8735
    %v8737 = vlaneseq
    %v8738 = vshrl.u32 %v8737, 7
    %v8739 = vsub.s32 %v1669, %v8738
    %v8740 = vrot.slane %v8712, %v8739
    %v8741 = vlaneseq
    %v8742 = vshrl.u32 %v8741, 7
    %v8743 = vsub.s32 %v1669, %v8742
    %v8744 = vrot.slane %v8715, %v8743
    %v8745 = vlaneseq
    %v8746 = vshrl.u32 %v8745, 7
    %v8747 = vsub.s32 %v1669, %v8746
    %v8748 = vrot.slane %v8718, %v8747
    %v8749 = vlaneseq
    %v8750 = vshrl.u32 %v8749, 7
    %v8751 = vsub.s32 %v1669, %v8750
    %v8752 = vrot.slane %v8721, %v8751
    %v8753 = vlaneseq
    %v8754 = vshrl.u32 %v8753, 7
    %v8755 = vsub.s32 %v1669, %v8754
    %v8756 = vrot.slane %v8724, %v8755
    %v8757 = vsel %vm1702, %v8732, %v8728
    %v8758 = vsel %vm1704, %v8736, %v8757
    %v8759 = vsel %vm1706, %v8740, %v8758
    %v8760 = vsel %vm1708, %v8744, %v8759
    %v8761 = vsel %vm1710, %v8748, %v8760
    %v8762 = vsel %vm1712, %v8752, %v8761
    %v8763 = vsel %vm1714, %v8756, %v8762
    %v8765 = vsel %vm136, %v8763, 0.0
    %8766 = vadd.xlane.f32.xlu0 %v8765
    %v8767 = vpop.xlane.xlu0 %8766
    %v8768 = vrcp.pop %v8767
    %v8770 = vlaneseq
    %v8771 = vshrl.u32 %v8770, 7
    %v8772 = vsub.s32 0, %v8771
    %v8773 = vrot.slane %v8768, %v8772
    %v8774 = vlaneseq
    %v8775 = vshrl.u32 %v8774, 7
    %v8776 = vsub.s32 1, %v8775
    %v8777 = vrot.slane %v8768, %v8776
    %v8778 = vlaneseq
    %v8779 = vshrl.u32 %v8778, 7
    %v8780 = vsub.s32 2, %v8779
    %v8781 = vrot.slane %v8768, %v8780
    %v8782 = vlaneseq
    %v8783 = vshrl.u32 %v8782, 7
    %v8784 = vsub.s32 3, %v8783
    %v8785 = vrot.slane %v8768, %v8784
    %v8786 = vlaneseq
    %v8787 = vshrl.u32 %v8786, 7
    %v8788 = vsub.s32 4, %v8787
    %v8789 = vrot.slane %v8768, %v8788
    %v8790 = vlaneseq
    %v8791 = vshrl.u32 %v8790, 7
    %v8792 = vsub.s32 5, %v8791
    %v8793 = vrot.slane %v8768, %v8792
    %v8794 = vlaneseq
    %v8795 = vshrl.u32 %v8794, 7
    %v8796 = vsub.s32 6, %v8795
    %v8797 = vrot.slane %v8768, %v8796
    %v8798 = vlaneseq
    %v8799 = vshrl.u32 %v8798, 7
    %v8800 = vsub.s32 7, %v8799
    %v8801 = vrot.slane %v8768, %v8800
    %v8810 = vmul.f32 %v8678, %v8773
    %v8811 = vmul.f32 %v8680, %v8777
    %v8812 = vmul.f32 %v8682, %v8781
    %v8813 = vmul.f32 %v8684, %v8785
    %v8814 = vmul.f32 %v8686, %v8789
    %v8815 = vmul.f32 %v8688, %v8793
    %v8816 = vmul.f32 %v8690, %v8797
    %v8817 = vmul.f32 %v8692, %v8801
    %8826 = vset.pattern.permute.xlu0 0
    %8827 = vperm.xlu0 %8826, %v8810
    %v8828 = vpop.permute.xlu0 %8827
    %8829 = vset.pattern.permute.xlu0 0
    %8830 = vperm.xlu0 %8829, %v8811
    %v8831 = vpop.permute.xlu0 %8830
    %8832 = vset.pattern.permute.xlu0 0
    %8833 = vperm.xlu0 %8832, %v8812
    %v8834 = vpop.permute.xlu0 %8833
    %8835 = vset.pattern.permute.xlu0 0
    %8836 = vperm.xlu0 %8835, %v8813
    %v8837 = vpop.permute.xlu0 %8836
    %8838 = vset.pattern.permute.xlu0 0
    %8839 = vperm.xlu0 %8838, %v8814
    %v8840 = vpop.permute.xlu0 %8839
    %8841 = vset.pattern.permute.xlu0 0
    %8842 = vperm.xlu0 %8841, %v8815
    %v8843 = vpop.permute.xlu0 %8842
    %8844 = vset.pattern.permute.xlu0 0
    %8845 = vperm.xlu0 %8844, %v8816
    %v8846 = vpop.permute.xlu0 %8845
    %8847 = vset.pattern.permute.xlu0 0
    %8848 = vperm.xlu0 %8847, %v8817
    %v8849 = vpop.permute.xlu0 %8848
    %v8850 = vlaneseq
    %v8851 = vshrl.u32 %v8850, 7
    %v8852 = vsub.s32 %v1669, %v8851
    %v8853 = vrot.slane %v8828, %v8852
    %v8854 = vlaneseq
    %v8855 = vshrl.u32 %v8854, 7
    %v8856 = vsub.s32 %v1669, %v8855
    %v8857 = vrot.slane %v8831, %v8856
    %v8858 = vlaneseq
    %v8859 = vshrl.u32 %v8858, 7
    %v8860 = vsub.s32 %v1669, %v8859
    %v8861 = vrot.slane %v8834, %v8860
    %v8862 = vlaneseq
    %v8863 = vshrl.u32 %v8862, 7
    %v8864 = vsub.s32 %v1669, %v8863
    %v8865 = vrot.slane %v8837, %v8864
    %v8866 = vlaneseq
    %v8867 = vshrl.u32 %v8866, 7
    %v8868 = vsub.s32 %v1669, %v8867
    %v8869 = vrot.slane %v8840, %v8868
    %v8870 = vlaneseq
    %v8871 = vshrl.u32 %v8870, 7
    %v8872 = vsub.s32 %v1669, %v8871
    %v8873 = vrot.slane %v8843, %v8872
    %v8874 = vlaneseq
    %v8875 = vshrl.u32 %v8874, 7
    %v8876 = vsub.s32 %v1669, %v8875
    %v8877 = vrot.slane %v8846, %v8876
    %v8878 = vlaneseq
    %v8879 = vshrl.u32 %v8878, 7
    %v8880 = vsub.s32 %v1669, %v8879
    %v8881 = vrot.slane %v8849, %v8880
    %v8882 = vsel %vm1702, %v8857, %v8853
    %v8883 = vsel %vm1704, %v8861, %v8882
    %v8884 = vsel %vm1706, %v8865, %v8883
    %v8885 = vsel %vm1708, %v8869, %v8884
    %v8886 = vsel %vm1710, %v8873, %v8885
    %v8887 = vsel %vm1712, %v8877, %v8886
    %v8888 = vsel %vm1714, %v8881, %v8887
    %v8890 = vlaneseq
    %v8891 = vshrl.u32 %v8890, 7
    %v8892 = vsub.s32 %v1850, %v8891
    %v8893 = vrot.slane %v8828, %v8892
    %v8894 = vlaneseq
    %v8895 = vshrl.u32 %v8894, 7
    %v8896 = vsub.s32 %v1850, %v8895
    %v8897 = vrot.slane %v8831, %v8896
    %v8898 = vlaneseq
    %v8899 = vshrl.u32 %v8898, 7
    %v8900 = vsub.s32 %v1850, %v8899
    %v8901 = vrot.slane %v8834, %v8900
    %v8902 = vlaneseq
    %v8903 = vshrl.u32 %v8902, 7
    %v8904 = vsub.s32 %v1850, %v8903
    %v8905 = vrot.slane %v8837, %v8904
    %v8906 = vlaneseq
    %v8907 = vshrl.u32 %v8906, 7
    %v8908 = vsub.s32 %v1850, %v8907
    %v8909 = vrot.slane %v8840, %v8908
    %v8910 = vlaneseq
    %v8911 = vshrl.u32 %v8910, 7
    %v8912 = vsub.s32 %v1850, %v8911
    %v8913 = vrot.slane %v8843, %v8912
    %v8914 = vlaneseq
    %v8915 = vshrl.u32 %v8914, 7
    %v8916 = vsub.s32 %v1850, %v8915
    %v8917 = vrot.slane %v8846, %v8916
    %v8918 = vlaneseq
    %v8919 = vshrl.u32 %v8918, 7
    %v8920 = vsub.s32 %v1850, %v8919
    %v8921 = vrot.slane %v8849, %v8920
    %v8922 = vsel %vm1702, %v8897, %v8893
    %v8923 = vsel %vm1704, %v8901, %v8922
    %v8924 = vsel %vm1706, %v8905, %v8923
    %v8925 = vsel %vm1708, %v8909, %v8924
    %v8926 = vsel %vm1710, %v8913, %v8925
    %v8927 = vsel %vm1712, %v8917, %v8926
    %v8928 = vsel %vm1714, %v8921, %v8927
    %v8930 = vlaneseq
    %v8931 = vshrl.u32 %v8930, 7
    %v8932 = vsub.s32 %v1891, %v8931
    %v8933 = vrot.slane %v8828, %v8932
    %v8934 = vlaneseq
    %v8935 = vshrl.u32 %v8934, 7
    %v8936 = vsub.s32 %v1891, %v8935
    %v8937 = vrot.slane %v8831, %v8936
    %v8938 = vlaneseq
    %v8939 = vshrl.u32 %v8938, 7
    %v8940 = vsub.s32 %v1891, %v8939
    %v8941 = vrot.slane %v8834, %v8940
    %v8942 = vlaneseq
    %v8943 = vshrl.u32 %v8942, 7
    %v8944 = vsub.s32 %v1891, %v8943
    %v8945 = vrot.slane %v8837, %v8944
    %v8946 = vlaneseq
    %v8947 = vshrl.u32 %v8946, 7
    %v8948 = vsub.s32 %v1891, %v8947
    %v8949 = vrot.slane %v8840, %v8948
    %v8950 = vlaneseq
    %v8951 = vshrl.u32 %v8950, 7
    %v8952 = vsub.s32 %v1891, %v8951
    %v8953 = vrot.slane %v8843, %v8952
    %v8954 = vlaneseq
    %v8955 = vshrl.u32 %v8954, 7
    %v8956 = vsub.s32 %v1891, %v8955
    %v8957 = vrot.slane %v8846, %v8956
    %v8958 = vlaneseq
    %v8959 = vshrl.u32 %v8958, 7
    %v8960 = vsub.s32 %v1891, %v8959
    %v8961 = vrot.slane %v8849, %v8960
    %v8962 = vsel %vm1702, %v8937, %v8933
    %v8963 = vsel %vm1704, %v8941, %v8962
    %v8964 = vsel %vm1706, %v8945, %v8963
    %v8965 = vsel %vm1708, %v8949, %v8964
    %v8966 = vsel %vm1710, %v8953, %v8965
    %v8967 = vsel %vm1712, %v8957, %v8966
    %v8968 = vsel %vm1714, %v8961, %v8967
    %v8970 = vlaneseq
    %v8971 = vshrl.u32 %v8970, 7
    %v8972 = vsub.s32 %v1932, %v8971
    %v8973 = vrot.slane %v8828, %v8972
    %v8974 = vlaneseq
    %v8975 = vshrl.u32 %v8974, 7
    %v8976 = vsub.s32 %v1932, %v8975
    %v8977 = vrot.slane %v8831, %v8976
    %v8978 = vlaneseq
    %v8979 = vshrl.u32 %v8978, 7
    %v8980 = vsub.s32 %v1932, %v8979
    %v8981 = vrot.slane %v8834, %v8980
    %v8982 = vlaneseq
    %v8983 = vshrl.u32 %v8982, 7
    %v8984 = vsub.s32 %v1932, %v8983
    %v8985 = vrot.slane %v8837, %v8984
    %v8986 = vlaneseq
    %v8987 = vshrl.u32 %v8986, 7
    %v8988 = vsub.s32 %v1932, %v8987
    %v8989 = vrot.slane %v8840, %v8988
    %v8990 = vlaneseq
    %v8991 = vshrl.u32 %v8990, 7
    %v8992 = vsub.s32 %v1932, %v8991
    %v8993 = vrot.slane %v8843, %v8992
    %v8994 = vlaneseq
    %v8995 = vshrl.u32 %v8994, 7
    %v8996 = vsub.s32 %v1932, %v8995
    %v8997 = vrot.slane %v8846, %v8996
    %v8998 = vlaneseq
    %v8999 = vshrl.u32 %v8998, 7
    %v9000 = vsub.s32 %v1932, %v8999
    %v9001 = vrot.slane %v8849, %v9000
    %v9002 = vsel %vm1702, %v8977, %v8973
    %v9003 = vsel %vm1704, %v8981, %v9002
    %v9004 = vsel %vm1706, %v8985, %v9003
    %v9005 = vsel %vm1708, %v8989, %v9004
    %v9006 = vsel %vm1710, %v8993, %v9005
    %v9007 = vsel %vm1712, %v8997, %v9006
    %v9008 = vsel %vm1714, %v9001, %v9007
    %v9010 = vlaneseq
    %v9011 = vshrl.u32 %v9010, 7
    %v9012 = vsub.s32 %v1973, %v9011
    %v9013 = vrot.slane %v8828, %v9012
    %v9014 = vlaneseq
    %v9015 = vshrl.u32 %v9014, 7
    %v9016 = vsub.s32 %v1973, %v9015
    %v9017 = vrot.slane %v8831, %v9016
    %v9018 = vlaneseq
    %v9019 = vshrl.u32 %v9018, 7
    %v9020 = vsub.s32 %v1973, %v9019
    %v9021 = vrot.slane %v8834, %v9020
    %v9022 = vlaneseq
    %v9023 = vshrl.u32 %v9022, 7
    %v9024 = vsub.s32 %v1973, %v9023
    %v9025 = vrot.slane %v8837, %v9024
    %v9026 = vlaneseq
    %v9027 = vshrl.u32 %v9026, 7
    %v9028 = vsub.s32 %v1973, %v9027
    %v9029 = vrot.slane %v8840, %v9028
    %v9030 = vlaneseq
    %v9031 = vshrl.u32 %v9030, 7
    %v9032 = vsub.s32 %v1973, %v9031
    %v9033 = vrot.slane %v8843, %v9032
    %v9034 = vlaneseq
    %v9035 = vshrl.u32 %v9034, 7
    %v9036 = vsub.s32 %v1973, %v9035
    %v9037 = vrot.slane %v8846, %v9036
    %v9038 = vlaneseq
    %v9039 = vshrl.u32 %v9038, 7
    %v9040 = vsub.s32 %v1973, %v9039
    %v9041 = vrot.slane %v8849, %v9040
    %v9042 = vsel %vm1702, %v9017, %v9013
    %v9043 = vsel %vm1704, %v9021, %v9042
    %v9044 = vsel %vm1706, %v9025, %v9043
    %v9045 = vsel %vm1708, %v9029, %v9044
    %v9046 = vsel %vm1710, %v9033, %v9045
    %v9047 = vsel %vm1712, %v9037, %v9046
    %v9048 = vsel %vm1714, %v9041, %v9047
    %v9050 = vlaneseq
    %v9051 = vshrl.u32 %v9050, 7
    %v9052 = vsub.s32 %v2014, %v9051
    %v9053 = vrot.slane %v8828, %v9052
    %v9054 = vlaneseq
    %v9055 = vshrl.u32 %v9054, 7
    %v9056 = vsub.s32 %v2014, %v9055
    %v9057 = vrot.slane %v8831, %v9056
    %v9058 = vlaneseq
    %v9059 = vshrl.u32 %v9058, 7
    %v9060 = vsub.s32 %v2014, %v9059
    %v9061 = vrot.slane %v8834, %v9060
    %v9062 = vlaneseq
    %v9063 = vshrl.u32 %v9062, 7
    %v9064 = vsub.s32 %v2014, %v9063
    %v9065 = vrot.slane %v8837, %v9064
    %v9066 = vlaneseq
    %v9067 = vshrl.u32 %v9066, 7
    %v9068 = vsub.s32 %v2014, %v9067
    %v9069 = vrot.slane %v8840, %v9068
    %v9070 = vlaneseq
    %v9071 = vshrl.u32 %v9070, 7
    %v9072 = vsub.s32 %v2014, %v9071
    %v9073 = vrot.slane %v8843, %v9072
    %v9074 = vlaneseq
    %v9075 = vshrl.u32 %v9074, 7
    %v9076 = vsub.s32 %v2014, %v9075
    %v9077 = vrot.slane %v8846, %v9076
    %v9078 = vlaneseq
    %v9079 = vshrl.u32 %v9078, 7
    %v9080 = vsub.s32 %v2014, %v9079
    %v9081 = vrot.slane %v8849, %v9080
    %v9082 = vsel %vm1702, %v9057, %v9053
    %v9083 = vsel %vm1704, %v9061, %v9082
    %v9084 = vsel %vm1706, %v9065, %v9083
    %v9085 = vsel %vm1708, %v9069, %v9084
    %v9086 = vsel %vm1710, %v9073, %v9085
    %v9087 = vsel %vm1712, %v9077, %v9086
    %v9088 = vsel %vm1714, %v9081, %v9087
    %v9090 = vlaneseq
    %v9091 = vshrl.u32 %v9090, 7
    %v9092 = vsub.s32 %v2055, %v9091
    %v9093 = vrot.slane %v8828, %v9092
    %v9094 = vlaneseq
    %v9095 = vshrl.u32 %v9094, 7
    %v9096 = vsub.s32 %v2055, %v9095
    %v9097 = vrot.slane %v8831, %v9096
    %v9098 = vlaneseq
    %v9099 = vshrl.u32 %v9098, 7
    %v9100 = vsub.s32 %v2055, %v9099
    %v9101 = vrot.slane %v8834, %v9100
    %v9102 = vlaneseq
    %v9103 = vshrl.u32 %v9102, 7
    %v9104 = vsub.s32 %v2055, %v9103
    %v9105 = vrot.slane %v8837, %v9104
    %v9106 = vlaneseq
    %v9107 = vshrl.u32 %v9106, 7
    %v9108 = vsub.s32 %v2055, %v9107
    %v9109 = vrot.slane %v8840, %v9108
    %v9110 = vlaneseq
    %v9111 = vshrl.u32 %v9110, 7
    %v9112 = vsub.s32 %v2055, %v9111
    %v9113 = vrot.slane %v8843, %v9112
    %v9114 = vlaneseq
    %v9115 = vshrl.u32 %v9114, 7
    %v9116 = vsub.s32 %v2055, %v9115
    %v9117 = vrot.slane %v8846, %v9116
    %v9118 = vlaneseq
    %v9119 = vshrl.u32 %v9118, 7
    %v9120 = vsub.s32 %v2055, %v9119
    %v9121 = vrot.slane %v8849, %v9120
    %v9122 = vsel %vm1702, %v9097, %v9093
    %v9123 = vsel %vm1704, %v9101, %v9122
    %v9124 = vsel %vm1706, %v9105, %v9123
    %v9125 = vsel %vm1708, %v9109, %v9124
    %v9126 = vsel %vm1710, %v9113, %v9125
    %v9127 = vsel %vm1712, %v9117, %v9126
    %v9128 = vsel %vm1714, %v9121, %v9127
    %v9130 = vlaneseq
    %v9131 = vshrl.u32 %v9130, 7
    %v9132 = vsub.s32 %v2096, %v9131
    %v9133 = vrot.slane %v8828, %v9132
    %v9134 = vlaneseq
    %v9135 = vshrl.u32 %v9134, 7
    %v9136 = vsub.s32 %v2096, %v9135
    %v9137 = vrot.slane %v8831, %v9136
    %v9138 = vlaneseq
    %v9139 = vshrl.u32 %v9138, 7
    %v9140 = vsub.s32 %v2096, %v9139
    %v9141 = vrot.slane %v8834, %v9140
    %v9142 = vlaneseq
    %v9143 = vshrl.u32 %v9142, 7
    %v9144 = vsub.s32 %v2096, %v9143
    %v9145 = vrot.slane %v8837, %v9144
    %v9146 = vlaneseq
    %v9147 = vshrl.u32 %v9146, 7
    %v9148 = vsub.s32 %v2096, %v9147
    %v9149 = vrot.slane %v8840, %v9148
    %v9150 = vlaneseq
    %v9151 = vshrl.u32 %v9150, 7
    %v9152 = vsub.s32 %v2096, %v9151
    %v9153 = vrot.slane %v8843, %v9152
    %v9154 = vlaneseq
    %v9155 = vshrl.u32 %v9154, 7
    %v9156 = vsub.s32 %v2096, %v9155
    %v9157 = vrot.slane %v8846, %v9156
    %v9158 = vlaneseq
    %v9159 = vshrl.u32 %v9158, 7
    %v9160 = vsub.s32 %v2096, %v9159
    %v9161 = vrot.slane %v8849, %v9160
    %v9162 = vsel %vm1702, %v9137, %v9133
    %v9163 = vsel %vm1704, %v9141, %v9162
    %v9164 = vsel %vm1706, %v9145, %v9163
    %v9165 = vsel %vm1708, %v9149, %v9164
    %v9166 = vsel %vm1710, %v9153, %v9165
    %v9167 = vsel %vm1712, %v9157, %v9166
    %v9168 = vsel %vm1714, %v9161, %v9167
    %v9170 = vsel %vm136, %v8888, %v8928
    %v9171 = vsel %vm1075, %v9170, %v8968
    %v9172 = vsel %vm2139, %v9171, %v9008
    %v9173 = vsel %vm2141, %v9172, %v9048
    %v9174 = vsel %vm2143, %v9173, %v9088
    %v9175 = vsel %vm2145, %v9174, %v9128
    %v9176 = vsel %vm2147, %v9175, %v9168
    %v9177 = vmul.f32 %v9176, %v364
    %v9179 = vsel %vm2150, %v9177, 0
    %9181 = vmatprep.subr.mxu0 0.0
    %9182 = vmatpush1.msra.mxu0 0.0
    %9183 = vmatprep.subr.mxu0 0.0
    %9184 = vmatpush1.msra.mxu0 0.0
    %9185 = vmatprep.subr.mxu0 0.0
    %9186 = vmatpush1.msra.mxu0 0.0
    %9187 = vmatprep.subr.mxu0 0.0
    %9188 = vmatpush1.msra.mxu0 0.0
    %9189 = vmatprep.subr.mxu0 0.0
    %9190 = vmatpush1.msra.mxu0 0.0
    %9191 = vmatprep.subr.mxu0 0.0
    %9192 = vmatpush1.msra.mxu0 0.0
    %9193 = vmatprep.subr.mxu0 0.0
    %9194 = vmatpush1.msra.mxu0 0.0
    %9195 = vmatprep.subr.mxu0 0.0
    %9196 = vmatpush1.msra.mxu0 0.0
    %9197 = vmatprep.subr.mxu0 0.0
    %9198 = vmatpush1.msra.mxu0 %v363
    %9199 = vmatprep.subr.mxu0 0.0
    %9200 = vmatpush1.msra.mxu0 %v362
    %9201 = vmatprep.subr.mxu0 0.0
    %9202 = vmatpush1.msra.mxu0 %v361
    %9203 = vmatprep.subr.mxu0 0.0
    %9204 = vmatpush1.msra.mxu0 %v360
    %9205 = vmatprep.subr.mxu0 0.0
    %9206 = vmatpush1.msra.mxu0 %v359
    %9207 = vmatprep.subr.mxu0 0.0
    %9208 = vmatpush1.msra.mxu0 %v358
    %9209 = vmatprep.subr.mxu0 0.0
    %9210 = vmatpush1.msra.mxu0 %v357
    %9211 = vmatprep.subr.mxu0 0.0
    %9212 = vmatpush1.msra.mxu0 %v356
    %9213 = vmatprep.subr.mxu0 0.0
    %9214 = vmatpush2.msra.mxu0 0.0
    %9215 = vmatprep.subr.mxu0 0.0
    %9216 = vmatpush2.msra.mxu0 0.0
    %9217 = vmatprep.subr.mxu0 0.0
    %9218 = vmatpush2.msra.mxu0 0.0
    %9219 = vmatprep.subr.mxu0 0.0
    %9220 = vmatpush2.msra.mxu0 0.0
    %9221 = vmatprep.subr.mxu0 0.0
    %9222 = vmatpush2.msra.mxu0 0.0
    %9223 = vmatprep.subr.mxu0 0.0
    %9224 = vmatpush2.msra.mxu0 0.0
    %9225 = vmatprep.subr.mxu0 0.0
    %9226 = vmatpush2.msra.mxu0 0.0
    %9227 = vmatprep.subr.mxu0 0.0
    %9228 = vmatpush2.msra.mxu0 0.0
    %9229 = vmatprep.subr.mxu0 0.0
    %9230 = vmatpush2.msra.mxu0 0.0
    %9231 = vmatprep.subr.mxu0 0.0
    %9232 = vmatpush2.msra.mxu0 0.0
    %9233 = vmatprep.subr.mxu0 0.0
    %9234 = vmatpush2.msra.mxu0 0.0
    %9235 = vmatprep.subr.mxu0 0.0
    %9236 = vmatpush2.msra.mxu0 0.0
    %9237 = vmatprep.subr.mxu0 0.0
    %9238 = vmatpush2.msra.mxu0 0.0
    %9239 = vmatprep.subr.mxu0 0.0
    %9240 = vmatpush2.msra.mxu0 0.0
    %9241 = vmatprep.subr.mxu0 0.0
    %9242 = vmatpush2.msra.mxu0 0.0
    %9243 = vmatprep.subr.mxu0 0.0
    %9244 = vmatpush2.msra.mxu0 0.0
    %9245 = vmatprep.mubr.f32.mxu0 0.0
    %9246 = vmatmul.mubr.f32.gmra.mxu0 %v9179
    %v9247 = vpop.f32.mrf.mxu0
    %v9248 = vadd.f32 0.0, %v9247
    %v9249 = vpop.f32.mrf.mxu0
    %9250 = vdwg.mxu0
    %v9251 = vld [vmem:[#allocation11] sm:$0xff]
    %v9252 = vld [vmem:[#allocation11 + $0x8] sm:$0xff]
    %v9253 = vld [vmem:[#allocation11 + $0x10] sm:$0xff]
    %v9254 = vld [vmem:[#allocation11 + $0x18] sm:$0xff]
    %v9255 = vld [vmem:[#allocation11 + $0x20] sm:$0xff]
    %v9256 = vld [vmem:[#allocation11 + $0x28] sm:$0xff]
    %v9257 = vld [vmem:[#allocation11 + $0x30] sm:$0xff]
    %v9258 = vld [vmem:[#allocation11 + $0x38] sm:$0xff]
    %v9259 = vld [vmem:[#allocation11 + $0x40] sm:$0xff]
    %v9260 = vld [vmem:[#allocation11 + $0x48] sm:$0xff]
    %v9261 = vld [vmem:[#allocation11 + $0x50] sm:$0xff]
    %v9262 = vld [vmem:[#allocation11 + $0x58] sm:$0xff]
    %v9263 = vld [vmem:[#allocation11 + $0x60] sm:$0xff]
    %v9264 = vld [vmem:[#allocation11 + $0x68] sm:$0xff]
    %v9265 = vld [vmem:[#allocation11 + $0x70] sm:$0xff]
    %v9266 = vld [vmem:[#allocation11 + $0x78] sm:$0xff]
    %v9267 = vld [vmem:[#allocation11 + $0x80] sm:$0xff]
    %v9268 = vld [vmem:[#allocation11 + $0x88] sm:$0xff]
    %v9269 = vld [vmem:[#allocation11 + $0x90] sm:$0xff]
    %v9270 = vld [vmem:[#allocation11 + $0x98] sm:$0xff]
    %v9271 = vld [vmem:[#allocation11 + $0xa0] sm:$0xff]
    %v9272 = vld [vmem:[#allocation11 + $0xa8] sm:$0xff]
    %v9273 = vld [vmem:[#allocation11 + $0xb0] sm:$0xff]
    %v9274 = vld [vmem:[#allocation11 + $0xb8] sm:$0xff]
    %v9275 = vld [vmem:[#allocation11 + $0xc0] sm:$0xff]
    %v9276 = vld [vmem:[#allocation11 + $0xc8] sm:$0xff]
    %v9277 = vld [vmem:[#allocation11 + $0xd0] sm:$0xff]
    %v9278 = vld [vmem:[#allocation11 + $0xd8] sm:$0xff]
    %v9279 = vld [vmem:[#allocation11 + $0xe0] sm:$0xff]
    %v9280 = vld [vmem:[#allocation11 + $0xe8] sm:$0xff]
    %v9281 = vld [vmem:[#allocation11 + $0xf0] sm:$0xff]
    %v9282 = vld [vmem:[#allocation11 + $0xf8] sm:$0xff]
    %v9283 = vld [vmem:[#allocation11 + $0x100] sm:$0xff]
    %v9284 = vld [vmem:[#allocation11 + $0x108] sm:$0xff]
    %v9285 = vld [vmem:[#allocation11 + $0x110] sm:$0xff]
    %v9286 = vld [vmem:[#allocation11 + $0x118] sm:$0xff]
    %v9287 = vld [vmem:[#allocation11 + $0x120] sm:$0xff]
    %v9288 = vld [vmem:[#allocation11 + $0x128] sm:$0xff]
    %v9289 = vld [vmem:[#allocation11 + $0x130] sm:$0xff]
    %v9290 = vld [vmem:[#allocation11 + $0x138] sm:$0xff]
    %v9291 = vld [vmem:[#allocation11 + $0x140] sm:$0xff]
    %v9292 = vld [vmem:[#allocation11 + $0x148] sm:$0xff]
    %v9293 = vld [vmem:[#allocation11 + $0x150] sm:$0xff]
    %v9294 = vld [vmem:[#allocation11 + $0x158] sm:$0xff]
    %v9295 = vld [vmem:[#allocation11 + $0x160] sm:$0xff]
    %v9296 = vld [vmem:[#allocation11 + $0x168] sm:$0xff]
    %v9297 = vld [vmem:[#allocation11 + $0x170] sm:$0xff]
    %v9298 = vld [vmem:[#allocation11 + $0x178] sm:$0xff]
    %v9299 = vld [vmem:[#allocation11 + $0x180] sm:$0xff]
    %v9300 = vld [vmem:[#allocation11 + $0x188] sm:$0xff]
    %v9301 = vld [vmem:[#allocation11 + $0x190] sm:$0xff]
    %v9302 = vld [vmem:[#allocation11 + $0x198] sm:$0xff]
    %v9303 = vld [vmem:[#allocation11 + $0x1a0] sm:$0xff]
    %v9304 = vld [vmem:[#allocation11 + $0x1a8] sm:$0xff]
    %v9305 = vld [vmem:[#allocation11 + $0x1b0] sm:$0xff]
    %v9306 = vld [vmem:[#allocation11 + $0x1b8] sm:$0xff]
    %v9307 = vld [vmem:[#allocation11 + $0x1c0] sm:$0xff]
    %v9308 = vld [vmem:[#allocation11 + $0x1c8] sm:$0xff]
    %v9309 = vld [vmem:[#allocation11 + $0x1d0] sm:$0xff]
    %v9310 = vld [vmem:[#allocation11 + $0x1d8] sm:$0xff]
    %v9311 = vld [vmem:[#allocation11 + $0x1e0] sm:$0xff]
    %v9312 = vld [vmem:[#allocation11 + $0x1e8] sm:$0xff]
    %v9313 = vld [vmem:[#allocation11 + $0x1f0] sm:$0xff]
    %v9314 = vld [vmem:[#allocation11 + $0x1f8] sm:$0xff]
    %v9315 = vld [vmem:[#allocation11 + $0x200] sm:$0xff]
    %v9316 = vld [vmem:[#allocation11 + $0x208] sm:$0xff]
    %v9317 = vld [vmem:[#allocation11 + $0x210] sm:$0xff]
    %v9318 = vld [vmem:[#allocation11 + $0x218] sm:$0xff]
    %v9319 = vld [vmem:[#allocation11 + $0x220] sm:$0xff]
    %v9320 = vld [vmem:[#allocation11 + $0x228] sm:$0xff]
    %v9321 = vld [vmem:[#allocation11 + $0x230] sm:$0xff]
    %v9322 = vld [vmem:[#allocation11 + $0x238] sm:$0xff]
    %v9323 = vld [vmem:[#allocation11 + $0x240] sm:$0xff]
    %v9324 = vld [vmem:[#allocation11 + $0x248] sm:$0xff]
    %v9325 = vld [vmem:[#allocation11 + $0x250] sm:$0xff]
    %v9326 = vld [vmem:[#allocation11 + $0x258] sm:$0xff]
    %v9327 = vld [vmem:[#allocation11 + $0x260] sm:$0xff]
    %v9328 = vld [vmem:[#allocation11 + $0x268] sm:$0xff]
    %v9329 = vld [vmem:[#allocation11 + $0x270] sm:$0xff]
    %v9330 = vld [vmem:[#allocation11 + $0x278] sm:$0xff]
    %v9331 = vld [vmem:[#allocation11 + $0x280] sm:$0xff]
    %v9332 = vld [vmem:[#allocation11 + $0x288] sm:$0xff]
    %v9333 = vld [vmem:[#allocation11 + $0x290] sm:$0xff]
    %v9334 = vld [vmem:[#allocation11 + $0x298] sm:$0xff]
    %v9335 = vld [vmem:[#allocation11 + $0x2a0] sm:$0xff]
    %v9336 = vld [vmem:[#allocation11 + $0x2a8] sm:$0xff]
    %v9337 = vld [vmem:[#allocation11 + $0x2b0] sm:$0xff]
    %v9338 = vld [vmem:[#allocation11 + $0x2b8] sm:$0xff]
    %v9339 = vld [vmem:[#allocation11 + $0x2c0] sm:$0xff]
    %v9340 = vld [vmem:[#allocation11 + $0x2c8] sm:$0xff]
    %v9341 = vld [vmem:[#allocation11 + $0x2d0] sm:$0xff]
    %v9342 = vld [vmem:[#allocation11 + $0x2d8] sm:$0xff]
    %v9343 = vld [vmem:[#allocation11 + $0x2e0] sm:$0xff]
    %v9344 = vld [vmem:[#allocation11 + $0x2e8] sm:$0xff]
    %v9345 = vld [vmem:[#allocation11 + $0x2f0] sm:$0xff]
    %v9346 = vld [vmem:[#allocation11 + $0x2f8] sm:$0xff]
    %v9347 = vld [vmem:[#allocation11 + $0x300] sm:$0xff]
    %v9348 = vld [vmem:[#allocation11 + $0x308] sm:$0xff]
    %v9349 = vld [vmem:[#allocation11 + $0x310] sm:$0xff]
    %v9350 = vld [vmem:[#allocation11 + $0x318] sm:$0xff]
    %v9351 = vld [vmem:[#allocation11 + $0x320] sm:$0xff]
    %v9352 = vld [vmem:[#allocation11 + $0x328] sm:$0xff]
    %v9353 = vld [vmem:[#allocation11 + $0x330] sm:$0xff]
    %v9354 = vld [vmem:[#allocation11 + $0x338] sm:$0xff]
    %v9355 = vld [vmem:[#allocation11 + $0x340] sm:$0xff]
    %v9356 = vld [vmem:[#allocation11 + $0x348] sm:$0xff]
    %v9357 = vld [vmem:[#allocation11 + $0x350] sm:$0xff]
    %v9358 = vld [vmem:[#allocation11 + $0x358] sm:$0xff]
    %v9359 = vld [vmem:[#allocation11 + $0x360] sm:$0xff]
    %v9360 = vld [vmem:[#allocation11 + $0x368] sm:$0xff]
    %v9361 = vld [vmem:[#allocation11 + $0x370] sm:$0xff]
    %v9362 = vld [vmem:[#allocation11 + $0x378] sm:$0xff]
    %v9363 = vld [vmem:[#allocation11 + $0x380] sm:$0xff]
    %v9364 = vld [vmem:[#allocation11 + $0x388] sm:$0xff]
    %v9365 = vld [vmem:[#allocation11 + $0x390] sm:$0xff]
    %v9366 = vld [vmem:[#allocation11 + $0x398] sm:$0xff]
    %v9367 = vld [vmem:[#allocation11 + $0x3a0] sm:$0xff]
    %v9368 = vld [vmem:[#allocation11 + $0x3a8] sm:$0xff]
    %v9369 = vld [vmem:[#allocation11 + $0x3b0] sm:$0xff]
    %v9370 = vld [vmem:[#allocation11 + $0x3b8] sm:$0xff]
    %v9371 = vld [vmem:[#allocation11 + $0x3c0] sm:$0xff]
    %v9372 = vld [vmem:[#allocation11 + $0x3c8] sm:$0xff]
    %v9373 = vld [vmem:[#allocation11 + $0x3d0] sm:$0xff]
    %v9374 = vld [vmem:[#allocation11 + $0x3d8] sm:$0xff]
    %v9375 = vld [vmem:[#allocation11 + $0x3e0] sm:$0xff]
    %v9376 = vld [vmem:[#allocation11 + $0x3e8] sm:$0xff]
    %v9377 = vld [vmem:[#allocation11 + $0x3f0] sm:$0xff]
    %v9378 = vld [vmem:[#allocation11 + $0x3f8] sm:$0xff]
    %v9379 = vld [vmem:[#allocation11 + $0x400] sm:$0xff]
    %v9380 = vld [vmem:[#allocation11 + $0x408] sm:$0xff]
    %v9381 = vld [vmem:[#allocation11 + $0x410] sm:$0xff]
    %v9382 = vld [vmem:[#allocation11 + $0x418] sm:$0xff]
    %v9383 = vld [vmem:[#allocation11 + $0x420] sm:$0xff]
    %v9384 = vld [vmem:[#allocation11 + $0x428] sm:$0xff]
    %v9385 = vld [vmem:[#allocation11 + $0x430] sm:$0xff]
    %v9386 = vld [vmem:[#allocation11 + $0x438] sm:$0xff]
    %v9387 = vld [vmem:[#allocation11 + $0x440] sm:$0xff]
    %v9388 = vld [vmem:[#allocation11 + $0x448] sm:$0xff]
    %v9389 = vld [vmem:[#allocation11 + $0x450] sm:$0xff]
    %v9390 = vld [vmem:[#allocation11 + $0x458] sm:$0xff]
    %v9391 = vld [vmem:[#allocation11 + $0x460] sm:$0xff]
    %v9392 = vld [vmem:[#allocation11 + $0x468] sm:$0xff]
    %v9393 = vld [vmem:[#allocation11 + $0x470] sm:$0xff]
    %v9394 = vld [vmem:[#allocation11 + $0x478] sm:$0xff]
    %v9395 = vld [vmem:[#allocation11 + $0x480] sm:$0xff]
    %v9396 = vld [vmem:[#allocation11 + $0x488] sm:$0xff]
    %v9397 = vld [vmem:[#allocation11 + $0x490] sm:$0xff]
    %v9398 = vld [vmem:[#allocation11 + $0x498] sm:$0xff]
    %v9399 = vld [vmem:[#allocation11 + $0x4a0] sm:$0xff]
    %v9400 = vld [vmem:[#allocation11 + $0x4a8] sm:$0xff]
    %v9401 = vld [vmem:[#allocation11 + $0x4b0] sm:$0xff]
    %v9402 = vld [vmem:[#allocation11 + $0x4b8] sm:$0xff]
    %v9403 = vld [vmem:[#allocation11 + $0x4c0] sm:$0xff]
    %v9404 = vld [vmem:[#allocation11 + $0x4c8] sm:$0xff]
    %v9405 = vld [vmem:[#allocation11 + $0x4d0] sm:$0xff]
    %v9406 = vld [vmem:[#allocation11 + $0x4d8] sm:$0xff]
    %v9407 = vld [vmem:[#allocation11 + $0x4e0] sm:$0xff]
    %v9408 = vld [vmem:[#allocation11 + $0x4e8] sm:$0xff]
    %v9409 = vld [vmem:[#allocation11 + $0x4f0] sm:$0xff]
    %v9410 = vld [vmem:[#allocation11 + $0x4f8] sm:$0xff]
    %v9411 = vld [vmem:[#allocation11 + $0x500] sm:$0xff]
    %v9412 = vld [vmem:[#allocation11 + $0x508] sm:$0xff]
    %v9413 = vld [vmem:[#allocation11 + $0x510] sm:$0xff]
    %v9414 = vld [vmem:[#allocation11 + $0x518] sm:$0xff]
    %v9415 = vld [vmem:[#allocation11 + $0x520] sm:$0xff]
    %v9416 = vld [vmem:[#allocation11 + $0x528] sm:$0xff]
    %v9417 = vld [vmem:[#allocation11 + $0x530] sm:$0xff]
    %v9418 = vld [vmem:[#allocation11 + $0x538] sm:$0xff]
    %v9419 = vld [vmem:[#allocation11 + $0x540] sm:$0xff]
    %v9420 = vld [vmem:[#allocation11 + $0x548] sm:$0xff]
    %v9421 = vld [vmem:[#allocation11 + $0x550] sm:$0xff]
    %v9422 = vld [vmem:[#allocation11 + $0x558] sm:$0xff]
    %v9423 = vld [vmem:[#allocation11 + $0x560] sm:$0xff]
    %v9424 = vld [vmem:[#allocation11 + $0x568] sm:$0xff]
    %v9425 = vld [vmem:[#allocation11 + $0x570] sm:$0xff]
    %v9426 = vld [vmem:[#allocation11 + $0x578] sm:$0xff]
    %v9427 = vld [vmem:[#allocation11 + $0x580] sm:$0xff]
    %v9428 = vld [vmem:[#allocation11 + $0x588] sm:$0xff]
    %v9429 = vld [vmem:[#allocation11 + $0x590] sm:$0xff]
    %v9430 = vld [vmem:[#allocation11 + $0x598] sm:$0xff]
    %v9431 = vld [vmem:[#allocation11 + $0x5a0] sm:$0xff]
    %v9432 = vld [vmem:[#allocation11 + $0x5a8] sm:$0xff]
    %v9433 = vld [vmem:[#allocation11 + $0x5b0] sm:$0xff]
    %v9434 = vld [vmem:[#allocation11 + $0x5b8] sm:$0xff]
    %v9435 = vld [vmem:[#allocation11 + $0x5c0] sm:$0xff]
    %v9436 = vld [vmem:[#allocation11 + $0x5c8] sm:$0xff]
    %v9437 = vld [vmem:[#allocation11 + $0x5d0] sm:$0xff]
    %v9438 = vld [vmem:[#allocation11 + $0x5d8] sm:$0xff]
    %v9439 = vld [vmem:[#allocation11 + $0x5e0] sm:$0xff]
    %v9440 = vld [vmem:[#allocation11 + $0x5e8] sm:$0xff]
    %v9441 = vld [vmem:[#allocation11 + $0x5f0] sm:$0xff]
    %v9442 = vld [vmem:[#allocation11 + $0x5f8] sm:$0xff]
    %9443 = vmatprep.subr.mxu0 %v9312
    %9444 = vmatpush1.msra.mxu0 %v9311
    %9445 = vmatprep.subr.mxu0 %v9308
    %9446 = vmatpush1.msra.mxu0 %v9307
    %9447 = vmatprep.subr.mxu0 %v9304
    %9448 = vmatpush1.msra.mxu0 %v9303
    %9449 = vmatprep.subr.mxu0 %v9300
    %9450 = vmatpush1.msra.mxu0 %v9299
    %9451 = vmatprep.subr.mxu0 %v9296
    %9452 = vmatpush1.msra.mxu0 %v9295
    %9453 = vmatprep.subr.mxu0 %v9292
    %9454 = vmatpush1.msra.mxu0 %v9291
    %9455 = vmatprep.subr.mxu0 %v9288
    %9456 = vmatpush1.msra.mxu0 %v9287
    %9457 = vmatprep.subr.mxu0 %v9284
    %9458 = vmatpush1.msra.mxu0 %v9283
    %9459 = vmatprep.subr.mxu0 %v9280
    %9460 = vmatpush1.msra.mxu0 %v9279
    %9461 = vmatprep.subr.mxu0 %v9276
    %9462 = vmatpush1.msra.mxu0 %v9275
    %9463 = vmatprep.subr.mxu0 %v9272
    %9464 = vmatpush1.msra.mxu0 %v9271
    %9465 = vmatprep.subr.mxu0 %v9268
    %9466 = vmatpush1.msra.mxu0 %v9267
    %9467 = vmatprep.subr.mxu0 %v9264
    %9468 = vmatpush1.msra.mxu0 %v9263
    %9469 = vmatprep.subr.mxu0 %v9260
    %9470 = vmatpush1.msra.mxu0 %v9259
    %9471 = vmatprep.subr.mxu0 %v9256
    %9472 = vmatpush1.msra.mxu0 %v9255
    %9473 = vmatprep.subr.mxu0 %v9252
    %9474 = vmatpush1.msra.mxu0 %v9251
    %9475 = vmatprep.subr.mxu0 %v9376
    %9476 = vmatpush2.msra.mxu0 %v9375
    %9477 = vmatprep.subr.mxu0 %v9372
    %9478 = vmatpush2.msra.mxu0 %v9371
    %9479 = vmatprep.subr.mxu0 %v9368
    %9480 = vmatpush2.msra.mxu0 %v9367
    %9481 = vmatprep.subr.mxu0 %v9364
    %9482 = vmatpush2.msra.mxu0 %v9363
    %9483 = vmatprep.subr.mxu0 %v9360
    %9484 = vmatpush2.msra.mxu0 %v9359
    %9485 = vmatprep.subr.mxu0 %v9356
    %9486 = vmatpush2.msra.mxu0 %v9355
    %9487 = vmatprep.subr.mxu0 %v9352
    %9488 = vmatpush2.msra.mxu0 %v9351
    %9489 = vmatprep.subr.mxu0 %v9348
    %9490 = vmatpush2.msra.mxu0 %v9347
    %9491 = vmatprep.subr.mxu0 %v9344
    %9492 = vmatpush2.msra.mxu0 %v9343
    %9493 = vmatprep.subr.mxu0 %v9340
    %9494 = vmatpush2.msra.mxu0 %v9339
    %9495 = vmatprep.subr.mxu0 %v9336
    %9496 = vmatpush2.msra.mxu0 %v9335
    %9497 = vmatprep.subr.mxu0 %v9332
    %9498 = vmatpush2.msra.mxu0 %v9331
    %9499 = vmatprep.subr.mxu0 %v9328
    %9500 = vmatpush2.msra.mxu0 %v9327
    %9501 = vmatprep.subr.mxu0 %v9324
    %9502 = vmatpush2.msra.mxu0 %v9323
    %9503 = vmatprep.subr.mxu0 %v9320
    %9504 = vmatpush2.msra.mxu0 %v9319
    %9505 = vmatprep.subr.mxu0 %v9316
    %9506 = vmatpush2.msra.mxu0 %v9315
    %9507 = vmatprep.mubr.f32.mxu0 %v9248
    %9508 = vmatmul.mubr.f32.gmra.mxu0 %v8022
    %v9509 = vpop.f32.mrf.mxu0
    %v9510 = vadd.f32 %v434, %v9509
    %v9511 = vpop.f32.mrf.mxu0
    %v9512 = vadd.f32 %v438, %v9511
    %9513 = vdwg.mxu0
    %9514 = vmatprep.subr.mxu0 %v9440
    %9515 = vmatpush1.msra.mxu0 %v9439
    %9516 = vmatprep.subr.mxu0 %v9436
    %9517 = vmatpush1.msra.mxu0 %v9435
    %9518 = vmatprep.subr.mxu0 %v9432
    %9519 = vmatpush1.msra.mxu0 %v9431
    %9520 = vmatprep.subr.mxu0 %v9428
    %9521 = vmatpush1.msra.mxu0 %v9427
    %9522 = vmatprep.subr.mxu0 %v9424
    %9523 = vmatpush1.msra.mxu0 %v9423
    %9524 = vmatprep.subr.mxu0 %v9420
    %9525 = vmatpush1.msra.mxu0 %v9419
    %9526 = vmatprep.subr.mxu0 %v9416
    %9527 = vmatpush1.msra.mxu0 %v9415
    %9528 = vmatprep.subr.mxu0 %v9412
    %9529 = vmatpush1.msra.mxu0 %v9411
    %9530 = vmatprep.subr.mxu0 %v9408
    %9531 = vmatpush1.msra.mxu0 %v9407
    %9532 = vmatprep.subr.mxu0 %v9404
    %9533 = vmatpush1.msra.mxu0 %v9403
    %9534 = vmatprep.subr.mxu0 %v9400
    %9535 = vmatpush1.msra.mxu0 %v9399
    %9536 = vmatprep.subr.mxu0 %v9396
    %9537 = vmatpush1.msra.mxu0 %v9395
    %9538 = vmatprep.subr.mxu0 %v9392
    %9539 = vmatpush1.msra.mxu0 %v9391
    %9540 = vmatprep.subr.mxu0 %v9388
    %9541 = vmatpush1.msra.mxu0 %v9387
    %9542 = vmatprep.subr.mxu0 %v9384
    %9543 = vmatpush1.msra.mxu0 %v9383
    %9544 = vmatprep.subr.mxu0 %v9380
    %9545 = vmatpush1.msra.mxu0 %v9379
    %9546 = vmatprep.subr.mxu0 0.0
    %9547 = vmatpush2.msra.mxu0 0.0
    %9548 = vmatprep.subr.mxu0 0.0
    %9549 = vmatpush2.msra.mxu0 0.0
    %9550 = vmatprep.subr.mxu0 0.0
    %9551 = vmatpush2.msra.mxu0 0.0
    %9552 = vmatprep.subr.mxu0 0.0
    %9553 = vmatpush2.msra.mxu0 0.0
    %9554 = vmatprep.subr.mxu0 0.0
    %9555 = vmatpush2.msra.mxu0 0.0
    %9556 = vmatprep.subr.mxu0 0.0
    %9557 = vmatpush2.msra.mxu0 0.0
    %9558 = vmatprep.subr.mxu0 0.0
    %9559 = vmatpush2.msra.mxu0 0.0
    %9560 = vmatprep.subr.mxu0 0.0
    %9561 = vmatpush2.msra.mxu0 0.0
    %9562 = vmatprep.subr.mxu0 0.0
    %9563 = vmatpush2.msra.mxu0 0.0
    %9564 = vmatprep.subr.mxu0 0.0
    %9565 = vmatpush2.msra.mxu0 0.0
    %9566 = vmatprep.subr.mxu0 0.0
    %9567 = vmatpush2.msra.mxu0 0.0
    %9568 = vmatprep.subr.mxu0 0.0
    %9569 = vmatpush2.msra.mxu0 0.0
    %9570 = vmatprep.subr.mxu0 0.0
    %9571 = vmatpush2.msra.mxu0 0.0
    %9572 = vmatprep.subr.mxu0 0.0
    %9573 = vmatpush2.msra.mxu0 0.0
    %9574 = vmatprep.subr.mxu0 0.0
    %9575 = vmatpush2.msra.mxu0 0.0
    %9576 = vmatprep.subr.mxu0 0.0
    %9577 = vmatpush2.msra.mxu0 0.0
    %9578 = vmatprep.mubr.f32.mxu0 0.0
    %9579 = vmatmul.mubr.f32.gmra.mxu0 %v7413
    %v9580 = vpop.f32.mrf.mxu0
    %v9581 = vadd.f32 %v9510, %v9580
    %v9582 = vpop.f32.mrf.mxu0
    %v9583 = vadd.f32 %v9512, %v9582
    %9584 = vdwg.mxu0
    %9585 = vmatprep.subr.mxu0 %v9314
    %9586 = vmatpush1.msra.mxu0 %v9313
    %9587 = vmatprep.subr.mxu0 %v9310
    %9588 = vmatpush1.msra.mxu0 %v9309
    %9589 = vmatprep.subr.mxu0 %v9306
    %9590 = vmatpush1.msra.mxu0 %v9305
    %9591 = vmatprep.subr.mxu0 %v9302
    %9592 = vmatpush1.msra.mxu0 %v9301
    %9593 = vmatprep.subr.mxu0 %v9298
    %9594 = vmatpush1.msra.mxu0 %v9297
    %9595 = vmatprep.subr.mxu0 %v9294
    %9596 = vmatpush1.msra.mxu0 %v9293
    %9597 = vmatprep.subr.mxu0 %v9290
    %9598 = vmatpush1.msra.mxu0 %v9289
    %9599 = vmatprep.subr.mxu0 %v9286
    %9600 = vmatpush1.msra.mxu0 %v9285
    %9601 = vmatprep.subr.mxu0 %v9282
    %9602 = vmatpush1.msra.mxu0 %v9281
    %9603 = vmatprep.subr.mxu0 %v9278
    %9604 = vmatpush1.msra.mxu0 %v9277
    %9605 = vmatprep.subr.mxu0 %v9274
    %9606 = vmatpush1.msra.mxu0 %v9273
    %9607 = vmatprep.subr.mxu0 %v9270
    %9608 = vmatpush1.msra.mxu0 %v9269
    %9609 = vmatprep.subr.mxu0 %v9266
    %9610 = vmatpush1.msra.mxu0 %v9265
    %9611 = vmatprep.subr.mxu0 %v9262
    %9612 = vmatpush1.msra.mxu0 %v9261
    %9613 = vmatprep.subr.mxu0 %v9258
    %9614 = vmatpush1.msra.mxu0 %v9257
    %9615 = vmatprep.subr.mxu0 %v9254
    %9616 = vmatpush1.msra.mxu0 %v9253
    %9617 = vmatprep.subr.mxu0 %v9378
    %9618 = vmatpush2.msra.mxu0 %v9377
    %9619 = vmatprep.subr.mxu0 %v9374
    %9620 = vmatpush2.msra.mxu0 %v9373
    %9621 = vmatprep.subr.mxu0 %v9370
    %9622 = vmatpush2.msra.mxu0 %v9369
    %9623 = vmatprep.subr.mxu0 %v9366
    %9624 = vmatpush2.msra.mxu0 %v9365
    %9625 = vmatprep.subr.mxu0 %v9362
    %9626 = vmatpush2.msra.mxu0 %v9361
    %9627 = vmatprep.subr.mxu0 %v9358
    %9628 = vmatpush2.msra.mxu0 %v9357
    %9629 = vmatprep.subr.mxu0 %v9354
    %9630 = vmatpush2.msra.mxu0 %v9353
    %9631 = vmatprep.subr.mxu0 %v9350
    %9632 = vmatpush2.msra.mxu0 %v9349
    %9633 = vmatprep.subr.mxu0 %v9346
    %9634 = vmatpush2.msra.mxu0 %v9345
    %9635 = vmatprep.subr.mxu0 %v9342
    %9636 = vmatpush2.msra.mxu0 %v9341
    %9637 = vmatprep.subr.mxu0 %v9338
    %9638 = vmatpush2.msra.mxu0 %v9337
    %9639 = vmatprep.subr.mxu0 %v9334
    %9640 = vmatpush2.msra.mxu0 %v9333
    %9641 = vmatprep.subr.mxu0 %v9330
    %9642 = vmatpush2.msra.mxu0 %v9329
    %9643 = vmatprep.subr.mxu0 %v9326
    %9644 = vmatpush2.msra.mxu0 %v9325
    %9645 = vmatprep.subr.mxu0 %v9322
    %9646 = vmatpush2.msra.mxu0 %v9321
    %9647 = vmatprep.subr.mxu0 %v9318
    %9648 = vmatpush2.msra.mxu0 %v9317
    %9649 = vmatprep.mubr.f32.mxu0 %v9248
    %9650 = vmatmul.mubr.f32.gmra.mxu0 %v8022
    %v9651 = vpop.f32.mrf.mxu0
    %v9652 = vadd.f32 %v442, %v9651
    %v9653 = vpop.f32.mrf.mxu0
    %v9654 = vadd.f32 %v446, %v9653
    %9655 = vdwg.mxu0
    %9656 = vmatprep.subr.mxu0 %v9442
    %9657 = vmatpush1.msra.mxu0 %v9441
    %9658 = vmatprep.subr.mxu0 %v9438
    %9659 = vmatpush1.msra.mxu0 %v9437
    %9660 = vmatprep.subr.mxu0 %v9434
    %9661 = vmatpush1.msra.mxu0 %v9433
    %9662 = vmatprep.subr.mxu0 %v9430
    %9663 = vmatpush1.msra.mxu0 %v9429
    %9664 = vmatprep.subr.mxu0 %v9426
    %9665 = vmatpush1.msra.mxu0 %v9425
    %9666 = vmatprep.subr.mxu0 %v9422
    %9667 = vmatpush1.msra.mxu0 %v9421
    %9668 = vmatprep.subr.mxu0 %v9418
    %9669 = vmatpush1.msra.mxu0 %v9417
    %9670 = vmatprep.subr.mxu0 %v9414
    %9671 = vmatpush1.msra.mxu0 %v9413
    %9672 = vmatprep.subr.mxu0 %v9410
    %9673 = vmatpush1.msra.mxu0 %v9409
    %9674 = vmatprep.subr.mxu0 %v9406
    %9675 = vmatpush1.msra.mxu0 %v9405
    %9676 = vmatprep.subr.mxu0 %v9402
    %9677 = vmatpush1.msra.mxu0 %v9401
    %9678 = vmatprep.subr.mxu0 %v9398
    %9679 = vmatpush1.msra.mxu0 %v9397
    %9680 = vmatprep.subr.mxu0 %v9394
    %9681 = vmatpush1.msra.mxu0 %v9393
    %9682 = vmatprep.subr.mxu0 %v9390
    %9683 = vmatpush1.msra.mxu0 %v9389
    %9684 = vmatprep.subr.mxu0 %v9386
    %9685 = vmatpush1.msra.mxu0 %v9385
    %9686 = vmatprep.subr.mxu0 %v9382
    %9687 = vmatpush1.msra.mxu0 %v9381
    %9688 = vmatprep.subr.mxu0 0.0
    %9689 = vmatpush2.msra.mxu0 0.0
    %9690 = vmatprep.subr.mxu0 0.0
    %9691 = vmatpush2.msra.mxu0 0.0
    %9692 = vmatprep.subr.mxu0 0.0
    %9693 = vmatpush2.msra.mxu0 0.0
    %9694 = vmatprep.subr.mxu0 0.0
    %9695 = vmatpush2.msra.mxu0 0.0
    %9696 = vmatprep.subr.mxu0 0.0
    %9697 = vmatpush2.msra.mxu0 0.0
    %9698 = vmatprep.subr.mxu0 0.0
    %9699 = vmatpush2.msra.mxu0 0.0
    %9700 = vmatprep.subr.mxu0 0.0
    %9701 = vmatpush2.msra.mxu0 0.0
    %9702 = vmatprep.subr.mxu0 0.0
    %9703 = vmatpush2.msra.mxu0 0.0
    %9704 = vmatprep.subr.mxu0 0.0
    %9705 = vmatpush2.msra.mxu0 0.0
    %9706 = vmatprep.subr.mxu0 0.0
    %9707 = vmatpush2.msra.mxu0 0.0
    %9708 = vmatprep.subr.mxu0 0.0
    %9709 = vmatpush2.msra.mxu0 0.0
    %9710 = vmatprep.subr.mxu0 0.0
    %9711 = vmatpush2.msra.mxu0 0.0
    %9712 = vmatprep.subr.mxu0 0.0
    %9713 = vmatpush2.msra.mxu0 0.0
    %9714 = vmatprep.subr.mxu0 0.0
    %9715 = vmatpush2.msra.mxu0 0.0
    %9716 = vmatprep.subr.mxu0 0.0
    %9717 = vmatpush2.msra.mxu0 0.0
    %9718 = vmatprep.subr.mxu0 0.0
    %9719 = vmatpush2.msra.mxu0 0.0
    %9720 = vmatprep.mubr.f32.mxu0 0.0
    %9721 = vmatmul.mubr.f32.gmra.mxu0 %v7413
    %v9722 = vpop.f32.mrf.mxu0
    %v9723 = vadd.f32 %v9652, %v9722
    %v9724 = vpop.f32.mrf.mxu0
    %v9725 = vadd.f32 %v9654, %v9724
    %9726 = vdwg.mxu0
    %v9727 = vxor.u32 %v9581, 2147483648
    %v9728 = vmul.f32 %v9727, 1.442695
    %v9729 = vpow.pop %v9728
    %v9730 = vadd.f32 %v9729, 1.0
    %v9731 = vrcp.pop %v9730
    %v9732 = vmul.f32 1.0, %v9731
    %v9733 = vxor.u32 %v9583, 2147483648
    %v9734 = vmul.f32 %v9733, 1.442695
    %v9735 = vpow.pop %v9734
    %v9736 = vadd.f32 %v9735, 1.0
    %v9737 = vrcp.pop %v9736
    %v9738 = vmul.f32 1.0, %v9737
    %v9739 = vtanh.pop %v9723
    %v9740 = vxor.u32 %v9725, 2147483648
    %v9741 = vmul.f32 %v9740, 1.442695
    %v9742 = vpow.pop %v9741
    %v9743 = vadd.f32 %v9742, 1.0
    %v9744 = vrcp.pop %v9743
    %v9745 = vmul.f32 1.0, %v9744
    %v9746 = vmul.f32 %v9738, %v7411
    %v9747 = vmul.f32 %v9732, %v9739
    %v9748 = vadd.f32 %v9746, %v9747
    %v9749 = vtanh.pop %v9748
    %v9750 = vmul.f32 %v9745, %v9749
    %v9751 = vld [vmem:[%s12] sm:$0xff]
    %v9752 = vld [vmem:[%s12 + $0x8] sm:$0xff]
    %v9753 = vld [vmem:[%s12 + $0x10] sm:$0xff]
    %v9754 = vld [vmem:[%s12 + $0x18] sm:$0xff]
    %v9755 = vld [vmem:[%s12 + $0x20] sm:$0xff]
    %v9756 = vld [vmem:[%s12 + $0x28] sm:$0xff]
    %v9757 = vld [vmem:[%s12 + $0x30] sm:$0xff]
    %v9758 = vld [vmem:[%s12 + $0x38] sm:$0xff]
    %v9759 = vld [vmem:[%s12 + $0x40] sm:$0xff]
    %v9760 = vld [vmem:[%s12 + $0x48] sm:$0xff]
    %v9761 = vld [vmem:[%s12 + $0x50] sm:$0xff]
    %v9762 = vld [vmem:[%s12 + $0x58] sm:$0xff]
    %v9763 = vld [vmem:[%s12 + $0x60] sm:$0xff]
    %v9764 = vld [vmem:[%s12 + $0x68] sm:$0xff]
    %v9765 = vld [vmem:[%s12 + $0x70] sm:$0xff]
    %v9766 = vld [vmem:[%s12 + $0x78] sm:$0xff]
    %v9767 = vld [vmem:[%s12 + $0x80] sm:$0xff]
    %v9768 = vld [vmem:[%s12 + $0x88] sm:$0xff]
    %v9769 = vld [vmem:[%s12 + $0x90] sm:$0xff]
    %v9770 = vld [vmem:[%s12 + $0x98] sm:$0xff]
    %v9771 = vld [vmem:[%s12 + $0xa0] sm:$0xff]
    %v9772 = vld [vmem:[%s12 + $0xa8] sm:$0xff]
    %v9773 = vld [vmem:[%s12 + $0xb0] sm:$0xff]
    %v9774 = vld [vmem:[%s12 + $0xb8] sm:$0xff]
    %v9775 = vld [vmem:[%s12 + $0xc0] sm:$0xff]
    %v9776 = vld [vmem:[%s12 + $0xc8] sm:$0xff]
    %v9777 = vld [vmem:[%s12 + $0xd0] sm:$0xff]
    %v9778 = vld [vmem:[%s12 + $0xd8] sm:$0xff]
    %v9779 = vld [vmem:[%s12 + $0xe0] sm:$0xff]
    %v9780 = vld [vmem:[%s12 + $0xe8] sm:$0xff]
    %v9781 = vld [vmem:[%s12 + $0xf0] sm:$0xff]
    %v9782 = vld [vmem:[%s12 + $0xf8] sm:$0xff]
    %9783 = vmatprep.subr.mxu0 0.0
    %9784 = vmatpush1.msra.mxu0 %v9766
    %9785 = vmatprep.subr.mxu0 0.0
    %9786 = vmatpush1.msra.mxu0 %v9765
    %9787 = vmatprep.subr.mxu0 0.0
    %9788 = vmatpush1.msra.mxu0 %v9764
    %9789 = vmatprep.subr.mxu0 0.0
    %9790 = vmatpush1.msra.mxu0 %v9763
    %9791 = vmatprep.subr.mxu0 0.0
    %9792 = vmatpush1.msra.mxu0 %v9762
    %9793 = vmatprep.subr.mxu0 0.0
    %9794 = vmatpush1.msra.mxu0 %v9761
    %9795 = vmatprep.subr.mxu0 0.0
    %9796 = vmatpush1.msra.mxu0 %v9760
    %9797 = vmatprep.subr.mxu0 0.0
    %9798 = vmatpush1.msra.mxu0 %v9759
    %9799 = vmatprep.subr.mxu0 0.0
    %9800 = vmatpush1.msra.mxu0 %v9758
    %9801 = vmatprep.subr.mxu0 0.0
    %9802 = vmatpush1.msra.mxu0 %v9757
    %9803 = vmatprep.subr.mxu0 0.0
    %9804 = vmatpush1.msra.mxu0 %v9756
    %9805 = vmatprep.subr.mxu0 0.0
    %9806 = vmatpush1.msra.mxu0 %v9755
    %9807 = vmatprep.subr.mxu0 0.0
    %9808 = vmatpush1.msra.mxu0 %v9754
    %9809 = vmatprep.subr.mxu0 0.0
    %9810 = vmatpush1.msra.mxu0 %v9753
    %9811 = vmatprep.subr.mxu0 0.0
    %9812 = vmatpush1.msra.mxu0 %v9752
    %9813 = vmatprep.subr.mxu0 0.0
    %9814 = vmatpush1.msra.mxu0 %v9751
    %9815 = vmatprep.subr.mxu0 0.0
    %9816 = vmatpush2.msra.mxu0 %v9782
    %9817 = vmatprep.subr.mxu0 0.0
    %9818 = vmatpush2.msra.mxu0 %v9781
    %9819 = vmatprep.subr.mxu0 0.0
    %9820 = vmatpush2.msra.mxu0 %v9780
    %9821 = vmatprep.subr.mxu0 0.0
    %9822 = vmatpush2.msra.mxu0 %v9779
    %9823 = vmatprep.subr.mxu0 0.0
    %9824 = vmatpush2.msra.mxu0 %v9778
    %9825 = vmatprep.subr.mxu0 0.0
    %9826 = vmatpush2.msra.mxu0 %v9777
    %9827 = vmatprep.subr.mxu0 0.0
    %9828 = vmatpush2.msra.mxu0 %v9776
    %9829 = vmatprep.subr.mxu0 0.0
    %9830 = vmatpush2.msra.mxu0 %v9775
    %9831 = vmatprep.subr.mxu0 0.0
    %9832 = vmatpush2.msra.mxu0 %v9774
    %9833 = vmatprep.subr.mxu0 0.0
    %9834 = vmatpush2.msra.mxu0 %v9773
    %9835 = vmatprep.subr.mxu0 0.0
    %9836 = vmatpush2.msra.mxu0 %v9772
    %9837 = vmatprep.subr.mxu0 0.0
    %9838 = vmatpush2.msra.mxu0 %v9771
    %9839 = vmatprep.subr.mxu0 0.0
    %9840 = vmatpush2.msra.mxu0 %v9770
    %9841 = vmatprep.subr.mxu0 0.0
    %9842 = vmatpush2.msra.mxu0 %v9769
    %9843 = vmatprep.subr.mxu0 0.0
    %9844 = vmatpush2.msra.mxu0 %v9768
    %9845 = vmatprep.subr.mxu0 0.0
    %9846 = vmatpush2.msra.mxu0 %v9767
    %9847 = vmatprep.mubr.f32.mxu0 %v9248
    %9848 = vmatmul.mubr.f32.gmra.mxu0 %v9750
    %v9849 = vpop.f32.mrf.mxu0
    %v9850 = vadd.f32 %v456, %v9849
    %v9851 = vpop.f32.mrf.mxu0
    %9852 = vdwg.mxu0
    %v9853 = vsel %vm2826, %v9850, 0.0
    %v9854 = vsel %vm1075, %v9853, %v8968
    %v9855 = vsel %vm2139, %v9854, 0.0
    %s9856 = scalar_lea.vmem [#allocation14], 24
    %9857 = vst [vmem:[%s9856] sm:$0xff] %v9855
    // Predicated region
    $region86: #{tpu_custom_call.1} parent=1 // pred_check
      _
    $region87: #{tpu_custom_call.1} parent=1 // pred_check_branch
      %9859 = sbr.rel (0) target = $region89
    $region88: #{tpu_custom_call.1} parent=1 // pred_region
      %s9861 = ssub.s32 512, 512
      %9862 = vsyncadd [#allocation5], %s9861
      %s9863 = sshll.u32 [#allocation14], 4
      %s9864 = int_to_ptr.vmem [resolvable:$true] %s9863
      %9869 = dma.vmem_to_hbm [thread:$0]  %s9864, 512, %s15, [#allocation5], 128, 128, 8
    $region89: #{tpu_custom_call.1} parent=1 // pred_fallthru
      _
    // Predicated region
    $region90: #{tpu_custom_call.1} parent=1 // pred_check
      _
    $region91: #{tpu_custom_call.1} parent=1 // pred_check_branch
      %9871 = sbr.rel (0) target = $region93
    $region92: #{tpu_custom_call.1} parent=1 // pred_region
      %9872 = dma.done [#allocation5], 512
    $region93: #{tpu_custom_call.1} parent=1 // pred_fallthru
      _
    %9873 = vsyncpa [#allocation4], 1
    %9874 = vsyncpa [#allocation7], 1
    %9875 = vsyncpa [#allocation10], 1
    %9876 = vsyncpa [#allocation13], 1
    %9877 = vsyncpa [#allocation5], 1

</llo_original>
